<compile_context>
chip_gen: v7x
topology: tpu7x:2x2x1
jax: 0.10.0
libtpu: 0.0.40
codegen_flags: <defaults>
</compile_context>

<pallas_src>
import jax
import jax.numpy as jnp
from jax.experimental import pallas as pl
from jax.experimental.pallas import tpu as pltpu


def _ln12_kernel(x_ref, w1_ref, b1_ref, w2_ref, o_ref):
    """Grid = (num_cores, nj).

    Axis 0 ("parallel"): splits the shared 4096 (ln1-out / ln2-in) dim across
    TensorCores — each core owns a disjoint set of w1 columns / w2 rows.
    Axis 1 ("arbitrary"): streams that core's share in tk-wide chunks.

    Per step:  o_ref[c] += relu(x @ w1[:, chunk] + b1[chunk]) @ w2[chunk, :]
    o_ref[c] (this core's pre-bias, pre-ReLU partial of ln2's output) has a
    constant index map across the j axis, so it stays VMEM-resident and
    doubles as the fp32 accumulator (no scratch buffer).
    """
    j = pl.program_id(1)

    @pl.when(j == 0)
    def _():
        o_ref[...] = jnp.zeros_like(o_ref)

    # ln1 chunk: (M, tk), bf16 activations with fp32 MXU accumulation.
    h1 = jnp.dot(x_ref[...], w1_ref[...], preferred_element_type=jnp.float32)
    h1 = jnp.maximum(h1 + b1_ref[...], 0.0).astype(x_ref.dtype)

    # ln2 partial over this chunk of the contraction dim, accumulated in fp32.
    o_ref[...] += jnp.dot(h1, w2_ref[...], preferred_element_type=jnp.float32)


def _ln3_kernel(hpre_ref, b2_ref, w3_ref, b3_ref, o_ref):
    """Epilogue: combine per-core ln2 partials, add b2, ReLU, then ln3 + b3."""
    h2_pre = jnp.sum(hpre_ref[...], axis=0)                   # (M, 4096) f32
    h2 = jnp.maximum(h2_pre + b2_ref[...], 0.0).astype(w3_ref.dtype)
    o_ref[...] = (jnp.dot(h2, w3_ref[...], preferred_element_type=jnp.float32)
                  + b3_ref[...])


def classifier_forward_pallas(x, params, *, num_cores=2, tk=512,
                              vmem_limit_bytes=32 * 1024 * 1024):
    """Fused forward pass. x:(M,1024). Returns lane-padded logits (M, 128)."""
    w1, b1 = params["w1"], params["b1"]
    w2, b2 = params["w2"], params["b2"]
    w3, b3 = params["w3"], params["b3"]   # w3/b3 already lane-padded to 128

    M = x.shape[0]
    K1, N1 = w1.shape          # 1024, 4096
    N2 = w2.shape[1]           # 4096
    N3 = w3.shape[1]           # padded num_class (128)
    assert N1 % (num_cores * tk) == 0
    nj = N1 // (num_cores * tk)    # chunks of the shared dim per core

    x_bf = x.astype(w1.dtype)
    b1_2d = b1.reshape(1, N1).astype(jnp.float32)
    b2_2d = b2.reshape(1, N2).astype(jnp.float32)
    b3_2d = b3.reshape(1, N3).astype(jnp.float32)

    # Stage 1: ln1 + ln2-matmul, co-streaming w1 column chunks and w2 row
    # chunks; one fp32 partial (pre-bias/pre-ReLU) h2 block per core.
    h2_partial = pl.pallas_call(
        _ln12_kernel,
        out_shape=jax.ShapeDtypeStruct((num_cores, M, N2), jnp.float32),
        grid_spec=pltpu.PrefetchScalarGridSpec(
            num_scalar_prefetch=0,
            grid=(num_cores, nj),
            in_specs=[
                pl.BlockSpec((M, K1), lambda c, j: (0, 0)),           # x (tiny, resident)
                pl.BlockSpec((K1, tk), lambda c, j: (0, c * nj + j)),  # w1 column stream
                pl.BlockSpec((1, tk), lambda c, j: (0, c * nj + j)),   # b1 chunk
                pl.BlockSpec((tk, N2), lambda c, j: (c * nj + j, 0)),  # w2 row stream
            ],
            out_specs=pl.BlockSpec((None, M, N2), lambda c, j: (c, 0, 0)),
        ),
        compiler_params=pltpu.CompilerParams(
            dimension_semantics=("parallel", "arbitrary"),
            vmem_limit_bytes=vmem_limit_bytes,
        ),
    )(x_bf, w1, b1_2d, w2)

    # Stage 2 (tiny): sum per-core partials, b2 + ReLU, ln3 + b3.
    # ~1.3 MiB of traffic total; everything fits in VMEM with no grid.
    logits_padded = pl.pallas_call(
        _ln3_kernel,
        out_shape=jax.ShapeDtypeStruct((M, N3), jnp.float32),
    )(h2_partial, b2_2d, w3, b3_2d)

    return logits_padded


def make_classifier_forward(num_class):
    @jax.jit
    def forward(x, params):
        out = classifier_forward_pallas(x, params)
        return out[:, :num_class]
    return forward


def init_classifier_params(key, num_class, weight_dtype=jnp.bfloat16):
    """Deterministic synthetic params (PyTorch-style fan_in uniform init).
    Weights stored as (in, out); w3/b3 zero-padded to a 128-lane output."""
    k1, k2, k3, k4, k5, k6 = jax.random.split(key, 6)

    def uniform_fan_in(k, shape, fan_in):
        bound = float(fan_in) ** -0.5
        return jax.random.uniform(k, shape, jnp.float32, -bound, bound)

    n3_pad = max(128, ((num_class + 127) // 128) * 128)
    w3 = uniform_fan_in(k5, (4096, num_class), 4096)
    b3 = uniform_fan_in(k6, (num_class,), 4096)
    w3 = jnp.pad(w3, ((0, 0), (0, n3_pad - num_class)))
    b3 = jnp.pad(b3, (0, n3_pad - num_class))

    return {
        "w1": uniform_fan_in(k1, (1024, 4096), 1024).astype(weight_dtype),
        "b1": uniform_fan_in(k2, (4096,), 1024),
        "w2": uniform_fan_in(k3, (4096, 4096), 4096).astype(weight_dtype),
        "b2": uniform_fan_in(k4, (4096,), 4096),
        "w3": w3.astype(weight_dtype),
        "b3": b3,
    }


if __name__ == "__main__":
    key = jax.random.PRNGKey(0)
    k_x, k_p = jax.random.split(key)

    batch = 8
    num_class = 10  # CIFAR10

    x = jax.random.normal(k_x, (batch, 1024), dtype=jnp.float32)
    params = init_classifier_params(k_p, num_class)

    forward = make_classifier_forward(num_class)
    out = forward(x, params)
    jax.block_until_ready(out)

    # fp32 reference using the same (bf16-quantized) weights.
    def ref(x, p):
        w1 = p["w1"].astype(jnp.float32)
        w2 = p["w2"].astype(jnp.float32)
        w3 = p["w3"].astype(jnp.float32)[:, :num_class]
        hp = jax.lax.Precision.HIGHEST
        h = jnp.maximum(jnp.dot(x, w1, precision=hp) + p["b1"], 0.0)
        h = jnp.maximum(jnp.dot(h, w2, precision=hp) + p["b2"], 0.0)
        return jnp.dot(h, w3, precision=hp) + p["b3"][:num_class]

    expected = ref(x, params)
    assert out.shape == (batch, num_class)
    max_err = float(jnp.max(jnp.abs(out - expected)))
    assert jnp.allclose(out, expected, atol=2e-2, rtol=2e-2), max_err

    print("KERNEL_OK")
</pallas_src>

<mosaic_0001>
module attributes {stable_mosaic.version = 11 : i64} {
  func.func @_ln3_kernel(%arg0: memref<2x8x4096xf32, #tpu.memory_space<vmem>>, %arg1: memref<1x4096xf32, #tpu.memory_space<vmem>>, %arg2: memref<4096x128xbf16, #tpu.memory_space<vmem>>, %arg3: memref<1x128xf32, #tpu.memory_space<vmem>>, %arg4: memref<8x128xf32, #tpu.memory_space<vmem>>) attributes {dimension_semantics = [], scalar_prefetch = 0 : i64, scratch_operands = 0 : i64, tpu.core_type = #tpu.core_type<tc>} {
    %c0 = arith.constant 0 : index
    %c0_0 = arith.constant 0 : index
    %c0_1 = arith.constant 0 : index
    %0 = vector.load %arg0[%c0, %c0_0, %c0_1] : memref<2x8x4096xf32, #tpu.memory_space<vmem>>, vector<2x8x4096xf32>
    %cst = arith.constant dense<0.000000e+00> : vector<8x4096xf32>
    %1 = vector.multi_reduction <add>, %0, %cst [0] : vector<2x8x4096xf32> to vector<8x4096xf32>
    %c0_2 = arith.constant 0 : index
    %c0_3 = arith.constant 0 : index
    %2 = vector.load %arg1[%c0_2, %c0_3] : memref<1x4096xf32, #tpu.memory_space<vmem>>, vector<1x4096xf32>
    %3 = vector.broadcast %2 : vector<1x4096xf32> to vector<8x4096xf32>
    %4 = arith.addf %1, %3 : vector<8x4096xf32>
    %cst_4 = arith.constant 0.000000e+00 : f32
    %5 = vector.broadcast %cst_4 : f32 to vector<8x4096xf32>
    %6 = arith.maximumf %4, %5 : vector<8x4096xf32>
    %7 = arith.truncf %6 : vector<8x4096xf32> to vector<8x4096xbf16>
    %c0_5 = arith.constant 0 : index
    %c0_6 = arith.constant 0 : index
    %8 = vector.load %arg2[%c0_5, %c0_6] : memref<4096x128xbf16, #tpu.memory_space<vmem>>, vector<4096x128xbf16>
    %cst_7 = arith.constant dense<0.000000e+00> : vector<8x128xf32>
    %9 = tpu.matmul %7, %8, %cst_7 {dimension_numbers = #tpu.dot_dimension_numbers<[1], [0], [0], [1], [0, 0, 1, 1], [], []>} : vector<8x4096xbf16>, vector<4096x128xbf16>, vector<8x128xf32> -> vector<8x128xf32>
    %c0_8 = arith.constant 0 : index
    %c0_9 = arith.constant 0 : index
    %10 = vector.load %arg3[%c0_8, %c0_9] : memref<1x128xf32, #tpu.memory_space<vmem>>, vector<1x128xf32>
    %11 = vector.broadcast %10 : vector<1x128xf32> to vector<8x128xf32>
    %12 = arith.addf %9, %11 : vector<8x128xf32>
    %c0_10 = arith.constant 0 : index
    %c0_11 = arith.constant 0 : index
    %13 = vector.load %arg4[%c0_10, %c0_11] : memref<8x128xf32, #tpu.memory_space<vmem>>, vector<8x128xf32>
    tpu.vector_store %arg4[%c0_10, %c0_11], %12 {strides = array<i32>} : memref<8x128xf32, #tpu.memory_space<vmem>>, vector<8x128xf32>,
    return
  }
}

module attributes {stable_mosaic.version = 11 : i64} {
  func.func @_ln12_kernel(%arg0: i32, %arg1: i32, %arg2: memref<8x1024xbf16, #tpu.memory_space<vmem>>, %arg3: memref<1024x512xbf16, #tpu.memory_space<vmem>>, %arg4: memref<1x512xf32, #tpu.memory_space<vmem>>, %arg5: memref<512x4096xbf16, #tpu.memory_space<vmem>>, %arg6: memref<1x8x4096xf32, #tpu.memory_space<vmem>>) attributes {dimension_semantics = [#tpu.dimension_semantics<parallel>, #tpu.dimension_semantics<arbitrary>], iteration_bounds = array<i64: 2, 4>, scalar_prefetch = 0 : i64, scratch_operands = 0 : i64, tpu.core_type = #tpu.core_type<tc>, window_params = [{pipeline_mode = #tpu.pipeline_mode<synchronous>, transform_indices = @transform_0, window_bounds = array<i64: 8, 1024>}, {transform_indices = @transform_1, window_bounds = array<i64: 1024, 512>}, {transform_indices = @transform_2, window_bounds = array<i64: 1, 512>}, {transform_indices = @transform_3, window_bounds = array<i64: 512, 4096>}, {transform_indices = @transform_4, window_bounds = array<i64: 1, 8, 4096>}]} {
    %c0_i32 = arith.constant 0 : i32
    %0 = arith.cmpi eq, %arg1, %c0_i32 : i32
    %1 = arith.extui %0 : i1 to i32
    %c0_i32_0 = arith.constant 0 : i32
    %2 = arith.cmpi ne, %1, %c0_i32_0 : i32
    scf.if %2 {
      %cst_16 = arith.constant 0.000000e+00 : f32
      %20 = vector.broadcast %cst_16 : f32 to vector<8x4096xf32>
      %c0_17 = arith.constant 0 : index
      %c0_18 = arith.constant 0 : index
      %c0_19 = arith.constant 0 : index
      %21 = vector.load %arg6[%c0_17, %c0_18, %c0_19] : memref<1x8x4096xf32, #tpu.memory_space<vmem>>, vector<1x8x4096xf32>
      %22 = vector.shape_cast %21 : vector<1x8x4096xf32> to vector<8x4096xf32>
      %23 = vector.shape_cast %20 : vector<8x4096xf32> to vector<1x8x4096xf32>
      tpu.vector_store %arg6[%c0_17, %c0_18, %c0_19], %23 {strides = array<i32>} : memref<1x8x4096xf32, #tpu.memory_space<vmem>>, vector<1x8x4096xf32>,
    } else {
    }
    %c0 = arith.constant 0 : index
    %c0_1 = arith.constant 0 : index
    %3 = vector.load %arg2[%c0, %c0_1] : memref<8x1024xbf16, #tpu.memory_space<vmem>>, vector<8x1024xbf16>
    %c0_2 = arith.constant 0 : index
    %c0_3 = arith.constant 0 : index
    %4 = vector.load %arg3[%c0_2, %c0_3] : memref<1024x512xbf16, #tpu.memory_space<vmem>>, vector<1024x512xbf16>
    %cst = arith.constant dense<0.000000e+00> : vector<8x512xf32>
    %5 = tpu.matmul %3, %4, %cst {dimension_numbers = #tpu.dot_dimension_numbers<[1], [0], [0], [1], [0, 0, 1, 1], [], []>} : vector<8x1024xbf16>, vector<1024x512xbf16>, vector<8x512xf32> -> vector<8x512xf32>
    %c0_4 = arith.constant 0 : index
    %c0_5 = arith.constant 0 : index
    %6 = vector.load %arg4[%c0_4, %c0_5] : memref<1x512xf32, #tpu.memory_space<vmem>>, vector<1x512xf32>
    %7 = vector.broadcast %6 : vector<1x512xf32> to vector<8x512xf32>
    %8 = arith.addf %5, %7 : vector<8x512xf32>
    %cst_6 = arith.constant 0.000000e+00 : f32
    %9 = vector.broadcast %cst_6 : f32 to vector<8x512xf32>
    %10 = arith.maximumf %8, %9 : vector<8x512xf32>
    %11 = arith.truncf %10 : vector<8x512xf32> to vector<8x512xbf16>
    %c0_7 = arith.constant 0 : index
    %c0_8 = arith.constant 0 : index
    %c0_9 = arith.constant 0 : index
    %12 = vector.load %arg6[%c0_7, %c0_8, %c0_9] : memref<1x8x4096xf32, #tpu.memory_space<vmem>>, vector<1x8x4096xf32>
    %13 = vector.shape_cast %12 : vector<1x8x4096xf32> to vector<8x4096xf32>
    %c0_10 = arith.constant 0 : index
    %c0_11 = arith.constant 0 : index
    %14 = vector.load %arg5[%c0_10, %c0_11] : memref<512x4096xbf16, #tpu.memory_space<vmem>>, vector<512x4096xbf16>
    %cst_12 = arith.constant dense<0.000000e+00> : vector<8x4096xf32>
    %15 = tpu.matmul %11, %14, %cst_12 {dimension_numbers = #tpu.dot_dimension_numbers<[1], [0], [0], [1], [0, 0, 1, 1], [], []>} : vector<8x512xbf16>, vector<512x4096xbf16>, vector<8x4096xf32> -> vector<8x4096xf32>
    %16 = arith.addf %13, %15 : vector<8x4096xf32>
    %c0_13 = arith.constant 0 : index
    %c0_14 = arith.constant 0 : index
    %c0_15 = arith.constant 0 : index
    %17 = vector.load %arg6[%c0_13, %c0_14, %c0_15] : memref<1x8x4096xf32, #tpu.memory_space<vmem>>, vector<1x8x4096xf32>
    %18 = vector.shape_cast %17 : vector<1x8x4096xf32> to vector<8x4096xf32>
    %19 = vector.shape_cast %16 : vector<8x4096xf32> to vector<1x8x4096xf32>
    tpu.vector_store %arg6[%c0_13, %c0_14, %c0_15], %19 {strides = array<i32>} : memref<1x8x4096xf32, #tpu.memory_space<vmem>>, vector<1x8x4096xf32>,
    return
  }
  func.func @transform_0(%arg0: i32, %arg1: i32) -> (i32, i32) {
    %c0_i32 = arith.constant 0 : i32
    %c0_i32_0 = arith.constant 0 : i32
    %c0_i32_1 = arith.constant 0 : i32
    return %c0_i32, %c0_i32_0 : i32, i32
  }
  func.func @transform_1(%arg0: i32, %arg1: i32) -> (i32, i32) {
    %c4_i32 = arith.constant 4 : i32
    %0 = arith.muli %arg0, %c4_i32 : i32
    %1 = arith.addi %0, %arg1 : i32
    %c0_i32 = arith.constant 0 : i32
    %c0_i32_0 = arith.constant 0 : i32
    return %c0_i32, %1 : i32, i32
  }
  func.func @transform_2(%arg0: i32, %arg1: i32) -> (i32, i32) {
    %c4_i32 = arith.constant 4 : i32
    %0 = arith.muli %arg0, %c4_i32 : i32
    %1 = arith.addi %0, %arg1 : i32
    %c0_i32 = arith.constant 0 : i32
    %c0_i32_0 = arith.constant 0 : i32
    return %c0_i32, %1 : i32, i32
  }
  func.func @transform_3(%arg0: i32, %arg1: i32) -> (i32, i32) {
    %c4_i32 = arith.constant 4 : i32
    %0 = arith.muli %arg0, %c4_i32 : i32
    %1 = arith.addi %0, %arg1 : i32
    %c0_i32 = arith.constant 0 : i32
    %c0_i32_0 = arith.constant 0 : i32
    return %1, %c0_i32 : i32, i32
  }
  func.func @transform_4(%arg0: i32, %arg1: i32) -> (i32, i32, i32) {
    %c0_i32 = arith.constant 0 : i32
    %c0_i32_0 = arith.constant 0 : i32
    %c0_i32_1 = arith.constant 0 : i32
    return %arg0, %c0_i32, %c0_i32_0 : i32, i32, i32
  }
}

</mosaic_0001>

<llo_original>
// kernel: forward.3
$region0: #{forward.3}
  #allocation0 [shape = 'u32[]', space=smem, size = 0x4, offset = 0x4, fixed_abs, tag = 'smem constant byte address 0x4 - core index']
  #allocation1 [shape = 'u32[144,128]{1,0:T(1,128)}', space=vmem, size = 0x12000, scoped, tag = 'internal scratch']
  %s0 = inlined_call_operand.vmem [shape: f32[2,8,4096], index: 0, kind: input, shape index: {}]
  %s1 = inlined_call_operand.vmem [shape: f32[1,4096], index: 1, kind: input, shape index: {}]
  %s2 = inlined_call_operand.vmem [shape: bf16[4096,128], index: 2, kind: input, shape index: {}]
  %s3 = inlined_call_operand.vmem [shape: f32[1,128], index: 3, kind: input, shape index: {}]
  %s4 = inlined_call_operand.hbm [shape: f32[8,128], index: 4, kind: output, shape index: {}]
  %s5 = sld [smem:[#allocation0]]
  $region26: #{forward.3} parent=0
    _
  %s7 = ssub.s32 1, %s5
  %s8 = scalar_select 0, %s7, %s5
  $region1: #{forward.3} parent=0
    #allocation2 [shape = 'u8[4096]{0}', space=vmem, size = 0x1000, scoped, tag = 'output window, operand 0, single buffered']
    #allocation3 [shape = 's32[1]{0}', space=sflag, size = 0x4, scoped, tag = 'scoped memory for forward.3']
    %9 = vsyncpa [#allocation3], 0
    // Predicated region
    $region2: #{forward.3} parent=1 // pred_check
      _
    $region3: #{forward.3} parent=1 // pred_check_branch
      %11 = sbr.rel (0) target = $region5
    $region4: #{forward.3} parent=1 // pred_region
      _
    $region5: #{forward.3} parent=1 // pred_fallthru
      _
    // Predicated region
    $region6: #{forward.3} parent=1 // pred_check
      _
    $region7: #{forward.3} parent=1 // pred_check_branch
      %13 = sbr.rel (0) target = $region9
    $region8: #{forward.3} parent=1 // pred_region
      _
    $region9: #{forward.3} parent=1 // pred_fallthru
      _
    // Predicated region
    $region10: #{forward.3} parent=1 // pred_check
      _
    $region11: #{forward.3} parent=1 // pred_check_branch
      %15 = sbr.rel (0) target = $region13
    $region12: #{forward.3} parent=1 // pred_region
      _
    $region13: #{forward.3} parent=1 // pred_fallthru
      _
    // Predicated region
    $region14: #{forward.3} parent=1 // pred_check
      _
    $region15: #{forward.3} parent=1 // pred_check_branch
      %17 = sbr.rel (0) target = $region17
    $region16: #{forward.3} parent=1 // pred_region
      _
    $region17: #{forward.3} parent=1 // pred_fallthru
      _
    %v19 = vld [vmem:[%s0] sm:$0xff]
    %v20 = vld [vmem:[%s0 + $0x8] sm:$0xff]
    %v21 = vld [vmem:[%s0 + $0x10] sm:$0xff]
    %v22 = vld [vmem:[%s0 + $0x18] sm:$0xff]
    %v23 = vld [vmem:[%s0 + $0x20] sm:$0xff]
    %v24 = vld [vmem:[%s0 + $0x28] sm:$0xff]
    %v25 = vld [vmem:[%s0 + $0x30] sm:$0xff]
    %v26 = vld [vmem:[%s0 + $0x38] sm:$0xff]
    %v27 = vld [vmem:[%s0 + $0x40] sm:$0xff]
    %v28 = vld [vmem:[%s0 + $0x48] sm:$0xff]
    %v29 = vld [vmem:[%s0 + $0x50] sm:$0xff]
    %v30 = vld [vmem:[%s0 + $0x58] sm:$0xff]
    %v31 = vld [vmem:[%s0 + $0x60] sm:$0xff]
    %v32 = vld [vmem:[%s0 + $0x68] sm:$0xff]
    %v33 = vld [vmem:[%s0 + $0x70] sm:$0xff]
    %v34 = vld [vmem:[%s0 + $0x78] sm:$0xff]
    %v35 = vld [vmem:[%s0 + $0x80] sm:$0xff]
    %v36 = vld [vmem:[%s0 + $0x88] sm:$0xff]
    %v37 = vld [vmem:[%s0 + $0x90] sm:$0xff]
    %v38 = vld [vmem:[%s0 + $0x98] sm:$0xff]
    %v39 = vld [vmem:[%s0 + $0xa0] sm:$0xff]
    %v40 = vld [vmem:[%s0 + $0xa8] sm:$0xff]
    %v41 = vld [vmem:[%s0 + $0xb0] sm:$0xff]
    %v42 = vld [vmem:[%s0 + $0xb8] sm:$0xff]
    %v43 = vld [vmem:[%s0 + $0xc0] sm:$0xff]
    %v44 = vld [vmem:[%s0 + $0xc8] sm:$0xff]
    %v45 = vld [vmem:[%s0 + $0xd0] sm:$0xff]
    %v46 = vld [vmem:[%s0 + $0xd8] sm:$0xff]
    %v47 = vld [vmem:[%s0 + $0xe0] sm:$0xff]
    %v48 = vld [vmem:[%s0 + $0xe8] sm:$0xff]
    %v49 = vld [vmem:[%s0 + $0xf0] sm:$0xff]
    %v50 = vld [vmem:[%s0 + $0xf8] sm:$0xff]
    %v51 = vld [vmem:[%s0 + $0x100] sm:$0xff]
    %v52 = vld [vmem:[%s0 + $0x108] sm:$0xff]
    %v53 = vld [vmem:[%s0 + $0x110] sm:$0xff]
    %v54 = vld [vmem:[%s0 + $0x118] sm:$0xff]
    %v55 = vld [vmem:[%s0 + $0x120] sm:$0xff]
    %v56 = vld [vmem:[%s0 + $0x128] sm:$0xff]
    %v57 = vld [vmem:[%s0 + $0x130] sm:$0xff]
    %v58 = vld [vmem:[%s0 + $0x138] sm:$0xff]
    %v59 = vld [vmem:[%s0 + $0x140] sm:$0xff]
    %v60 = vld [vmem:[%s0 + $0x148] sm:$0xff]
    %v61 = vld [vmem:[%s0 + $0x150] sm:$0xff]
    %v62 = vld [vmem:[%s0 + $0x158] sm:$0xff]
    %v63 = vld [vmem:[%s0 + $0x160] sm:$0xff]
    %v64 = vld [vmem:[%s0 + $0x168] sm:$0xff]
    %v65 = vld [vmem:[%s0 + $0x170] sm:$0xff]
    %v66 = vld [vmem:[%s0 + $0x178] sm:$0xff]
    %v67 = vld [vmem:[%s0 + $0x180] sm:$0xff]
    %v68 = vld [vmem:[%s0 + $0x188] sm:$0xff]
    %v69 = vld [vmem:[%s0 + $0x190] sm:$0xff]
    %v70 = vld [vmem:[%s0 + $0x198] sm:$0xff]
    %v71 = vld [vmem:[%s0 + $0x1a0] sm:$0xff]
    %v72 = vld [vmem:[%s0 + $0x1a8] sm:$0xff]
    %v73 = vld [vmem:[%s0 + $0x1b0] sm:$0xff]
    %v74 = vld [vmem:[%s0 + $0x1b8] sm:$0xff]
    %v75 = vld [vmem:[%s0 + $0x1c0] sm:$0xff]
    %v76 = vld [vmem:[%s0 + $0x1c8] sm:$0xff]
    %v77 = vld [vmem:[%s0 + $0x1d0] sm:$0xff]
    %v78 = vld [vmem:[%s0 + $0x1d8] sm:$0xff]
    %v79 = vld [vmem:[%s0 + $0x1e0] sm:$0xff]
    %v80 = vld [vmem:[%s0 + $0x1e8] sm:$0xff]
    %v81 = vld [vmem:[%s0 + $0x1f0] sm:$0xff]
    %v82 = vld [vmem:[%s0 + $0x1f8] sm:$0xff]
    %v83 = vadd.f32 %v19, %v51
    %v84 = vadd.f32 %v20, %v52
    %v85 = vadd.f32 %v21, %v53
    %v86 = vadd.f32 %v22, %v54
    %v87 = vadd.f32 %v23, %v55
    %v88 = vadd.f32 %v24, %v56
    %v89 = vadd.f32 %v25, %v57
    %v90 = vadd.f32 %v26, %v58
    %v91 = vadd.f32 %v27, %v59
    %v92 = vadd.f32 %v28, %v60
    %v93 = vadd.f32 %v29, %v61
    %v94 = vadd.f32 %v30, %v62
    %v95 = vadd.f32 %v31, %v63
    %v96 = vadd.f32 %v32, %v64
    %v97 = vadd.f32 %v33, %v65
    %v98 = vadd.f32 %v34, %v66
    %v99 = vadd.f32 %v35, %v67
    %v100 = vadd.f32 %v36, %v68
    %v101 = vadd.f32 %v37, %v69
    %v102 = vadd.f32 %v38, %v70
    %v103 = vadd.f32 %v39, %v71
    %v104 = vadd.f32 %v40, %v72
    %v105 = vadd.f32 %v41, %v73
    %v106 = vadd.f32 %v42, %v74
    %v107 = vadd.f32 %v43, %v75
    %v108 = vadd.f32 %v44, %v76
    %v109 = vadd.f32 %v45, %v77
    %v110 = vadd.f32 %v46, %v78
    %v111 = vadd.f32 %v47, %v79
    %v112 = vadd.f32 %v48, %v80
    %v113 = vadd.f32 %v49, %v81
    %v114 = vadd.f32 %v50, %v82
    %v115 = vld [vmem:[%s1] sm:$0xff]
    %v116 = vld [vmem:[%s1 + $0x8] sm:$0xff]
    %v117 = vld [vmem:[%s1 + $0x10] sm:$0xff]
    %v118 = vld [vmem:[%s1 + $0x18] sm:$0xff]
    %v123 = vlaneseq
    %v124 = vshrl.u32 %v123, 7
    %v125 = vsub.s32 0, %v124
    %v126 = vrot.slane %v115, %v125
    %v127 = vlaneseq
    %v128 = vshrl.u32 %v127, 7
    %v129 = vsub.s32 1, %v128
    %v130 = vrot.slane %v115, %v129
    %v131 = vlaneseq
    %v132 = vshrl.u32 %v131, 7
    %v133 = vsub.s32 2, %v132
    %v134 = vrot.slane %v115, %v133
    %v135 = vlaneseq
    %v136 = vshrl.u32 %v135, 7
    %v137 = vsub.s32 3, %v136
    %v138 = vrot.slane %v115, %v137
    %v139 = vlaneseq
    %v140 = vshrl.u32 %v139, 7
    %v141 = vsub.s32 4, %v140
    %v142 = vrot.slane %v115, %v141
    %v143 = vlaneseq
    %v144 = vshrl.u32 %v143, 7
    %v145 = vsub.s32 5, %v144
    %v146 = vrot.slane %v115, %v145
    %v147 = vlaneseq
    %v148 = vshrl.u32 %v147, 7
    %v149 = vsub.s32 6, %v148
    %v150 = vrot.slane %v115, %v149
    %v151 = vlaneseq
    %v152 = vshrl.u32 %v151, 7
    %v153 = vsub.s32 7, %v152
    %v154 = vrot.slane %v115, %v153
    %v155 = vlaneseq
    %v156 = vshrl.u32 %v155, 7
    %v157 = vsub.s32 0, %v156
    %v158 = vrot.slane %v116, %v157
    %v159 = vlaneseq
    %v160 = vshrl.u32 %v159, 7
    %v161 = vsub.s32 1, %v160
    %v162 = vrot.slane %v116, %v161
    %v163 = vlaneseq
    %v164 = vshrl.u32 %v163, 7
    %v165 = vsub.s32 2, %v164
    %v166 = vrot.slane %v116, %v165
    %v167 = vlaneseq
    %v168 = vshrl.u32 %v167, 7
    %v169 = vsub.s32 3, %v168
    %v170 = vrot.slane %v116, %v169
    %v171 = vlaneseq
    %v172 = vshrl.u32 %v171, 7
    %v173 = vsub.s32 4, %v172
    %v174 = vrot.slane %v116, %v173
    %v175 = vlaneseq
    %v176 = vshrl.u32 %v175, 7
    %v177 = vsub.s32 5, %v176
    %v178 = vrot.slane %v116, %v177
    %v179 = vlaneseq
    %v180 = vshrl.u32 %v179, 7
    %v181 = vsub.s32 6, %v180
    %v182 = vrot.slane %v116, %v181
    %v183 = vlaneseq
    %v184 = vshrl.u32 %v183, 7
    %v185 = vsub.s32 7, %v184
    %v186 = vrot.slane %v116, %v185
    %v187 = vlaneseq
    %v188 = vshrl.u32 %v187, 7
    %v189 = vsub.s32 0, %v188
    %v190 = vrot.slane %v117, %v189
    %v191 = vlaneseq
    %v192 = vshrl.u32 %v191, 7
    %v193 = vsub.s32 1, %v192
    %v194 = vrot.slane %v117, %v193
    %v195 = vlaneseq
    %v196 = vshrl.u32 %v195, 7
    %v197 = vsub.s32 2, %v196
    %v198 = vrot.slane %v117, %v197
    %v199 = vlaneseq
    %v200 = vshrl.u32 %v199, 7
    %v201 = vsub.s32 3, %v200
    %v202 = vrot.slane %v117, %v201
    %v203 = vlaneseq
    %v204 = vshrl.u32 %v203, 7
    %v205 = vsub.s32 4, %v204
    %v206 = vrot.slane %v117, %v205
    %v207 = vlaneseq
    %v208 = vshrl.u32 %v207, 7
    %v209 = vsub.s32 5, %v208
    %v210 = vrot.slane %v117, %v209
    %v211 = vlaneseq
    %v212 = vshrl.u32 %v211, 7
    %v213 = vsub.s32 6, %v212
    %v214 = vrot.slane %v117, %v213
    %v215 = vlaneseq
    %v216 = vshrl.u32 %v215, 7
    %v217 = vsub.s32 7, %v216
    %v218 = vrot.slane %v117, %v217
    %v219 = vlaneseq
    %v220 = vshrl.u32 %v219, 7
    %v221 = vsub.s32 0, %v220
    %v222 = vrot.slane %v118, %v221
    %v223 = vlaneseq
    %v224 = vshrl.u32 %v223, 7
    %v225 = vsub.s32 1, %v224
    %v226 = vrot.slane %v118, %v225
    %v227 = vlaneseq
    %v228 = vshrl.u32 %v227, 7
    %v229 = vsub.s32 2, %v228
    %v230 = vrot.slane %v118, %v229
    %v231 = vlaneseq
    %v232 = vshrl.u32 %v231, 7
    %v233 = vsub.s32 3, %v232
    %v234 = vrot.slane %v118, %v233
    %v235 = vlaneseq
    %v236 = vshrl.u32 %v235, 7
    %v237 = vsub.s32 4, %v236
    %v238 = vrot.slane %v118, %v237
    %v239 = vlaneseq
    %v240 = vshrl.u32 %v239, 7
    %v241 = vsub.s32 5, %v240
    %v242 = vrot.slane %v118, %v241
    %v243 = vlaneseq
    %v244 = vshrl.u32 %v243, 7
    %v245 = vsub.s32 6, %v244
    %v246 = vrot.slane %v118, %v245
    %v247 = vlaneseq
    %v248 = vshrl.u32 %v247, 7
    %v249 = vsub.s32 7, %v248
    %v250 = vrot.slane %v118, %v249
    %v283 = vadd.f32 %v83, %v126
    %v284 = vadd.f32 %v84, %v130
    %v285 = vadd.f32 %v85, %v134
    %v286 = vadd.f32 %v86, %v138
    %v287 = vadd.f32 %v87, %v142
    %v288 = vadd.f32 %v88, %v146
    %v289 = vadd.f32 %v89, %v150
    %v290 = vadd.f32 %v90, %v154
    %v291 = vadd.f32 %v91, %v158
    %v292 = vadd.f32 %v92, %v162
    %v293 = vadd.f32 %v93, %v166
    %v294 = vadd.f32 %v94, %v170
    %v295 = vadd.f32 %v95, %v174
    %v296 = vadd.f32 %v96, %v178
    %v297 = vadd.f32 %v97, %v182
    %v298 = vadd.f32 %v98, %v186
    %v299 = vadd.f32 %v99, %v190
    %v300 = vadd.f32 %v100, %v194
    %v301 = vadd.f32 %v101, %v198
    %v302 = vadd.f32 %v102, %v202
    %v303 = vadd.f32 %v103, %v206
    %v304 = vadd.f32 %v104, %v210
    %v305 = vadd.f32 %v105, %v214
    %v306 = vadd.f32 %v106, %v218
    %v307 = vadd.f32 %v107, %v222
    %v308 = vadd.f32 %v108, %v226
    %v309 = vadd.f32 %v109, %v230
    %v310 = vadd.f32 %v110, %v234
    %v311 = vadd.f32 %v111, %v238
    %v312 = vadd.f32 %v112, %v242
    %v313 = vadd.f32 %v113, %v246
    %v314 = vadd.f32 %v114, %v250
    %v315 = vmax.f32 %v283, 0.0
    %v316 = vmax.f32 %v284, 0.0
    %v317 = vmax.f32 %v285, 0.0
    %v318 = vmax.f32 %v286, 0.0
    %v319 = vmax.f32 %v287, 0.0
    %v320 = vmax.f32 %v288, 0.0
    %v321 = vmax.f32 %v289, 0.0
    %v322 = vmax.f32 %v290, 0.0
    %v323 = vmax.f32 %v291, 0.0
    %v324 = vmax.f32 %v292, 0.0
    %v325 = vmax.f32 %v293, 0.0
    %v326 = vmax.f32 %v294, 0.0
    %v327 = vmax.f32 %v295, 0.0
    %v328 = vmax.f32 %v296, 0.0
    %v329 = vmax.f32 %v297, 0.0
    %v330 = vmax.f32 %v298, 0.0
    %v331 = vmax.f32 %v299, 0.0
    %v332 = vmax.f32 %v300, 0.0
    %v333 = vmax.f32 %v301, 0.0
    %v334 = vmax.f32 %v302, 0.0
    %v335 = vmax.f32 %v303, 0.0
    %v336 = vmax.f32 %v304, 0.0
    %v337 = vmax.f32 %v305, 0.0
    %v338 = vmax.f32 %v306, 0.0
    %v339 = vmax.f32 %v307, 0.0
    %v340 = vmax.f32 %v308, 0.0
    %v341 = vmax.f32 %v309, 0.0
    %v342 = vmax.f32 %v310, 0.0
    %v343 = vmax.f32 %v311, 0.0
    %v344 = vmax.f32 %v312, 0.0
    %v345 = vmax.f32 %v313, 0.0
    %v346 = vmax.f32 %v314, 0.0
    %v347 = vpack.c.bf16 %v315, %v315
    %v348 = vpack.c.bf16 %v316, %v316
    %v349 = vpack.c.bf16 %v317, %v317
    %v350 = vpack.c.bf16 %v318, %v318
    %v351 = vpack.c.bf16 %v319, %v319
    %v352 = vpack.c.bf16 %v320, %v320
    %v353 = vpack.c.bf16 %v321, %v321
    %v354 = vpack.c.bf16 %v322, %v322
    %v355 = vpack.c.bf16 %v323, %v323
    %v356 = vpack.c.bf16 %v324, %v324
    %v357 = vpack.c.bf16 %v325, %v325
    %v358 = vpack.c.bf16 %v326, %v326
    %v359 = vpack.c.bf16 %v327, %v327
    %v360 = vpack.c.bf16 %v328, %v328
    %v361 = vpack.c.bf16 %v329, %v329
    %v362 = vpack.c.bf16 %v330, %v330
    %v363 = vpack.c.bf16 %v331, %v331
    %v364 = vpack.c.bf16 %v332, %v332
    %v365 = vpack.c.bf16 %v333, %v333
    %v366 = vpack.c.bf16 %v334, %v334
    %v367 = vpack.c.bf16 %v335, %v335
    %v368 = vpack.c.bf16 %v336, %v336
    %v369 = vpack.c.bf16 %v337, %v337
    %v370 = vpack.c.bf16 %v338, %v338
    %v371 = vpack.c.bf16 %v339, %v339
    %v372 = vpack.c.bf16 %v340, %v340
    %v373 = vpack.c.bf16 %v341, %v341
    %v374 = vpack.c.bf16 %v342, %v342
    %v375 = vpack.c.bf16 %v343, %v343
    %v376 = vpack.c.bf16 %v344, %v344
    %v377 = vpack.c.bf16 %v345, %v345
    %v378 = vpack.c.bf16 %v346, %v346
    %v379 = vld [vmem:[%s2] sm:$0xf]
    %v380 = vld [vmem:[%s2 + $0x4] sm:$0xf]
    %v381 = vld [vmem:[%s2 + $0x8] sm:$0xf]
    %v382 = vld [vmem:[%s2 + $0xc] sm:$0xf]
    %v383 = vld [vmem:[%s2 + $0x10] sm:$0xf]
    %v384 = vld [vmem:[%s2 + $0x14] sm:$0xf]
    %v385 = vld [vmem:[%s2 + $0x18] sm:$0xf]
    %v386 = vld [vmem:[%s2 + $0x1c] sm:$0xf]
    %v387 = vld [vmem:[%s2 + $0x20] sm:$0xf]
    %v388 = vld [vmem:[%s2 + $0x24] sm:$0xf]
    %v389 = vld [vmem:[%s2 + $0x28] sm:$0xf]
    %v390 = vld [vmem:[%s2 + $0x2c] sm:$0xf]
    %v391 = vld [vmem:[%s2 + $0x30] sm:$0xf]
    %v392 = vld [vmem:[%s2 + $0x34] sm:$0xf]
    %v393 = vld [vmem:[%s2 + $0x38] sm:$0xf]
    %v394 = vld [vmem:[%s2 + $0x3c] sm:$0xf]
    %v395 = vld [vmem:[%s2 + $0x40] sm:$0xf]
    %v396 = vld [vmem:[%s2 + $0x44] sm:$0xf]
    %v397 = vld [vmem:[%s2 + $0x48] sm:$0xf]
    %v398 = vld [vmem:[%s2 + $0x4c] sm:$0xf]
    %v399 = vld [vmem:[%s2 + $0x50] sm:$0xf]
    %v400 = vld [vmem:[%s2 + $0x54] sm:$0xf]
    %v401 = vld [vmem:[%s2 + $0x58] sm:$0xf]
    %v402 = vld [vmem:[%s2 + $0x5c] sm:$0xf]
    %v403 = vld [vmem:[%s2 + $0x60] sm:$0xf]
    %v404 = vld [vmem:[%s2 + $0x64] sm:$0xf]
    %v405 = vld [vmem:[%s2 + $0x68] sm:$0xf]
    %v406 = vld [vmem:[%s2 + $0x6c] sm:$0xf]
    %v407 = vld [vmem:[%s2 + $0x70] sm:$0xf]
    %v408 = vld [vmem:[%s2 + $0x74] sm:$0xf]
    %v409 = vld [vmem:[%s2 + $0x78] sm:$0xf]
    %v410 = vld [vmem:[%s2 + $0x7c] sm:$0xf]
    %v411 = vld [vmem:[%s2 + $0x80] sm:$0xf]
    %v412 = vld [vmem:[%s2 + $0x84] sm:$0xf]
    %v413 = vld [vmem:[%s2 + $0x88] sm:$0xf]
    %v414 = vld [vmem:[%s2 + $0x8c] sm:$0xf]
    %v415 = vld [vmem:[%s2 + $0x90] sm:$0xf]
    %v416 = vld [vmem:[%s2 + $0x94] sm:$0xf]
    %v417 = vld [vmem:[%s2 + $0x98] sm:$0xf]
    %v418 = vld [vmem:[%s2 + $0x9c] sm:$0xf]
    %v419 = vld [vmem:[%s2 + $0xa0] sm:$0xf]
    %v420 = vld [vmem:[%s2 + $0xa4] sm:$0xf]
    %v421 = vld [vmem:[%s2 + $0xa8] sm:$0xf]
    %v422 = vld [vmem:[%s2 + $0xac] sm:$0xf]
    %v423 = vld [vmem:[%s2 + $0xb0] sm:$0xf]
    %v424 = vld [vmem:[%s2 + $0xb4] sm:$0xf]
    %v425 = vld [vmem:[%s2 + $0xb8] sm:$0xf]
    %v426 = vld [vmem:[%s2 + $0xbc] sm:$0xf]
    %v427 = vld [vmem:[%s2 + $0xc0] sm:$0xf]
    %v428 = vld [vmem:[%s2 + $0xc4] sm:$0xf]
    %v429 = vld [vmem:[%s2 + $0xc8] sm:$0xf]
    %v430 = vld [vmem:[%s2 + $0xcc] sm:$0xf]
    %v431 = vld [vmem:[%s2 + $0xd0] sm:$0xf]
    %v432 = vld [vmem:[%s2 + $0xd4] sm:$0xf]
    %v433 = vld [vmem:[%s2 + $0xd8] sm:$0xf]
    %v434 = vld [vmem:[%s2 + $0xdc] sm:$0xf]
    %v435 = vld [vmem:[%s2 + $0xe0] sm:$0xf]
    %v436 = vld [vmem:[%s2 + $0xe4] sm:$0xf]
    %v437 = vld [vmem:[%s2 + $0xe8] sm:$0xf]
    %v438 = vld [vmem:[%s2 + $0xec] sm:$0xf]
    %v439 = vld [vmem:[%s2 + $0xf0] sm:$0xf]
    %v440 = vld [vmem:[%s2 + $0xf4] sm:$0xf]
    %v441 = vld [vmem:[%s2 + $0xf8] sm:$0xf]
    %v442 = vld [vmem:[%s2 + $0xfc] sm:$0xf]
    %v443 = vld [vmem:[%s2 + $0x100] sm:$0xf]
    %v444 = vld [vmem:[%s2 + $0x104] sm:$0xf]
    %v445 = vld [vmem:[%s2 + $0x108] sm:$0xf]
    %v446 = vld [vmem:[%s2 + $0x10c] sm:$0xf]
    %v447 = vld [vmem:[%s2 + $0x110] sm:$0xf]
    %v448 = vld [vmem:[%s2 + $0x114] sm:$0xf]
    %v449 = vld [vmem:[%s2 + $0x118] sm:$0xf]
    %v450 = vld [vmem:[%s2 + $0x11c] sm:$0xf]
    %v451 = vld [vmem:[%s2 + $0x120] sm:$0xf]
    %v452 = vld [vmem:[%s2 + $0x124] sm:$0xf]
    %v453 = vld [vmem:[%s2 + $0x128] sm:$0xf]
    %v454 = vld [vmem:[%s2 + $0x12c] sm:$0xf]
    %v455 = vld [vmem:[%s2 + $0x130] sm:$0xf]
    %v456 = vld [vmem:[%s2 + $0x134] sm:$0xf]
    %v457 = vld [vmem:[%s2 + $0x138] sm:$0xf]
    %v458 = vld [vmem:[%s2 + $0x13c] sm:$0xf]
    %v459 = vld [vmem:[%s2 + $0x140] sm:$0xf]
    %v460 = vld [vmem:[%s2 + $0x144] sm:$0xf]
    %v461 = vld [vmem:[%s2 + $0x148] sm:$0xf]
    %v462 = vld [vmem:[%s2 + $0x14c] sm:$0xf]
    %v463 = vld [vmem:[%s2 + $0x150] sm:$0xf]
    %v464 = vld [vmem:[%s2 + $0x154] sm:$0xf]
    %v465 = vld [vmem:[%s2 + $0x158] sm:$0xf]
    %v466 = vld [vmem:[%s2 + $0x15c] sm:$0xf]
    %v467 = vld [vmem:[%s2 + $0x160] sm:$0xf]
    %v468 = vld [vmem:[%s2 + $0x164] sm:$0xf]
    %v469 = vld [vmem:[%s2 + $0x168] sm:$0xf]
    %v470 = vld [vmem:[%s2 + $0x16c] sm:$0xf]
    %v471 = vld [vmem:[%s2 + $0x170] sm:$0xf]
    %v472 = vld [vmem:[%s2 + $0x174] sm:$0xf]
    %v473 = vld [vmem:[%s2 + $0x178] sm:$0xf]
    %v474 = vld [vmem:[%s2 + $0x17c] sm:$0xf]
    %v475 = vld [vmem:[%s2 + $0x180] sm:$0xf]
    %v476 = vld [vmem:[%s2 + $0x184] sm:$0xf]
    %v477 = vld [vmem:[%s2 + $0x188] sm:$0xf]
    %v478 = vld [vmem:[%s2 + $0x18c] sm:$0xf]
    %v479 = vld [vmem:[%s2 + $0x190] sm:$0xf]
    %v480 = vld [vmem:[%s2 + $0x194] sm:$0xf]
    %v481 = vld [vmem:[%s2 + $0x198] sm:$0xf]
    %v482 = vld [vmem:[%s2 + $0x19c] sm:$0xf]
    %v483 = vld [vmem:[%s2 + $0x1a0] sm:$0xf]
    %v484 = vld [vmem:[%s2 + $0x1a4] sm:$0xf]
    %v485 = vld [vmem:[%s2 + $0x1a8] sm:$0xf]
    %v486 = vld [vmem:[%s2 + $0x1ac] sm:$0xf]
    %v487 = vld [vmem:[%s2 + $0x1b0] sm:$0xf]
    %v488 = vld [vmem:[%s2 + $0x1b4] sm:$0xf]
    %v489 = vld [vmem:[%s2 + $0x1b8] sm:$0xf]
    %v490 = vld [vmem:[%s2 + $0x1bc] sm:$0xf]
    %v491 = vld [vmem:[%s2 + $0x1c0] sm:$0xf]
    %v492 = vld [vmem:[%s2 + $0x1c4] sm:$0xf]
    %v493 = vld [vmem:[%s2 + $0x1c8] sm:$0xf]
    %v494 = vld [vmem:[%s2 + $0x1cc] sm:$0xf]
    %v495 = vld [vmem:[%s2 + $0x1d0] sm:$0xf]
    %v496 = vld [vmem:[%s2 + $0x1d4] sm:$0xf]
    %v497 = vld [vmem:[%s2 + $0x1d8] sm:$0xf]
    %v498 = vld [vmem:[%s2 + $0x1dc] sm:$0xf]
    %v499 = vld [vmem:[%s2 + $0x1e0] sm:$0xf]
    %v500 = vld [vmem:[%s2 + $0x1e4] sm:$0xf]
    %v501 = vld [vmem:[%s2 + $0x1e8] sm:$0xf]
    %v502 = vld [vmem:[%s2 + $0x1ec] sm:$0xf]
    %v503 = vld [vmem:[%s2 + $0x1f0] sm:$0xf]
    %v504 = vld [vmem:[%s2 + $0x1f4] sm:$0xf]
    %v505 = vld [vmem:[%s2 + $0x1f8] sm:$0xf]
    %v506 = vld [vmem:[%s2 + $0x1fc] sm:$0xf]
    %v507 = vld [vmem:[%s2 + $0x200] sm:$0xf]
    %v508 = vld [vmem:[%s2 + $0x204] sm:$0xf]
    %v509 = vld [vmem:[%s2 + $0x208] sm:$0xf]
    %v510 = vld [vmem:[%s2 + $0x20c] sm:$0xf]
    %v511 = vld [vmem:[%s2 + $0x210] sm:$0xf]
    %v512 = vld [vmem:[%s2 + $0x214] sm:$0xf]
    %v513 = vld [vmem:[%s2 + $0x218] sm:$0xf]
    %v514 = vld [vmem:[%s2 + $0x21c] sm:$0xf]
    %v515 = vld [vmem:[%s2 + $0x220] sm:$0xf]
    %v516 = vld [vmem:[%s2 + $0x224] sm:$0xf]
    %v517 = vld [vmem:[%s2 + $0x228] sm:$0xf]
    %v518 = vld [vmem:[%s2 + $0x22c] sm:$0xf]
    %v519 = vld [vmem:[%s2 + $0x230] sm:$0xf]
    %v520 = vld [vmem:[%s2 + $0x234] sm:$0xf]
    %v521 = vld [vmem:[%s2 + $0x238] sm:$0xf]
    %v522 = vld [vmem:[%s2 + $0x23c] sm:$0xf]
    %v523 = vld [vmem:[%s2 + $0x240] sm:$0xf]
    %v524 = vld [vmem:[%s2 + $0x244] sm:$0xf]
    %v525 = vld [vmem:[%s2 + $0x248] sm:$0xf]
    %v526 = vld [vmem:[%s2 + $0x24c] sm:$0xf]
    %v527 = vld [vmem:[%s2 + $0x250] sm:$0xf]
    %v528 = vld [vmem:[%s2 + $0x254] sm:$0xf]
    %v529 = vld [vmem:[%s2 + $0x258] sm:$0xf]
    %v530 = vld [vmem:[%s2 + $0x25c] sm:$0xf]
    %v531 = vld [vmem:[%s2 + $0x260] sm:$0xf]
    %v532 = vld [vmem:[%s2 + $0x264] sm:$0xf]
    %v533 = vld [vmem:[%s2 + $0x268] sm:$0xf]
    %v534 = vld [vmem:[%s2 + $0x26c] sm:$0xf]
    %v535 = vld [vmem:[%s2 + $0x270] sm:$0xf]
    %v536 = vld [vmem:[%s2 + $0x274] sm:$0xf]
    %v537 = vld [vmem:[%s2 + $0x278] sm:$0xf]
    %v538 = vld [vmem:[%s2 + $0x27c] sm:$0xf]
    %v539 = vld [vmem:[%s2 + $0x280] sm:$0xf]
    %v540 = vld [vmem:[%s2 + $0x284] sm:$0xf]
    %v541 = vld [vmem:[%s2 + $0x288] sm:$0xf]
    %v542 = vld [vmem:[%s2 + $0x28c] sm:$0xf]
    %v543 = vld [vmem:[%s2 + $0x290] sm:$0xf]
    %v544 = vld [vmem:[%s2 + $0x294] sm:$0xf]
    %v545 = vld [vmem:[%s2 + $0x298] sm:$0xf]
    %v546 = vld [vmem:[%s2 + $0x29c] sm:$0xf]
    %v547 = vld [vmem:[%s2 + $0x2a0] sm:$0xf]
    %v548 = vld [vmem:[%s2 + $0x2a4] sm:$0xf]
    %v549 = vld [vmem:[%s2 + $0x2a8] sm:$0xf]
    %v550 = vld [vmem:[%s2 + $0x2ac] sm:$0xf]
    %v551 = vld [vmem:[%s2 + $0x2b0] sm:$0xf]
    %v552 = vld [vmem:[%s2 + $0x2b4] sm:$0xf]
    %v553 = vld [vmem:[%s2 + $0x2b8] sm:$0xf]
    %v554 = vld [vmem:[%s2 + $0x2bc] sm:$0xf]
    %v555 = vld [vmem:[%s2 + $0x2c0] sm:$0xf]
    %v556 = vld [vmem:[%s2 + $0x2c4] sm:$0xf]
    %v557 = vld [vmem:[%s2 + $0x2c8] sm:$0xf]
    %v558 = vld [vmem:[%s2 + $0x2cc] sm:$0xf]
    %v559 = vld [vmem:[%s2 + $0x2d0] sm:$0xf]
    %v560 = vld [vmem:[%s2 + $0x2d4] sm:$0xf]
    %v561 = vld [vmem:[%s2 + $0x2d8] sm:$0xf]
    %v562 = vld [vmem:[%s2 + $0x2dc] sm:$0xf]
    %v563 = vld [vmem:[%s2 + $0x2e0] sm:$0xf]
    %v564 = vld [vmem:[%s2 + $0x2e4] sm:$0xf]
    %v565 = vld [vmem:[%s2 + $0x2e8] sm:$0xf]
    %v566 = vld [vmem:[%s2 + $0x2ec] sm:$0xf]
    %v567 = vld [vmem:[%s2 + $0x2f0] sm:$0xf]
    %v568 = vld [vmem:[%s2 + $0x2f4] sm:$0xf]
    %v569 = vld [vmem:[%s2 + $0x2f8] sm:$0xf]
    %v570 = vld [vmem:[%s2 + $0x2fc] sm:$0xf]
    %v571 = vld [vmem:[%s2 + $0x300] sm:$0xf]
    %v572 = vld [vmem:[%s2 + $0x304] sm:$0xf]
    %v573 = vld [vmem:[%s2 + $0x308] sm:$0xf]
    %v574 = vld [vmem:[%s2 + $0x30c] sm:$0xf]
    %v575 = vld [vmem:[%s2 + $0x310] sm:$0xf]
    %v576 = vld [vmem:[%s2 + $0x314] sm:$0xf]
    %v577 = vld [vmem:[%s2 + $0x318] sm:$0xf]
    %v578 = vld [vmem:[%s2 + $0x31c] sm:$0xf]
    %v579 = vld [vmem:[%s2 + $0x320] sm:$0xf]
    %v580 = vld [vmem:[%s2 + $0x324] sm:$0xf]
    %v581 = vld [vmem:[%s2 + $0x328] sm:$0xf]
    %v582 = vld [vmem:[%s2 + $0x32c] sm:$0xf]
    %v583 = vld [vmem:[%s2 + $0x330] sm:$0xf]
    %v584 = vld [vmem:[%s2 + $0x334] sm:$0xf]
    %v585 = vld [vmem:[%s2 + $0x338] sm:$0xf]
    %v586 = vld [vmem:[%s2 + $0x33c] sm:$0xf]
    %v587 = vld [vmem:[%s2 + $0x340] sm:$0xf]
    %v588 = vld [vmem:[%s2 + $0x344] sm:$0xf]
    %v589 = vld [vmem:[%s2 + $0x348] sm:$0xf]
    %v590 = vld [vmem:[%s2 + $0x34c] sm:$0xf]
    %v591 = vld [vmem:[%s2 + $0x350] sm:$0xf]
    %v592 = vld [vmem:[%s2 + $0x354] sm:$0xf]
    %v593 = vld [vmem:[%s2 + $0x358] sm:$0xf]
    %v594 = vld [vmem:[%s2 + $0x35c] sm:$0xf]
    %v595 = vld [vmem:[%s2 + $0x360] sm:$0xf]
    %v596 = vld [vmem:[%s2 + $0x364] sm:$0xf]
    %v597 = vld [vmem:[%s2 + $0x368] sm:$0xf]
    %v598 = vld [vmem:[%s2 + $0x36c] sm:$0xf]
    %v599 = vld [vmem:[%s2 + $0x370] sm:$0xf]
    %v600 = vld [vmem:[%s2 + $0x374] sm:$0xf]
    %v601 = vld [vmem:[%s2 + $0x378] sm:$0xf]
    %v602 = vld [vmem:[%s2 + $0x37c] sm:$0xf]
    %v603 = vld [vmem:[%s2 + $0x380] sm:$0xf]
    %v604 = vld [vmem:[%s2 + $0x384] sm:$0xf]
    %v605 = vld [vmem:[%s2 + $0x388] sm:$0xf]
    %v606 = vld [vmem:[%s2 + $0x38c] sm:$0xf]
    %v607 = vld [vmem:[%s2 + $0x390] sm:$0xf]
    %v608 = vld [vmem:[%s2 + $0x394] sm:$0xf]
    %v609 = vld [vmem:[%s2 + $0x398] sm:$0xf]
    %v610 = vld [vmem:[%s2 + $0x39c] sm:$0xf]
    %v611 = vld [vmem:[%s2 + $0x3a0] sm:$0xf]
    %v612 = vld [vmem:[%s2 + $0x3a4] sm:$0xf]
    %v613 = vld [vmem:[%s2 + $0x3a8] sm:$0xf]
    %v614 = vld [vmem:[%s2 + $0x3ac] sm:$0xf]
    %v615 = vld [vmem:[%s2 + $0x3b0] sm:$0xf]
    %v616 = vld [vmem:[%s2 + $0x3b4] sm:$0xf]
    %v617 = vld [vmem:[%s2 + $0x3b8] sm:$0xf]
    %v618 = vld [vmem:[%s2 + $0x3bc] sm:$0xf]
    %v619 = vld [vmem:[%s2 + $0x3c0] sm:$0xf]
    %v620 = vld [vmem:[%s2 + $0x3c4] sm:$0xf]
    %v621 = vld [vmem:[%s2 + $0x3c8] sm:$0xf]
    %v622 = vld [vmem:[%s2 + $0x3cc] sm:$0xf]
    %v623 = vld [vmem:[%s2 + $0x3d0] sm:$0xf]
    %v624 = vld [vmem:[%s2 + $0x3d4] sm:$0xf]
    %v625 = vld [vmem:[%s2 + $0x3d8] sm:$0xf]
    %v626 = vld [vmem:[%s2 + $0x3dc] sm:$0xf]
    %v627 = vld [vmem:[%s2 + $0x3e0] sm:$0xf]
    %v628 = vld [vmem:[%s2 + $0x3e4] sm:$0xf]
    %v629 = vld [vmem:[%s2 + $0x3e8] sm:$0xf]
    %v630 = vld [vmem:[%s2 + $0x3ec] sm:$0xf]
    %v631 = vld [vmem:[%s2 + $0x3f0] sm:$0xf]
    %v632 = vld [vmem:[%s2 + $0x3f4] sm:$0xf]
    %v633 = vld [vmem:[%s2 + $0x3f8] sm:$0xf]
    %v634 = vld [vmem:[%s2 + $0x3fc] sm:$0xf]
    %v635 = vld [vmem:[%s2 + $0x400] sm:$0xf]
    %v636 = vld [vmem:[%s2 + $0x404] sm:$0xf]
    %v637 = vld [vmem:[%s2 + $0x408] sm:$0xf]
    %v638 = vld [vmem:[%s2 + $0x40c] sm:$0xf]
    %v639 = vld [vmem:[%s2 + $0x410] sm:$0xf]
    %v640 = vld [vmem:[%s2 + $0x414] sm:$0xf]
    %v641 = vld [vmem:[%s2 + $0x418] sm:$0xf]
    %v642 = vld [vmem:[%s2 + $0x41c] sm:$0xf]
    %v643 = vld [vmem:[%s2 + $0x420] sm:$0xf]
    %v644 = vld [vmem:[%s2 + $0x424] sm:$0xf]
    %v645 = vld [vmem:[%s2 + $0x428] sm:$0xf]
    %v646 = vld [vmem:[%s2 + $0x42c] sm:$0xf]
    %v647 = vld [vmem:[%s2 + $0x430] sm:$0xf]
    %v648 = vld [vmem:[%s2 + $0x434] sm:$0xf]
    %v649 = vld [vmem:[%s2 + $0x438] sm:$0xf]
    %v650 = vld [vmem:[%s2 + $0x43c] sm:$0xf]
    %v651 = vld [vmem:[%s2 + $0x440] sm:$0xf]
    %v652 = vld [vmem:[%s2 + $0x444] sm:$0xf]
    %v653 = vld [vmem:[%s2 + $0x448] sm:$0xf]
    %v654 = vld [vmem:[%s2 + $0x44c] sm:$0xf]
    %v655 = vld [vmem:[%s2 + $0x450] sm:$0xf]
    %v656 = vld [vmem:[%s2 + $0x454] sm:$0xf]
    %v657 = vld [vmem:[%s2 + $0x458] sm:$0xf]
    %v658 = vld [vmem:[%s2 + $0x45c] sm:$0xf]
    %v659 = vld [vmem:[%s2 + $0x460] sm:$0xf]
    %v660 = vld [vmem:[%s2 + $0x464] sm:$0xf]
    %v661 = vld [vmem:[%s2 + $0x468] sm:$0xf]
    %v662 = vld [vmem:[%s2 + $0x46c] sm:$0xf]
    %v663 = vld [vmem:[%s2 + $0x470] sm:$0xf]
    %v664 = vld [vmem:[%s2 + $0x474] sm:$0xf]
    %v665 = vld [vmem:[%s2 + $0x478] sm:$0xf]
    %v666 = vld [vmem:[%s2 + $0x47c] sm:$0xf]
    %v667 = vld [vmem:[%s2 + $0x480] sm:$0xf]
    %v668 = vld [vmem:[%s2 + $0x484] sm:$0xf]
    %v669 = vld [vmem:[%s2 + $0x488] sm:$0xf]
    %v670 = vld [vmem:[%s2 + $0x48c] sm:$0xf]
    %v671 = vld [vmem:[%s2 + $0x490] sm:$0xf]
    %v672 = vld [vmem:[%s2 + $0x494] sm:$0xf]
    %v673 = vld [vmem:[%s2 + $0x498] sm:$0xf]
    %v674 = vld [vmem:[%s2 + $0x49c] sm:$0xf]
    %v675 = vld [vmem:[%s2 + $0x4a0] sm:$0xf]
    %v676 = vld [vmem:[%s2 + $0x4a4] sm:$0xf]
    %v677 = vld [vmem:[%s2 + $0x4a8] sm:$0xf]
    %v678 = vld [vmem:[%s2 + $0x4ac] sm:$0xf]
    %v679 = vld [vmem:[%s2 + $0x4b0] sm:$0xf]
    %v680 = vld [vmem:[%s2 + $0x4b4] sm:$0xf]
    %v681 = vld [vmem:[%s2 + $0x4b8] sm:$0xf]
    %v682 = vld [vmem:[%s2 + $0x4bc] sm:$0xf]
    %v683 = vld [vmem:[%s2 + $0x4c0] sm:$0xf]
    %v684 = vld [vmem:[%s2 + $0x4c4] sm:$0xf]
    %v685 = vld [vmem:[%s2 + $0x4c8] sm:$0xf]
    %v686 = vld [vmem:[%s2 + $0x4cc] sm:$0xf]
    %v687 = vld [vmem:[%s2 + $0x4d0] sm:$0xf]
    %v688 = vld [vmem:[%s2 + $0x4d4] sm:$0xf]
    %v689 = vld [vmem:[%s2 + $0x4d8] sm:$0xf]
    %v690 = vld [vmem:[%s2 + $0x4dc] sm:$0xf]
    %v691 = vld [vmem:[%s2 + $0x4e0] sm:$0xf]
    %v692 = vld [vmem:[%s2 + $0x4e4] sm:$0xf]
    %v693 = vld [vmem:[%s2 + $0x4e8] sm:$0xf]
    %v694 = vld [vmem:[%s2 + $0x4ec] sm:$0xf]
    %v695 = vld [vmem:[%s2 + $0x4f0] sm:$0xf]
    %v696 = vld [vmem:[%s2 + $0x4f4] sm:$0xf]
    %v697 = vld [vmem:[%s2 + $0x4f8] sm:$0xf]
    %v698 = vld [vmem:[%s2 + $0x4fc] sm:$0xf]
    %v699 = vld [vmem:[%s2 + $0x500] sm:$0xf]
    %v700 = vld [vmem:[%s2 + $0x504] sm:$0xf]
    %v701 = vld [vmem:[%s2 + $0x508] sm:$0xf]
    %v702 = vld [vmem:[%s2 + $0x50c] sm:$0xf]
    %v703 = vld [vmem:[%s2 + $0x510] sm:$0xf]
    %v704 = vld [vmem:[%s2 + $0x514] sm:$0xf]
    %v705 = vld [vmem:[%s2 + $0x518] sm:$0xf]
    %v706 = vld [vmem:[%s2 + $0x51c] sm:$0xf]
    %v707 = vld [vmem:[%s2 + $0x520] sm:$0xf]
    %v708 = vld [vmem:[%s2 + $0x524] sm:$0xf]
    %v709 = vld [vmem:[%s2 + $0x528] sm:$0xf]
    %v710 = vld [vmem:[%s2 + $0x52c] sm:$0xf]
    %v711 = vld [vmem:[%s2 + $0x530] sm:$0xf]
    %v712 = vld [vmem:[%s2 + $0x534] sm:$0xf]
    %v713 = vld [vmem:[%s2 + $0x538] sm:$0xf]
    %v714 = vld [vmem:[%s2 + $0x53c] sm:$0xf]
    %v715 = vld [vmem:[%s2 + $0x540] sm:$0xf]
    %v716 = vld [vmem:[%s2 + $0x544] sm:$0xf]
    %v717 = vld [vmem:[%s2 + $0x548] sm:$0xf]
    %v718 = vld [vmem:[%s2 + $0x54c] sm:$0xf]
    %v719 = vld [vmem:[%s2 + $0x550] sm:$0xf]
    %v720 = vld [vmem:[%s2 + $0x554] sm:$0xf]
    %v721 = vld [vmem:[%s2 + $0x558] sm:$0xf]
    %v722 = vld [vmem:[%s2 + $0x55c] sm:$0xf]
    %v723 = vld [vmem:[%s2 + $0x560] sm:$0xf]
    %v724 = vld [vmem:[%s2 + $0x564] sm:$0xf]
    %v725 = vld [vmem:[%s2 + $0x568] sm:$0xf]
    %v726 = vld [vmem:[%s2 + $0x56c] sm:$0xf]
    %v727 = vld [vmem:[%s2 + $0x570] sm:$0xf]
    %v728 = vld [vmem:[%s2 + $0x574] sm:$0xf]
    %v729 = vld [vmem:[%s2 + $0x578] sm:$0xf]
    %v730 = vld [vmem:[%s2 + $0x57c] sm:$0xf]
    %v731 = vld [vmem:[%s2 + $0x580] sm:$0xf]
    %v732 = vld [vmem:[%s2 + $0x584] sm:$0xf]
    %v733 = vld [vmem:[%s2 + $0x588] sm:$0xf]
    %v734 = vld [vmem:[%s2 + $0x58c] sm:$0xf]
    %v735 = vld [vmem:[%s2 + $0x590] sm:$0xf]
    %v736 = vld [vmem:[%s2 + $0x594] sm:$0xf]
    %v737 = vld [vmem:[%s2 + $0x598] sm:$0xf]
    %v738 = vld [vmem:[%s2 + $0x59c] sm:$0xf]
    %v739 = vld [vmem:[%s2 + $0x5a0] sm:$0xf]
    %v740 = vld [vmem:[%s2 + $0x5a4] sm:$0xf]
    %v741 = vld [vmem:[%s2 + $0x5a8] sm:$0xf]
    %v742 = vld [vmem:[%s2 + $0x5ac] sm:$0xf]
    %v743 = vld [vmem:[%s2 + $0x5b0] sm:$0xf]
    %v744 = vld [vmem:[%s2 + $0x5b4] sm:$0xf]
    %v745 = vld [vmem:[%s2 + $0x5b8] sm:$0xf]
    %v746 = vld [vmem:[%s2 + $0x5bc] sm:$0xf]
    %v747 = vld [vmem:[%s2 + $0x5c0] sm:$0xf]
    %v748 = vld [vmem:[%s2 + $0x5c4] sm:$0xf]
    %v749 = vld [vmem:[%s2 + $0x5c8] sm:$0xf]
    %v750 = vld [vmem:[%s2 + $0x5cc] sm:$0xf]
    %v751 = vld [vmem:[%s2 + $0x5d0] sm:$0xf]
    %v752 = vld [vmem:[%s2 + $0x5d4] sm:$0xf]
    %v753 = vld [vmem:[%s2 + $0x5d8] sm:$0xf]
    %v754 = vld [vmem:[%s2 + $0x5dc] sm:$0xf]
    %v755 = vld [vmem:[%s2 + $0x5e0] sm:$0xf]
    %v756 = vld [vmem:[%s2 + $0x5e4] sm:$0xf]
    %v757 = vld [vmem:[%s2 + $0x5e8] sm:$0xf]
    %v758 = vld [vmem:[%s2 + $0x5ec] sm:$0xf]
    %v759 = vld [vmem:[%s2 + $0x5f0] sm:$0xf]
    %v760 = vld [vmem:[%s2 + $0x5f4] sm:$0xf]
    %v761 = vld [vmem:[%s2 + $0x5f8] sm:$0xf]
    %v762 = vld [vmem:[%s2 + $0x5fc] sm:$0xf]
    %v763 = vld [vmem:[%s2 + $0x600] sm:$0xf]
    %v764 = vld [vmem:[%s2 + $0x604] sm:$0xf]
    %v765 = vld [vmem:[%s2 + $0x608] sm:$0xf]
    %v766 = vld [vmem:[%s2 + $0x60c] sm:$0xf]
    %v767 = vld [vmem:[%s2 + $0x610] sm:$0xf]
    %v768 = vld [vmem:[%s2 + $0x614] sm:$0xf]
    %v769 = vld [vmem:[%s2 + $0x618] sm:$0xf]
    %v770 = vld [vmem:[%s2 + $0x61c] sm:$0xf]
    %v771 = vld [vmem:[%s2 + $0x620] sm:$0xf]
    %v772 = vld [vmem:[%s2 + $0x624] sm:$0xf]
    %v773 = vld [vmem:[%s2 + $0x628] sm:$0xf]
    %v774 = vld [vmem:[%s2 + $0x62c] sm:$0xf]
    %v775 = vld [vmem:[%s2 + $0x630] sm:$0xf]
    %v776 = vld [vmem:[%s2 + $0x634] sm:$0xf]
    %v777 = vld [vmem:[%s2 + $0x638] sm:$0xf]
    %v778 = vld [vmem:[%s2 + $0x63c] sm:$0xf]
    %v779 = vld [vmem:[%s2 + $0x640] sm:$0xf]
    %v780 = vld [vmem:[%s2 + $0x644] sm:$0xf]
    %v781 = vld [vmem:[%s2 + $0x648] sm:$0xf]
    %v782 = vld [vmem:[%s2 + $0x64c] sm:$0xf]
    %v783 = vld [vmem:[%s2 + $0x650] sm:$0xf]
    %v784 = vld [vmem:[%s2 + $0x654] sm:$0xf]
    %v785 = vld [vmem:[%s2 + $0x658] sm:$0xf]
    %v786 = vld [vmem:[%s2 + $0x65c] sm:$0xf]
    %v787 = vld [vmem:[%s2 + $0x660] sm:$0xf]
    %v788 = vld [vmem:[%s2 + $0x664] sm:$0xf]
    %v789 = vld [vmem:[%s2 + $0x668] sm:$0xf]
    %v790 = vld [vmem:[%s2 + $0x66c] sm:$0xf]
    %v791 = vld [vmem:[%s2 + $0x670] sm:$0xf]
    %v792 = vld [vmem:[%s2 + $0x674] sm:$0xf]
    %v793 = vld [vmem:[%s2 + $0x678] sm:$0xf]
    %v794 = vld [vmem:[%s2 + $0x67c] sm:$0xf]
    %v795 = vld [vmem:[%s2 + $0x680] sm:$0xf]
    %v796 = vld [vmem:[%s2 + $0x684] sm:$0xf]
    %v797 = vld [vmem:[%s2 + $0x688] sm:$0xf]
    %v798 = vld [vmem:[%s2 + $0x68c] sm:$0xf]
    %v799 = vld [vmem:[%s2 + $0x690] sm:$0xf]
    %v800 = vld [vmem:[%s2 + $0x694] sm:$0xf]
    %v801 = vld [vmem:[%s2 + $0x698] sm:$0xf]
    %v802 = vld [vmem:[%s2 + $0x69c] sm:$0xf]
    %v803 = vld [vmem:[%s2 + $0x6a0] sm:$0xf]
    %v804 = vld [vmem:[%s2 + $0x6a4] sm:$0xf]
    %v805 = vld [vmem:[%s2 + $0x6a8] sm:$0xf]
    %v806 = vld [vmem:[%s2 + $0x6ac] sm:$0xf]
    %v807 = vld [vmem:[%s2 + $0x6b0] sm:$0xf]
    %v808 = vld [vmem:[%s2 + $0x6b4] sm:$0xf]
    %v809 = vld [vmem:[%s2 + $0x6b8] sm:$0xf]
    %v810 = vld [vmem:[%s2 + $0x6bc] sm:$0xf]
    %v811 = vld [vmem:[%s2 + $0x6c0] sm:$0xf]
    %v812 = vld [vmem:[%s2 + $0x6c4] sm:$0xf]
    %v813 = vld [vmem:[%s2 + $0x6c8] sm:$0xf]
    %v814 = vld [vmem:[%s2 + $0x6cc] sm:$0xf]
    %v815 = vld [vmem:[%s2 + $0x6d0] sm:$0xf]
    %v816 = vld [vmem:[%s2 + $0x6d4] sm:$0xf]
    %v817 = vld [vmem:[%s2 + $0x6d8] sm:$0xf]
    %v818 = vld [vmem:[%s2 + $0x6dc] sm:$0xf]
    %v819 = vld [vmem:[%s2 + $0x6e0] sm:$0xf]
    %v820 = vld [vmem:[%s2 + $0x6e4] sm:$0xf]
    %v821 = vld [vmem:[%s2 + $0x6e8] sm:$0xf]
    %v822 = vld [vmem:[%s2 + $0x6ec] sm:$0xf]
    %v823 = vld [vmem:[%s2 + $0x6f0] sm:$0xf]
    %v824 = vld [vmem:[%s2 + $0x6f4] sm:$0xf]
    %v825 = vld [vmem:[%s2 + $0x6f8] sm:$0xf]
    %v826 = vld [vmem:[%s2 + $0x6fc] sm:$0xf]
    %v827 = vld [vmem:[%s2 + $0x700] sm:$0xf]
    %v828 = vld [vmem:[%s2 + $0x704] sm:$0xf]
    %v829 = vld [vmem:[%s2 + $0x708] sm:$0xf]
    %v830 = vld [vmem:[%s2 + $0x70c] sm:$0xf]
    %v831 = vld [vmem:[%s2 + $0x710] sm:$0xf]
    %v832 = vld [vmem:[%s2 + $0x714] sm:$0xf]
    %v833 = vld [vmem:[%s2 + $0x718] sm:$0xf]
    %v834 = vld [vmem:[%s2 + $0x71c] sm:$0xf]
    %v835 = vld [vmem:[%s2 + $0x720] sm:$0xf]
    %v836 = vld [vmem:[%s2 + $0x724] sm:$0xf]
    %v837 = vld [vmem:[%s2 + $0x728] sm:$0xf]
    %v838 = vld [vmem:[%s2 + $0x72c] sm:$0xf]
    %v839 = vld [vmem:[%s2 + $0x730] sm:$0xf]
    %v840 = vld [vmem:[%s2 + $0x734] sm:$0xf]
    %v841 = vld [vmem:[%s2 + $0x738] sm:$0xf]
    %v842 = vld [vmem:[%s2 + $0x73c] sm:$0xf]
    %v843 = vld [vmem:[%s2 + $0x740] sm:$0xf]
    %v844 = vld [vmem:[%s2 + $0x744] sm:$0xf]
    %v845 = vld [vmem:[%s2 + $0x748] sm:$0xf]
    %v846 = vld [vmem:[%s2 + $0x74c] sm:$0xf]
    %v847 = vld [vmem:[%s2 + $0x750] sm:$0xf]
    %v848 = vld [vmem:[%s2 + $0x754] sm:$0xf]
    %v849 = vld [vmem:[%s2 + $0x758] sm:$0xf]
    %v850 = vld [vmem:[%s2 + $0x75c] sm:$0xf]
    %v851 = vld [vmem:[%s2 + $0x760] sm:$0xf]
    %v852 = vld [vmem:[%s2 + $0x764] sm:$0xf]
    %v853 = vld [vmem:[%s2 + $0x768] sm:$0xf]
    %v854 = vld [vmem:[%s2 + $0x76c] sm:$0xf]
    %v855 = vld [vmem:[%s2 + $0x770] sm:$0xf]
    %v856 = vld [vmem:[%s2 + $0x774] sm:$0xf]
    %v857 = vld [vmem:[%s2 + $0x778] sm:$0xf]
    %v858 = vld [vmem:[%s2 + $0x77c] sm:$0xf]
    %v859 = vld [vmem:[%s2 + $0x780] sm:$0xf]
    %v860 = vld [vmem:[%s2 + $0x784] sm:$0xf]
    %v861 = vld [vmem:[%s2 + $0x788] sm:$0xf]
    %v862 = vld [vmem:[%s2 + $0x78c] sm:$0xf]
    %v863 = vld [vmem:[%s2 + $0x790] sm:$0xf]
    %v864 = vld [vmem:[%s2 + $0x794] sm:$0xf]
    %v865 = vld [vmem:[%s2 + $0x798] sm:$0xf]
    %v866 = vld [vmem:[%s2 + $0x79c] sm:$0xf]
    %v867 = vld [vmem:[%s2 + $0x7a0] sm:$0xf]
    %v868 = vld [vmem:[%s2 + $0x7a4] sm:$0xf]
    %v869 = vld [vmem:[%s2 + $0x7a8] sm:$0xf]
    %v870 = vld [vmem:[%s2 + $0x7ac] sm:$0xf]
    %v871 = vld [vmem:[%s2 + $0x7b0] sm:$0xf]
    %v872 = vld [vmem:[%s2 + $0x7b4] sm:$0xf]
    %v873 = vld [vmem:[%s2 + $0x7b8] sm:$0xf]
    %v874 = vld [vmem:[%s2 + $0x7bc] sm:$0xf]
    %v875 = vld [vmem:[%s2 + $0x7c0] sm:$0xf]
    %v876 = vld [vmem:[%s2 + $0x7c4] sm:$0xf]
    %v877 = vld [vmem:[%s2 + $0x7c8] sm:$0xf]
    %v878 = vld [vmem:[%s2 + $0x7cc] sm:$0xf]
    %v879 = vld [vmem:[%s2 + $0x7d0] sm:$0xf]
    %v880 = vld [vmem:[%s2 + $0x7d4] sm:$0xf]
    %v881 = vld [vmem:[%s2 + $0x7d8] sm:$0xf]
    %v882 = vld [vmem:[%s2 + $0x7dc] sm:$0xf]
    %v883 = vld [vmem:[%s2 + $0x7e0] sm:$0xf]
    %v884 = vld [vmem:[%s2 + $0x7e4] sm:$0xf]
    %v885 = vld [vmem:[%s2 + $0x7e8] sm:$0xf]
    %v886 = vld [vmem:[%s2 + $0x7ec] sm:$0xf]
    %v887 = vld [vmem:[%s2 + $0x7f0] sm:$0xf]
    %v888 = vld [vmem:[%s2 + $0x7f4] sm:$0xf]
    %v889 = vld [vmem:[%s2 + $0x7f8] sm:$0xf]
    %v890 = vld [vmem:[%s2 + $0x7fc] sm:$0xf]
    %v891 = vld [vmem:[%s3] sm:$0x1]
    %v893 = vlaneseq
    %v894 = vshrl.u32 %v893, 7
    %v895 = vsub.s32 0, %v894
    %v896 = vrot.slane %v891, %v895
    %v1410 = vunpack.c.l.b16 %v379
    %v1411 = vunpack.c.l.b16 %v380
    %v1412 = vunpack.c.l.b16 %v381
    %v1413 = vunpack.c.l.b16 %v382
    %v1414 = vunpack.c.l.b16 %v383
    %v1415 = vunpack.c.l.b16 %v384
    %v1416 = vunpack.c.l.b16 %v385
    %v1417 = vunpack.c.l.b16 %v386
    %v1418 = vunpack.c.l.b16 %v387
    %v1419 = vunpack.c.l.b16 %v388
    %v1420 = vunpack.c.l.b16 %v389
    %v1421 = vunpack.c.l.b16 %v390
    %v1422 = vunpack.c.l.b16 %v391
    %v1423 = vunpack.c.l.b16 %v392
    %v1424 = vunpack.c.l.b16 %v393
    %v1425 = vunpack.c.l.b16 %v394
    %v1426 = vunpack.c.l.b16 %v395
    %v1427 = vunpack.c.l.b16 %v396
    %v1428 = vunpack.c.l.b16 %v397
    %v1429 = vunpack.c.l.b16 %v398
    %v1430 = vunpack.c.l.b16 %v399
    %v1431 = vunpack.c.l.b16 %v400
    %v1432 = vunpack.c.l.b16 %v401
    %v1433 = vunpack.c.l.b16 %v402
    %v1434 = vunpack.c.l.b16 %v403
    %v1435 = vunpack.c.l.b16 %v404
    %v1436 = vunpack.c.l.b16 %v405
    %v1437 = vunpack.c.l.b16 %v406
    %v1438 = vunpack.c.l.b16 %v407
    %v1439 = vunpack.c.l.b16 %v408
    %v1440 = vunpack.c.l.b16 %v409
    %v1441 = vunpack.c.l.b16 %v410
    %v1442 = vunpack.c.l.b16 %v411
    %v1443 = vunpack.c.l.b16 %v412
    %v1444 = vunpack.c.l.b16 %v413
    %v1445 = vunpack.c.l.b16 %v414
    %v1446 = vunpack.c.l.b16 %v415
    %v1447 = vunpack.c.l.b16 %v416
    %v1448 = vunpack.c.l.b16 %v417
    %v1449 = vunpack.c.l.b16 %v418
    %v1450 = vunpack.c.l.b16 %v419
    %v1451 = vunpack.c.l.b16 %v420
    %v1452 = vunpack.c.l.b16 %v421
    %v1453 = vunpack.c.l.b16 %v422
    %v1454 = vunpack.c.l.b16 %v423
    %v1455 = vunpack.c.l.b16 %v424
    %v1456 = vunpack.c.l.b16 %v425
    %v1457 = vunpack.c.l.b16 %v426
    %v1458 = vunpack.c.l.b16 %v427
    %v1459 = vunpack.c.l.b16 %v428
    %v1460 = vunpack.c.l.b16 %v429
    %v1461 = vunpack.c.l.b16 %v430
    %v1462 = vunpack.c.l.b16 %v431
    %v1463 = vunpack.c.l.b16 %v432
    %v1464 = vunpack.c.l.b16 %v433
    %v1465 = vunpack.c.l.b16 %v434
    %v1466 = vunpack.c.l.b16 %v435
    %v1467 = vunpack.c.l.b16 %v436
    %v1468 = vunpack.c.l.b16 %v437
    %v1469 = vunpack.c.l.b16 %v438
    %v1470 = vunpack.c.l.b16 %v439
    %v1471 = vunpack.c.l.b16 %v440
    %v1472 = vunpack.c.l.b16 %v441
    %v1473 = vunpack.c.l.b16 %v442
    %v1474 = vunpack.c.l.b16 %v443
    %v1475 = vunpack.c.l.b16 %v444
    %v1476 = vunpack.c.l.b16 %v445
    %v1477 = vunpack.c.l.b16 %v446
    %v1478 = vunpack.c.l.b16 %v447
    %v1479 = vunpack.c.l.b16 %v448
    %v1480 = vunpack.c.l.b16 %v449
    %v1481 = vunpack.c.l.b16 %v450
    %v1482 = vunpack.c.l.b16 %v451
    %v1483 = vunpack.c.l.b16 %v452
    %v1484 = vunpack.c.l.b16 %v453
    %v1485 = vunpack.c.l.b16 %v454
    %v1486 = vunpack.c.l.b16 %v455
    %v1487 = vunpack.c.l.b16 %v456
    %v1488 = vunpack.c.l.b16 %v457
    %v1489 = vunpack.c.l.b16 %v458
    %v1490 = vunpack.c.l.b16 %v459
    %v1491 = vunpack.c.l.b16 %v460
    %v1492 = vunpack.c.l.b16 %v461
    %v1493 = vunpack.c.l.b16 %v462
    %v1494 = vunpack.c.l.b16 %v463
    %v1495 = vunpack.c.l.b16 %v464
    %v1496 = vunpack.c.l.b16 %v465
    %v1497 = vunpack.c.l.b16 %v466
    %v1498 = vunpack.c.l.b16 %v467
    %v1499 = vunpack.c.l.b16 %v468
    %v1500 = vunpack.c.l.b16 %v469
    %v1501 = vunpack.c.l.b16 %v470
    %v1502 = vunpack.c.l.b16 %v471
    %v1503 = vunpack.c.l.b16 %v472
    %v1504 = vunpack.c.l.b16 %v473
    %v1505 = vunpack.c.l.b16 %v474
    %v1506 = vunpack.c.l.b16 %v475
    %v1507 = vunpack.c.l.b16 %v476
    %v1508 = vunpack.c.l.b16 %v477
    %v1509 = vunpack.c.l.b16 %v478
    %v1510 = vunpack.c.l.b16 %v479
    %v1511 = vunpack.c.l.b16 %v480
    %v1512 = vunpack.c.l.b16 %v481
    %v1513 = vunpack.c.l.b16 %v482
    %v1514 = vunpack.c.l.b16 %v483
    %v1515 = vunpack.c.l.b16 %v484
    %v1516 = vunpack.c.l.b16 %v485
    %v1517 = vunpack.c.l.b16 %v486
    %v1518 = vunpack.c.l.b16 %v487
    %v1519 = vunpack.c.l.b16 %v488
    %v1520 = vunpack.c.l.b16 %v489
    %v1521 = vunpack.c.l.b16 %v490
    %v1522 = vunpack.c.l.b16 %v491
    %v1523 = vunpack.c.l.b16 %v492
    %v1524 = vunpack.c.l.b16 %v493
    %v1525 = vunpack.c.l.b16 %v494
    %v1526 = vunpack.c.l.b16 %v495
    %v1527 = vunpack.c.l.b16 %v496
    %v1528 = vunpack.c.l.b16 %v497
    %v1529 = vunpack.c.l.b16 %v498
    %v1530 = vunpack.c.l.b16 %v499
    %v1531 = vunpack.c.l.b16 %v500
    %v1532 = vunpack.c.l.b16 %v501
    %v1533 = vunpack.c.l.b16 %v502
    %v1534 = vunpack.c.l.b16 %v503
    %v1535 = vunpack.c.l.b16 %v504
    %v1536 = vunpack.c.l.b16 %v505
    %v1537 = vunpack.c.l.b16 %v506
    %v1538 = vunpack.c.l.b16 %v507
    %v1539 = vunpack.c.l.b16 %v508
    %v1540 = vunpack.c.l.b16 %v509
    %v1541 = vunpack.c.l.b16 %v510
    %v1542 = vunpack.c.l.b16 %v511
    %v1543 = vunpack.c.l.b16 %v512
    %v1544 = vunpack.c.l.b16 %v513
    %v1545 = vunpack.c.l.b16 %v514
    %v1546 = vunpack.c.l.b16 %v515
    %v1547 = vunpack.c.l.b16 %v516
    %v1548 = vunpack.c.l.b16 %v517
    %v1549 = vunpack.c.l.b16 %v518
    %v1550 = vunpack.c.l.b16 %v519
    %v1551 = vunpack.c.l.b16 %v520
    %v1552 = vunpack.c.l.b16 %v521
    %v1553 = vunpack.c.l.b16 %v522
    %v1554 = vunpack.c.l.b16 %v523
    %v1555 = vunpack.c.l.b16 %v524
    %v1556 = vunpack.c.l.b16 %v525
    %v1557 = vunpack.c.l.b16 %v526
    %v1558 = vunpack.c.l.b16 %v527
    %v1559 = vunpack.c.l.b16 %v528
    %v1560 = vunpack.c.l.b16 %v529
    %v1561 = vunpack.c.l.b16 %v530
    %v1562 = vunpack.c.l.b16 %v531
    %v1563 = vunpack.c.l.b16 %v532
    %v1564 = vunpack.c.l.b16 %v533
    %v1565 = vunpack.c.l.b16 %v534
    %v1566 = vunpack.c.l.b16 %v535
    %v1567 = vunpack.c.l.b16 %v536
    %v1568 = vunpack.c.l.b16 %v537
    %v1569 = vunpack.c.l.b16 %v538
    %v1570 = vunpack.c.l.b16 %v539
    %v1571 = vunpack.c.l.b16 %v540
    %v1572 = vunpack.c.l.b16 %v541
    %v1573 = vunpack.c.l.b16 %v542
    %v1574 = vunpack.c.l.b16 %v543
    %v1575 = vunpack.c.l.b16 %v544
    %v1576 = vunpack.c.l.b16 %v545
    %v1577 = vunpack.c.l.b16 %v546
    %v1578 = vunpack.c.l.b16 %v547
    %v1579 = vunpack.c.l.b16 %v548
    %v1580 = vunpack.c.l.b16 %v549
    %v1581 = vunpack.c.l.b16 %v550
    %v1582 = vunpack.c.l.b16 %v551
    %v1583 = vunpack.c.l.b16 %v552
    %v1584 = vunpack.c.l.b16 %v553
    %v1585 = vunpack.c.l.b16 %v554
    %v1586 = vunpack.c.l.b16 %v555
    %v1587 = vunpack.c.l.b16 %v556
    %v1588 = vunpack.c.l.b16 %v557
    %v1589 = vunpack.c.l.b16 %v558
    %v1590 = vunpack.c.l.b16 %v559
    %v1591 = vunpack.c.l.b16 %v560
    %v1592 = vunpack.c.l.b16 %v561
    %v1593 = vunpack.c.l.b16 %v562
    %v1594 = vunpack.c.l.b16 %v563
    %v1595 = vunpack.c.l.b16 %v564
    %v1596 = vunpack.c.l.b16 %v565
    %v1597 = vunpack.c.l.b16 %v566
    %v1598 = vunpack.c.l.b16 %v567
    %v1599 = vunpack.c.l.b16 %v568
    %v1600 = vunpack.c.l.b16 %v569
    %v1601 = vunpack.c.l.b16 %v570
    %v1602 = vunpack.c.l.b16 %v571
    %v1603 = vunpack.c.l.b16 %v572
    %v1604 = vunpack.c.l.b16 %v573
    %v1605 = vunpack.c.l.b16 %v574
    %v1606 = vunpack.c.l.b16 %v575
    %v1607 = vunpack.c.l.b16 %v576
    %v1608 = vunpack.c.l.b16 %v577
    %v1609 = vunpack.c.l.b16 %v578
    %v1610 = vunpack.c.l.b16 %v579
    %v1611 = vunpack.c.l.b16 %v580
    %v1612 = vunpack.c.l.b16 %v581
    %v1613 = vunpack.c.l.b16 %v582
    %v1614 = vunpack.c.l.b16 %v583
    %v1615 = vunpack.c.l.b16 %v584
    %v1616 = vunpack.c.l.b16 %v585
    %v1617 = vunpack.c.l.b16 %v586
    %v1618 = vunpack.c.l.b16 %v587
    %v1619 = vunpack.c.l.b16 %v588
    %v1620 = vunpack.c.l.b16 %v589
    %v1621 = vunpack.c.l.b16 %v590
    %v1622 = vunpack.c.l.b16 %v591
    %v1623 = vunpack.c.l.b16 %v592
    %v1624 = vunpack.c.l.b16 %v593
    %v1625 = vunpack.c.l.b16 %v594
    %v1626 = vunpack.c.l.b16 %v595
    %v1627 = vunpack.c.l.b16 %v596
    %v1628 = vunpack.c.l.b16 %v597
    %v1629 = vunpack.c.l.b16 %v598
    %v1630 = vunpack.c.l.b16 %v599
    %v1631 = vunpack.c.l.b16 %v600
    %v1632 = vunpack.c.l.b16 %v601
    %v1633 = vunpack.c.l.b16 %v602
    %v1634 = vunpack.c.l.b16 %v603
    %v1635 = vunpack.c.l.b16 %v604
    %v1636 = vunpack.c.l.b16 %v605
    %v1637 = vunpack.c.l.b16 %v606
    %v1638 = vunpack.c.l.b16 %v607
    %v1639 = vunpack.c.l.b16 %v608
    %v1640 = vunpack.c.l.b16 %v609
    %v1641 = vunpack.c.l.b16 %v610
    %v1642 = vunpack.c.l.b16 %v611
    %v1643 = vunpack.c.l.b16 %v612
    %v1644 = vunpack.c.l.b16 %v613
    %v1645 = vunpack.c.l.b16 %v614
    %v1646 = vunpack.c.l.b16 %v615
    %v1647 = vunpack.c.l.b16 %v616
    %v1648 = vunpack.c.l.b16 %v617
    %v1649 = vunpack.c.l.b16 %v618
    %v1650 = vunpack.c.l.b16 %v619
    %v1651 = vunpack.c.l.b16 %v620
    %v1652 = vunpack.c.l.b16 %v621
    %v1653 = vunpack.c.l.b16 %v622
    %v1654 = vunpack.c.l.b16 %v623
    %v1655 = vunpack.c.l.b16 %v624
    %v1656 = vunpack.c.l.b16 %v625
    %v1657 = vunpack.c.l.b16 %v626
    %v1658 = vunpack.c.l.b16 %v627
    %v1659 = vunpack.c.l.b16 %v628
    %v1660 = vunpack.c.l.b16 %v629
    %v1661 = vunpack.c.l.b16 %v630
    %v1662 = vunpack.c.l.b16 %v631
    %v1663 = vunpack.c.l.b16 %v632
    %v1664 = vunpack.c.l.b16 %v633
    %v1665 = vunpack.c.l.b16 %v634
    %v1666 = vunpack.c.l.b16 %v635
    %v1667 = vunpack.c.l.b16 %v636
    %v1668 = vunpack.c.l.b16 %v637
    %v1669 = vunpack.c.l.b16 %v638
    %v1670 = vunpack.c.l.b16 %v639
    %v1671 = vunpack.c.l.b16 %v640
    %v1672 = vunpack.c.l.b16 %v641
    %v1673 = vunpack.c.l.b16 %v642
    %v1674 = vunpack.c.l.b16 %v643
    %v1675 = vunpack.c.l.b16 %v644
    %v1676 = vunpack.c.l.b16 %v645
    %v1677 = vunpack.c.l.b16 %v646
    %v1678 = vunpack.c.l.b16 %v647
    %v1679 = vunpack.c.l.b16 %v648
    %v1680 = vunpack.c.l.b16 %v649
    %v1681 = vunpack.c.l.b16 %v650
    %v1682 = vunpack.c.l.b16 %v651
    %v1683 = vunpack.c.l.b16 %v652
    %v1684 = vunpack.c.l.b16 %v653
    %v1685 = vunpack.c.l.b16 %v654
    %v1686 = vunpack.c.l.b16 %v655
    %v1687 = vunpack.c.l.b16 %v656
    %v1688 = vunpack.c.l.b16 %v657
    %v1689 = vunpack.c.l.b16 %v658
    %v1690 = vunpack.c.l.b16 %v659
    %v1691 = vunpack.c.l.b16 %v660
    %v1692 = vunpack.c.l.b16 %v661
    %v1693 = vunpack.c.l.b16 %v662
    %v1694 = vunpack.c.l.b16 %v663
    %v1695 = vunpack.c.l.b16 %v664
    %v1696 = vunpack.c.l.b16 %v665
    %v1697 = vunpack.c.l.b16 %v666
    %v1698 = vunpack.c.l.b16 %v667
    %v1699 = vunpack.c.l.b16 %v668
    %v1700 = vunpack.c.l.b16 %v669
    %v1701 = vunpack.c.l.b16 %v670
    %v1702 = vunpack.c.l.b16 %v671
    %v1703 = vunpack.c.l.b16 %v672
    %v1704 = vunpack.c.l.b16 %v673
    %v1705 = vunpack.c.l.b16 %v674
    %v1706 = vunpack.c.l.b16 %v675
    %v1707 = vunpack.c.l.b16 %v676
    %v1708 = vunpack.c.l.b16 %v677
    %v1709 = vunpack.c.l.b16 %v678
    %v1710 = vunpack.c.l.b16 %v679
    %v1711 = vunpack.c.l.b16 %v680
    %v1712 = vunpack.c.l.b16 %v681
    %v1713 = vunpack.c.l.b16 %v682
    %v1714 = vunpack.c.l.b16 %v683
    %v1715 = vunpack.c.l.b16 %v684
    %v1716 = vunpack.c.l.b16 %v685
    %v1717 = vunpack.c.l.b16 %v686
    %v1718 = vunpack.c.l.b16 %v687
    %v1719 = vunpack.c.l.b16 %v688
    %v1720 = vunpack.c.l.b16 %v689
    %v1721 = vunpack.c.l.b16 %v690
    %v1722 = vunpack.c.l.b16 %v691
    %v1723 = vunpack.c.l.b16 %v692
    %v1724 = vunpack.c.l.b16 %v693
    %v1725 = vunpack.c.l.b16 %v694
    %v1726 = vunpack.c.l.b16 %v695
    %v1727 = vunpack.c.l.b16 %v696
    %v1728 = vunpack.c.l.b16 %v697
    %v1729 = vunpack.c.l.b16 %v698
    %v1730 = vunpack.c.l.b16 %v699
    %v1731 = vunpack.c.l.b16 %v700
    %v1732 = vunpack.c.l.b16 %v701
    %v1733 = vunpack.c.l.b16 %v702
    %v1734 = vunpack.c.l.b16 %v703
    %v1735 = vunpack.c.l.b16 %v704
    %v1736 = vunpack.c.l.b16 %v705
    %v1737 = vunpack.c.l.b16 %v706
    %v1738 = vunpack.c.l.b16 %v707
    %v1739 = vunpack.c.l.b16 %v708
    %v1740 = vunpack.c.l.b16 %v709
    %v1741 = vunpack.c.l.b16 %v710
    %v1742 = vunpack.c.l.b16 %v711
    %v1743 = vunpack.c.l.b16 %v712
    %v1744 = vunpack.c.l.b16 %v713
    %v1745 = vunpack.c.l.b16 %v714
    %v1746 = vunpack.c.l.b16 %v715
    %v1747 = vunpack.c.l.b16 %v716
    %v1748 = vunpack.c.l.b16 %v717
    %v1749 = vunpack.c.l.b16 %v718
    %v1750 = vunpack.c.l.b16 %v719
    %v1751 = vunpack.c.l.b16 %v720
    %v1752 = vunpack.c.l.b16 %v721
    %v1753 = vunpack.c.l.b16 %v722
    %v1754 = vunpack.c.l.b16 %v723
    %v1755 = vunpack.c.l.b16 %v724
    %v1756 = vunpack.c.l.b16 %v725
    %v1757 = vunpack.c.l.b16 %v726
    %v1758 = vunpack.c.l.b16 %v727
    %v1759 = vunpack.c.l.b16 %v728
    %v1760 = vunpack.c.l.b16 %v729
    %v1761 = vunpack.c.l.b16 %v730
    %v1762 = vunpack.c.l.b16 %v731
    %v1763 = vunpack.c.l.b16 %v732
    %v1764 = vunpack.c.l.b16 %v733
    %v1765 = vunpack.c.l.b16 %v734
    %v1766 = vunpack.c.l.b16 %v735
    %v1767 = vunpack.c.l.b16 %v736
    %v1768 = vunpack.c.l.b16 %v737
    %v1769 = vunpack.c.l.b16 %v738
    %v1770 = vunpack.c.l.b16 %v739
    %v1771 = vunpack.c.l.b16 %v740
    %v1772 = vunpack.c.l.b16 %v741
    %v1773 = vunpack.c.l.b16 %v742
    %v1774 = vunpack.c.l.b16 %v743
    %v1775 = vunpack.c.l.b16 %v744
    %v1776 = vunpack.c.l.b16 %v745
    %v1777 = vunpack.c.l.b16 %v746
    %v1778 = vunpack.c.l.b16 %v747
    %v1779 = vunpack.c.l.b16 %v748
    %v1780 = vunpack.c.l.b16 %v749
    %v1781 = vunpack.c.l.b16 %v750
    %v1782 = vunpack.c.l.b16 %v751
    %v1783 = vunpack.c.l.b16 %v752
    %v1784 = vunpack.c.l.b16 %v753
    %v1785 = vunpack.c.l.b16 %v754
    %v1786 = vunpack.c.l.b16 %v755
    %v1787 = vunpack.c.l.b16 %v756
    %v1788 = vunpack.c.l.b16 %v757
    %v1789 = vunpack.c.l.b16 %v758
    %v1790 = vunpack.c.l.b16 %v759
    %v1791 = vunpack.c.l.b16 %v760
    %v1792 = vunpack.c.l.b16 %v761
    %v1793 = vunpack.c.l.b16 %v762
    %v1794 = vunpack.c.l.b16 %v763
    %v1795 = vunpack.c.l.b16 %v764
    %v1796 = vunpack.c.l.b16 %v765
    %v1797 = vunpack.c.l.b16 %v766
    %v1798 = vunpack.c.l.b16 %v767
    %v1799 = vunpack.c.l.b16 %v768
    %v1800 = vunpack.c.l.b16 %v769
    %v1801 = vunpack.c.l.b16 %v770
    %v1802 = vunpack.c.l.b16 %v771
    %v1803 = vunpack.c.l.b16 %v772
    %v1804 = vunpack.c.l.b16 %v773
    %v1805 = vunpack.c.l.b16 %v774
    %v1806 = vunpack.c.l.b16 %v775
    %v1807 = vunpack.c.l.b16 %v776
    %v1808 = vunpack.c.l.b16 %v777
    %v1809 = vunpack.c.l.b16 %v778
    %v1810 = vunpack.c.l.b16 %v779
    %v1811 = vunpack.c.l.b16 %v780
    %v1812 = vunpack.c.l.b16 %v781
    %v1813 = vunpack.c.l.b16 %v782
    %v1814 = vunpack.c.l.b16 %v783
    %v1815 = vunpack.c.l.b16 %v784
    %v1816 = vunpack.c.l.b16 %v785
    %v1817 = vunpack.c.l.b16 %v786
    %v1818 = vunpack.c.l.b16 %v787
    %v1819 = vunpack.c.l.b16 %v788
    %v1820 = vunpack.c.l.b16 %v789
    %v1821 = vunpack.c.l.b16 %v790
    %v1822 = vunpack.c.l.b16 %v791
    %v1823 = vunpack.c.l.b16 %v792
    %v1824 = vunpack.c.l.b16 %v793
    %v1825 = vunpack.c.l.b16 %v794
    %v1826 = vunpack.c.l.b16 %v795
    %v1827 = vunpack.c.l.b16 %v796
    %v1828 = vunpack.c.l.b16 %v797
    %v1829 = vunpack.c.l.b16 %v798
    %v1830 = vunpack.c.l.b16 %v799
    %v1831 = vunpack.c.l.b16 %v800
    %v1832 = vunpack.c.l.b16 %v801
    %v1833 = vunpack.c.l.b16 %v802
    %v1834 = vunpack.c.l.b16 %v803
    %v1835 = vunpack.c.l.b16 %v804
    %v1836 = vunpack.c.l.b16 %v805
    %v1837 = vunpack.c.l.b16 %v806
    %v1838 = vunpack.c.l.b16 %v807
    %v1839 = vunpack.c.l.b16 %v808
    %v1840 = vunpack.c.l.b16 %v809
    %v1841 = vunpack.c.l.b16 %v810
    %v1842 = vunpack.c.l.b16 %v811
    %v1843 = vunpack.c.l.b16 %v812
    %v1844 = vunpack.c.l.b16 %v813
    %v1845 = vunpack.c.l.b16 %v814
    %v1846 = vunpack.c.l.b16 %v815
    %v1847 = vunpack.c.l.b16 %v816
    %v1848 = vunpack.c.l.b16 %v817
    %v1849 = vunpack.c.l.b16 %v818
    %v1850 = vunpack.c.l.b16 %v819
    %v1851 = vunpack.c.l.b16 %v820
    %v1852 = vunpack.c.l.b16 %v821
    %v1853 = vunpack.c.l.b16 %v822
    %v1854 = vunpack.c.l.b16 %v823
    %v1855 = vunpack.c.l.b16 %v824
    %v1856 = vunpack.c.l.b16 %v825
    %v1857 = vunpack.c.l.b16 %v826
    %v1858 = vunpack.c.l.b16 %v827
    %v1859 = vunpack.c.l.b16 %v828
    %v1860 = vunpack.c.l.b16 %v829
    %v1861 = vunpack.c.l.b16 %v830
    %v1862 = vunpack.c.l.b16 %v831
    %v1863 = vunpack.c.l.b16 %v832
    %v1864 = vunpack.c.l.b16 %v833
    %v1865 = vunpack.c.l.b16 %v834
    %v1866 = vunpack.c.l.b16 %v835
    %v1867 = vunpack.c.l.b16 %v836
    %v1868 = vunpack.c.l.b16 %v837
    %v1869 = vunpack.c.l.b16 %v838
    %v1870 = vunpack.c.l.b16 %v839
    %v1871 = vunpack.c.l.b16 %v840
    %v1872 = vunpack.c.l.b16 %v841
    %v1873 = vunpack.c.l.b16 %v842
    %v1874 = vunpack.c.l.b16 %v843
    %v1875 = vunpack.c.l.b16 %v844
    %v1876 = vunpack.c.l.b16 %v845
    %v1877 = vunpack.c.l.b16 %v846
    %v1878 = vunpack.c.l.b16 %v847
    %v1879 = vunpack.c.l.b16 %v848
    %v1880 = vunpack.c.l.b16 %v849
    %v1881 = vunpack.c.l.b16 %v850
    %v1882 = vunpack.c.l.b16 %v851
    %v1883 = vunpack.c.l.b16 %v852
    %v1884 = vunpack.c.l.b16 %v853
    %v1885 = vunpack.c.l.b16 %v854
    %v1886 = vunpack.c.l.b16 %v855
    %v1887 = vunpack.c.l.b16 %v856
    %v1888 = vunpack.c.l.b16 %v857
    %v1889 = vunpack.c.l.b16 %v858
    %v1890 = vunpack.c.l.b16 %v859
    %v1891 = vunpack.c.l.b16 %v860
    %v1892 = vunpack.c.l.b16 %v861
    %v1893 = vunpack.c.l.b16 %v862
    %v1894 = vunpack.c.l.b16 %v863
    %v1895 = vunpack.c.l.b16 %v864
    %v1896 = vunpack.c.l.b16 %v865
    %v1897 = vunpack.c.l.b16 %v866
    %v1898 = vunpack.c.l.b16 %v867
    %v1899 = vunpack.c.l.b16 %v868
    %v1900 = vunpack.c.l.b16 %v869
    %v1901 = vunpack.c.l.b16 %v870
    %v1902 = vunpack.c.l.b16 %v871
    %v1903 = vunpack.c.l.b16 %v872
    %v1904 = vunpack.c.l.b16 %v873
    %v1905 = vunpack.c.l.b16 %v874
    %v1906 = vunpack.c.l.b16 %v875
    %v1907 = vunpack.c.l.b16 %v876
    %v1908 = vunpack.c.l.b16 %v877
    %v1909 = vunpack.c.l.b16 %v878
    %v1910 = vunpack.c.l.b16 %v879
    %v1911 = vunpack.c.l.b16 %v880
    %v1912 = vunpack.c.l.b16 %v881
    %v1913 = vunpack.c.l.b16 %v882
    %v1914 = vunpack.c.l.b16 %v883
    %v1915 = vunpack.c.l.b16 %v884
    %v1916 = vunpack.c.l.b16 %v885
    %v1917 = vunpack.c.l.b16 %v886
    %v1918 = vunpack.c.l.b16 %v887
    %v1919 = vunpack.c.l.b16 %v888
    %v1920 = vunpack.c.l.b16 %v889
    %v1921 = vunpack.c.l.b16 %v890
    %v1922 = vpack.c.b16 %v1411, %v1410
    %v1923 = vpack.c.b16 %v1413, %v1412
    %v1924 = vpack.c.b16 %v1415, %v1414
    %v1925 = vpack.c.b16 %v1417, %v1416
    %v1926 = vpack.c.b16 %v1419, %v1418
    %v1927 = vpack.c.b16 %v1421, %v1420
    %v1928 = vpack.c.b16 %v1423, %v1422
    %v1929 = vpack.c.b16 %v1425, %v1424
    %v1930 = vpack.c.b16 %v1427, %v1426
    %v1931 = vpack.c.b16 %v1429, %v1428
    %v1932 = vpack.c.b16 %v1431, %v1430
    %v1933 = vpack.c.b16 %v1433, %v1432
    %v1934 = vpack.c.b16 %v1435, %v1434
    %v1935 = vpack.c.b16 %v1437, %v1436
    %v1936 = vpack.c.b16 %v1439, %v1438
    %v1937 = vpack.c.b16 %v1441, %v1440
    %v1938 = vpack.c.b16 %v1443, %v1442
    %v1939 = vpack.c.b16 %v1445, %v1444
    %v1940 = vpack.c.b16 %v1447, %v1446
    %v1941 = vpack.c.b16 %v1449, %v1448
    %v1942 = vpack.c.b16 %v1451, %v1450
    %v1943 = vpack.c.b16 %v1453, %v1452
    %v1944 = vpack.c.b16 %v1455, %v1454
    %v1945 = vpack.c.b16 %v1457, %v1456
    %v1946 = vpack.c.b16 %v1459, %v1458
    %v1947 = vpack.c.b16 %v1461, %v1460
    %v1948 = vpack.c.b16 %v1463, %v1462
    %v1949 = vpack.c.b16 %v1465, %v1464
    %v1950 = vpack.c.b16 %v1467, %v1466
    %v1951 = vpack.c.b16 %v1469, %v1468
    %v1952 = vpack.c.b16 %v1471, %v1470
    %v1953 = vpack.c.b16 %v1473, %v1472
    %v1954 = vpack.c.b16 %v1475, %v1474
    %v1955 = vpack.c.b16 %v1477, %v1476
    %v1956 = vpack.c.b16 %v1479, %v1478
    %v1957 = vpack.c.b16 %v1481, %v1480
    %v1958 = vpack.c.b16 %v1483, %v1482
    %v1959 = vpack.c.b16 %v1485, %v1484
    %v1960 = vpack.c.b16 %v1487, %v1486
    %v1961 = vpack.c.b16 %v1489, %v1488
    %v1962 = vpack.c.b16 %v1491, %v1490
    %v1963 = vpack.c.b16 %v1493, %v1492
    %v1964 = vpack.c.b16 %v1495, %v1494
    %v1965 = vpack.c.b16 %v1497, %v1496
    %v1966 = vpack.c.b16 %v1499, %v1498
    %v1967 = vpack.c.b16 %v1501, %v1500
    %v1968 = vpack.c.b16 %v1503, %v1502
    %v1969 = vpack.c.b16 %v1505, %v1504
    %v1970 = vpack.c.b16 %v1507, %v1506
    %v1971 = vpack.c.b16 %v1509, %v1508
    %v1972 = vpack.c.b16 %v1511, %v1510
    %v1973 = vpack.c.b16 %v1513, %v1512
    %v1974 = vpack.c.b16 %v1515, %v1514
    %v1975 = vpack.c.b16 %v1517, %v1516
    %v1976 = vpack.c.b16 %v1519, %v1518
    %v1977 = vpack.c.b16 %v1521, %v1520
    %v1978 = vpack.c.b16 %v1523, %v1522
    %v1979 = vpack.c.b16 %v1525, %v1524
    %v1980 = vpack.c.b16 %v1527, %v1526
    %v1981 = vpack.c.b16 %v1529, %v1528
    %v1982 = vpack.c.b16 %v1531, %v1530
    %v1983 = vpack.c.b16 %v1533, %v1532
    %v1984 = vpack.c.b16 %v1535, %v1534
    %v1985 = vpack.c.b16 %v1537, %v1536
    %v1986 = vpack.c.b16 %v1539, %v1538
    %v1987 = vpack.c.b16 %v1541, %v1540
    %v1988 = vpack.c.b16 %v1543, %v1542
    %v1989 = vpack.c.b16 %v1545, %v1544
    %v1990 = vpack.c.b16 %v1547, %v1546
    %v1991 = vpack.c.b16 %v1549, %v1548
    %v1992 = vpack.c.b16 %v1551, %v1550
    %v1993 = vpack.c.b16 %v1553, %v1552
    %v1994 = vpack.c.b16 %v1555, %v1554
    %v1995 = vpack.c.b16 %v1557, %v1556
    %v1996 = vpack.c.b16 %v1559, %v1558
    %v1997 = vpack.c.b16 %v1561, %v1560
    %v1998 = vpack.c.b16 %v1563, %v1562
    %v1999 = vpack.c.b16 %v1565, %v1564
    %v2000 = vpack.c.b16 %v1567, %v1566
    %v2001 = vpack.c.b16 %v1569, %v1568
    %v2002 = vpack.c.b16 %v1571, %v1570
    %v2003 = vpack.c.b16 %v1573, %v1572
    %v2004 = vpack.c.b16 %v1575, %v1574
    %v2005 = vpack.c.b16 %v1577, %v1576
    %v2006 = vpack.c.b16 %v1579, %v1578
    %v2007 = vpack.c.b16 %v1581, %v1580
    %v2008 = vpack.c.b16 %v1583, %v1582
    %v2009 = vpack.c.b16 %v1585, %v1584
    %v2010 = vpack.c.b16 %v1587, %v1586
    %v2011 = vpack.c.b16 %v1589, %v1588
    %v2012 = vpack.c.b16 %v1591, %v1590
    %v2013 = vpack.c.b16 %v1593, %v1592
    %v2014 = vpack.c.b16 %v1595, %v1594
    %v2015 = vpack.c.b16 %v1597, %v1596
    %v2016 = vpack.c.b16 %v1599, %v1598
    %v2017 = vpack.c.b16 %v1601, %v1600
    %v2018 = vpack.c.b16 %v1603, %v1602
    %v2019 = vpack.c.b16 %v1605, %v1604
    %v2020 = vpack.c.b16 %v1607, %v1606
    %v2021 = vpack.c.b16 %v1609, %v1608
    %v2022 = vpack.c.b16 %v1611, %v1610
    %v2023 = vpack.c.b16 %v1613, %v1612
    %v2024 = vpack.c.b16 %v1615, %v1614
    %v2025 = vpack.c.b16 %v1617, %v1616
    %v2026 = vpack.c.b16 %v1619, %v1618
    %v2027 = vpack.c.b16 %v1621, %v1620
    %v2028 = vpack.c.b16 %v1623, %v1622
    %v2029 = vpack.c.b16 %v1625, %v1624
    %v2030 = vpack.c.b16 %v1627, %v1626
    %v2031 = vpack.c.b16 %v1629, %v1628
    %v2032 = vpack.c.b16 %v1631, %v1630
    %v2033 = vpack.c.b16 %v1633, %v1632
    %v2034 = vpack.c.b16 %v1635, %v1634
    %v2035 = vpack.c.b16 %v1637, %v1636
    %v2036 = vpack.c.b16 %v1639, %v1638
    %v2037 = vpack.c.b16 %v1641, %v1640
    %v2038 = vpack.c.b16 %v1643, %v1642
    %v2039 = vpack.c.b16 %v1645, %v1644
    %v2040 = vpack.c.b16 %v1647, %v1646
    %v2041 = vpack.c.b16 %v1649, %v1648
    %v2042 = vpack.c.b16 %v1651, %v1650
    %v2043 = vpack.c.b16 %v1653, %v1652
    %v2044 = vpack.c.b16 %v1655, %v1654
    %v2045 = vpack.c.b16 %v1657, %v1656
    %v2046 = vpack.c.b16 %v1659, %v1658
    %v2047 = vpack.c.b16 %v1661, %v1660
    %v2048 = vpack.c.b16 %v1663, %v1662
    %v2049 = vpack.c.b16 %v1665, %v1664
    %v2050 = vpack.c.b16 %v1667, %v1666
    %v2051 = vpack.c.b16 %v1669, %v1668
    %v2052 = vpack.c.b16 %v1671, %v1670
    %v2053 = vpack.c.b16 %v1673, %v1672
    %v2054 = vpack.c.b16 %v1675, %v1674
    %v2055 = vpack.c.b16 %v1677, %v1676
    %v2056 = vpack.c.b16 %v1679, %v1678
    %v2057 = vpack.c.b16 %v1681, %v1680
    %v2058 = vpack.c.b16 %v1683, %v1682
    %v2059 = vpack.c.b16 %v1685, %v1684
    %v2060 = vpack.c.b16 %v1687, %v1686
    %v2061 = vpack.c.b16 %v1689, %v1688
    %v2062 = vpack.c.b16 %v1691, %v1690
    %v2063 = vpack.c.b16 %v1693, %v1692
    %v2064 = vpack.c.b16 %v1695, %v1694
    %v2065 = vpack.c.b16 %v1697, %v1696
    %v2066 = vpack.c.b16 %v1699, %v1698
    %v2067 = vpack.c.b16 %v1701, %v1700
    %v2068 = vpack.c.b16 %v1703, %v1702
    %v2069 = vpack.c.b16 %v1705, %v1704
    %v2070 = vpack.c.b16 %v1707, %v1706
    %v2071 = vpack.c.b16 %v1709, %v1708
    %v2072 = vpack.c.b16 %v1711, %v1710
    %v2073 = vpack.c.b16 %v1713, %v1712
    %v2074 = vpack.c.b16 %v1715, %v1714
    %v2075 = vpack.c.b16 %v1717, %v1716
    %v2076 = vpack.c.b16 %v1719, %v1718
    %v2077 = vpack.c.b16 %v1721, %v1720
    %v2078 = vpack.c.b16 %v1723, %v1722
    %v2079 = vpack.c.b16 %v1725, %v1724
    %v2080 = vpack.c.b16 %v1727, %v1726
    %v2081 = vpack.c.b16 %v1729, %v1728
    %v2082 = vpack.c.b16 %v1731, %v1730
    %v2083 = vpack.c.b16 %v1733, %v1732
    %v2084 = vpack.c.b16 %v1735, %v1734
    %v2085 = vpack.c.b16 %v1737, %v1736
    %v2086 = vpack.c.b16 %v1739, %v1738
    %v2087 = vpack.c.b16 %v1741, %v1740
    %v2088 = vpack.c.b16 %v1743, %v1742
    %v2089 = vpack.c.b16 %v1745, %v1744
    %v2090 = vpack.c.b16 %v1747, %v1746
    %v2091 = vpack.c.b16 %v1749, %v1748
    %v2092 = vpack.c.b16 %v1751, %v1750
    %v2093 = vpack.c.b16 %v1753, %v1752
    %v2094 = vpack.c.b16 %v1755, %v1754
    %v2095 = vpack.c.b16 %v1757, %v1756
    %v2096 = vpack.c.b16 %v1759, %v1758
    %v2097 = vpack.c.b16 %v1761, %v1760
    %v2098 = vpack.c.b16 %v1763, %v1762
    %v2099 = vpack.c.b16 %v1765, %v1764
    %v2100 = vpack.c.b16 %v1767, %v1766
    %v2101 = vpack.c.b16 %v1769, %v1768
    %v2102 = vpack.c.b16 %v1771, %v1770
    %v2103 = vpack.c.b16 %v1773, %v1772
    %v2104 = vpack.c.b16 %v1775, %v1774
    %v2105 = vpack.c.b16 %v1777, %v1776
    %v2106 = vpack.c.b16 %v1779, %v1778
    %v2107 = vpack.c.b16 %v1781, %v1780
    %v2108 = vpack.c.b16 %v1783, %v1782
    %v2109 = vpack.c.b16 %v1785, %v1784
    %v2110 = vpack.c.b16 %v1787, %v1786
    %v2111 = vpack.c.b16 %v1789, %v1788
    %v2112 = vpack.c.b16 %v1791, %v1790
    %v2113 = vpack.c.b16 %v1793, %v1792
    %v2114 = vpack.c.b16 %v1795, %v1794
    %v2115 = vpack.c.b16 %v1797, %v1796
    %v2116 = vpack.c.b16 %v1799, %v1798
    %v2117 = vpack.c.b16 %v1801, %v1800
    %v2118 = vpack.c.b16 %v1803, %v1802
    %v2119 = vpack.c.b16 %v1805, %v1804
    %v2120 = vpack.c.b16 %v1807, %v1806
    %v2121 = vpack.c.b16 %v1809, %v1808
    %v2122 = vpack.c.b16 %v1811, %v1810
    %v2123 = vpack.c.b16 %v1813, %v1812
    %v2124 = vpack.c.b16 %v1815, %v1814
    %v2125 = vpack.c.b16 %v1817, %v1816
    %v2126 = vpack.c.b16 %v1819, %v1818
    %v2127 = vpack.c.b16 %v1821, %v1820
    %v2128 = vpack.c.b16 %v1823, %v1822
    %v2129 = vpack.c.b16 %v1825, %v1824
    %v2130 = vpack.c.b16 %v1827, %v1826
    %v2131 = vpack.c.b16 %v1829, %v1828
    %v2132 = vpack.c.b16 %v1831, %v1830
    %v2133 = vpack.c.b16 %v1833, %v1832
    %v2134 = vpack.c.b16 %v1835, %v1834
    %v2135 = vpack.c.b16 %v1837, %v1836
    %v2136 = vpack.c.b16 %v1839, %v1838
    %v2137 = vpack.c.b16 %v1841, %v1840
    %v2138 = vpack.c.b16 %v1843, %v1842
    %v2139 = vpack.c.b16 %v1845, %v1844
    %v2140 = vpack.c.b16 %v1847, %v1846
    %v2141 = vpack.c.b16 %v1849, %v1848
    %v2142 = vpack.c.b16 %v1851, %v1850
    %v2143 = vpack.c.b16 %v1853, %v1852
    %v2144 = vpack.c.b16 %v1855, %v1854
    %v2145 = vpack.c.b16 %v1857, %v1856
    %v2146 = vpack.c.b16 %v1859, %v1858
    %v2147 = vpack.c.b16 %v1861, %v1860
    %v2148 = vpack.c.b16 %v1863, %v1862
    %v2149 = vpack.c.b16 %v1865, %v1864
    %v2150 = vpack.c.b16 %v1867, %v1866
    %v2151 = vpack.c.b16 %v1869, %v1868
    %v2152 = vpack.c.b16 %v1871, %v1870
    %v2153 = vpack.c.b16 %v1873, %v1872
    %v2154 = vpack.c.b16 %v1875, %v1874
    %v2155 = vpack.c.b16 %v1877, %v1876
    %v2156 = vpack.c.b16 %v1879, %v1878
    %v2157 = vpack.c.b16 %v1881, %v1880
    %v2158 = vpack.c.b16 %v1883, %v1882
    %v2159 = vpack.c.b16 %v1885, %v1884
    %v2160 = vpack.c.b16 %v1887, %v1886
    %v2161 = vpack.c.b16 %v1889, %v1888
    %v2162 = vpack.c.b16 %v1891, %v1890
    %v2163 = vpack.c.b16 %v1893, %v1892
    %v2164 = vpack.c.b16 %v1895, %v1894
    %v2165 = vpack.c.b16 %v1897, %v1896
    %v2166 = vpack.c.b16 %v1899, %v1898
    %v2167 = vpack.c.b16 %v1901, %v1900
    %v2168 = vpack.c.b16 %v1903, %v1902
    %v2169 = vpack.c.b16 %v1905, %v1904
    %v2170 = vpack.c.b16 %v1907, %v1906
    %v2171 = vpack.c.b16 %v1909, %v1908
    %v2172 = vpack.c.b16 %v1911, %v1910
    %v2173 = vpack.c.b16 %v1913, %v1912
    %v2174 = vpack.c.b16 %v1915, %v1914
    %v2175 = vpack.c.b16 %v1917, %v1916
    %v2176 = vpack.c.b16 %v1919, %v1918
    %v2177 = vpack.c.b16 %v1921, %v1920
    %2434 = vmatprep.subr.bf16.mxu0 0
    %2435 = vmatpush1.bf16.msra.mxu0 %v1922
    %2436 = vmatprep.subr.bf16.mxu0 0
    %2437 = vmatpush1.bf16.msra.mxu0 %v1923
    %2438 = vmatprep.subr.bf16.mxu0 0
    %2439 = vmatpush1.bf16.msra.mxu0 %v1924
    %2440 = vmatprep.subr.bf16.mxu0 0
    %2441 = vmatpush1.bf16.msra.mxu0 %v1925
    %2442 = vmatprep.subr.bf16.mxu0 0
    %2443 = vmatpush1.bf16.msra.mxu0 %v1926
    %2444 = vmatprep.subr.bf16.mxu0 0
    %2445 = vmatpush1.bf16.msra.mxu0 %v1927
    %2446 = vmatprep.subr.bf16.mxu0 0
    %2447 = vmatpush1.bf16.msra.mxu0 %v1928
    %2448 = vmatprep.subr.bf16.mxu0 0
    %2449 = vmatpush1.bf16.msra.mxu0 %v1929
    %2450 = vmatprep.subr.bf16.mxu0 0
    %2451 = vmatpush1.bf16.msra.mxu0 %v1930
    %2452 = vmatprep.subr.bf16.mxu0 0
    %2453 = vmatpush1.bf16.msra.mxu0 %v1931
    %2454 = vmatprep.subr.bf16.mxu0 0
    %2455 = vmatpush1.bf16.msra.mxu0 %v1932
    %2456 = vmatprep.subr.bf16.mxu0 0
    %2457 = vmatpush1.bf16.msra.mxu0 %v1933
    %2458 = vmatprep.subr.bf16.mxu0 0
    %2459 = vmatpush1.bf16.msra.mxu0 %v1934
    %2460 = vmatprep.subr.bf16.mxu0 0
    %2461 = vmatpush1.bf16.msra.mxu0 %v1935
    %2462 = vmatprep.subr.bf16.mxu0 0
    %2463 = vmatpush1.bf16.msra.mxu0 %v1936
    %2464 = vmatprep.subr.bf16.mxu0 0
    %2465 = vmatpush1.bf16.msra.mxu0 %v1937
    %2466 = vmatprep.mubr.bf16.mxu0 %v348
    %2467 = vmatmul.mubr.bf16.gmra.mrb[0].mxu0 %v347
    %v2468 = vpop.f32.mrb[0].mxu0
    %v2469 = vadd.f32 %v896, %v2468
    %v2470 = vpop.f32.mrb[0].mxu0
    %v2471 = vpop.f32.mrb[0].mxu0
    %v2472 = vpop.f32.mrb[0].mxu0
    %2473 = vdwg.mxu0
    %2474 = vmatprep.subr.bf16.mxu0 0
    %2475 = vmatpush1.bf16.msra.mxu0 %v1938
    %2476 = vmatprep.subr.bf16.mxu0 0
    %2477 = vmatpush1.bf16.msra.mxu0 %v1939
    %2478 = vmatprep.subr.bf16.mxu0 0
    %2479 = vmatpush1.bf16.msra.mxu0 %v1940
    %2480 = vmatprep.subr.bf16.mxu0 0
    %2481 = vmatpush1.bf16.msra.mxu0 %v1941
    %2482 = vmatprep.subr.bf16.mxu0 0
    %2483 = vmatpush1.bf16.msra.mxu0 %v1942
    %2484 = vmatprep.subr.bf16.mxu0 0
    %2485 = vmatpush1.bf16.msra.mxu0 %v1943
    %2486 = vmatprep.subr.bf16.mxu0 0
    %2487 = vmatpush1.bf16.msra.mxu0 %v1944
    %2488 = vmatprep.subr.bf16.mxu0 0
    %2489 = vmatpush1.bf16.msra.mxu0 %v1945
    %2490 = vmatprep.subr.bf16.mxu0 0
    %2491 = vmatpush1.bf16.msra.mxu0 %v1946
    %2492 = vmatprep.subr.bf16.mxu0 0
    %2493 = vmatpush1.bf16.msra.mxu0 %v1947
    %2494 = vmatprep.subr.bf16.mxu0 0
    %2495 = vmatpush1.bf16.msra.mxu0 %v1948
    %2496 = vmatprep.subr.bf16.mxu0 0
    %2497 = vmatpush1.bf16.msra.mxu0 %v1949
    %2498 = vmatprep.subr.bf16.mxu0 0
    %2499 = vmatpush1.bf16.msra.mxu0 %v1950
    %2500 = vmatprep.subr.bf16.mxu0 0
    %2501 = vmatpush1.bf16.msra.mxu0 %v1951
    %2502 = vmatprep.subr.bf16.mxu0 0
    %2503 = vmatpush1.bf16.msra.mxu0 %v1952
    %2504 = vmatprep.subr.bf16.mxu0 0
    %2505 = vmatpush1.bf16.msra.mxu0 %v1953
    %2506 = vmatprep.mubr.bf16.mxu0 %v350
    %2507 = vmatmul.mubr.bf16.gmra.mrb[0].mxu0 %v349
    %v2508 = vpop.f32.mrb[0].mxu0
    %v2509 = vadd.f32 %v2469, %v2508
    %v2510 = vpop.f32.mrb[0].mxu0
    %v2511 = vpop.f32.mrb[0].mxu0
    %v2512 = vpop.f32.mrb[0].mxu0
    %2513 = vdwg.mxu0
    %2514 = vmatprep.subr.bf16.mxu0 0
    %2515 = vmatpush1.bf16.msra.mxu0 %v1954
    %2516 = vmatprep.subr.bf16.mxu0 0
    %2517 = vmatpush1.bf16.msra.mxu0 %v1955
    %2518 = vmatprep.subr.bf16.mxu0 0
    %2519 = vmatpush1.bf16.msra.mxu0 %v1956
    %2520 = vmatprep.subr.bf16.mxu0 0
    %2521 = vmatpush1.bf16.msra.mxu0 %v1957
    %2522 = vmatprep.subr.bf16.mxu0 0
    %2523 = vmatpush1.bf16.msra.mxu0 %v1958
    %2524 = vmatprep.subr.bf16.mxu0 0
    %2525 = vmatpush1.bf16.msra.mxu0 %v1959
    %2526 = vmatprep.subr.bf16.mxu0 0
    %2527 = vmatpush1.bf16.msra.mxu0 %v1960
    %2528 = vmatprep.subr.bf16.mxu0 0
    %2529 = vmatpush1.bf16.msra.mxu0 %v1961
    %2530 = vmatprep.subr.bf16.mxu0 0
    %2531 = vmatpush1.bf16.msra.mxu0 %v1962
    %2532 = vmatprep.subr.bf16.mxu0 0
    %2533 = vmatpush1.bf16.msra.mxu0 %v1963
    %2534 = vmatprep.subr.bf16.mxu0 0
    %2535 = vmatpush1.bf16.msra.mxu0 %v1964
    %2536 = vmatprep.subr.bf16.mxu0 0
    %2537 = vmatpush1.bf16.msra.mxu0 %v1965
    %2538 = vmatprep.subr.bf16.mxu0 0
    %2539 = vmatpush1.bf16.msra.mxu0 %v1966
    %2540 = vmatprep.subr.bf16.mxu0 0
    %2541 = vmatpush1.bf16.msra.mxu0 %v1967
    %2542 = vmatprep.subr.bf16.mxu0 0
    %2543 = vmatpush1.bf16.msra.mxu0 %v1968
    %2544 = vmatprep.subr.bf16.mxu0 0
    %2545 = vmatpush1.bf16.msra.mxu0 %v1969
    %2546 = vmatprep.mubr.bf16.mxu0 %v352
    %2547 = vmatmul.mubr.bf16.gmra.mrb[0].mxu0 %v351
    %v2548 = vpop.f32.mrb[0].mxu0
    %v2549 = vadd.f32 %v2509, %v2548
    %v2550 = vpop.f32.mrb[0].mxu0
    %v2551 = vpop.f32.mrb[0].mxu0
    %v2552 = vpop.f32.mrb[0].mxu0
    %2553 = vdwg.mxu0
    %2554 = vmatprep.subr.bf16.mxu0 0
    %2555 = vmatpush1.bf16.msra.mxu0 %v1970
    %2556 = vmatprep.subr.bf16.mxu0 0
    %2557 = vmatpush1.bf16.msra.mxu0 %v1971
    %2558 = vmatprep.subr.bf16.mxu0 0
    %2559 = vmatpush1.bf16.msra.mxu0 %v1972
    %2560 = vmatprep.subr.bf16.mxu0 0
    %2561 = vmatpush1.bf16.msra.mxu0 %v1973
    %2562 = vmatprep.subr.bf16.mxu0 0
    %2563 = vmatpush1.bf16.msra.mxu0 %v1974
    %2564 = vmatprep.subr.bf16.mxu0 0
    %2565 = vmatpush1.bf16.msra.mxu0 %v1975
    %2566 = vmatprep.subr.bf16.mxu0 0
    %2567 = vmatpush1.bf16.msra.mxu0 %v1976
    %2568 = vmatprep.subr.bf16.mxu0 0
    %2569 = vmatpush1.bf16.msra.mxu0 %v1977
    %2570 = vmatprep.subr.bf16.mxu0 0
    %2571 = vmatpush1.bf16.msra.mxu0 %v1978
    %2572 = vmatprep.subr.bf16.mxu0 0
    %2573 = vmatpush1.bf16.msra.mxu0 %v1979
    %2574 = vmatprep.subr.bf16.mxu0 0
    %2575 = vmatpush1.bf16.msra.mxu0 %v1980
    %2576 = vmatprep.subr.bf16.mxu0 0
    %2577 = vmatpush1.bf16.msra.mxu0 %v1981
    %2578 = vmatprep.subr.bf16.mxu0 0
    %2579 = vmatpush1.bf16.msra.mxu0 %v1982
    %2580 = vmatprep.subr.bf16.mxu0 0
    %2581 = vmatpush1.bf16.msra.mxu0 %v1983
    %2582 = vmatprep.subr.bf16.mxu0 0
    %2583 = vmatpush1.bf16.msra.mxu0 %v1984
    %2584 = vmatprep.subr.bf16.mxu0 0
    %2585 = vmatpush1.bf16.msra.mxu0 %v1985
    %2586 = vmatprep.mubr.bf16.mxu0 %v354
    %2587 = vmatmul.mubr.bf16.gmra.mrb[0].mxu0 %v353
    %v2588 = vpop.f32.mrb[0].mxu0
    %v2589 = vadd.f32 %v2549, %v2588
    %v2590 = vpop.f32.mrb[0].mxu0
    %v2591 = vpop.f32.mrb[0].mxu0
    %v2592 = vpop.f32.mrb[0].mxu0
    %2593 = vdwg.mxu0
    %2594 = vmatprep.subr.bf16.mxu0 0
    %2595 = vmatpush1.bf16.msra.mxu0 %v1986
    %2596 = vmatprep.subr.bf16.mxu0 0
    %2597 = vmatpush1.bf16.msra.mxu0 %v1987
    %2598 = vmatprep.subr.bf16.mxu0 0
    %2599 = vmatpush1.bf16.msra.mxu0 %v1988
    %2600 = vmatprep.subr.bf16.mxu0 0
    %2601 = vmatpush1.bf16.msra.mxu0 %v1989
    %2602 = vmatprep.subr.bf16.mxu0 0
    %2603 = vmatpush1.bf16.msra.mxu0 %v1990
    %2604 = vmatprep.subr.bf16.mxu0 0
    %2605 = vmatpush1.bf16.msra.mxu0 %v1991
    %2606 = vmatprep.subr.bf16.mxu0 0
    %2607 = vmatpush1.bf16.msra.mxu0 %v1992
    %2608 = vmatprep.subr.bf16.mxu0 0
    %2609 = vmatpush1.bf16.msra.mxu0 %v1993
    %2610 = vmatprep.subr.bf16.mxu0 0
    %2611 = vmatpush1.bf16.msra.mxu0 %v1994
    %2612 = vmatprep.subr.bf16.mxu0 0
    %2613 = vmatpush1.bf16.msra.mxu0 %v1995
    %2614 = vmatprep.subr.bf16.mxu0 0
    %2615 = vmatpush1.bf16.msra.mxu0 %v1996
    %2616 = vmatprep.subr.bf16.mxu0 0
    %2617 = vmatpush1.bf16.msra.mxu0 %v1997
    %2618 = vmatprep.subr.bf16.mxu0 0
    %2619 = vmatpush1.bf16.msra.mxu0 %v1998
    %2620 = vmatprep.subr.bf16.mxu0 0
    %2621 = vmatpush1.bf16.msra.mxu0 %v1999
    %2622 = vmatprep.subr.bf16.mxu0 0
    %2623 = vmatpush1.bf16.msra.mxu0 %v2000
    %2624 = vmatprep.subr.bf16.mxu0 0
    %2625 = vmatpush1.bf16.msra.mxu0 %v2001
    %2626 = vmatprep.mubr.bf16.mxu0 %v356
    %2627 = vmatmul.mubr.bf16.gmra.mrb[0].mxu0 %v355
    %v2628 = vpop.f32.mrb[0].mxu0
    %v2629 = vadd.f32 %v2589, %v2628
    %v2630 = vpop.f32.mrb[0].mxu0
    %v2631 = vpop.f32.mrb[0].mxu0
    %v2632 = vpop.f32.mrb[0].mxu0
    %2633 = vdwg.mxu0
    %2634 = vmatprep.subr.bf16.mxu0 0
    %2635 = vmatpush1.bf16.msra.mxu0 %v2002
    %2636 = vmatprep.subr.bf16.mxu0 0
    %2637 = vmatpush1.bf16.msra.mxu0 %v2003
    %2638 = vmatprep.subr.bf16.mxu0 0
    %2639 = vmatpush1.bf16.msra.mxu0 %v2004
    %2640 = vmatprep.subr.bf16.mxu0 0
    %2641 = vmatpush1.bf16.msra.mxu0 %v2005
    %2642 = vmatprep.subr.bf16.mxu0 0
    %2643 = vmatpush1.bf16.msra.mxu0 %v2006
    %2644 = vmatprep.subr.bf16.mxu0 0
    %2645 = vmatpush1.bf16.msra.mxu0 %v2007
    %2646 = vmatprep.subr.bf16.mxu0 0
    %2647 = vmatpush1.bf16.msra.mxu0 %v2008
    %2648 = vmatprep.subr.bf16.mxu0 0
    %2649 = vmatpush1.bf16.msra.mxu0 %v2009
    %2650 = vmatprep.subr.bf16.mxu0 0
    %2651 = vmatpush1.bf16.msra.mxu0 %v2010
    %2652 = vmatprep.subr.bf16.mxu0 0
    %2653 = vmatpush1.bf16.msra.mxu0 %v2011
    %2654 = vmatprep.subr.bf16.mxu0 0
    %2655 = vmatpush1.bf16.msra.mxu0 %v2012
    %2656 = vmatprep.subr.bf16.mxu0 0
    %2657 = vmatpush1.bf16.msra.mxu0 %v2013
    %2658 = vmatprep.subr.bf16.mxu0 0
    %2659 = vmatpush1.bf16.msra.mxu0 %v2014
    %2660 = vmatprep.subr.bf16.mxu0 0
    %2661 = vmatpush1.bf16.msra.mxu0 %v2015
    %2662 = vmatprep.subr.bf16.mxu0 0
    %2663 = vmatpush1.bf16.msra.mxu0 %v2016
    %2664 = vmatprep.subr.bf16.mxu0 0
    %2665 = vmatpush1.bf16.msra.mxu0 %v2017
    %2666 = vmatprep.mubr.bf16.mxu0 %v358
    %2667 = vmatmul.mubr.bf16.gmra.mrb[0].mxu0 %v357
    %v2668 = vpop.f32.mrb[0].mxu0
    %v2669 = vadd.f32 %v2629, %v2668
    %v2670 = vpop.f32.mrb[0].mxu0
    %v2671 = vpop.f32.mrb[0].mxu0
    %v2672 = vpop.f32.mrb[0].mxu0
    %2673 = vdwg.mxu0
    %2674 = vmatprep.subr.bf16.mxu0 0
    %2675 = vmatpush1.bf16.msra.mxu0 %v2018
    %2676 = vmatprep.subr.bf16.mxu0 0
    %2677 = vmatpush1.bf16.msra.mxu0 %v2019
    %2678 = vmatprep.subr.bf16.mxu0 0
    %2679 = vmatpush1.bf16.msra.mxu0 %v2020
    %2680 = vmatprep.subr.bf16.mxu0 0
    %2681 = vmatpush1.bf16.msra.mxu0 %v2021
    %2682 = vmatprep.subr.bf16.mxu0 0
    %2683 = vmatpush1.bf16.msra.mxu0 %v2022
    %2684 = vmatprep.subr.bf16.mxu0 0
    %2685 = vmatpush1.bf16.msra.mxu0 %v2023
    %2686 = vmatprep.subr.bf16.mxu0 0
    %2687 = vmatpush1.bf16.msra.mxu0 %v2024
    %2688 = vmatprep.subr.bf16.mxu0 0
    %2689 = vmatpush1.bf16.msra.mxu0 %v2025
    %2690 = vmatprep.subr.bf16.mxu0 0
    %2691 = vmatpush1.bf16.msra.mxu0 %v2026
    %2692 = vmatprep.subr.bf16.mxu0 0
    %2693 = vmatpush1.bf16.msra.mxu0 %v2027
    %2694 = vmatprep.subr.bf16.mxu0 0
    %2695 = vmatpush1.bf16.msra.mxu0 %v2028
    %2696 = vmatprep.subr.bf16.mxu0 0
    %2697 = vmatpush1.bf16.msra.mxu0 %v2029
    %2698 = vmatprep.subr.bf16.mxu0 0
    %2699 = vmatpush1.bf16.msra.mxu0 %v2030
    %2700 = vmatprep.subr.bf16.mxu0 0
    %2701 = vmatpush1.bf16.msra.mxu0 %v2031
    %2702 = vmatprep.subr.bf16.mxu0 0
    %2703 = vmatpush1.bf16.msra.mxu0 %v2032
    %2704 = vmatprep.subr.bf16.mxu0 0
    %2705 = vmatpush1.bf16.msra.mxu0 %v2033
    %2706 = vmatprep.mubr.bf16.mxu0 %v360
    %2707 = vmatmul.mubr.bf16.gmra.mrb[0].mxu0 %v359
    %v2708 = vpop.f32.mrb[0].mxu0
    %v2709 = vadd.f32 %v2669, %v2708
    %v2710 = vpop.f32.mrb[0].mxu0
    %v2711 = vpop.f32.mrb[0].mxu0
    %v2712 = vpop.f32.mrb[0].mxu0
    %2713 = vdwg.mxu0
    %2714 = vmatprep.subr.bf16.mxu0 0
    %2715 = vmatpush1.bf16.msra.mxu0 %v2034
    %2716 = vmatprep.subr.bf16.mxu0 0
    %2717 = vmatpush1.bf16.msra.mxu0 %v2035
    %2718 = vmatprep.subr.bf16.mxu0 0
    %2719 = vmatpush1.bf16.msra.mxu0 %v2036
    %2720 = vmatprep.subr.bf16.mxu0 0
    %2721 = vmatpush1.bf16.msra.mxu0 %v2037
    %2722 = vmatprep.subr.bf16.mxu0 0
    %2723 = vmatpush1.bf16.msra.mxu0 %v2038
    %2724 = vmatprep.subr.bf16.mxu0 0
    %2725 = vmatpush1.bf16.msra.mxu0 %v2039
    %2726 = vmatprep.subr.bf16.mxu0 0
    %2727 = vmatpush1.bf16.msra.mxu0 %v2040
    %2728 = vmatprep.subr.bf16.mxu0 0
    %2729 = vmatpush1.bf16.msra.mxu0 %v2041
    %2730 = vmatprep.subr.bf16.mxu0 0
    %2731 = vmatpush1.bf16.msra.mxu0 %v2042
    %2732 = vmatprep.subr.bf16.mxu0 0
    %2733 = vmatpush1.bf16.msra.mxu0 %v2043
    %2734 = vmatprep.subr.bf16.mxu0 0
    %2735 = vmatpush1.bf16.msra.mxu0 %v2044
    %2736 = vmatprep.subr.bf16.mxu0 0
    %2737 = vmatpush1.bf16.msra.mxu0 %v2045
    %2738 = vmatprep.subr.bf16.mxu0 0
    %2739 = vmatpush1.bf16.msra.mxu0 %v2046
    %2740 = vmatprep.subr.bf16.mxu0 0
    %2741 = vmatpush1.bf16.msra.mxu0 %v2047
    %2742 = vmatprep.subr.bf16.mxu0 0
    %2743 = vmatpush1.bf16.msra.mxu0 %v2048
    %2744 = vmatprep.subr.bf16.mxu0 0
    %2745 = vmatpush1.bf16.msra.mxu0 %v2049
    %2746 = vmatprep.mubr.bf16.mxu0 %v362
    %2747 = vmatmul.mubr.bf16.gmra.mrb[0].mxu0 %v361
    %v2748 = vpop.f32.mrb[0].mxu0
    %v2749 = vadd.f32 %v2709, %v2748
    %v2750 = vpop.f32.mrb[0].mxu0
    %v2751 = vpop.f32.mrb[0].mxu0
    %v2752 = vpop.f32.mrb[0].mxu0
    %2753 = vdwg.mxu0
    %2754 = vmatprep.subr.bf16.mxu0 0
    %2755 = vmatpush1.bf16.msra.mxu0 %v2050
    %2756 = vmatprep.subr.bf16.mxu0 0
    %2757 = vmatpush1.bf16.msra.mxu0 %v2051
    %2758 = vmatprep.subr.bf16.mxu0 0
    %2759 = vmatpush1.bf16.msra.mxu0 %v2052
    %2760 = vmatprep.subr.bf16.mxu0 0
    %2761 = vmatpush1.bf16.msra.mxu0 %v2053
    %2762 = vmatprep.subr.bf16.mxu0 0
    %2763 = vmatpush1.bf16.msra.mxu0 %v2054
    %2764 = vmatprep.subr.bf16.mxu0 0
    %2765 = vmatpush1.bf16.msra.mxu0 %v2055
    %2766 = vmatprep.subr.bf16.mxu0 0
    %2767 = vmatpush1.bf16.msra.mxu0 %v2056
    %2768 = vmatprep.subr.bf16.mxu0 0
    %2769 = vmatpush1.bf16.msra.mxu0 %v2057
    %2770 = vmatprep.subr.bf16.mxu0 0
    %2771 = vmatpush1.bf16.msra.mxu0 %v2058
    %2772 = vmatprep.subr.bf16.mxu0 0
    %2773 = vmatpush1.bf16.msra.mxu0 %v2059
    %2774 = vmatprep.subr.bf16.mxu0 0
    %2775 = vmatpush1.bf16.msra.mxu0 %v2060
    %2776 = vmatprep.subr.bf16.mxu0 0
    %2777 = vmatpush1.bf16.msra.mxu0 %v2061
    %2778 = vmatprep.subr.bf16.mxu0 0
    %2779 = vmatpush1.bf16.msra.mxu0 %v2062
    %2780 = vmatprep.subr.bf16.mxu0 0
    %2781 = vmatpush1.bf16.msra.mxu0 %v2063
    %2782 = vmatprep.subr.bf16.mxu0 0
    %2783 = vmatpush1.bf16.msra.mxu0 %v2064
    %2784 = vmatprep.subr.bf16.mxu0 0
    %2785 = vmatpush1.bf16.msra.mxu0 %v2065
    %2786 = vmatprep.mubr.bf16.mxu0 %v364
    %2787 = vmatmul.mubr.bf16.gmra.mrb[0].mxu0 %v363
    %v2788 = vpop.f32.mrb[0].mxu0
    %v2789 = vadd.f32 %v2749, %v2788
    %v2790 = vpop.f32.mrb[0].mxu0
    %v2791 = vpop.f32.mrb[0].mxu0
    %v2792 = vpop.f32.mrb[0].mxu0
    %2793 = vdwg.mxu0
    %2794 = vmatprep.subr.bf16.mxu0 0
    %2795 = vmatpush1.bf16.msra.mxu0 %v2066
    %2796 = vmatprep.subr.bf16.mxu0 0
    %2797 = vmatpush1.bf16.msra.mxu0 %v2067
    %2798 = vmatprep.subr.bf16.mxu0 0
    %2799 = vmatpush1.bf16.msra.mxu0 %v2068
    %2800 = vmatprep.subr.bf16.mxu0 0
    %2801 = vmatpush1.bf16.msra.mxu0 %v2069
    %2802 = vmatprep.subr.bf16.mxu0 0
    %2803 = vmatpush1.bf16.msra.mxu0 %v2070
    %2804 = vmatprep.subr.bf16.mxu0 0
    %2805 = vmatpush1.bf16.msra.mxu0 %v2071
    %2806 = vmatprep.subr.bf16.mxu0 0
    %2807 = vmatpush1.bf16.msra.mxu0 %v2072
    %2808 = vmatprep.subr.bf16.mxu0 0
    %2809 = vmatpush1.bf16.msra.mxu0 %v2073
    %2810 = vmatprep.subr.bf16.mxu0 0
    %2811 = vmatpush1.bf16.msra.mxu0 %v2074
    %2812 = vmatprep.subr.bf16.mxu0 0
    %2813 = vmatpush1.bf16.msra.mxu0 %v2075
    %2814 = vmatprep.subr.bf16.mxu0 0
    %2815 = vmatpush1.bf16.msra.mxu0 %v2076
    %2816 = vmatprep.subr.bf16.mxu0 0
    %2817 = vmatpush1.bf16.msra.mxu0 %v2077
    %2818 = vmatprep.subr.bf16.mxu0 0
    %2819 = vmatpush1.bf16.msra.mxu0 %v2078
    %2820 = vmatprep.subr.bf16.mxu0 0
    %2821 = vmatpush1.bf16.msra.mxu0 %v2079
    %2822 = vmatprep.subr.bf16.mxu0 0
    %2823 = vmatpush1.bf16.msra.mxu0 %v2080
    %2824 = vmatprep.subr.bf16.mxu0 0
    %2825 = vmatpush1.bf16.msra.mxu0 %v2081
    %2826 = vmatprep.mubr.bf16.mxu0 %v366
    %2827 = vmatmul.mubr.bf16.gmra.mrb[0].mxu0 %v365
    %v2828 = vpop.f32.mrb[0].mxu0
    %v2829 = vadd.f32 %v2789, %v2828
    %v2830 = vpop.f32.mrb[0].mxu0
    %v2831 = vpop.f32.mrb[0].mxu0
    %v2832 = vpop.f32.mrb[0].mxu0
    %2833 = vdwg.mxu0
    %2834 = vmatprep.subr.bf16.mxu0 0
    %2835 = vmatpush1.bf16.msra.mxu0 %v2082
    %2836 = vmatprep.subr.bf16.mxu0 0
    %2837 = vmatpush1.bf16.msra.mxu0 %v2083
    %2838 = vmatprep.subr.bf16.mxu0 0
    %2839 = vmatpush1.bf16.msra.mxu0 %v2084
    %2840 = vmatprep.subr.bf16.mxu0 0
    %2841 = vmatpush1.bf16.msra.mxu0 %v2085
    %2842 = vmatprep.subr.bf16.mxu0 0
    %2843 = vmatpush1.bf16.msra.mxu0 %v2086
    %2844 = vmatprep.subr.bf16.mxu0 0
    %2845 = vmatpush1.bf16.msra.mxu0 %v2087
    %2846 = vmatprep.subr.bf16.mxu0 0
    %2847 = vmatpush1.bf16.msra.mxu0 %v2088
    %2848 = vmatprep.subr.bf16.mxu0 0
    %2849 = vmatpush1.bf16.msra.mxu0 %v2089
    %2850 = vmatprep.subr.bf16.mxu0 0
    %2851 = vmatpush1.bf16.msra.mxu0 %v2090
    %2852 = vmatprep.subr.bf16.mxu0 0
    %2853 = vmatpush1.bf16.msra.mxu0 %v2091
    %2854 = vmatprep.subr.bf16.mxu0 0
    %2855 = vmatpush1.bf16.msra.mxu0 %v2092
    %2856 = vmatprep.subr.bf16.mxu0 0
    %2857 = vmatpush1.bf16.msra.mxu0 %v2093
    %2858 = vmatprep.subr.bf16.mxu0 0
    %2859 = vmatpush1.bf16.msra.mxu0 %v2094
    %2860 = vmatprep.subr.bf16.mxu0 0
    %2861 = vmatpush1.bf16.msra.mxu0 %v2095
    %2862 = vmatprep.subr.bf16.mxu0 0
    %2863 = vmatpush1.bf16.msra.mxu0 %v2096
    %2864 = vmatprep.subr.bf16.mxu0 0
    %2865 = vmatpush1.bf16.msra.mxu0 %v2097
    %2866 = vmatprep.mubr.bf16.mxu0 %v368
    %2867 = vmatmul.mubr.bf16.gmra.mrb[0].mxu0 %v367
    %v2868 = vpop.f32.mrb[0].mxu0
    %v2869 = vadd.f32 %v2829, %v2868
    %v2870 = vpop.f32.mrb[0].mxu0
    %v2871 = vpop.f32.mrb[0].mxu0
    %v2872 = vpop.f32.mrb[0].mxu0
    %2873 = vdwg.mxu0
    %2874 = vmatprep.subr.bf16.mxu0 0
    %2875 = vmatpush1.bf16.msra.mxu0 %v2098
    %2876 = vmatprep.subr.bf16.mxu0 0
    %2877 = vmatpush1.bf16.msra.mxu0 %v2099
    %2878 = vmatprep.subr.bf16.mxu0 0
    %2879 = vmatpush1.bf16.msra.mxu0 %v2100
    %2880 = vmatprep.subr.bf16.mxu0 0
    %2881 = vmatpush1.bf16.msra.mxu0 %v2101
    %2882 = vmatprep.subr.bf16.mxu0 0
    %2883 = vmatpush1.bf16.msra.mxu0 %v2102
    %2884 = vmatprep.subr.bf16.mxu0 0
    %2885 = vmatpush1.bf16.msra.mxu0 %v2103
    %2886 = vmatprep.subr.bf16.mxu0 0
    %2887 = vmatpush1.bf16.msra.mxu0 %v2104
    %2888 = vmatprep.subr.bf16.mxu0 0
    %2889 = vmatpush1.bf16.msra.mxu0 %v2105
    %2890 = vmatprep.subr.bf16.mxu0 0
    %2891 = vmatpush1.bf16.msra.mxu0 %v2106
    %2892 = vmatprep.subr.bf16.mxu0 0
    %2893 = vmatpush1.bf16.msra.mxu0 %v2107
    %2894 = vmatprep.subr.bf16.mxu0 0
    %2895 = vmatpush1.bf16.msra.mxu0 %v2108
    %2896 = vmatprep.subr.bf16.mxu0 0
    %2897 = vmatpush1.bf16.msra.mxu0 %v2109
    %2898 = vmatprep.subr.bf16.mxu0 0
    %2899 = vmatpush1.bf16.msra.mxu0 %v2110
    %2900 = vmatprep.subr.bf16.mxu0 0
    %2901 = vmatpush1.bf16.msra.mxu0 %v2111
    %2902 = vmatprep.subr.bf16.mxu0 0
    %2903 = vmatpush1.bf16.msra.mxu0 %v2112
    %2904 = vmatprep.subr.bf16.mxu0 0
    %2905 = vmatpush1.bf16.msra.mxu0 %v2113
    %2906 = vmatprep.mubr.bf16.mxu0 %v370
    %2907 = vmatmul.mubr.bf16.gmra.mrb[0].mxu0 %v369
    %v2908 = vpop.f32.mrb[0].mxu0
    %v2909 = vadd.f32 %v2869, %v2908
    %v2910 = vpop.f32.mrb[0].mxu0
    %v2911 = vpop.f32.mrb[0].mxu0
    %v2912 = vpop.f32.mrb[0].mxu0
    %2913 = vdwg.mxu0
    %2914 = vmatprep.subr.bf16.mxu0 0
    %2915 = vmatpush1.bf16.msra.mxu0 %v2114
    %2916 = vmatprep.subr.bf16.mxu0 0
    %2917 = vmatpush1.bf16.msra.mxu0 %v2115
    %2918 = vmatprep.subr.bf16.mxu0 0
    %2919 = vmatpush1.bf16.msra.mxu0 %v2116
    %2920 = vmatprep.subr.bf16.mxu0 0
    %2921 = vmatpush1.bf16.msra.mxu0 %v2117
    %2922 = vmatprep.subr.bf16.mxu0 0
    %2923 = vmatpush1.bf16.msra.mxu0 %v2118
    %2924 = vmatprep.subr.bf16.mxu0 0
    %2925 = vmatpush1.bf16.msra.mxu0 %v2119
    %2926 = vmatprep.subr.bf16.mxu0 0
    %2927 = vmatpush1.bf16.msra.mxu0 %v2120
    %2928 = vmatprep.subr.bf16.mxu0 0
    %2929 = vmatpush1.bf16.msra.mxu0 %v2121
    %2930 = vmatprep.subr.bf16.mxu0 0
    %2931 = vmatpush1.bf16.msra.mxu0 %v2122
    %2932 = vmatprep.subr.bf16.mxu0 0
    %2933 = vmatpush1.bf16.msra.mxu0 %v2123
    %2934 = vmatprep.subr.bf16.mxu0 0
    %2935 = vmatpush1.bf16.msra.mxu0 %v2124
    %2936 = vmatprep.subr.bf16.mxu0 0
    %2937 = vmatpush1.bf16.msra.mxu0 %v2125
    %2938 = vmatprep.subr.bf16.mxu0 0
    %2939 = vmatpush1.bf16.msra.mxu0 %v2126
    %2940 = vmatprep.subr.bf16.mxu0 0
    %2941 = vmatpush1.bf16.msra.mxu0 %v2127
    %2942 = vmatprep.subr.bf16.mxu0 0
    %2943 = vmatpush1.bf16.msra.mxu0 %v2128
    %2944 = vmatprep.subr.bf16.mxu0 0
    %2945 = vmatpush1.bf16.msra.mxu0 %v2129
    %2946 = vmatprep.mubr.bf16.mxu0 %v372
    %2947 = vmatmul.mubr.bf16.gmra.mrb[0].mxu0 %v371
    %v2948 = vpop.f32.mrb[0].mxu0
    %v2949 = vadd.f32 %v2909, %v2948
    %v2950 = vpop.f32.mrb[0].mxu0
    %v2951 = vpop.f32.mrb[0].mxu0
    %v2952 = vpop.f32.mrb[0].mxu0
    %2953 = vdwg.mxu0
    %2954 = vmatprep.subr.bf16.mxu0 0
    %2955 = vmatpush1.bf16.msra.mxu0 %v2130
    %2956 = vmatprep.subr.bf16.mxu0 0
    %2957 = vmatpush1.bf16.msra.mxu0 %v2131
    %2958 = vmatprep.subr.bf16.mxu0 0
    %2959 = vmatpush1.bf16.msra.mxu0 %v2132
    %2960 = vmatprep.subr.bf16.mxu0 0
    %2961 = vmatpush1.bf16.msra.mxu0 %v2133
    %2962 = vmatprep.subr.bf16.mxu0 0
    %2963 = vmatpush1.bf16.msra.mxu0 %v2134
    %2964 = vmatprep.subr.bf16.mxu0 0
    %2965 = vmatpush1.bf16.msra.mxu0 %v2135
    %2966 = vmatprep.subr.bf16.mxu0 0
    %2967 = vmatpush1.bf16.msra.mxu0 %v2136
    %2968 = vmatprep.subr.bf16.mxu0 0
    %2969 = vmatpush1.bf16.msra.mxu0 %v2137
    %2970 = vmatprep.subr.bf16.mxu0 0
    %2971 = vmatpush1.bf16.msra.mxu0 %v2138
    %2972 = vmatprep.subr.bf16.mxu0 0
    %2973 = vmatpush1.bf16.msra.mxu0 %v2139
    %2974 = vmatprep.subr.bf16.mxu0 0
    %2975 = vmatpush1.bf16.msra.mxu0 %v2140
    %2976 = vmatprep.subr.bf16.mxu0 0
    %2977 = vmatpush1.bf16.msra.mxu0 %v2141
    %2978 = vmatprep.subr.bf16.mxu0 0
    %2979 = vmatpush1.bf16.msra.mxu0 %v2142
    %2980 = vmatprep.subr.bf16.mxu0 0
    %2981 = vmatpush1.bf16.msra.mxu0 %v2143
    %2982 = vmatprep.subr.bf16.mxu0 0
    %2983 = vmatpush1.bf16.msra.mxu0 %v2144
    %2984 = vmatprep.subr.bf16.mxu0 0
    %2985 = vmatpush1.bf16.msra.mxu0 %v2145
    %2986 = vmatprep.mubr.bf16.mxu0 %v374
    %2987 = vmatmul.mubr.bf16.gmra.mrb[0].mxu0 %v373
    %v2988 = vpop.f32.mrb[0].mxu0
    %v2989 = vadd.f32 %v2949, %v2988
    %v2990 = vpop.f32.mrb[0].mxu0
    %v2991 = vpop.f32.mrb[0].mxu0
    %v2992 = vpop.f32.mrb[0].mxu0
    %2993 = vdwg.mxu0
    %2994 = vmatprep.subr.bf16.mxu0 0
    %2995 = vmatpush1.bf16.msra.mxu0 %v2146
    %2996 = vmatprep.subr.bf16.mxu0 0
    %2997 = vmatpush1.bf16.msra.mxu0 %v2147
    %2998 = vmatprep.subr.bf16.mxu0 0
    %2999 = vmatpush1.bf16.msra.mxu0 %v2148
    %3000 = vmatprep.subr.bf16.mxu0 0
    %3001 = vmatpush1.bf16.msra.mxu0 %v2149
    %3002 = vmatprep.subr.bf16.mxu0 0
    %3003 = vmatpush1.bf16.msra.mxu0 %v2150
    %3004 = vmatprep.subr.bf16.mxu0 0
    %3005 = vmatpush1.bf16.msra.mxu0 %v2151
    %3006 = vmatprep.subr.bf16.mxu0 0
    %3007 = vmatpush1.bf16.msra.mxu0 %v2152
    %3008 = vmatprep.subr.bf16.mxu0 0
    %3009 = vmatpush1.bf16.msra.mxu0 %v2153
    %3010 = vmatprep.subr.bf16.mxu0 0
    %3011 = vmatpush1.bf16.msra.mxu0 %v2154
    %3012 = vmatprep.subr.bf16.mxu0 0
    %3013 = vmatpush1.bf16.msra.mxu0 %v2155
    %3014 = vmatprep.subr.bf16.mxu0 0
    %3015 = vmatpush1.bf16.msra.mxu0 %v2156
    %3016 = vmatprep.subr.bf16.mxu0 0
    %3017 = vmatpush1.bf16.msra.mxu0 %v2157
    %3018 = vmatprep.subr.bf16.mxu0 0
    %3019 = vmatpush1.bf16.msra.mxu0 %v2158
    %3020 = vmatprep.subr.bf16.mxu0 0
    %3021 = vmatpush1.bf16.msra.mxu0 %v2159
    %3022 = vmatprep.subr.bf16.mxu0 0
    %3023 = vmatpush1.bf16.msra.mxu0 %v2160
    %3024 = vmatprep.subr.bf16.mxu0 0
    %3025 = vmatpush1.bf16.msra.mxu0 %v2161
    %3026 = vmatprep.mubr.bf16.mxu0 %v376
    %3027 = vmatmul.mubr.bf16.gmra.mrb[0].mxu0 %v375
    %v3028 = vpop.f32.mrb[0].mxu0
    %v3029 = vadd.f32 %v2989, %v3028
    %v3030 = vpop.f32.mrb[0].mxu0
    %v3031 = vpop.f32.mrb[0].mxu0
    %v3032 = vpop.f32.mrb[0].mxu0
    %3033 = vdwg.mxu0
    %3034 = vmatprep.subr.bf16.mxu0 0
    %3035 = vmatpush1.bf16.msra.mxu0 %v2162
    %3036 = vmatprep.subr.bf16.mxu0 0
    %3037 = vmatpush1.bf16.msra.mxu0 %v2163
    %3038 = vmatprep.subr.bf16.mxu0 0
    %3039 = vmatpush1.bf16.msra.mxu0 %v2164
    %3040 = vmatprep.subr.bf16.mxu0 0
    %3041 = vmatpush1.bf16.msra.mxu0 %v2165
    %3042 = vmatprep.subr.bf16.mxu0 0
    %3043 = vmatpush1.bf16.msra.mxu0 %v2166
    %3044 = vmatprep.subr.bf16.mxu0 0
    %3045 = vmatpush1.bf16.msra.mxu0 %v2167
    %3046 = vmatprep.subr.bf16.mxu0 0
    %3047 = vmatpush1.bf16.msra.mxu0 %v2168
    %3048 = vmatprep.subr.bf16.mxu0 0
    %3049 = vmatpush1.bf16.msra.mxu0 %v2169
    %3050 = vmatprep.subr.bf16.mxu0 0
    %3051 = vmatpush1.bf16.msra.mxu0 %v2170
    %3052 = vmatprep.subr.bf16.mxu0 0
    %3053 = vmatpush1.bf16.msra.mxu0 %v2171
    %3054 = vmatprep.subr.bf16.mxu0 0
    %3055 = vmatpush1.bf16.msra.mxu0 %v2172
    %3056 = vmatprep.subr.bf16.mxu0 0
    %3057 = vmatpush1.bf16.msra.mxu0 %v2173
    %3058 = vmatprep.subr.bf16.mxu0 0
    %3059 = vmatpush1.bf16.msra.mxu0 %v2174
    %3060 = vmatprep.subr.bf16.mxu0 0
    %3061 = vmatpush1.bf16.msra.mxu0 %v2175
    %3062 = vmatprep.subr.bf16.mxu0 0
    %3063 = vmatpush1.bf16.msra.mxu0 %v2176
    %3064 = vmatprep.subr.bf16.mxu0 0
    %3065 = vmatpush1.bf16.msra.mxu0 %v2177
    %3066 = vmatprep.mubr.bf16.mxu0 %v378
    %3067 = vmatmul.mubr.bf16.gmra.mrb[0].mxu0 %v377
    %v3068 = vpop.f32.mrb[0].mxu0
    %v3069 = vadd.f32 %v3029, %v3068
    %v3070 = vpop.f32.mrb[0].mxu0
    %v3071 = vpop.f32.mrb[0].mxu0
    %v3072 = vpop.f32.mrb[0].mxu0
    %3073 = vdwg.mxu0
    %3074 = vst [vmem:[#allocation2] sm:$0xff] %v3069
    // Predicated region
    $region18: #{forward.3} parent=1 // pred_check
      _
    $region19: #{forward.3} parent=1 // pred_check_branch
      %3076 = sbr.rel (0) target = $region21
    $region20: #{forward.3} parent=1 // pred_region
      %s3078 = ssub.s32 128, 128
      %3079 = vsyncadd [#allocation3], %s3078
      %s3081 = sshll.u32 [#allocation2], 4
      %s3082 = int_to_ptr.vmem [resolvable:$true] %s3081
      %3084 = dma.vmem_to_hbm [thread:$0]  %s3082, 128, %s4, [#allocation3]
    $region21: #{forward.3} parent=1 // pred_fallthru
      _
    // Predicated region
    $region22: #{forward.3} parent=1 // pred_check
      _
    $region23: #{forward.3} parent=1 // pred_check_branch
      %3086 = sbr.rel (0) target = $region25
    $region24: #{forward.3} parent=1 // pred_region
      %3087 = dma.done [#allocation3], 128
    $region25: #{forward.3} parent=1 // pred_fallthru
      _
    %3088 = vsyncpa [#allocation3], 1

// kernel: forward.2
$region0: #{forward.2}
  #allocation0 [shape = 'u32[]', space=smem, size = 0x4, offset = 0x4, fixed_abs, tag = 'smem constant byte address 0x4 - core index']
  #allocation1 [shape = 'u32[144,128]{1,0:T(1,128)}', space=vmem, size = 0x12000, scoped, tag = 'internal scratch']
  %s0 = inlined_call_operand.vmem [shape: bf16[8,1024], index: 0, kind: input, shape index: {}]
  %s1 = inlined_call_operand.hbm [shape: bf16[1024,4096], index: 1, kind: input, shape index: {}]
  %s2 = inlined_call_operand.hbm [shape: f32[1,4096], index: 2, kind: input, shape index: {}]
  %s3 = inlined_call_operand.hbm [shape: bf16[4096,4096], index: 3, kind: input, shape index: {}]
  %s4 = inlined_call_operand.vmem [shape: f32[2,8,4096], index: 4, kind: output, shape index: {}]
  %s5 = sld [smem:[#allocation0]]
  $region65: #{forward.2} parent=0
    _
  %s7 = ssub.s32 1, %s5
  %s8 = scalar_select 0, %s7, %s5
  $region1: #{forward.2} parent=0
    #allocation2 [shape = 'u8[2097152]{0}', space=vmem, size = 0x200000, scoped, tag = 'input window, operand 1']
    #allocation3 [shape = 's32[2]{0}', space=sflag, size = 0x8, scoped, tag = 'scoped memory for forward.2']
    #allocation4 [shape = 'u8[4096]{0}', space=vmem, size = 0x1000, scoped, tag = 'input window, operand 2']
    #allocation5 [shape = 's32[2]{0}', space=sflag, size = 0x8, scoped, tag = 'scoped memory for forward.2']
    #allocation6 [shape = 'u8[8388608]{0}', space=vmem, size = 0x800000, scoped, tag = 'input window, operand 3']
    %9 = vsyncpa [#allocation3], 0
    %s10 = scalar_lea.sflag [#allocation3], 1
    %11 = vsyncpa %s10, 0
    %12 = vsyncpa [#allocation5], 0
    %s13 = scalar_lea.sflag [#allocation5], 1
    %14 = vsyncpa %s13, 0
    loop: start=0, step=1, limit=10
    $region2: #{forward.2} parent=1 // loop_pre_header
      _
    $region3: #{forward.2} parent=1 // loop_header
      %s16 = sphi 0, %s20
      %p17 = scmp.ge.s32.totalorder %s16, 10
      %s23 = sphi 0, %s35
      %s24 = sphi 0, %s31
      %s25 = sphi 0, %s23
      %s26 = sphi 0, %s24
      %s27 = sphi 0, %s25
      %s28 = sphi 0, %s26
      %s36 = sphi 0, %s36
      %s38 = sphi 0, %s36
      %s39 = sphi 0, %s38
      %s53 = sphi 0, %s39
      %s63 = sphi 0, %s65
      %s66 = sphi 0, %s63
      %s67 = sphi 0, %s66
      %s83 = sphi 0, %s67
      %s93 = sphi 0, %s95
      %s96 = sphi 0, %s93
      %s97 = sphi 0, %s96
      %s113 = sphi 0, %s97
      %s123 = sphi 0, %s125
      %s126 = sphi 0, %s123
      %s127 = sphi 0, %s126
      %s143 = sphi 0, %s127
      %s149 = sphi 0, %s151
      %s152 = sphi 0, %s149
      %s153 = sphi 0, %s152
      %s169 = sphi 0, %s153
    $region4: #{forward.2} parent=1 // loop_header_branch
      %19 = sbr.rel (%p17) target = $region8
    $region5: #{forward.2} parent=1 // loop_body
      %s21 = ssub.s32 %s16, 1
      %s22 = ssub.s32 %s16, 2
      %s29 = sadd.s32 1, %s24
      %p30 = scmp.ge.s32.totalorder %s29, 4
      %s31 = scalar_select %p30, 0, %s29
      %s32 = sadd.s32 1, %s23
      %s33 = scalar_select %p30, %s32, %s23
      %p34 = scmp.ge.s32.totalorder %s33, 2
      %s35 = scalar_select %p34, 0, %s33
      %s37 = sadd.s32 %s36, 1
      %p40 = scmp.eq.s32.totalorder %s16, 7
      %p41 = scmp.ne.s32.totalorder %s36, %s38
      %p42 = scmp.eq.s32.totalorder %s16, 0
      %p43 = por %p41, %p42
      %p44 = scmp.ne.s32.totalorder %s36, %s38
      %p45 = scmp.eq.s32.totalorder %s21, 7
      %p46 = por %p44, %p45
      %p47 = scmp.ne.s32.totalorder %s38, %s39
      %p48 = scmp.eq.s32.totalorder %s21, 0
      %p49 = por %p47, %p48
      %p50 = scmp.ne.s32.totalorder %s38, %s39
      %p51 = scmp.eq.s32.totalorder %s22, 7
      %p52 = por %p50, %p51
      %p54 = scmp.ne.s32.totalorder %s39, %s53
      %p55 = scmp.eq.s32.totalorder %s22, 0
      %p56 = por %p54, %p55
      %s57 = smul.u32 %s23, 4
      %s58 = sadd.s32 %s57, %s24
      %s59 = smul.u32 %s35, 4
      %s60 = sadd.s32 %s59, %s31
      %s61 = ssub.s32 %s58, %s60
      %p62 = scmp.eq.s32.totalorder %s61, 0
      %s64 = sadd.s32 %s63, 1
      %s65 = scalar_select %p62, %s63, %s64
      %p68 = pneg %p62
      %p69 = scmp.eq.s32.totalorder %s16, 7
      %p70 = por %p68, %p69
      %p71 = scmp.ne.s32.totalorder %s63, %s66
      %p72 = scmp.eq.s32.totalorder %s16, 0
      %p73 = por %p71, %p72
      %p74 = scmp.ne.s32.totalorder %s63, %s66
      %p75 = scmp.eq.s32.totalorder %s21, 7
      %p76 = por %p74, %p75
      %p77 = scmp.ne.s32.totalorder %s66, %s67
      %p78 = scmp.eq.s32.totalorder %s21, 0
      %p79 = por %p77, %p78
      %p80 = scmp.ne.s32.totalorder %s66, %s67
      %p81 = scmp.eq.s32.totalorder %s22, 7
      %p82 = por %p80, %p81
      %p84 = scmp.ne.s32.totalorder %s67, %s83
      %p85 = scmp.eq.s32.totalorder %s22, 0
      %p86 = por %p84, %p85
      %s87 = smul.u32 %s23, 4
      %s88 = sadd.s32 %s87, %s24
      %s89 = smul.u32 %s35, 4
      %s90 = sadd.s32 %s89, %s31
      %s91 = ssub.s32 %s88, %s90
      %p92 = scmp.eq.s32.totalorder %s91, 0
      %s94 = sadd.s32 %s93, 1
      %s95 = scalar_select %p92, %s93, %s94
      %p98 = pneg %p92
      %p99 = scmp.eq.s32.totalorder %s16, 7
      %p100 = por %p98, %p99
      %p101 = scmp.ne.s32.totalorder %s93, %s96
      %p102 = scmp.eq.s32.totalorder %s16, 0
      %p103 = por %p101, %p102
      %p104 = scmp.ne.s32.totalorder %s93, %s96
      %p105 = scmp.eq.s32.totalorder %s21, 7
      %p106 = por %p104, %p105
      %p107 = scmp.ne.s32.totalorder %s96, %s97
      %p108 = scmp.eq.s32.totalorder %s21, 0
      %p109 = por %p107, %p108
      %p110 = scmp.ne.s32.totalorder %s96, %s97
      %p111 = scmp.eq.s32.totalorder %s22, 7
      %p112 = por %p110, %p111
      %p114 = scmp.ne.s32.totalorder %s97, %s113
      %p115 = scmp.eq.s32.totalorder %s22, 0
      %p116 = por %p114, %p115
      %s117 = smul.u32 %s23, 4
      %s118 = sadd.s32 %s117, %s24
      %s119 = smul.u32 %s35, 4
      %s120 = sadd.s32 %s119, %s31
      %s121 = ssub.s32 %s118, %s120
      %p122 = scmp.eq.s32.totalorder %s121, 0
      %s124 = sadd.s32 %s123, 1
      %s125 = scalar_select %p122, %s123, %s124
      %p128 = pneg %p122
      %p129 = scmp.eq.s32.totalorder %s16, 7
      %p130 = por %p128, %p129
      %p131 = scmp.ne.s32.totalorder %s123, %s126
      %p132 = scmp.eq.s32.totalorder %s16, 0
      %p133 = por %p131, %p132
      %p134 = scmp.ne.s32.totalorder %s123, %s126
      %p135 = scmp.eq.s32.totalorder %s21, 7
      %p136 = por %p134, %p135
      %p137 = scmp.ne.s32.totalorder %s126, %s127
      %p138 = scmp.eq.s32.totalorder %s21, 0
      %p139 = por %p137, %p138
      %p140 = scmp.ne.s32.totalorder %s126, %s127
      %p141 = scmp.eq.s32.totalorder %s22, 7
      %p142 = por %p140, %p141
      %p144 = scmp.ne.s32.totalorder %s127, %s143
      %p145 = scmp.eq.s32.totalorder %s22, 0
      %p146 = por %p144, %p145
      %s147 = ssub.s32 %s23, %s35
      %p148 = scmp.eq.s32.totalorder %s147, 0
      %s150 = sadd.s32 %s149, 1
      %s151 = scalar_select %p148, %s149, %s150
      %p154 = pneg %p148
      %p155 = scmp.eq.s32.totalorder %s16, 7
      %p156 = por %p154, %p155
      %p157 = scmp.ne.s32.totalorder %s149, %s152
      %p158 = scmp.eq.s32.totalorder %s16, 0
      %p159 = por %p157, %p158
      %p160 = scmp.ne.s32.totalorder %s149, %s152
      %p161 = scmp.eq.s32.totalorder %s21, 7
      %p162 = por %p160, %p161
      %p163 = scmp.ne.s32.totalorder %s152, %s153
      %p164 = scmp.eq.s32.totalorder %s21, 0
      %p165 = por %p163, %p164
      %p166 = scmp.ne.s32.totalorder %s152, %s153
      %p167 = scmp.eq.s32.totalorder %s22, 7
      %p168 = por %p166, %p167
      %p170 = scmp.ne.s32.totalorder %s153, %s169
      %p171 = scmp.eq.s32.totalorder %s22, 0
      %p172 = por %p170, %p171
      %p173 = scmp.le.s32.totalorder 1, %s16
      %p174 = scmp.lt.s32.totalorder %s16, 9
      %p175 = pnand %p173, %p174
      %p176 = pneg %p175
      // Predicated region
      $region9: #{forward.2} parent=5 // pred_check
        _
      $region10: #{forward.2} parent=5 // pred_check_branch
        %178 = sbr.rel (%p175) target = $region12
      $region11: #{forward.2} parent=5 // pred_region
        %s179 = ssub.s32 %s16, 1
        // Predicated region
        $region13: #{forward.2} parent=11 // pred_check
          %p180 = pneg %p49
        $region14: #{forward.2} parent=11 // pred_check_branch
          %182 = sbr.rel (%p180) target = $region16
        $region15: #{forward.2} parent=11 // pred_region
          _
        $region16: #{forward.2} parent=11 // pred_fallthru
          _
      $region12: #{forward.2} parent=5 // pred_fallthru
        _
      %p183 = scmp.lt.s32.totalorder %s16, 8
      // Predicated region
      $region17: #{forward.2} parent=5 // pred_check
        %p184 = pneg %p183
      $region18: #{forward.2} parent=5 // pred_check_branch
        %186 = sbr.rel (%p184) target = $region20
      $region19: #{forward.2} parent=5 // pred_region
        // Predicated region
        $region21: #{forward.2} parent=19 // pred_check
          %p187 = pneg %p73
        $region22: #{forward.2} parent=19 // pred_check_branch
          %189 = sbr.rel (%p187) target = $region24
        $region23: #{forward.2} parent=19 // pred_region
          %s190 = sand.u32 %s63, 1
          %s191 = scalar_lea.sflag [#allocation3], %s190
          %s192 = sand.u32 %s63, 1
          %s193 = smul.addr %s192, 2048
          %s194 = scalar_lea.vmem [#allocation2], %s193
          %s195 = smul.u32 %s23, 4
          %s196 = sadd.s32 %s195, %s24
          %s197 = smul.u32 4, %s196
          %s199 = ssub.s32 32768, 32768
          %200 = vsyncadd %s191, %s199
          %s201 = smul.addr %s197, 64
          %s202 = scalar_lea.hbm %s1, %s201
          %s203 = sshll.u32 %s194, 4
          %s204 = int_to_ptr.vmem [resolvable:$true] %s203
          %209 = dma.hbm_to_vmem [thread:$0]  %s202, 32768, %s204, %s191, 2048, 256, 16
        $region24: #{forward.2} parent=19 // pred_fallthru
          _
        // Predicated region
        $region25: #{forward.2} parent=19 // pred_check
          %p210 = pneg %p103
        $region26: #{forward.2} parent=19 // pred_check_branch
          %212 = sbr.rel (%p210) target = $region28
        $region27: #{forward.2} parent=19 // pred_region
          %s213 = sand.u32 %s16, 1
          %s214 = scalar_lea.sflag [#allocation5], %s213
          %s215 = sand.u32 %s93, 1
          %s216 = smul.addr %s215, 4
          %s217 = scalar_lea.vmem [#allocation4], %s216
          %s218 = smul.u32 %s23, 4
          %s219 = sadd.s32 %s218, %s24
          %s220 = smul.u32 4, %s219
          %s222 = ssub.s32 64, 64
          %223 = vsyncadd %s214, %s222
          %s224 = smul.addr %s220, 16
          %s225 = scalar_lea.hbm %s2, %s224
          %s227 = sshll.u32 %s217, 4
          %s228 = int_to_ptr.vmem [resolvable:$true] %s227
          %230 = dma.hbm_to_vmem [thread:$0]  %s225, 64, %s228, %s214
        $region28: #{forward.2} parent=19 // pred_fallthru
          _
        // Predicated region
        $region29: #{forward.2} parent=19 // pred_check
          %p231 = pneg %p133
        $region30: #{forward.2} parent=19 // pred_check_branch
          %233 = sbr.rel (%p231) target = $region32
        $region31: #{forward.2} parent=19 // pred_region
          %s234 = sand.u32 %s16, 1
          %s235 = scalar_lea.sflag [#allocation5], %s234
          %s236 = sand.u32 %s123, 1
          %s237 = smul.addr %s236, 8192
          %s238 = scalar_lea.vmem [#allocation6], %s237
          %s239 = smul.u32 %s23, 4
          %s240 = sadd.s32 %s239, %s24
          %s241 = smul.u32 64, %s240
          %s243 = ssub.s32 131072, 131072
          %244 = vsyncadd %s235, %s243
          %s245 = smul.addr %s241, 32
          %s246 = smul.addr %s245, 64
          %s247 = scalar_lea.hbm %s3, %s246
          %s248 = sshll.u32 %s238, 4
          %s249 = int_to_ptr.vmem [resolvable:$true] %s248
          %254 = dma.hbm_to_vmem [thread:$0]  %s247, 131072, %s249, %s235, 2048, 2048, 128
        $region32: #{forward.2} parent=19 // pred_fallthru
          _
      $region20: #{forward.2} parent=5 // pred_fallthru
        _
      %p255 = scmp.le.s32.totalorder 1, %s16
      %p256 = scmp.lt.s32.totalorder %s16, 9
      %p257 = pnand %p255, %p256
      %p258 = pneg %p257
      // Predicated region
      $region33: #{forward.2} parent=5 // pred_check
        _
      $region34: #{forward.2} parent=5 // pred_check_branch
        %260 = sbr.rel (%p257) target = $region36
      $region35: #{forward.2} parent=5 // pred_region
        %s261 = ssub.s32 %s16, 1
        %s262 = sand.u32 %s66, 1
        %s263 = scalar_lea.sflag [#allocation3], %s262
        %s264 = sand.u32 %s66, 1
        %s265 = smul.addr %s264, 2048
        %s266 = scalar_lea.vmem [#allocation2], %s265
        // Predicated region
        $region37: #{forward.2} parent=35 // pred_check
          %p267 = pneg %p79
        $region38: #{forward.2} parent=35 // pred_check_branch
          %269 = sbr.rel (%p267) target = $region40
        $region39: #{forward.2} parent=35 // pred_region
          %270 = dma.done %s263, 32768
        $region40: #{forward.2} parent=35 // pred_fallthru
          _
        %s271 = sand.u32 %s21, 1
        %s272 = scalar_lea.sflag [#allocation5], %s271
        %s273 = sand.u32 %s96, 1
        %s274 = smul.addr %s273, 4
        %s275 = scalar_lea.vmem [#allocation4], %s274
        // Predicated region
        $region41: #{forward.2} parent=35 // pred_check
          %p276 = pneg %p109
        $region42: #{forward.2} parent=35 // pred_check_branch
          %278 = sbr.rel (%p276) target = $region44
        $region43: #{forward.2} parent=35 // pred_region
          %279 = dma.done %s272, 64
        $region44: #{forward.2} parent=35 // pred_fallthru
          _
        %s280 = sand.u32 %s21, 1
        %s281 = scalar_lea.sflag [#allocation5], %s280
        %s282 = sand.u32 %s126, 1
        %s283 = smul.addr %s282, 8192
        %s284 = scalar_lea.vmem [#allocation6], %s283
        // Predicated region
        $region45: #{forward.2} parent=35 // pred_check
          %p285 = pneg %p139
        $region46: #{forward.2} parent=35 // pred_check_branch
          %287 = sbr.rel (%p285) target = $region48
        $region47: #{forward.2} parent=35 // pred_region
          %288 = dma.done %s281, 131072
        $region48: #{forward.2} parent=35 // pred_fallthru
          _
        %p289 = pneg %p49
        %p290 = pneg %p46
        %s291 = sand.u32 %s66, 1
        %s292 = scalar_lea.sflag [#allocation3], %s291
        %s293 = sand.u32 %s66, 1
        %s294 = smul.addr %s293, 2048
        %s295 = scalar_lea.vmem [#allocation2], %s294
        %p296 = pneg %p79
        %p297 = pneg %p76
        %s298 = sand.u32 %s21, 1
        %s299 = scalar_lea.sflag [#allocation5], %s298
        %s300 = sand.u32 %s96, 1
        %s301 = smul.addr %s300, 4
        %s302 = scalar_lea.vmem [#allocation4], %s301
        %p303 = pneg %p109
        %p304 = pneg %p106
        %s305 = sand.u32 %s21, 1
        %s306 = scalar_lea.sflag [#allocation5], %s305
        %s307 = sand.u32 %s126, 1
        %s308 = smul.addr %s307, 8192
        %s309 = scalar_lea.vmem [#allocation6], %s308
        %p310 = pneg %p139
        %p311 = pneg %p136
        %p312 = pneg %p165
        %p313 = pneg %p162
        %p314 = scmp.lt.s32.totalorder %s25, 1
        %s315 = scalar_select %p314, %s25, 1
        %s316 = smul.addr %s315, 32
        %s317 = smul.addr %s316, 8
        %s318 = scalar_lea.vmem %s4, %s317
        %s319 = smul.u32 %s25, 4
        %s320 = sadd.s32 %s319, %s26
        %s321 = smul.u32 4, %s320
        %s322 = smul.u32 %s25, 4
        %s323 = sadd.s32 %s322, %s26
        %s324 = smul.u32 4, %s323
        %s325 = smul.u32 %s25, 4
        %s326 = sadd.s32 %s325, %s26
        %s327 = smul.u32 64, %s326
        %p328 = scmp.lt.s32.totalorder %s25, 1
        %s329 = scalar_select %p328, %s25, 1
        %s330 = smul.addr %s329, 32
        %s331 = smul.addr %s330, 8
        %s332 = scalar_lea.vmem %s4, %s331
        %p333 = scmp.eq.s32.totalorder %s26, 0
        // Predicated region
        $region49: #{forward.2} parent=35 // pred_check
          %p334 = pneg %p333
        $region50: #{forward.2} parent=35 // pred_check_branch
          %336 = sbr.rel (%p334) target = $region52
        $region51: #{forward.2} parent=35 // pred_region
          %337 = vst [vmem:[%s332] sm:$0xff] 0.0
          %338 = vst [vmem:[%s332 + $0x8] sm:$0xff] 0.0
          %339 = vst [vmem:[%s332 + $0x10] sm:$0xff] 0.0
          %340 = vst [vmem:[%s332 + $0x18] sm:$0xff] 0.0
          %341 = vst [vmem:[%s332 + $0x20] sm:$0xff] 0.0
          %342 = vst [vmem:[%s332 + $0x28] sm:$0xff] 0.0
          %343 = vst [vmem:[%s332 + $0x30] sm:$0xff] 0.0
          %344 = vst [vmem:[%s332 + $0x38] sm:$0xff] 0.0
          %345 = vst [vmem:[%s332 + $0x40] sm:$0xff] 0.0
          %346 = vst [vmem:[%s332 + $0x48] sm:$0xff] 0.0
          %347 = vst [vmem:[%s332 + $0x50] sm:$0xff] 0.0
          %348 = vst [vmem:[%s332 + $0x58] sm:$0xff] 0.0
          %349 = vst [vmem:[%s332 + $0x60] sm:$0xff] 0.0
          %350 = vst [vmem:[%s332 + $0x68] sm:$0xff] 0.0
          %351 = vst [vmem:[%s332 + $0x70] sm:$0xff] 0.0
          %352 = vst [vmem:[%s332 + $0x78] sm:$0xff] 0.0
          %353 = vst [vmem:[%s332 + $0x80] sm:$0xff] 0.0
          %354 = vst [vmem:[%s332 + $0x88] sm:$0xff] 0.0
          %355 = vst [vmem:[%s332 + $0x90] sm:$0xff] 0.0
          %356 = vst [vmem:[%s332 + $0x98] sm:$0xff] 0.0
          %357 = vst [vmem:[%s332 + $0xa0] sm:$0xff] 0.0
          %358 = vst [vmem:[%s332 + $0xa8] sm:$0xff] 0.0
          %359 = vst [vmem:[%s332 + $0xb0] sm:$0xff] 0.0
          %360 = vst [vmem:[%s332 + $0xb8] sm:$0xff] 0.0
          %361 = vst [vmem:[%s332 + $0xc0] sm:$0xff] 0.0
          %362 = vst [vmem:[%s332 + $0xc8] sm:$0xff] 0.0
          %363 = vst [vmem:[%s332 + $0xd0] sm:$0xff] 0.0
          %364 = vst [vmem:[%s332 + $0xd8] sm:$0xff] 0.0
          %365 = vst [vmem:[%s332 + $0xe0] sm:$0xff] 0.0
          %366 = vst [vmem:[%s332 + $0xe8] sm:$0xff] 0.0
          %367 = vst [vmem:[%s332 + $0xf0] sm:$0xff] 0.0
          %368 = vst [vmem:[%s332 + $0xf8] sm:$0xff] 0.0
        $region52: #{forward.2} parent=35 // pred_fallthru
          _
        %v369 = vld [vmem:[%s0] sm:$0xff]
        %v370 = vld [vmem:[%s0 + $0x8] sm:$0xff]
        %v371 = vld [vmem:[%s0 + $0x10] sm:$0xff]
        %v372 = vld [vmem:[%s0 + $0x18] sm:$0xff]
        %v373 = vld [vmem:[%s266] sm:$0xff]
        %v374 = vld [vmem:[%s266 + $0x8] sm:$0xff]
        %v375 = vld [vmem:[%s266 + $0x10] sm:$0xff]
        %v376 = vld [vmem:[%s266 + $0x18] sm:$0xff]
        %v377 = vld [vmem:[%s266 + $0x20] sm:$0xff]
        %v378 = vld [vmem:[%s266 + $0x28] sm:$0xff]
        %v379 = vld [vmem:[%s266 + $0x30] sm:$0xff]
        %v380 = vld [vmem:[%s266 + $0x38] sm:$0xff]
        %v381 = vld [vmem:[%s266 + $0x40] sm:$0xff]
        %v382 = vld [vmem:[%s266 + $0x48] sm:$0xff]
        %v383 = vld [vmem:[%s266 + $0x50] sm:$0xff]
        %v384 = vld [vmem:[%s266 + $0x58] sm:$0xff]
        %v385 = vld [vmem:[%s266 + $0x60] sm:$0xff]
        %v386 = vld [vmem:[%s266 + $0x68] sm:$0xff]
        %v387 = vld [vmem:[%s266 + $0x70] sm:$0xff]
        %v388 = vld [vmem:[%s266 + $0x78] sm:$0xff]
        %v389 = vld [vmem:[%s266 + $0x80] sm:$0xff]
        %v390 = vld [vmem:[%s266 + $0x88] sm:$0xff]
        %v391 = vld [vmem:[%s266 + $0x90] sm:$0xff]
        %v392 = vld [vmem:[%s266 + $0x98] sm:$0xff]
        %v393 = vld [vmem:[%s266 + $0xa0] sm:$0xff]
        %v394 = vld [vmem:[%s266 + $0xa8] sm:$0xff]
        %v395 = vld [vmem:[%s266 + $0xb0] sm:$0xff]
        %v396 = vld [vmem:[%s266 + $0xb8] sm:$0xff]
        %v397 = vld [vmem:[%s266 + $0xc0] sm:$0xff]
        %v398 = vld [vmem:[%s266 + $0xc8] sm:$0xff]
        %v399 = vld [vmem:[%s266 + $0xd0] sm:$0xff]
        %v400 = vld [vmem:[%s266 + $0xd8] sm:$0xff]
        %v401 = vld [vmem:[%s266 + $0xe0] sm:$0xff]
        %v402 = vld [vmem:[%s266 + $0xe8] sm:$0xff]
        %v403 = vld [vmem:[%s266 + $0xf0] sm:$0xff]
        %v404 = vld [vmem:[%s266 + $0xf8] sm:$0xff]
        %v405 = vld [vmem:[%s266 + $0x100] sm:$0xff]
        %v406 = vld [vmem:[%s266 + $0x108] sm:$0xff]
        %v407 = vld [vmem:[%s266 + $0x110] sm:$0xff]
        %v408 = vld [vmem:[%s266 + $0x118] sm:$0xff]
        %v409 = vld [vmem:[%s266 + $0x120] sm:$0xff]
        %v410 = vld [vmem:[%s266 + $0x128] sm:$0xff]
        %v411 = vld [vmem:[%s266 + $0x130] sm:$0xff]
        %v412 = vld [vmem:[%s266 + $0x138] sm:$0xff]
        %v413 = vld [vmem:[%s266 + $0x140] sm:$0xff]
        %v414 = vld [vmem:[%s266 + $0x148] sm:$0xff]
        %v415 = vld [vmem:[%s266 + $0x150] sm:$0xff]
        %v416 = vld [vmem:[%s266 + $0x158] sm:$0xff]
        %v417 = vld [vmem:[%s266 + $0x160] sm:$0xff]
        %v418 = vld [vmem:[%s266 + $0x168] sm:$0xff]
        %v419 = vld [vmem:[%s266 + $0x170] sm:$0xff]
        %v420 = vld [vmem:[%s266 + $0x178] sm:$0xff]
        %v421 = vld [vmem:[%s266 + $0x180] sm:$0xff]
        %v422 = vld [vmem:[%s266 + $0x188] sm:$0xff]
        %v423 = vld [vmem:[%s266 + $0x190] sm:$0xff]
        %v424 = vld [vmem:[%s266 + $0x198] sm:$0xff]
        %v425 = vld [vmem:[%s266 + $0x1a0] sm:$0xff]
        %v426 = vld [vmem:[%s266 + $0x1a8] sm:$0xff]
        %v427 = vld [vmem:[%s266 + $0x1b0] sm:$0xff]
        %v428 = vld [vmem:[%s266 + $0x1b8] sm:$0xff]
        %v429 = vld [vmem:[%s266 + $0x1c0] sm:$0xff]
        %v430 = vld [vmem:[%s266 + $0x1c8] sm:$0xff]
        %v431 = vld [vmem:[%s266 + $0x1d0] sm:$0xff]
        %v432 = vld [vmem:[%s266 + $0x1d8] sm:$0xff]
        %v433 = vld [vmem:[%s266 + $0x1e0] sm:$0xff]
        %v434 = vld [vmem:[%s266 + $0x1e8] sm:$0xff]
        %v435 = vld [vmem:[%s266 + $0x1f0] sm:$0xff]
        %v436 = vld [vmem:[%s266 + $0x1f8] sm:$0xff]
        %v437 = vld [vmem:[%s266 + $0x200] sm:$0xff]
        %v438 = vld [vmem:[%s266 + $0x208] sm:$0xff]
        %v439 = vld [vmem:[%s266 + $0x210] sm:$0xff]
        %v440 = vld [vmem:[%s266 + $0x218] sm:$0xff]
        %v441 = vld [vmem:[%s266 + $0x220] sm:$0xff]
        %v442 = vld [vmem:[%s266 + $0x228] sm:$0xff]
        %v443 = vld [vmem:[%s266 + $0x230] sm:$0xff]
        %v444 = vld [vmem:[%s266 + $0x238] sm:$0xff]
        %v445 = vld [vmem:[%s266 + $0x240] sm:$0xff]
        %v446 = vld [vmem:[%s266 + $0x248] sm:$0xff]
        %v447 = vld [vmem:[%s266 + $0x250] sm:$0xff]
        %v448 = vld [vmem:[%s266 + $0x258] sm:$0xff]
        %v449 = vld [vmem:[%s266 + $0x260] sm:$0xff]
        %v450 = vld [vmem:[%s266 + $0x268] sm:$0xff]
        %v451 = vld [vmem:[%s266 + $0x270] sm:$0xff]
        %v452 = vld [vmem:[%s266 + $0x278] sm:$0xff]
        %v453 = vld [vmem:[%s266 + $0x280] sm:$0xff]
        %v454 = vld [vmem:[%s266 + $0x288] sm:$0xff]
        %v455 = vld [vmem:[%s266 + $0x290] sm:$0xff]
        %v456 = vld [vmem:[%s266 + $0x298] sm:$0xff]
        %v457 = vld [vmem:[%s266 + $0x2a0] sm:$0xff]
        %v458 = vld [vmem:[%s266 + $0x2a8] sm:$0xff]
        %v459 = vld [vmem:[%s266 + $0x2b0] sm:$0xff]
        %v460 = vld [vmem:[%s266 + $0x2b8] sm:$0xff]
        %v461 = vld [vmem:[%s266 + $0x2c0] sm:$0xff]
        %v462 = vld [vmem:[%s266 + $0x2c8] sm:$0xff]
        %v463 = vld [vmem:[%s266 + $0x2d0] sm:$0xff]
        %v464 = vld [vmem:[%s266 + $0x2d8] sm:$0xff]
        %v465 = vld [vmem:[%s266 + $0x2e0] sm:$0xff]
        %v466 = vld [vmem:[%s266 + $0x2e8] sm:$0xff]
        %v467 = vld [vmem:[%s266 + $0x2f0] sm:$0xff]
        %v468 = vld [vmem:[%s266 + $0x2f8] sm:$0xff]
        %v469 = vld [vmem:[%s266 + $0x300] sm:$0xff]
        %v470 = vld [vmem:[%s266 + $0x308] sm:$0xff]
        %v471 = vld [vmem:[%s266 + $0x310] sm:$0xff]
        %v472 = vld [vmem:[%s266 + $0x318] sm:$0xff]
        %v473 = vld [vmem:[%s266 + $0x320] sm:$0xff]
        %v474 = vld [vmem:[%s266 + $0x328] sm:$0xff]
        %v475 = vld [vmem:[%s266 + $0x330] sm:$0xff]
        %v476 = vld [vmem:[%s266 + $0x338] sm:$0xff]
        %v477 = vld [vmem:[%s266 + $0x340] sm:$0xff]
        %v478 = vld [vmem:[%s266 + $0x348] sm:$0xff]
        %v479 = vld [vmem:[%s266 + $0x350] sm:$0xff]
        %v480 = vld [vmem:[%s266 + $0x358] sm:$0xff]
        %v481 = vld [vmem:[%s266 + $0x360] sm:$0xff]
        %v482 = vld [vmem:[%s266 + $0x368] sm:$0xff]
        %v483 = vld [vmem:[%s266 + $0x370] sm:$0xff]
        %v484 = vld [vmem:[%s266 + $0x378] sm:$0xff]
        %v485 = vld [vmem:[%s266 + $0x380] sm:$0xff]
        %v486 = vld [vmem:[%s266 + $0x388] sm:$0xff]
        %v487 = vld [vmem:[%s266 + $0x390] sm:$0xff]
        %v488 = vld [vmem:[%s266 + $0x398] sm:$0xff]
        %v489 = vld [vmem:[%s266 + $0x3a0] sm:$0xff]
        %v490 = vld [vmem:[%s266 + $0x3a8] sm:$0xff]
        %v491 = vld [vmem:[%s266 + $0x3b0] sm:$0xff]
        %v492 = vld [vmem:[%s266 + $0x3b8] sm:$0xff]
        %v493 = vld [vmem:[%s266 + $0x3c0] sm:$0xff]
        %v494 = vld [vmem:[%s266 + $0x3c8] sm:$0xff]
        %v495 = vld [vmem:[%s266 + $0x3d0] sm:$0xff]
        %v496 = vld [vmem:[%s266 + $0x3d8] sm:$0xff]
        %v497 = vld [vmem:[%s266 + $0x3e0] sm:$0xff]
        %v498 = vld [vmem:[%s266 + $0x3e8] sm:$0xff]
        %v499 = vld [vmem:[%s266 + $0x3f0] sm:$0xff]
        %v500 = vld [vmem:[%s266 + $0x3f8] sm:$0xff]
        %v501 = vld [vmem:[%s266 + $0x400] sm:$0xff]
        %v502 = vld [vmem:[%s266 + $0x408] sm:$0xff]
        %v503 = vld [vmem:[%s266 + $0x410] sm:$0xff]
        %v504 = vld [vmem:[%s266 + $0x418] sm:$0xff]
        %v505 = vld [vmem:[%s266 + $0x420] sm:$0xff]
        %v506 = vld [vmem:[%s266 + $0x428] sm:$0xff]
        %v507 = vld [vmem:[%s266 + $0x430] sm:$0xff]
        %v508 = vld [vmem:[%s266 + $0x438] sm:$0xff]
        %v509 = vld [vmem:[%s266 + $0x440] sm:$0xff]
        %v510 = vld [vmem:[%s266 + $0x448] sm:$0xff]
        %v511 = vld [vmem:[%s266 + $0x450] sm:$0xff]
        %v512 = vld [vmem:[%s266 + $0x458] sm:$0xff]
        %v513 = vld [vmem:[%s266 + $0x460] sm:$0xff]
        %v514 = vld [vmem:[%s266 + $0x468] sm:$0xff]
        %v515 = vld [vmem:[%s266 + $0x470] sm:$0xff]
        %v516 = vld [vmem:[%s266 + $0x478] sm:$0xff]
        %v517 = vld [vmem:[%s266 + $0x480] sm:$0xff]
        %v518 = vld [vmem:[%s266 + $0x488] sm:$0xff]
        %v519 = vld [vmem:[%s266 + $0x490] sm:$0xff]
        %v520 = vld [vmem:[%s266 + $0x498] sm:$0xff]
        %v521 = vld [vmem:[%s266 + $0x4a0] sm:$0xff]
        %v522 = vld [vmem:[%s266 + $0x4a8] sm:$0xff]
        %v523 = vld [vmem:[%s266 + $0x4b0] sm:$0xff]
        %v524 = vld [vmem:[%s266 + $0x4b8] sm:$0xff]
        %v525 = vld [vmem:[%s266 + $0x4c0] sm:$0xff]
        %v526 = vld [vmem:[%s266 + $0x4c8] sm:$0xff]
        %v527 = vld [vmem:[%s266 + $0x4d0] sm:$0xff]
        %v528 = vld [vmem:[%s266 + $0x4d8] sm:$0xff]
        %v529 = vld [vmem:[%s266 + $0x4e0] sm:$0xff]
        %v530 = vld [vmem:[%s266 + $0x4e8] sm:$0xff]
        %v531 = vld [vmem:[%s266 + $0x4f0] sm:$0xff]
        %v532 = vld [vmem:[%s266 + $0x4f8] sm:$0xff]
        %v533 = vld [vmem:[%s266 + $0x500] sm:$0xff]
        %v534 = vld [vmem:[%s266 + $0x508] sm:$0xff]
        %v535 = vld [vmem:[%s266 + $0x510] sm:$0xff]
        %v536 = vld [vmem:[%s266 + $0x518] sm:$0xff]
        %v537 = vld [vmem:[%s266 + $0x520] sm:$0xff]
        %v538 = vld [vmem:[%s266 + $0x528] sm:$0xff]
        %v539 = vld [vmem:[%s266 + $0x530] sm:$0xff]
        %v540 = vld [vmem:[%s266 + $0x538] sm:$0xff]
        %v541 = vld [vmem:[%s266 + $0x540] sm:$0xff]
        %v542 = vld [vmem:[%s266 + $0x548] sm:$0xff]
        %v543 = vld [vmem:[%s266 + $0x550] sm:$0xff]
        %v544 = vld [vmem:[%s266 + $0x558] sm:$0xff]
        %v545 = vld [vmem:[%s266 + $0x560] sm:$0xff]
        %v546 = vld [vmem:[%s266 + $0x568] sm:$0xff]
        %v547 = vld [vmem:[%s266 + $0x570] sm:$0xff]
        %v548 = vld [vmem:[%s266 + $0x578] sm:$0xff]
        %v549 = vld [vmem:[%s266 + $0x580] sm:$0xff]
        %v550 = vld [vmem:[%s266 + $0x588] sm:$0xff]
        %v551 = vld [vmem:[%s266 + $0x590] sm:$0xff]
        %v552 = vld [vmem:[%s266 + $0x598] sm:$0xff]
        %v553 = vld [vmem:[%s266 + $0x5a0] sm:$0xff]
        %v554 = vld [vmem:[%s266 + $0x5a8] sm:$0xff]
        %v555 = vld [vmem:[%s266 + $0x5b0] sm:$0xff]
        %v556 = vld [vmem:[%s266 + $0x5b8] sm:$0xff]
        %v557 = vld [vmem:[%s266 + $0x5c0] sm:$0xff]
        %v558 = vld [vmem:[%s266 + $0x5c8] sm:$0xff]
        %v559 = vld [vmem:[%s266 + $0x5d0] sm:$0xff]
        %v560 = vld [vmem:[%s266 + $0x5d8] sm:$0xff]
        %v561 = vld [vmem:[%s266 + $0x5e0] sm:$0xff]
        %v562 = vld [vmem:[%s266 + $0x5e8] sm:$0xff]
        %v563 = vld [vmem:[%s266 + $0x5f0] sm:$0xff]
        %v564 = vld [vmem:[%s266 + $0x5f8] sm:$0xff]
        %v565 = vld [vmem:[%s266 + $0x600] sm:$0xff]
        %v566 = vld [vmem:[%s266 + $0x608] sm:$0xff]
        %v567 = vld [vmem:[%s266 + $0x610] sm:$0xff]
        %v568 = vld [vmem:[%s266 + $0x618] sm:$0xff]
        %v569 = vld [vmem:[%s266 + $0x620] sm:$0xff]
        %v570 = vld [vmem:[%s266 + $0x628] sm:$0xff]
        %v571 = vld [vmem:[%s266 + $0x630] sm:$0xff]
        %v572 = vld [vmem:[%s266 + $0x638] sm:$0xff]
        %v573 = vld [vmem:[%s266 + $0x640] sm:$0xff]
        %v574 = vld [vmem:[%s266 + $0x648] sm:$0xff]
        %v575 = vld [vmem:[%s266 + $0x650] sm:$0xff]
        %v576 = vld [vmem:[%s266 + $0x658] sm:$0xff]
        %v577 = vld [vmem:[%s266 + $0x660] sm:$0xff]
        %v578 = vld [vmem:[%s266 + $0x668] sm:$0xff]
        %v579 = vld [vmem:[%s266 + $0x670] sm:$0xff]
        %v580 = vld [vmem:[%s266 + $0x678] sm:$0xff]
        %v581 = vld [vmem:[%s266 + $0x680] sm:$0xff]
        %v582 = vld [vmem:[%s266 + $0x688] sm:$0xff]
        %v583 = vld [vmem:[%s266 + $0x690] sm:$0xff]
        %v584 = vld [vmem:[%s266 + $0x698] sm:$0xff]
        %v585 = vld [vmem:[%s266 + $0x6a0] sm:$0xff]
        %v586 = vld [vmem:[%s266 + $0x6a8] sm:$0xff]
        %v587 = vld [vmem:[%s266 + $0x6b0] sm:$0xff]
        %v588 = vld [vmem:[%s266 + $0x6b8] sm:$0xff]
        %v589 = vld [vmem:[%s266 + $0x6c0] sm:$0xff]
        %v590 = vld [vmem:[%s266 + $0x6c8] sm:$0xff]
        %v591 = vld [vmem:[%s266 + $0x6d0] sm:$0xff]
        %v592 = vld [vmem:[%s266 + $0x6d8] sm:$0xff]
        %v593 = vld [vmem:[%s266 + $0x6e0] sm:$0xff]
        %v594 = vld [vmem:[%s266 + $0x6e8] sm:$0xff]
        %v595 = vld [vmem:[%s266 + $0x6f0] sm:$0xff]
        %v596 = vld [vmem:[%s266 + $0x6f8] sm:$0xff]
        %v597 = vld [vmem:[%s266 + $0x700] sm:$0xff]
        %v598 = vld [vmem:[%s266 + $0x708] sm:$0xff]
        %v599 = vld [vmem:[%s266 + $0x710] sm:$0xff]
        %v600 = vld [vmem:[%s266 + $0x718] sm:$0xff]
        %v601 = vld [vmem:[%s266 + $0x720] sm:$0xff]
        %v602 = vld [vmem:[%s266 + $0x728] sm:$0xff]
        %v603 = vld [vmem:[%s266 + $0x730] sm:$0xff]
        %v604 = vld [vmem:[%s266 + $0x738] sm:$0xff]
        %v605 = vld [vmem:[%s266 + $0x740] sm:$0xff]
        %v606 = vld [vmem:[%s266 + $0x748] sm:$0xff]
        %v607 = vld [vmem:[%s266 + $0x750] sm:$0xff]
        %v608 = vld [vmem:[%s266 + $0x758] sm:$0xff]
        %v609 = vld [vmem:[%s266 + $0x760] sm:$0xff]
        %v610 = vld [vmem:[%s266 + $0x768] sm:$0xff]
        %v611 = vld [vmem:[%s266 + $0x770] sm:$0xff]
        %v612 = vld [vmem:[%s266 + $0x778] sm:$0xff]
        %v613 = vld [vmem:[%s266 + $0x780] sm:$0xff]
        %v614 = vld [vmem:[%s266 + $0x788] sm:$0xff]
        %v615 = vld [vmem:[%s266 + $0x790] sm:$0xff]
        %v616 = vld [vmem:[%s266 + $0x798] sm:$0xff]
        %v617 = vld [vmem:[%s266 + $0x7a0] sm:$0xff]
        %v618 = vld [vmem:[%s266 + $0x7a8] sm:$0xff]
        %v619 = vld [vmem:[%s266 + $0x7b0] sm:$0xff]
        %v620 = vld [vmem:[%s266 + $0x7b8] sm:$0xff]
        %v621 = vld [vmem:[%s266 + $0x7c0] sm:$0xff]
        %v622 = vld [vmem:[%s266 + $0x7c8] sm:$0xff]
        %v623 = vld [vmem:[%s266 + $0x7d0] sm:$0xff]
        %v624 = vld [vmem:[%s266 + $0x7d8] sm:$0xff]
        %v625 = vld [vmem:[%s266 + $0x7e0] sm:$0xff]
        %v626 = vld [vmem:[%s266 + $0x7e8] sm:$0xff]
        %v627 = vld [vmem:[%s266 + $0x7f0] sm:$0xff]
        %v628 = vld [vmem:[%s266 + $0x7f8] sm:$0xff]
        %v629 = vld [vmem:[%s275] sm:$0xf]
        %v631 = vlaneseq
        %v632 = vshrl.u32 %v631, 7
        %v633 = vsub.s32 0, %v632
        %v634 = vrot.slane %v629, %v633
        %v635 = vlaneseq
        %v636 = vshrl.u32 %v635, 7
        %v637 = vsub.s32 1, %v636
        %v638 = vrot.slane %v629, %v637
        %v639 = vlaneseq
        %v640 = vshrl.u32 %v639, 7
        %v641 = vsub.s32 2, %v640
        %v642 = vrot.slane %v629, %v641
        %v643 = vlaneseq
        %v644 = vshrl.u32 %v643, 7
        %v645 = vsub.s32 3, %v644
        %v646 = vrot.slane %v629, %v645
        %v655 = vunpack.c.l.b16 %v369
        %v656 = vunpack.c.h.b16 %v369
        %v657 = vunpack.c.l.b16 %v370
        %v658 = vunpack.c.h.b16 %v370
        %v659 = vunpack.c.l.b16 %v371
        %v660 = vunpack.c.h.b16 %v371
        %v661 = vunpack.c.l.b16 %v372
        %v662 = vunpack.c.h.b16 %v372
        %v663 = vpack.c.b16 %v655, %v655
        %v664 = vpack.c.b16 %v656, %v656
        %v665 = vpack.c.b16 %v657, %v657
        %v666 = vpack.c.b16 %v658, %v658
        %v667 = vpack.c.b16 %v659, %v659
        %v668 = vpack.c.b16 %v660, %v660
        %v669 = vpack.c.b16 %v661, %v661
        %v670 = vpack.c.b16 %v662, %v662
        %v935 = vunpack.c.l.b16 %v373
        %v936 = vunpack.c.h.b16 %v373
        %v937 = vunpack.c.l.b16 %v374
        %v938 = vunpack.c.h.b16 %v374
        %v939 = vunpack.c.l.b16 %v375
        %v940 = vunpack.c.h.b16 %v375
        %v941 = vunpack.c.l.b16 %v376
        %v942 = vunpack.c.h.b16 %v376
        %v943 = vunpack.c.l.b16 %v377
        %v944 = vunpack.c.h.b16 %v377
        %v945 = vunpack.c.l.b16 %v378
        %v946 = vunpack.c.h.b16 %v378
        %v947 = vunpack.c.l.b16 %v379
        %v948 = vunpack.c.h.b16 %v379
        %v949 = vunpack.c.l.b16 %v380
        %v950 = vunpack.c.h.b16 %v380
        %v951 = vunpack.c.l.b16 %v381
        %v952 = vunpack.c.h.b16 %v381
        %v953 = vunpack.c.l.b16 %v382
        %v954 = vunpack.c.h.b16 %v382
        %v955 = vunpack.c.l.b16 %v383
        %v956 = vunpack.c.h.b16 %v383
        %v957 = vunpack.c.l.b16 %v384
        %v958 = vunpack.c.h.b16 %v384
        %v959 = vunpack.c.l.b16 %v385
        %v960 = vunpack.c.h.b16 %v385
        %v961 = vunpack.c.l.b16 %v386
        %v962 = vunpack.c.h.b16 %v386
        %v963 = vunpack.c.l.b16 %v387
        %v964 = vunpack.c.h.b16 %v387
        %v965 = vunpack.c.l.b16 %v388
        %v966 = vunpack.c.h.b16 %v388
        %v967 = vunpack.c.l.b16 %v389
        %v968 = vunpack.c.h.b16 %v389
        %v969 = vunpack.c.l.b16 %v390
        %v970 = vunpack.c.h.b16 %v390
        %v971 = vunpack.c.l.b16 %v391
        %v972 = vunpack.c.h.b16 %v391
        %v973 = vunpack.c.l.b16 %v392
        %v974 = vunpack.c.h.b16 %v392
        %v975 = vunpack.c.l.b16 %v393
        %v976 = vunpack.c.h.b16 %v393
        %v977 = vunpack.c.l.b16 %v394
        %v978 = vunpack.c.h.b16 %v394
        %v979 = vunpack.c.l.b16 %v395
        %v980 = vunpack.c.h.b16 %v395
        %v981 = vunpack.c.l.b16 %v396
        %v982 = vunpack.c.h.b16 %v396
        %v983 = vunpack.c.l.b16 %v397
        %v984 = vunpack.c.h.b16 %v397
        %v985 = vunpack.c.l.b16 %v398
        %v986 = vunpack.c.h.b16 %v398
        %v987 = vunpack.c.l.b16 %v399
        %v988 = vunpack.c.h.b16 %v399
        %v989 = vunpack.c.l.b16 %v400
        %v990 = vunpack.c.h.b16 %v400
        %v991 = vunpack.c.l.b16 %v401
        %v992 = vunpack.c.h.b16 %v401
        %v993 = vunpack.c.l.b16 %v402
        %v994 = vunpack.c.h.b16 %v402
        %v995 = vunpack.c.l.b16 %v403
        %v996 = vunpack.c.h.b16 %v403
        %v997 = vunpack.c.l.b16 %v404
        %v998 = vunpack.c.h.b16 %v404
        %v999 = vunpack.c.l.b16 %v405
        %v1000 = vunpack.c.h.b16 %v405
        %v1001 = vunpack.c.l.b16 %v406
        %v1002 = vunpack.c.h.b16 %v406
        %v1003 = vunpack.c.l.b16 %v407
        %v1004 = vunpack.c.h.b16 %v407
        %v1005 = vunpack.c.l.b16 %v408
        %v1006 = vunpack.c.h.b16 %v408
        %v1007 = vunpack.c.l.b16 %v409
        %v1008 = vunpack.c.h.b16 %v409
        %v1009 = vunpack.c.l.b16 %v410
        %v1010 = vunpack.c.h.b16 %v410
        %v1011 = vunpack.c.l.b16 %v411
        %v1012 = vunpack.c.h.b16 %v411
        %v1013 = vunpack.c.l.b16 %v412
        %v1014 = vunpack.c.h.b16 %v412
        %v1015 = vunpack.c.l.b16 %v413
        %v1016 = vunpack.c.h.b16 %v413
        %v1017 = vunpack.c.l.b16 %v414
        %v1018 = vunpack.c.h.b16 %v414
        %v1019 = vunpack.c.l.b16 %v415
        %v1020 = vunpack.c.h.b16 %v415
        %v1021 = vunpack.c.l.b16 %v416
        %v1022 = vunpack.c.h.b16 %v416
        %v1023 = vunpack.c.l.b16 %v417
        %v1024 = vunpack.c.h.b16 %v417
        %v1025 = vunpack.c.l.b16 %v418
        %v1026 = vunpack.c.h.b16 %v418
        %v1027 = vunpack.c.l.b16 %v419
        %v1028 = vunpack.c.h.b16 %v419
        %v1029 = vunpack.c.l.b16 %v420
        %v1030 = vunpack.c.h.b16 %v420
        %v1031 = vunpack.c.l.b16 %v421
        %v1032 = vunpack.c.h.b16 %v421
        %v1033 = vunpack.c.l.b16 %v422
        %v1034 = vunpack.c.h.b16 %v422
        %v1035 = vunpack.c.l.b16 %v423
        %v1036 = vunpack.c.h.b16 %v423
        %v1037 = vunpack.c.l.b16 %v424
        %v1038 = vunpack.c.h.b16 %v424
        %v1039 = vunpack.c.l.b16 %v425
        %v1040 = vunpack.c.h.b16 %v425
        %v1041 = vunpack.c.l.b16 %v426
        %v1042 = vunpack.c.h.b16 %v426
        %v1043 = vunpack.c.l.b16 %v427
        %v1044 = vunpack.c.h.b16 %v427
        %v1045 = vunpack.c.l.b16 %v428
        %v1046 = vunpack.c.h.b16 %v428
        %v1047 = vunpack.c.l.b16 %v429
        %v1048 = vunpack.c.h.b16 %v429
        %v1049 = vunpack.c.l.b16 %v430
        %v1050 = vunpack.c.h.b16 %v430
        %v1051 = vunpack.c.l.b16 %v431
        %v1052 = vunpack.c.h.b16 %v431
        %v1053 = vunpack.c.l.b16 %v432
        %v1054 = vunpack.c.h.b16 %v432
        %v1055 = vunpack.c.l.b16 %v433
        %v1056 = vunpack.c.h.b16 %v433
        %v1057 = vunpack.c.l.b16 %v434
        %v1058 = vunpack.c.h.b16 %v434
        %v1059 = vunpack.c.l.b16 %v435
        %v1060 = vunpack.c.h.b16 %v435
        %v1061 = vunpack.c.l.b16 %v436
        %v1062 = vunpack.c.h.b16 %v436
        %v1063 = vunpack.c.l.b16 %v437
        %v1064 = vunpack.c.h.b16 %v437
        %v1065 = vunpack.c.l.b16 %v438
        %v1066 = vunpack.c.h.b16 %v438
        %v1067 = vunpack.c.l.b16 %v439
        %v1068 = vunpack.c.h.b16 %v439
        %v1069 = vunpack.c.l.b16 %v440
        %v1070 = vunpack.c.h.b16 %v440
        %v1071 = vunpack.c.l.b16 %v441
        %v1072 = vunpack.c.h.b16 %v441
        %v1073 = vunpack.c.l.b16 %v442
        %v1074 = vunpack.c.h.b16 %v442
        %v1075 = vunpack.c.l.b16 %v443
        %v1076 = vunpack.c.h.b16 %v443
        %v1077 = vunpack.c.l.b16 %v444
        %v1078 = vunpack.c.h.b16 %v444
        %v1079 = vunpack.c.l.b16 %v445
        %v1080 = vunpack.c.h.b16 %v445
        %v1081 = vunpack.c.l.b16 %v446
        %v1082 = vunpack.c.h.b16 %v446
        %v1083 = vunpack.c.l.b16 %v447
        %v1084 = vunpack.c.h.b16 %v447
        %v1085 = vunpack.c.l.b16 %v448
        %v1086 = vunpack.c.h.b16 %v448
        %v1087 = vunpack.c.l.b16 %v449
        %v1088 = vunpack.c.h.b16 %v449
        %v1089 = vunpack.c.l.b16 %v450
        %v1090 = vunpack.c.h.b16 %v450
        %v1091 = vunpack.c.l.b16 %v451
        %v1092 = vunpack.c.h.b16 %v451
        %v1093 = vunpack.c.l.b16 %v452
        %v1094 = vunpack.c.h.b16 %v452
        %v1095 = vunpack.c.l.b16 %v453
        %v1096 = vunpack.c.h.b16 %v453
        %v1097 = vunpack.c.l.b16 %v454
        %v1098 = vunpack.c.h.b16 %v454
        %v1099 = vunpack.c.l.b16 %v455
        %v1100 = vunpack.c.h.b16 %v455
        %v1101 = vunpack.c.l.b16 %v456
        %v1102 = vunpack.c.h.b16 %v456
        %v1103 = vunpack.c.l.b16 %v457
        %v1104 = vunpack.c.h.b16 %v457
        %v1105 = vunpack.c.l.b16 %v458
        %v1106 = vunpack.c.h.b16 %v458
        %v1107 = vunpack.c.l.b16 %v459
        %v1108 = vunpack.c.h.b16 %v459
        %v1109 = vunpack.c.l.b16 %v460
        %v1110 = vunpack.c.h.b16 %v460
        %v1111 = vunpack.c.l.b16 %v461
        %v1112 = vunpack.c.h.b16 %v461
        %v1113 = vunpack.c.l.b16 %v462
        %v1114 = vunpack.c.h.b16 %v462
        %v1115 = vunpack.c.l.b16 %v463
        %v1116 = vunpack.c.h.b16 %v463
        %v1117 = vunpack.c.l.b16 %v464
        %v1118 = vunpack.c.h.b16 %v464
        %v1119 = vunpack.c.l.b16 %v465
        %v1120 = vunpack.c.h.b16 %v465
        %v1121 = vunpack.c.l.b16 %v466
        %v1122 = vunpack.c.h.b16 %v466
        %v1123 = vunpack.c.l.b16 %v467
        %v1124 = vunpack.c.h.b16 %v467
        %v1125 = vunpack.c.l.b16 %v468
        %v1126 = vunpack.c.h.b16 %v468
        %v1127 = vunpack.c.l.b16 %v469
        %v1128 = vunpack.c.h.b16 %v469
        %v1129 = vunpack.c.l.b16 %v470
        %v1130 = vunpack.c.h.b16 %v470
        %v1131 = vunpack.c.l.b16 %v471
        %v1132 = vunpack.c.h.b16 %v471
        %v1133 = vunpack.c.l.b16 %v472
        %v1134 = vunpack.c.h.b16 %v472
        %v1135 = vunpack.c.l.b16 %v473
        %v1136 = vunpack.c.h.b16 %v473
        %v1137 = vunpack.c.l.b16 %v474
        %v1138 = vunpack.c.h.b16 %v474
        %v1139 = vunpack.c.l.b16 %v475
        %v1140 = vunpack.c.h.b16 %v475
        %v1141 = vunpack.c.l.b16 %v476
        %v1142 = vunpack.c.h.b16 %v476
        %v1143 = vunpack.c.l.b16 %v477
        %v1144 = vunpack.c.h.b16 %v477
        %v1145 = vunpack.c.l.b16 %v478
        %v1146 = vunpack.c.h.b16 %v478
        %v1147 = vunpack.c.l.b16 %v479
        %v1148 = vunpack.c.h.b16 %v479
        %v1149 = vunpack.c.l.b16 %v480
        %v1150 = vunpack.c.h.b16 %v480
        %v1151 = vunpack.c.l.b16 %v481
        %v1152 = vunpack.c.h.b16 %v481
        %v1153 = vunpack.c.l.b16 %v482
        %v1154 = vunpack.c.h.b16 %v482
        %v1155 = vunpack.c.l.b16 %v483
        %v1156 = vunpack.c.h.b16 %v483
        %v1157 = vunpack.c.l.b16 %v484
        %v1158 = vunpack.c.h.b16 %v484
        %v1159 = vunpack.c.l.b16 %v485
        %v1160 = vunpack.c.h.b16 %v485
        %v1161 = vunpack.c.l.b16 %v486
        %v1162 = vunpack.c.h.b16 %v486
        %v1163 = vunpack.c.l.b16 %v487
        %v1164 = vunpack.c.h.b16 %v487
        %v1165 = vunpack.c.l.b16 %v488
        %v1166 = vunpack.c.h.b16 %v488
        %v1167 = vunpack.c.l.b16 %v489
        %v1168 = vunpack.c.h.b16 %v489
        %v1169 = vunpack.c.l.b16 %v490
        %v1170 = vunpack.c.h.b16 %v490
        %v1171 = vunpack.c.l.b16 %v491
        %v1172 = vunpack.c.h.b16 %v491
        %v1173 = vunpack.c.l.b16 %v492
        %v1174 = vunpack.c.h.b16 %v492
        %v1175 = vunpack.c.l.b16 %v493
        %v1176 = vunpack.c.h.b16 %v493
        %v1177 = vunpack.c.l.b16 %v494
        %v1178 = vunpack.c.h.b16 %v494
        %v1179 = vunpack.c.l.b16 %v495
        %v1180 = vunpack.c.h.b16 %v495
        %v1181 = vunpack.c.l.b16 %v496
        %v1182 = vunpack.c.h.b16 %v496
        %v1183 = vunpack.c.l.b16 %v497
        %v1184 = vunpack.c.h.b16 %v497
        %v1185 = vunpack.c.l.b16 %v498
        %v1186 = vunpack.c.h.b16 %v498
        %v1187 = vunpack.c.l.b16 %v499
        %v1188 = vunpack.c.h.b16 %v499
        %v1189 = vunpack.c.l.b16 %v500
        %v1190 = vunpack.c.h.b16 %v500
        %v1191 = vunpack.c.l.b16 %v501
        %v1192 = vunpack.c.h.b16 %v501
        %v1193 = vunpack.c.l.b16 %v502
        %v1194 = vunpack.c.h.b16 %v502
        %v1195 = vunpack.c.l.b16 %v503
        %v1196 = vunpack.c.h.b16 %v503
        %v1197 = vunpack.c.l.b16 %v504
        %v1198 = vunpack.c.h.b16 %v504
        %v1199 = vunpack.c.l.b16 %v505
        %v1200 = vunpack.c.h.b16 %v505
        %v1201 = vunpack.c.l.b16 %v506
        %v1202 = vunpack.c.h.b16 %v506
        %v1203 = vunpack.c.l.b16 %v507
        %v1204 = vunpack.c.h.b16 %v507
        %v1205 = vunpack.c.l.b16 %v508
        %v1206 = vunpack.c.h.b16 %v508
        %v1207 = vunpack.c.l.b16 %v509
        %v1208 = vunpack.c.h.b16 %v509
        %v1209 = vunpack.c.l.b16 %v510
        %v1210 = vunpack.c.h.b16 %v510
        %v1211 = vunpack.c.l.b16 %v511
        %v1212 = vunpack.c.h.b16 %v511
        %v1213 = vunpack.c.l.b16 %v512
        %v1214 = vunpack.c.h.b16 %v512
        %v1215 = vunpack.c.l.b16 %v513
        %v1216 = vunpack.c.h.b16 %v513
        %v1217 = vunpack.c.l.b16 %v514
        %v1218 = vunpack.c.h.b16 %v514
        %v1219 = vunpack.c.l.b16 %v515
        %v1220 = vunpack.c.h.b16 %v515
        %v1221 = vunpack.c.l.b16 %v516
        %v1222 = vunpack.c.h.b16 %v516
        %v1223 = vunpack.c.l.b16 %v517
        %v1224 = vunpack.c.h.b16 %v517
        %v1225 = vunpack.c.l.b16 %v518
        %v1226 = vunpack.c.h.b16 %v518
        %v1227 = vunpack.c.l.b16 %v519
        %v1228 = vunpack.c.h.b16 %v519
        %v1229 = vunpack.c.l.b16 %v520
        %v1230 = vunpack.c.h.b16 %v520
        %v1231 = vunpack.c.l.b16 %v521
        %v1232 = vunpack.c.h.b16 %v521
        %v1233 = vunpack.c.l.b16 %v522
        %v1234 = vunpack.c.h.b16 %v522
        %v1235 = vunpack.c.l.b16 %v523
        %v1236 = vunpack.c.h.b16 %v523
        %v1237 = vunpack.c.l.b16 %v524
        %v1238 = vunpack.c.h.b16 %v524
        %v1239 = vunpack.c.l.b16 %v525
        %v1240 = vunpack.c.h.b16 %v525
        %v1241 = vunpack.c.l.b16 %v526
        %v1242 = vunpack.c.h.b16 %v526
        %v1243 = vunpack.c.l.b16 %v527
        %v1244 = vunpack.c.h.b16 %v527
        %v1245 = vunpack.c.l.b16 %v528
        %v1246 = vunpack.c.h.b16 %v528
        %v1247 = vunpack.c.l.b16 %v529
        %v1248 = vunpack.c.h.b16 %v529
        %v1249 = vunpack.c.l.b16 %v530
        %v1250 = vunpack.c.h.b16 %v530
        %v1251 = vunpack.c.l.b16 %v531
        %v1252 = vunpack.c.h.b16 %v531
        %v1253 = vunpack.c.l.b16 %v532
        %v1254 = vunpack.c.h.b16 %v532
        %v1255 = vunpack.c.l.b16 %v533
        %v1256 = vunpack.c.h.b16 %v533
        %v1257 = vunpack.c.l.b16 %v534
        %v1258 = vunpack.c.h.b16 %v534
        %v1259 = vunpack.c.l.b16 %v535
        %v1260 = vunpack.c.h.b16 %v535
        %v1261 = vunpack.c.l.b16 %v536
        %v1262 = vunpack.c.h.b16 %v536
        %v1263 = vunpack.c.l.b16 %v537
        %v1264 = vunpack.c.h.b16 %v537
        %v1265 = vunpack.c.l.b16 %v538
        %v1266 = vunpack.c.h.b16 %v538
        %v1267 = vunpack.c.l.b16 %v539
        %v1268 = vunpack.c.h.b16 %v539
        %v1269 = vunpack.c.l.b16 %v540
        %v1270 = vunpack.c.h.b16 %v540
        %v1271 = vunpack.c.l.b16 %v541
        %v1272 = vunpack.c.h.b16 %v541
        %v1273 = vunpack.c.l.b16 %v542
        %v1274 = vunpack.c.h.b16 %v542
        %v1275 = vunpack.c.l.b16 %v543
        %v1276 = vunpack.c.h.b16 %v543
        %v1277 = vunpack.c.l.b16 %v544
        %v1278 = vunpack.c.h.b16 %v544
        %v1279 = vunpack.c.l.b16 %v545
        %v1280 = vunpack.c.h.b16 %v545
        %v1281 = vunpack.c.l.b16 %v546
        %v1282 = vunpack.c.h.b16 %v546
        %v1283 = vunpack.c.l.b16 %v547
        %v1284 = vunpack.c.h.b16 %v547
        %v1285 = vunpack.c.l.b16 %v548
        %v1286 = vunpack.c.h.b16 %v548
        %v1287 = vunpack.c.l.b16 %v549
        %v1288 = vunpack.c.h.b16 %v549
        %v1289 = vunpack.c.l.b16 %v550
        %v1290 = vunpack.c.h.b16 %v550
        %v1291 = vunpack.c.l.b16 %v551
        %v1292 = vunpack.c.h.b16 %v551
        %v1293 = vunpack.c.l.b16 %v552
        %v1294 = vunpack.c.h.b16 %v552
        %v1295 = vunpack.c.l.b16 %v553
        %v1296 = vunpack.c.h.b16 %v553
        %v1297 = vunpack.c.l.b16 %v554
        %v1298 = vunpack.c.h.b16 %v554
        %v1299 = vunpack.c.l.b16 %v555
        %v1300 = vunpack.c.h.b16 %v555
        %v1301 = vunpack.c.l.b16 %v556
        %v1302 = vunpack.c.h.b16 %v556
        %v1303 = vunpack.c.l.b16 %v557
        %v1304 = vunpack.c.h.b16 %v557
        %v1305 = vunpack.c.l.b16 %v558
        %v1306 = vunpack.c.h.b16 %v558
        %v1307 = vunpack.c.l.b16 %v559
        %v1308 = vunpack.c.h.b16 %v559
        %v1309 = vunpack.c.l.b16 %v560
        %v1310 = vunpack.c.h.b16 %v560
        %v1311 = vunpack.c.l.b16 %v561
        %v1312 = vunpack.c.h.b16 %v561
        %v1313 = vunpack.c.l.b16 %v562
        %v1314 = vunpack.c.h.b16 %v562
        %v1315 = vunpack.c.l.b16 %v563
        %v1316 = vunpack.c.h.b16 %v563
        %v1317 = vunpack.c.l.b16 %v564
        %v1318 = vunpack.c.h.b16 %v564
        %v1319 = vunpack.c.l.b16 %v565
        %v1320 = vunpack.c.h.b16 %v565
        %v1321 = vunpack.c.l.b16 %v566
        %v1322 = vunpack.c.h.b16 %v566
        %v1323 = vunpack.c.l.b16 %v567
        %v1324 = vunpack.c.h.b16 %v567
        %v1325 = vunpack.c.l.b16 %v568
        %v1326 = vunpack.c.h.b16 %v568
        %v1327 = vunpack.c.l.b16 %v569
        %v1328 = vunpack.c.h.b16 %v569
        %v1329 = vunpack.c.l.b16 %v570
        %v1330 = vunpack.c.h.b16 %v570
        %v1331 = vunpack.c.l.b16 %v571
        %v1332 = vunpack.c.h.b16 %v571
        %v1333 = vunpack.c.l.b16 %v572
        %v1334 = vunpack.c.h.b16 %v572
        %v1335 = vunpack.c.l.b16 %v573
        %v1336 = vunpack.c.h.b16 %v573
        %v1337 = vunpack.c.l.b16 %v574
        %v1338 = vunpack.c.h.b16 %v574
        %v1339 = vunpack.c.l.b16 %v575
        %v1340 = vunpack.c.h.b16 %v575
        %v1341 = vunpack.c.l.b16 %v576
        %v1342 = vunpack.c.h.b16 %v576
        %v1343 = vunpack.c.l.b16 %v577
        %v1344 = vunpack.c.h.b16 %v577
        %v1345 = vunpack.c.l.b16 %v578
        %v1346 = vunpack.c.h.b16 %v578
        %v1347 = vunpack.c.l.b16 %v579
        %v1348 = vunpack.c.h.b16 %v579
        %v1349 = vunpack.c.l.b16 %v580
        %v1350 = vunpack.c.h.b16 %v580
        %v1351 = vunpack.c.l.b16 %v581
        %v1352 = vunpack.c.h.b16 %v581
        %v1353 = vunpack.c.l.b16 %v582
        %v1354 = vunpack.c.h.b16 %v582
        %v1355 = vunpack.c.l.b16 %v583
        %v1356 = vunpack.c.h.b16 %v583
        %v1357 = vunpack.c.l.b16 %v584
        %v1358 = vunpack.c.h.b16 %v584
        %v1359 = vunpack.c.l.b16 %v585
        %v1360 = vunpack.c.h.b16 %v585
        %v1361 = vunpack.c.l.b16 %v586
        %v1362 = vunpack.c.h.b16 %v586
        %v1363 = vunpack.c.l.b16 %v587
        %v1364 = vunpack.c.h.b16 %v587
        %v1365 = vunpack.c.l.b16 %v588
        %v1366 = vunpack.c.h.b16 %v588
        %v1367 = vunpack.c.l.b16 %v589
        %v1368 = vunpack.c.h.b16 %v589
        %v1369 = vunpack.c.l.b16 %v590
        %v1370 = vunpack.c.h.b16 %v590
        %v1371 = vunpack.c.l.b16 %v591
        %v1372 = vunpack.c.h.b16 %v591
        %v1373 = vunpack.c.l.b16 %v592
        %v1374 = vunpack.c.h.b16 %v592
        %v1375 = vunpack.c.l.b16 %v593
        %v1376 = vunpack.c.h.b16 %v593
        %v1377 = vunpack.c.l.b16 %v594
        %v1378 = vunpack.c.h.b16 %v594
        %v1379 = vunpack.c.l.b16 %v595
        %v1380 = vunpack.c.h.b16 %v595
        %v1381 = vunpack.c.l.b16 %v596
        %v1382 = vunpack.c.h.b16 %v596
        %v1383 = vunpack.c.l.b16 %v597
        %v1384 = vunpack.c.h.b16 %v597
        %v1385 = vunpack.c.l.b16 %v598
        %v1386 = vunpack.c.h.b16 %v598
        %v1387 = vunpack.c.l.b16 %v599
        %v1388 = vunpack.c.h.b16 %v599
        %v1389 = vunpack.c.l.b16 %v600
        %v1390 = vunpack.c.h.b16 %v600
        %v1391 = vunpack.c.l.b16 %v601
        %v1392 = vunpack.c.h.b16 %v601
        %v1393 = vunpack.c.l.b16 %v602
        %v1394 = vunpack.c.h.b16 %v602
        %v1395 = vunpack.c.l.b16 %v603
        %v1396 = vunpack.c.h.b16 %v603
        %v1397 = vunpack.c.l.b16 %v604
        %v1398 = vunpack.c.h.b16 %v604
        %v1399 = vunpack.c.l.b16 %v605
        %v1400 = vunpack.c.h.b16 %v605
        %v1401 = vunpack.c.l.b16 %v606
        %v1402 = vunpack.c.h.b16 %v606
        %v1403 = vunpack.c.l.b16 %v607
        %v1404 = vunpack.c.h.b16 %v607
        %v1405 = vunpack.c.l.b16 %v608
        %v1406 = vunpack.c.h.b16 %v608
        %v1407 = vunpack.c.l.b16 %v609
        %v1408 = vunpack.c.h.b16 %v609
        %v1409 = vunpack.c.l.b16 %v610
        %v1410 = vunpack.c.h.b16 %v610
        %v1411 = vunpack.c.l.b16 %v611
        %v1412 = vunpack.c.h.b16 %v611
        %v1413 = vunpack.c.l.b16 %v612
        %v1414 = vunpack.c.h.b16 %v612
        %v1415 = vunpack.c.l.b16 %v613
        %v1416 = vunpack.c.h.b16 %v613
        %v1417 = vunpack.c.l.b16 %v614
        %v1418 = vunpack.c.h.b16 %v614
        %v1419 = vunpack.c.l.b16 %v615
        %v1420 = vunpack.c.h.b16 %v615
        %v1421 = vunpack.c.l.b16 %v616
        %v1422 = vunpack.c.h.b16 %v616
        %v1423 = vunpack.c.l.b16 %v617
        %v1424 = vunpack.c.h.b16 %v617
        %v1425 = vunpack.c.l.b16 %v618
        %v1426 = vunpack.c.h.b16 %v618
        %v1427 = vunpack.c.l.b16 %v619
        %v1428 = vunpack.c.h.b16 %v619
        %v1429 = vunpack.c.l.b16 %v620
        %v1430 = vunpack.c.h.b16 %v620
        %v1431 = vunpack.c.l.b16 %v621
        %v1432 = vunpack.c.h.b16 %v621
        %v1433 = vunpack.c.l.b16 %v622
        %v1434 = vunpack.c.h.b16 %v622
        %v1435 = vunpack.c.l.b16 %v623
        %v1436 = vunpack.c.h.b16 %v623
        %v1437 = vunpack.c.l.b16 %v624
        %v1438 = vunpack.c.h.b16 %v624
        %v1439 = vunpack.c.l.b16 %v625
        %v1440 = vunpack.c.h.b16 %v625
        %v1441 = vunpack.c.l.b16 %v626
        %v1442 = vunpack.c.h.b16 %v626
        %v1443 = vunpack.c.l.b16 %v627
        %v1444 = vunpack.c.h.b16 %v627
        %v1445 = vunpack.c.l.b16 %v628
        %v1446 = vunpack.c.h.b16 %v628
        %v1447 = vpack.c.b16 %v939, %v935
        %v1448 = vpack.c.b16 %v940, %v936
        %v1449 = vpack.c.b16 %v941, %v937
        %v1450 = vpack.c.b16 %v942, %v938
        %v1451 = vpack.c.b16 %v947, %v943
        %v1452 = vpack.c.b16 %v948, %v944
        %v1453 = vpack.c.b16 %v949, %v945
        %v1454 = vpack.c.b16 %v950, %v946
        %v1455 = vpack.c.b16 %v955, %v951
        %v1456 = vpack.c.b16 %v956, %v952
        %v1457 = vpack.c.b16 %v957, %v953
        %v1458 = vpack.c.b16 %v958, %v954
        %v1459 = vpack.c.b16 %v963, %v959
        %v1460 = vpack.c.b16 %v964, %v960
        %v1461 = vpack.c.b16 %v965, %v961
        %v1462 = vpack.c.b16 %v966, %v962
        %v1463 = vpack.c.b16 %v971, %v967
        %v1464 = vpack.c.b16 %v972, %v968
        %v1465 = vpack.c.b16 %v973, %v969
        %v1466 = vpack.c.b16 %v974, %v970
        %v1467 = vpack.c.b16 %v979, %v975
        %v1468 = vpack.c.b16 %v980, %v976
        %v1469 = vpack.c.b16 %v981, %v977
        %v1470 = vpack.c.b16 %v982, %v978
        %v1471 = vpack.c.b16 %v987, %v983
        %v1472 = vpack.c.b16 %v988, %v984
        %v1473 = vpack.c.b16 %v989, %v985
        %v1474 = vpack.c.b16 %v990, %v986
        %v1475 = vpack.c.b16 %v995, %v991
        %v1476 = vpack.c.b16 %v996, %v992
        %v1477 = vpack.c.b16 %v997, %v993
        %v1478 = vpack.c.b16 %v998, %v994
        %v1479 = vpack.c.b16 %v1003, %v999
        %v1480 = vpack.c.b16 %v1004, %v1000
        %v1481 = vpack.c.b16 %v1005, %v1001
        %v1482 = vpack.c.b16 %v1006, %v1002
        %v1483 = vpack.c.b16 %v1011, %v1007
        %v1484 = vpack.c.b16 %v1012, %v1008
        %v1485 = vpack.c.b16 %v1013, %v1009
        %v1486 = vpack.c.b16 %v1014, %v1010
        %v1487 = vpack.c.b16 %v1019, %v1015
        %v1488 = vpack.c.b16 %v1020, %v1016
        %v1489 = vpack.c.b16 %v1021, %v1017
        %v1490 = vpack.c.b16 %v1022, %v1018
        %v1491 = vpack.c.b16 %v1027, %v1023
        %v1492 = vpack.c.b16 %v1028, %v1024
        %v1493 = vpack.c.b16 %v1029, %v1025
        %v1494 = vpack.c.b16 %v1030, %v1026
        %v1495 = vpack.c.b16 %v1035, %v1031
        %v1496 = vpack.c.b16 %v1036, %v1032
        %v1497 = vpack.c.b16 %v1037, %v1033
        %v1498 = vpack.c.b16 %v1038, %v1034
        %v1499 = vpack.c.b16 %v1043, %v1039
        %v1500 = vpack.c.b16 %v1044, %v1040
        %v1501 = vpack.c.b16 %v1045, %v1041
        %v1502 = vpack.c.b16 %v1046, %v1042
        %v1503 = vpack.c.b16 %v1051, %v1047
        %v1504 = vpack.c.b16 %v1052, %v1048
        %v1505 = vpack.c.b16 %v1053, %v1049
        %v1506 = vpack.c.b16 %v1054, %v1050
        %v1507 = vpack.c.b16 %v1059, %v1055
        %v1508 = vpack.c.b16 %v1060, %v1056
        %v1509 = vpack.c.b16 %v1061, %v1057
        %v1510 = vpack.c.b16 %v1062, %v1058
        %v1511 = vpack.c.b16 %v1067, %v1063
        %v1512 = vpack.c.b16 %v1068, %v1064
        %v1513 = vpack.c.b16 %v1069, %v1065
        %v1514 = vpack.c.b16 %v1070, %v1066
        %v1515 = vpack.c.b16 %v1075, %v1071
        %v1516 = vpack.c.b16 %v1076, %v1072
        %v1517 = vpack.c.b16 %v1077, %v1073
        %v1518 = vpack.c.b16 %v1078, %v1074
        %v1519 = vpack.c.b16 %v1083, %v1079
        %v1520 = vpack.c.b16 %v1084, %v1080
        %v1521 = vpack.c.b16 %v1085, %v1081
        %v1522 = vpack.c.b16 %v1086, %v1082
        %v1523 = vpack.c.b16 %v1091, %v1087
        %v1524 = vpack.c.b16 %v1092, %v1088
        %v1525 = vpack.c.b16 %v1093, %v1089
        %v1526 = vpack.c.b16 %v1094, %v1090
        %v1527 = vpack.c.b16 %v1099, %v1095
        %v1528 = vpack.c.b16 %v1100, %v1096
        %v1529 = vpack.c.b16 %v1101, %v1097
        %v1530 = vpack.c.b16 %v1102, %v1098
        %v1531 = vpack.c.b16 %v1107, %v1103
        %v1532 = vpack.c.b16 %v1108, %v1104
        %v1533 = vpack.c.b16 %v1109, %v1105
        %v1534 = vpack.c.b16 %v1110, %v1106
        %v1535 = vpack.c.b16 %v1115, %v1111
        %v1536 = vpack.c.b16 %v1116, %v1112
        %v1537 = vpack.c.b16 %v1117, %v1113
        %v1538 = vpack.c.b16 %v1118, %v1114
        %v1539 = vpack.c.b16 %v1123, %v1119
        %v1540 = vpack.c.b16 %v1124, %v1120
        %v1541 = vpack.c.b16 %v1125, %v1121
        %v1542 = vpack.c.b16 %v1126, %v1122
        %v1543 = vpack.c.b16 %v1131, %v1127
        %v1544 = vpack.c.b16 %v1132, %v1128
        %v1545 = vpack.c.b16 %v1133, %v1129
        %v1546 = vpack.c.b16 %v1134, %v1130
        %v1547 = vpack.c.b16 %v1139, %v1135
        %v1548 = vpack.c.b16 %v1140, %v1136
        %v1549 = vpack.c.b16 %v1141, %v1137
        %v1550 = vpack.c.b16 %v1142, %v1138
        %v1551 = vpack.c.b16 %v1147, %v1143
        %v1552 = vpack.c.b16 %v1148, %v1144
        %v1553 = vpack.c.b16 %v1149, %v1145
        %v1554 = vpack.c.b16 %v1150, %v1146
        %v1555 = vpack.c.b16 %v1155, %v1151
        %v1556 = vpack.c.b16 %v1156, %v1152
        %v1557 = vpack.c.b16 %v1157, %v1153
        %v1558 = vpack.c.b16 %v1158, %v1154
        %v1559 = vpack.c.b16 %v1163, %v1159
        %v1560 = vpack.c.b16 %v1164, %v1160
        %v1561 = vpack.c.b16 %v1165, %v1161
        %v1562 = vpack.c.b16 %v1166, %v1162
        %v1563 = vpack.c.b16 %v1171, %v1167
        %v1564 = vpack.c.b16 %v1172, %v1168
        %v1565 = vpack.c.b16 %v1173, %v1169
        %v1566 = vpack.c.b16 %v1174, %v1170
        %v1567 = vpack.c.b16 %v1179, %v1175
        %v1568 = vpack.c.b16 %v1180, %v1176
        %v1569 = vpack.c.b16 %v1181, %v1177
        %v1570 = vpack.c.b16 %v1182, %v1178
        %v1571 = vpack.c.b16 %v1187, %v1183
        %v1572 = vpack.c.b16 %v1188, %v1184
        %v1573 = vpack.c.b16 %v1189, %v1185
        %v1574 = vpack.c.b16 %v1190, %v1186
        %v1575 = vpack.c.b16 %v1195, %v1191
        %v1576 = vpack.c.b16 %v1196, %v1192
        %v1577 = vpack.c.b16 %v1197, %v1193
        %v1578 = vpack.c.b16 %v1198, %v1194
        %v1579 = vpack.c.b16 %v1203, %v1199
        %v1580 = vpack.c.b16 %v1204, %v1200
        %v1581 = vpack.c.b16 %v1205, %v1201
        %v1582 = vpack.c.b16 %v1206, %v1202
        %v1583 = vpack.c.b16 %v1211, %v1207
        %v1584 = vpack.c.b16 %v1212, %v1208
        %v1585 = vpack.c.b16 %v1213, %v1209
        %v1586 = vpack.c.b16 %v1214, %v1210
        %v1587 = vpack.c.b16 %v1219, %v1215
        %v1588 = vpack.c.b16 %v1220, %v1216
        %v1589 = vpack.c.b16 %v1221, %v1217
        %v1590 = vpack.c.b16 %v1222, %v1218
        %v1591 = vpack.c.b16 %v1227, %v1223
        %v1592 = vpack.c.b16 %v1228, %v1224
        %v1593 = vpack.c.b16 %v1229, %v1225
        %v1594 = vpack.c.b16 %v1230, %v1226
        %v1595 = vpack.c.b16 %v1235, %v1231
        %v1596 = vpack.c.b16 %v1236, %v1232
        %v1597 = vpack.c.b16 %v1237, %v1233
        %v1598 = vpack.c.b16 %v1238, %v1234
        %v1599 = vpack.c.b16 %v1243, %v1239
        %v1600 = vpack.c.b16 %v1244, %v1240
        %v1601 = vpack.c.b16 %v1245, %v1241
        %v1602 = vpack.c.b16 %v1246, %v1242
        %v1603 = vpack.c.b16 %v1251, %v1247
        %v1604 = vpack.c.b16 %v1252, %v1248
        %v1605 = vpack.c.b16 %v1253, %v1249
        %v1606 = vpack.c.b16 %v1254, %v1250
        %v1607 = vpack.c.b16 %v1259, %v1255
        %v1608 = vpack.c.b16 %v1260, %v1256
        %v1609 = vpack.c.b16 %v1261, %v1257
        %v1610 = vpack.c.b16 %v1262, %v1258
        %v1611 = vpack.c.b16 %v1267, %v1263
        %v1612 = vpack.c.b16 %v1268, %v1264
        %v1613 = vpack.c.b16 %v1269, %v1265
        %v1614 = vpack.c.b16 %v1270, %v1266
        %v1615 = vpack.c.b16 %v1275, %v1271
        %v1616 = vpack.c.b16 %v1276, %v1272
        %v1617 = vpack.c.b16 %v1277, %v1273
        %v1618 = vpack.c.b16 %v1278, %v1274
        %v1619 = vpack.c.b16 %v1283, %v1279
        %v1620 = vpack.c.b16 %v1284, %v1280
        %v1621 = vpack.c.b16 %v1285, %v1281
        %v1622 = vpack.c.b16 %v1286, %v1282
        %v1623 = vpack.c.b16 %v1291, %v1287
        %v1624 = vpack.c.b16 %v1292, %v1288
        %v1625 = vpack.c.b16 %v1293, %v1289
        %v1626 = vpack.c.b16 %v1294, %v1290
        %v1627 = vpack.c.b16 %v1299, %v1295
        %v1628 = vpack.c.b16 %v1300, %v1296
        %v1629 = vpack.c.b16 %v1301, %v1297
        %v1630 = vpack.c.b16 %v1302, %v1298
        %v1631 = vpack.c.b16 %v1307, %v1303
        %v1632 = vpack.c.b16 %v1308, %v1304
        %v1633 = vpack.c.b16 %v1309, %v1305
        %v1634 = vpack.c.b16 %v1310, %v1306
        %v1635 = vpack.c.b16 %v1315, %v1311
        %v1636 = vpack.c.b16 %v1316, %v1312
        %v1637 = vpack.c.b16 %v1317, %v1313
        %v1638 = vpack.c.b16 %v1318, %v1314
        %v1639 = vpack.c.b16 %v1323, %v1319
        %v1640 = vpack.c.b16 %v1324, %v1320
        %v1641 = vpack.c.b16 %v1325, %v1321
        %v1642 = vpack.c.b16 %v1326, %v1322
        %v1643 = vpack.c.b16 %v1331, %v1327
        %v1644 = vpack.c.b16 %v1332, %v1328
        %v1645 = vpack.c.b16 %v1333, %v1329
        %v1646 = vpack.c.b16 %v1334, %v1330
        %v1647 = vpack.c.b16 %v1339, %v1335
        %v1648 = vpack.c.b16 %v1340, %v1336
        %v1649 = vpack.c.b16 %v1341, %v1337
        %v1650 = vpack.c.b16 %v1342, %v1338
        %v1651 = vpack.c.b16 %v1347, %v1343
        %v1652 = vpack.c.b16 %v1348, %v1344
        %v1653 = vpack.c.b16 %v1349, %v1345
        %v1654 = vpack.c.b16 %v1350, %v1346
        %v1655 = vpack.c.b16 %v1355, %v1351
        %v1656 = vpack.c.b16 %v1356, %v1352
        %v1657 = vpack.c.b16 %v1357, %v1353
        %v1658 = vpack.c.b16 %v1358, %v1354
        %v1659 = vpack.c.b16 %v1363, %v1359
        %v1660 = vpack.c.b16 %v1364, %v1360
        %v1661 = vpack.c.b16 %v1365, %v1361
        %v1662 = vpack.c.b16 %v1366, %v1362
        %v1663 = vpack.c.b16 %v1371, %v1367
        %v1664 = vpack.c.b16 %v1372, %v1368
        %v1665 = vpack.c.b16 %v1373, %v1369
        %v1666 = vpack.c.b16 %v1374, %v1370
        %v1667 = vpack.c.b16 %v1379, %v1375
        %v1668 = vpack.c.b16 %v1380, %v1376
        %v1669 = vpack.c.b16 %v1381, %v1377
        %v1670 = vpack.c.b16 %v1382, %v1378
        %v1671 = vpack.c.b16 %v1387, %v1383
        %v1672 = vpack.c.b16 %v1388, %v1384
        %v1673 = vpack.c.b16 %v1389, %v1385
        %v1674 = vpack.c.b16 %v1390, %v1386
        %v1675 = vpack.c.b16 %v1395, %v1391
        %v1676 = vpack.c.b16 %v1396, %v1392
        %v1677 = vpack.c.b16 %v1397, %v1393
        %v1678 = vpack.c.b16 %v1398, %v1394
        %v1679 = vpack.c.b16 %v1403, %v1399
        %v1680 = vpack.c.b16 %v1404, %v1400
        %v1681 = vpack.c.b16 %v1405, %v1401
        %v1682 = vpack.c.b16 %v1406, %v1402
        %v1683 = vpack.c.b16 %v1411, %v1407
        %v1684 = vpack.c.b16 %v1412, %v1408
        %v1685 = vpack.c.b16 %v1413, %v1409
        %v1686 = vpack.c.b16 %v1414, %v1410
        %v1687 = vpack.c.b16 %v1419, %v1415
        %v1688 = vpack.c.b16 %v1420, %v1416
        %v1689 = vpack.c.b16 %v1421, %v1417
        %v1690 = vpack.c.b16 %v1422, %v1418
        %v1691 = vpack.c.b16 %v1427, %v1423
        %v1692 = vpack.c.b16 %v1428, %v1424
        %v1693 = vpack.c.b16 %v1429, %v1425
        %v1694 = vpack.c.b16 %v1430, %v1426
        %v1695 = vpack.c.b16 %v1435, %v1431
        %v1696 = vpack.c.b16 %v1436, %v1432
        %v1697 = vpack.c.b16 %v1437, %v1433
        %v1698 = vpack.c.b16 %v1438, %v1434
        %v1699 = vpack.c.b16 %v1443, %v1439
        %v1700 = vpack.c.b16 %v1444, %v1440
        %v1701 = vpack.c.b16 %v1445, %v1441
        %v1702 = vpack.c.b16 %v1446, %v1442
        %1959 = vmatprep.subr.bf16.mxu0 %v1448
        %1960 = vmatpush1.bf16.msra.mxu0 %v1447
        %1961 = vmatprep.subr.bf16.mxu0 %v1452
        %1962 = vmatpush1.bf16.msra.mxu0 %v1451
        %1963 = vmatprep.subr.bf16.mxu0 %v1456
        %1964 = vmatpush1.bf16.msra.mxu0 %v1455
        %1965 = vmatprep.subr.bf16.mxu0 %v1460
        %1966 = vmatpush1.bf16.msra.mxu0 %v1459
        %1967 = vmatprep.subr.bf16.mxu0 %v1464
        %1968 = vmatpush1.bf16.msra.mxu0 %v1463
        %1969 = vmatprep.subr.bf16.mxu0 %v1468
        %1970 = vmatpush1.bf16.msra.mxu0 %v1467
        %1971 = vmatprep.subr.bf16.mxu0 %v1472
        %1972 = vmatpush1.bf16.msra.mxu0 %v1471
        %1973 = vmatprep.subr.bf16.mxu0 %v1476
        %1974 = vmatpush1.bf16.msra.mxu0 %v1475
        %1975 = vmatprep.subr.bf16.mxu0 %v1480
        %1976 = vmatpush1.bf16.msra.mxu0 %v1479
        %1977 = vmatprep.subr.bf16.mxu0 %v1484
        %1978 = vmatpush1.bf16.msra.mxu0 %v1483
        %1979 = vmatprep.subr.bf16.mxu0 %v1488
        %1980 = vmatpush1.bf16.msra.mxu0 %v1487
        %1981 = vmatprep.subr.bf16.mxu0 %v1492
        %1982 = vmatpush1.bf16.msra.mxu0 %v1491
        %1983 = vmatprep.subr.bf16.mxu0 %v1496
        %1984 = vmatpush1.bf16.msra.mxu0 %v1495
        %1985 = vmatprep.subr.bf16.mxu0 %v1500
        %1986 = vmatpush1.bf16.msra.mxu0 %v1499
        %1987 = vmatprep.subr.bf16.mxu0 %v1504
        %1988 = vmatpush1.bf16.msra.mxu0 %v1503
        %1989 = vmatprep.subr.bf16.mxu0 %v1508
        %1990 = vmatpush1.bf16.msra.mxu0 %v1507
        %1991 = vmatprep.mubr.bf16.mxu0 %v664
        %1992 = vmatmul.mubr.bf16.gmra.mrb[0].mxu0 %v663
        %v1993 = vpop.f32.mrb[0].mxu0
        %v1994 = vadd.f32 %v634, %v1993
        %v1995 = vpop.f32.mrb[0].mxu0
        %v1996 = vadd.f32 %v638, %v1995
        %v1997 = vpop.f32.mrb[0].mxu0
        %v1998 = vpop.f32.mrb[0].mxu0
        %1999 = vdwg.mxu0
        %2000 = vmatprep.subr.bf16.mxu0 %v1512
        %2001 = vmatpush1.bf16.msra.mxu0 %v1511
        %2002 = vmatprep.subr.bf16.mxu0 %v1516
        %2003 = vmatpush1.bf16.msra.mxu0 %v1515
        %2004 = vmatprep.subr.bf16.mxu0 %v1520
        %2005 = vmatpush1.bf16.msra.mxu0 %v1519
        %2006 = vmatprep.subr.bf16.mxu0 %v1524
        %2007 = vmatpush1.bf16.msra.mxu0 %v1523
        %2008 = vmatprep.subr.bf16.mxu0 %v1528
        %2009 = vmatpush1.bf16.msra.mxu0 %v1527
        %2010 = vmatprep.subr.bf16.mxu0 %v1532
        %2011 = vmatpush1.bf16.msra.mxu0 %v1531
        %2012 = vmatprep.subr.bf16.mxu0 %v1536
        %2013 = vmatpush1.bf16.msra.mxu0 %v1535
        %2014 = vmatprep.subr.bf16.mxu0 %v1540
        %2015 = vmatpush1.bf16.msra.mxu0 %v1539
        %2016 = vmatprep.subr.bf16.mxu0 %v1544
        %2017 = vmatpush1.bf16.msra.mxu0 %v1543
        %2018 = vmatprep.subr.bf16.mxu0 %v1548
        %2019 = vmatpush1.bf16.msra.mxu0 %v1547
        %2020 = vmatprep.subr.bf16.mxu0 %v1552
        %2021 = vmatpush1.bf16.msra.mxu0 %v1551
        %2022 = vmatprep.subr.bf16.mxu0 %v1556
        %2023 = vmatpush1.bf16.msra.mxu0 %v1555
        %2024 = vmatprep.subr.bf16.mxu0 %v1560
        %2025 = vmatpush1.bf16.msra.mxu0 %v1559
        %2026 = vmatprep.subr.bf16.mxu0 %v1564
        %2027 = vmatpush1.bf16.msra.mxu0 %v1563
        %2028 = vmatprep.subr.bf16.mxu0 %v1568
        %2029 = vmatpush1.bf16.msra.mxu0 %v1567
        %2030 = vmatprep.subr.bf16.mxu0 %v1572
        %2031 = vmatpush1.bf16.msra.mxu0 %v1571
        %2032 = vmatprep.mubr.bf16.mxu0 %v666
        %2033 = vmatmul.mubr.bf16.gmra.mrb[0].mxu0 %v665
        %v2034 = vpop.f32.mrb[0].mxu0
        %v2035 = vadd.f32 %v1994, %v2034
        %v2036 = vpop.f32.mrb[0].mxu0
        %v2037 = vadd.f32 %v1996, %v2036
        %v2038 = vpop.f32.mrb[0].mxu0
        %v2039 = vpop.f32.mrb[0].mxu0
        %2040 = vdwg.mxu0
        %2041 = vmatprep.subr.bf16.mxu0 %v1576
        %2042 = vmatpush1.bf16.msra.mxu0 %v1575
        %2043 = vmatprep.subr.bf16.mxu0 %v1580
        %2044 = vmatpush1.bf16.msra.mxu0 %v1579
        %2045 = vmatprep.subr.bf16.mxu0 %v1584
        %2046 = vmatpush1.bf16.msra.mxu0 %v1583
        %2047 = vmatprep.subr.bf16.mxu0 %v1588
        %2048 = vmatpush1.bf16.msra.mxu0 %v1587
        %2049 = vmatprep.subr.bf16.mxu0 %v1592
        %2050 = vmatpush1.bf16.msra.mxu0 %v1591
        %2051 = vmatprep.subr.bf16.mxu0 %v1596
        %2052 = vmatpush1.bf16.msra.mxu0 %v1595
        %2053 = vmatprep.subr.bf16.mxu0 %v1600
        %2054 = vmatpush1.bf16.msra.mxu0 %v1599
        %2055 = vmatprep.subr.bf16.mxu0 %v1604
        %2056 = vmatpush1.bf16.msra.mxu0 %v1603
        %2057 = vmatprep.subr.bf16.mxu0 %v1608
        %2058 = vmatpush1.bf16.msra.mxu0 %v1607
        %2059 = vmatprep.subr.bf16.mxu0 %v1612
        %2060 = vmatpush1.bf16.msra.mxu0 %v1611
        %2061 = vmatprep.subr.bf16.mxu0 %v1616
        %2062 = vmatpush1.bf16.msra.mxu0 %v1615
        %2063 = vmatprep.subr.bf16.mxu0 %v1620
        %2064 = vmatpush1.bf16.msra.mxu0 %v1619
        %2065 = vmatprep.subr.bf16.mxu0 %v1624
        %2066 = vmatpush1.bf16.msra.mxu0 %v1623
        %2067 = vmatprep.subr.bf16.mxu0 %v1628
        %2068 = vmatpush1.bf16.msra.mxu0 %v1627
        %2069 = vmatprep.subr.bf16.mxu0 %v1632
        %2070 = vmatpush1.bf16.msra.mxu0 %v1631
        %2071 = vmatprep.subr.bf16.mxu0 %v1636
        %2072 = vmatpush1.bf16.msra.mxu0 %v1635
        %2073 = vmatprep.mubr.bf16.mxu0 %v668
        %2074 = vmatmul.mubr.bf16.gmra.mrb[0].mxu0 %v667
        %v2075 = vpop.f32.mrb[0].mxu0
        %v2076 = vadd.f32 %v2035, %v2075
        %v2077 = vpop.f32.mrb[0].mxu0
        %v2078 = vadd.f32 %v2037, %v2077
        %v2079 = vpop.f32.mrb[0].mxu0
        %v2080 = vpop.f32.mrb[0].mxu0
        %2081 = vdwg.mxu0
        %2082 = vmatprep.subr.bf16.mxu0 %v1640
        %2083 = vmatpush1.bf16.msra.mxu0 %v1639
        %2084 = vmatprep.subr.bf16.mxu0 %v1644
        %2085 = vmatpush1.bf16.msra.mxu0 %v1643
        %2086 = vmatprep.subr.bf16.mxu0 %v1648
        %2087 = vmatpush1.bf16.msra.mxu0 %v1647
        %2088 = vmatprep.subr.bf16.mxu0 %v1652
        %2089 = vmatpush1.bf16.msra.mxu0 %v1651
        %2090 = vmatprep.subr.bf16.mxu0 %v1656
        %2091 = vmatpush1.bf16.msra.mxu0 %v1655
        %2092 = vmatprep.subr.bf16.mxu0 %v1660
        %2093 = vmatpush1.bf16.msra.mxu0 %v1659
        %2094 = vmatprep.subr.bf16.mxu0 %v1664
        %2095 = vmatpush1.bf16.msra.mxu0 %v1663
        %2096 = vmatprep.subr.bf16.mxu0 %v1668
        %2097 = vmatpush1.bf16.msra.mxu0 %v1667
        %2098 = vmatprep.subr.bf16.mxu0 %v1672
        %2099 = vmatpush1.bf16.msra.mxu0 %v1671
        %2100 = vmatprep.subr.bf16.mxu0 %v1676
        %2101 = vmatpush1.bf16.msra.mxu0 %v1675
        %2102 = vmatprep.subr.bf16.mxu0 %v1680
        %2103 = vmatpush1.bf16.msra.mxu0 %v1679
        %2104 = vmatprep.subr.bf16.mxu0 %v1684
        %2105 = vmatpush1.bf16.msra.mxu0 %v1683
        %2106 = vmatprep.subr.bf16.mxu0 %v1688
        %2107 = vmatpush1.bf16.msra.mxu0 %v1687
        %2108 = vmatprep.subr.bf16.mxu0 %v1692
        %2109 = vmatpush1.bf16.msra.mxu0 %v1691
        %2110 = vmatprep.subr.bf16.mxu0 %v1696
        %2111 = vmatpush1.bf16.msra.mxu0 %v1695
        %2112 = vmatprep.subr.bf16.mxu0 %v1700
        %2113 = vmatpush1.bf16.msra.mxu0 %v1699
        %2114 = vmatprep.mubr.bf16.mxu0 %v670
        %2115 = vmatmul.mubr.bf16.gmra.mrb[0].mxu0 %v669
        %v2116 = vpop.f32.mrb[0].mxu0
        %v2117 = vadd.f32 %v2076, %v2116
        %v2118 = vpop.f32.mrb[0].mxu0
        %v2119 = vadd.f32 %v2078, %v2118
        %v2120 = vpop.f32.mrb[0].mxu0
        %v2121 = vpop.f32.mrb[0].mxu0
        %2122 = vdwg.mxu0
        %2123 = vmatprep.subr.bf16.mxu0 %v1450
        %2124 = vmatpush1.bf16.msra.mxu0 %v1449
        %2125 = vmatprep.subr.bf16.mxu0 %v1454
        %2126 = vmatpush1.bf16.msra.mxu0 %v1453
        %2127 = vmatprep.subr.bf16.mxu0 %v1458
        %2128 = vmatpush1.bf16.msra.mxu0 %v1457
        %2129 = vmatprep.subr.bf16.mxu0 %v1462
        %2130 = vmatpush1.bf16.msra.mxu0 %v1461
        %2131 = vmatprep.subr.bf16.mxu0 %v1466
        %2132 = vmatpush1.bf16.msra.mxu0 %v1465
        %2133 = vmatprep.subr.bf16.mxu0 %v1470
        %2134 = vmatpush1.bf16.msra.mxu0 %v1469
        %2135 = vmatprep.subr.bf16.mxu0 %v1474
        %2136 = vmatpush1.bf16.msra.mxu0 %v1473
        %2137 = vmatprep.subr.bf16.mxu0 %v1478
        %2138 = vmatpush1.bf16.msra.mxu0 %v1477
        %2139 = vmatprep.subr.bf16.mxu0 %v1482
        %2140 = vmatpush1.bf16.msra.mxu0 %v1481
        %2141 = vmatprep.subr.bf16.mxu0 %v1486
        %2142 = vmatpush1.bf16.msra.mxu0 %v1485
        %2143 = vmatprep.subr.bf16.mxu0 %v1490
        %2144 = vmatpush1.bf16.msra.mxu0 %v1489
        %2145 = vmatprep.subr.bf16.mxu0 %v1494
        %2146 = vmatpush1.bf16.msra.mxu0 %v1493
        %2147 = vmatprep.subr.bf16.mxu0 %v1498
        %2148 = vmatpush1.bf16.msra.mxu0 %v1497
        %2149 = vmatprep.subr.bf16.mxu0 %v1502
        %2150 = vmatpush1.bf16.msra.mxu0 %v1501
        %2151 = vmatprep.subr.bf16.mxu0 %v1506
        %2152 = vmatpush1.bf16.msra.mxu0 %v1505
        %2153 = vmatprep.subr.bf16.mxu0 %v1510
        %2154 = vmatpush1.bf16.msra.mxu0 %v1509
        %2155 = vmatprep.mubr.bf16.mxu0 %v664
        %2156 = vmatmul.mubr.bf16.gmra.mrb[0].mxu0 %v663
        %v2157 = vpop.f32.mrb[0].mxu0
        %v2158 = vadd.f32 %v642, %v2157
        %v2159 = vpop.f32.mrb[0].mxu0
        %v2160 = vadd.f32 %v646, %v2159
        %v2161 = vpop.f32.mrb[0].mxu0
        %v2162 = vpop.f32.mrb[0].mxu0
        %2163 = vdwg.mxu0
        %2164 = vmatprep.subr.bf16.mxu0 %v1514
        %2165 = vmatpush1.bf16.msra.mxu0 %v1513
        %2166 = vmatprep.subr.bf16.mxu0 %v1518
        %2167 = vmatpush1.bf16.msra.mxu0 %v1517
        %2168 = vmatprep.subr.bf16.mxu0 %v1522
        %2169 = vmatpush1.bf16.msra.mxu0 %v1521
        %2170 = vmatprep.subr.bf16.mxu0 %v1526
        %2171 = vmatpush1.bf16.msra.mxu0 %v1525
        %2172 = vmatprep.subr.bf16.mxu0 %v1530
        %2173 = vmatpush1.bf16.msra.mxu0 %v1529
        %2174 = vmatprep.subr.bf16.mxu0 %v1534
        %2175 = vmatpush1.bf16.msra.mxu0 %v1533
        %2176 = vmatprep.subr.bf16.mxu0 %v1538
        %2177 = vmatpush1.bf16.msra.mxu0 %v1537
        %2178 = vmatprep.subr.bf16.mxu0 %v1542
        %2179 = vmatpush1.bf16.msra.mxu0 %v1541
        %2180 = vmatprep.subr.bf16.mxu0 %v1546
        %2181 = vmatpush1.bf16.msra.mxu0 %v1545
        %2182 = vmatprep.subr.bf16.mxu0 %v1550
        %2183 = vmatpush1.bf16.msra.mxu0 %v1549
        %2184 = vmatprep.subr.bf16.mxu0 %v1554
        %2185 = vmatpush1.bf16.msra.mxu0 %v1553
        %2186 = vmatprep.subr.bf16.mxu0 %v1558
        %2187 = vmatpush1.bf16.msra.mxu0 %v1557
        %2188 = vmatprep.subr.bf16.mxu0 %v1562
        %2189 = vmatpush1.bf16.msra.mxu0 %v1561
        %2190 = vmatprep.subr.bf16.mxu0 %v1566
        %2191 = vmatpush1.bf16.msra.mxu0 %v1565
        %2192 = vmatprep.subr.bf16.mxu0 %v1570
        %2193 = vmatpush1.bf16.msra.mxu0 %v1569
        %2194 = vmatprep.subr.bf16.mxu0 %v1574
        %2195 = vmatpush1.bf16.msra.mxu0 %v1573
        %2196 = vmatprep.mubr.bf16.mxu0 %v666
        %2197 = vmatmul.mubr.bf16.gmra.mrb[0].mxu0 %v665
        %v2198 = vpop.f32.mrb[0].mxu0
        %v2199 = vadd.f32 %v2158, %v2198
        %v2200 = vpop.f32.mrb[0].mxu0
        %v2201 = vadd.f32 %v2160, %v2200
        %v2202 = vpop.f32.mrb[0].mxu0
        %v2203 = vpop.f32.mrb[0].mxu0
        %2204 = vdwg.mxu0
        %2205 = vmatprep.subr.bf16.mxu0 %v1578
        %2206 = vmatpush1.bf16.msra.mxu0 %v1577
        %2207 = vmatprep.subr.bf16.mxu0 %v1582
        %2208 = vmatpush1.bf16.msra.mxu0 %v1581
        %2209 = vmatprep.subr.bf16.mxu0 %v1586
        %2210 = vmatpush1.bf16.msra.mxu0 %v1585
        %2211 = vmatprep.subr.bf16.mxu0 %v1590
        %2212 = vmatpush1.bf16.msra.mxu0 %v1589
        %2213 = vmatprep.subr.bf16.mxu0 %v1594
        %2214 = vmatpush1.bf16.msra.mxu0 %v1593
        %2215 = vmatprep.subr.bf16.mxu0 %v1598
        %2216 = vmatpush1.bf16.msra.mxu0 %v1597
        %2217 = vmatprep.subr.bf16.mxu0 %v1602
        %2218 = vmatpush1.bf16.msra.mxu0 %v1601
        %2219 = vmatprep.subr.bf16.mxu0 %v1606
        %2220 = vmatpush1.bf16.msra.mxu0 %v1605
        %2221 = vmatprep.subr.bf16.mxu0 %v1610
        %2222 = vmatpush1.bf16.msra.mxu0 %v1609
        %2223 = vmatprep.subr.bf16.mxu0 %v1614
        %2224 = vmatpush1.bf16.msra.mxu0 %v1613
        %2225 = vmatprep.subr.bf16.mxu0 %v1618
        %2226 = vmatpush1.bf16.msra.mxu0 %v1617
        %2227 = vmatprep.subr.bf16.mxu0 %v1622
        %2228 = vmatpush1.bf16.msra.mxu0 %v1621
        %2229 = vmatprep.subr.bf16.mxu0 %v1626
        %2230 = vmatpush1.bf16.msra.mxu0 %v1625
        %2231 = vmatprep.subr.bf16.mxu0 %v1630
        %2232 = vmatpush1.bf16.msra.mxu0 %v1629
        %2233 = vmatprep.subr.bf16.mxu0 %v1634
        %2234 = vmatpush1.bf16.msra.mxu0 %v1633
        %2235 = vmatprep.subr.bf16.mxu0 %v1638
        %2236 = vmatpush1.bf16.msra.mxu0 %v1637
        %2237 = vmatprep.mubr.bf16.mxu0 %v668
        %2238 = vmatmul.mubr.bf16.gmra.mrb[0].mxu0 %v667
        %v2239 = vpop.f32.mrb[0].mxu0
        %v2240 = vadd.f32 %v2199, %v2239
        %v2241 = vpop.f32.mrb[0].mxu0
        %v2242 = vadd.f32 %v2201, %v2241
        %v2243 = vpop.f32.mrb[0].mxu0
        %v2244 = vpop.f32.mrb[0].mxu0
        %2245 = vdwg.mxu0
        %2246 = vmatprep.subr.bf16.mxu0 %v1642
        %2247 = vmatpush1.bf16.msra.mxu0 %v1641
        %2248 = vmatprep.subr.bf16.mxu0 %v1646
        %2249 = vmatpush1.bf16.msra.mxu0 %v1645
        %2250 = vmatprep.subr.bf16.mxu0 %v1650
        %2251 = vmatpush1.bf16.msra.mxu0 %v1649
        %2252 = vmatprep.subr.bf16.mxu0 %v1654
        %2253 = vmatpush1.bf16.msra.mxu0 %v1653
        %2254 = vmatprep.subr.bf16.mxu0 %v1658
        %2255 = vmatpush1.bf16.msra.mxu0 %v1657
        %2256 = vmatprep.subr.bf16.mxu0 %v1662
        %2257 = vmatpush1.bf16.msra.mxu0 %v1661
        %2258 = vmatprep.subr.bf16.mxu0 %v1666
        %2259 = vmatpush1.bf16.msra.mxu0 %v1665
        %2260 = vmatprep.subr.bf16.mxu0 %v1670
        %2261 = vmatpush1.bf16.msra.mxu0 %v1669
        %2262 = vmatprep.subr.bf16.mxu0 %v1674
        %2263 = vmatpush1.bf16.msra.mxu0 %v1673
        %2264 = vmatprep.subr.bf16.mxu0 %v1678
        %2265 = vmatpush1.bf16.msra.mxu0 %v1677
        %2266 = vmatprep.subr.bf16.mxu0 %v1682
        %2267 = vmatpush1.bf16.msra.mxu0 %v1681
        %2268 = vmatprep.subr.bf16.mxu0 %v1686
        %2269 = vmatpush1.bf16.msra.mxu0 %v1685
        %2270 = vmatprep.subr.bf16.mxu0 %v1690
        %2271 = vmatpush1.bf16.msra.mxu0 %v1689
        %2272 = vmatprep.subr.bf16.mxu0 %v1694
        %2273 = vmatpush1.bf16.msra.mxu0 %v1693
        %2274 = vmatprep.subr.bf16.mxu0 %v1698
        %2275 = vmatpush1.bf16.msra.mxu0 %v1697
        %2276 = vmatprep.subr.bf16.mxu0 %v1702
        %2277 = vmatpush1.bf16.msra.mxu0 %v1701
        %2278 = vmatprep.mubr.bf16.mxu0 %v670
        %2279 = vmatmul.mubr.bf16.gmra.mrb[0].mxu0 %v669
        %v2280 = vpop.f32.mrb[0].mxu0
        %v2281 = vadd.f32 %v2240, %v2280
        %v2282 = vpop.f32.mrb[0].mxu0
        %v2283 = vadd.f32 %v2242, %v2282
        %v2284 = vpop.f32.mrb[0].mxu0
        %v2285 = vpop.f32.mrb[0].mxu0
        %2286 = vdwg.mxu0
        %v2287 = vmax.f32 %v2117, 0.0
        %v2288 = vmax.f32 %v2119, 0.0
        %v2289 = vmax.f32 %v2281, 0.0
        %v2290 = vmax.f32 %v2283, 0.0
        %v2291 = vpack.c.bf16 %v2287, %v2287
        %v2292 = vpack.c.bf16 %v2288, %v2288
        %v2293 = vpack.c.bf16 %v2289, %v2289
        %v2294 = vpack.c.bf16 %v2290, %v2290
        %v2295 = vld [vmem:[%s332] sm:$0xff]
        %v2296 = vld [vmem:[%s332 + $0x8] sm:$0xff]
        %v2297 = vld [vmem:[%s332 + $0x10] sm:$0xff]
        %v2298 = vld [vmem:[%s332 + $0x18] sm:$0xff]
        %v2299 = vld [vmem:[%s332 + $0x20] sm:$0xff]
        %v2300 = vld [vmem:[%s332 + $0x28] sm:$0xff]
        %v2301 = vld [vmem:[%s332 + $0x30] sm:$0xff]
        %v2302 = vld [vmem:[%s332 + $0x38] sm:$0xff]
        %v2303 = vld [vmem:[%s332 + $0x40] sm:$0xff]
        %v2304 = vld [vmem:[%s332 + $0x48] sm:$0xff]
        %v2305 = vld [vmem:[%s332 + $0x50] sm:$0xff]
        %v2306 = vld [vmem:[%s332 + $0x58] sm:$0xff]
        %v2307 = vld [vmem:[%s332 + $0x60] sm:$0xff]
        %v2308 = vld [vmem:[%s332 + $0x68] sm:$0xff]
        %v2309 = vld [vmem:[%s332 + $0x70] sm:$0xff]
        %v2310 = vld [vmem:[%s332 + $0x78] sm:$0xff]
        %v2311 = vld [vmem:[%s332 + $0x80] sm:$0xff]
        %v2312 = vld [vmem:[%s332 + $0x88] sm:$0xff]
        %v2313 = vld [vmem:[%s332 + $0x90] sm:$0xff]
        %v2314 = vld [vmem:[%s332 + $0x98] sm:$0xff]
        %v2315 = vld [vmem:[%s332 + $0xa0] sm:$0xff]
        %v2316 = vld [vmem:[%s332 + $0xa8] sm:$0xff]
        %v2317 = vld [vmem:[%s332 + $0xb0] sm:$0xff]
        %v2318 = vld [vmem:[%s332 + $0xb8] sm:$0xff]
        %v2319 = vld [vmem:[%s332 + $0xc0] sm:$0xff]
        %v2320 = vld [vmem:[%s332 + $0xc8] sm:$0xff]
        %v2321 = vld [vmem:[%s332 + $0xd0] sm:$0xff]
        %v2322 = vld [vmem:[%s332 + $0xd8] sm:$0xff]
        %v2323 = vld [vmem:[%s332 + $0xe0] sm:$0xff]
        %v2324 = vld [vmem:[%s332 + $0xe8] sm:$0xff]
        %v2325 = vld [vmem:[%s332 + $0xf0] sm:$0xff]
        %v2326 = vld [vmem:[%s332 + $0xf8] sm:$0xff]
        %v2327 = vld [vmem:[%s284] sm:$0xff]
        %v2328 = vld [vmem:[%s284 + $0x8] sm:$0xff]
        %v2329 = vld [vmem:[%s284 + $0x10] sm:$0xff]
        %v2330 = vld [vmem:[%s284 + $0x18] sm:$0xff]
        %v2331 = vld [vmem:[%s284 + $0x20] sm:$0xff]
        %v2332 = vld [vmem:[%s284 + $0x28] sm:$0xff]
        %v2333 = vld [vmem:[%s284 + $0x30] sm:$0xff]
        %v2334 = vld [vmem:[%s284 + $0x38] sm:$0xff]
        %v2335 = vld [vmem:[%s284 + $0x40] sm:$0xff]
        %v2336 = vld [vmem:[%s284 + $0x48] sm:$0xff]
        %v2337 = vld [vmem:[%s284 + $0x50] sm:$0xff]
        %v2338 = vld [vmem:[%s284 + $0x58] sm:$0xff]
        %v2339 = vld [vmem:[%s284 + $0x60] sm:$0xff]
        %v2340 = vld [vmem:[%s284 + $0x68] sm:$0xff]
        %v2341 = vld [vmem:[%s284 + $0x70] sm:$0xff]
        %v2342 = vld [vmem:[%s284 + $0x78] sm:$0xff]
        %v2343 = vld [vmem:[%s284 + $0x80] sm:$0xff]
        %v2344 = vld [vmem:[%s284 + $0x88] sm:$0xff]
        %v2345 = vld [vmem:[%s284 + $0x90] sm:$0xff]
        %v2346 = vld [vmem:[%s284 + $0x98] sm:$0xff]
        %v2347 = vld [vmem:[%s284 + $0xa0] sm:$0xff]
        %v2348 = vld [vmem:[%s284 + $0xa8] sm:$0xff]
        %v2349 = vld [vmem:[%s284 + $0xb0] sm:$0xff]
        %v2350 = vld [vmem:[%s284 + $0xb8] sm:$0xff]
        %v2351 = vld [vmem:[%s284 + $0xc0] sm:$0xff]
        %v2352 = vld [vmem:[%s284 + $0xc8] sm:$0xff]
        %v2353 = vld [vmem:[%s284 + $0xd0] sm:$0xff]
        %v2354 = vld [vmem:[%s284 + $0xd8] sm:$0xff]
        %v2355 = vld [vmem:[%s284 + $0xe0] sm:$0xff]
        %v2356 = vld [vmem:[%s284 + $0xe8] sm:$0xff]
        %v2357 = vld [vmem:[%s284 + $0xf0] sm:$0xff]
        %v2358 = vld [vmem:[%s284 + $0xf8] sm:$0xff]
        %v2359 = vld [vmem:[%s284 + $0x100] sm:$0xff]
        %v2360 = vld [vmem:[%s284 + $0x108] sm:$0xff]
        %v2361 = vld [vmem:[%s284 + $0x110] sm:$0xff]
        %v2362 = vld [vmem:[%s284 + $0x118] sm:$0xff]
        %v2363 = vld [vmem:[%s284 + $0x120] sm:$0xff]
        %v2364 = vld [vmem:[%s284 + $0x128] sm:$0xff]
        %v2365 = vld [vmem:[%s284 + $0x130] sm:$0xff]
        %v2366 = vld [vmem:[%s284 + $0x138] sm:$0xff]
        %v2367 = vld [vmem:[%s284 + $0x140] sm:$0xff]
        %v2368 = vld [vmem:[%s284 + $0x148] sm:$0xff]
        %v2369 = vld [vmem:[%s284 + $0x150] sm:$0xff]
        %v2370 = vld [vmem:[%s284 + $0x158] sm:$0xff]
        %v2371 = vld [vmem:[%s284 + $0x160] sm:$0xff]
        %v2372 = vld [vmem:[%s284 + $0x168] sm:$0xff]
        %v2373 = vld [vmem:[%s284 + $0x170] sm:$0xff]
        %v2374 = vld [vmem:[%s284 + $0x178] sm:$0xff]
        %v2375 = vld [vmem:[%s284 + $0x180] sm:$0xff]
        %v2376 = vld [vmem:[%s284 + $0x188] sm:$0xff]
        %v2377 = vld [vmem:[%s284 + $0x190] sm:$0xff]
        %v2378 = vld [vmem:[%s284 + $0x198] sm:$0xff]
        %v2379 = vld [vmem:[%s284 + $0x1a0] sm:$0xff]
        %v2380 = vld [vmem:[%s284 + $0x1a8] sm:$0xff]
        %v2381 = vld [vmem:[%s284 + $0x1b0] sm:$0xff]
        %v2382 = vld [vmem:[%s284 + $0x1b8] sm:$0xff]
        %v2383 = vld [vmem:[%s284 + $0x1c0] sm:$0xff]
        %v2384 = vld [vmem:[%s284 + $0x1c8] sm:$0xff]
        %v2385 = vld [vmem:[%s284 + $0x1d0] sm:$0xff]
        %v2386 = vld [vmem:[%s284 + $0x1d8] sm:$0xff]
        %v2387 = vld [vmem:[%s284 + $0x1e0] sm:$0xff]
        %v2388 = vld [vmem:[%s284 + $0x1e8] sm:$0xff]
        %v2389 = vld [vmem:[%s284 + $0x1f0] sm:$0xff]
        %v2390 = vld [vmem:[%s284 + $0x1f8] sm:$0xff]
        %v2391 = vld [vmem:[%s284 + $0x200] sm:$0xff]
        %v2392 = vld [vmem:[%s284 + $0x208] sm:$0xff]
        %v2393 = vld [vmem:[%s284 + $0x210] sm:$0xff]
        %v2394 = vld [vmem:[%s284 + $0x218] sm:$0xff]
        %v2395 = vld [vmem:[%s284 + $0x220] sm:$0xff]
        %v2396 = vld [vmem:[%s284 + $0x228] sm:$0xff]
        %v2397 = vld [vmem:[%s284 + $0x230] sm:$0xff]
        %v2398 = vld [vmem:[%s284 + $0x238] sm:$0xff]
        %v2399 = vld [vmem:[%s284 + $0x240] sm:$0xff]
        %v2400 = vld [vmem:[%s284 + $0x248] sm:$0xff]
        %v2401 = vld [vmem:[%s284 + $0x250] sm:$0xff]
        %v2402 = vld [vmem:[%s284 + $0x258] sm:$0xff]
        %v2403 = vld [vmem:[%s284 + $0x260] sm:$0xff]
        %v2404 = vld [vmem:[%s284 + $0x268] sm:$0xff]
        %v2405 = vld [vmem:[%s284 + $0x270] sm:$0xff]
        %v2406 = vld [vmem:[%s284 + $0x278] sm:$0xff]
        %v2407 = vld [vmem:[%s284 + $0x280] sm:$0xff]
        %v2408 = vld [vmem:[%s284 + $0x288] sm:$0xff]
        %v2409 = vld [vmem:[%s284 + $0x290] sm:$0xff]
        %v2410 = vld [vmem:[%s284 + $0x298] sm:$0xff]
        %v2411 = vld [vmem:[%s284 + $0x2a0] sm:$0xff]
        %v2412 = vld [vmem:[%s284 + $0x2a8] sm:$0xff]
        %v2413 = vld [vmem:[%s284 + $0x2b0] sm:$0xff]
        %v2414 = vld [vmem:[%s284 + $0x2b8] sm:$0xff]
        %v2415 = vld [vmem:[%s284 + $0x2c0] sm:$0xff]
        %v2416 = vld [vmem:[%s284 + $0x2c8] sm:$0xff]
        %v2417 = vld [vmem:[%s284 + $0x2d0] sm:$0xff]
        %v2418 = vld [vmem:[%s284 + $0x2d8] sm:$0xff]
        %v2419 = vld [vmem:[%s284 + $0x2e0] sm:$0xff]
        %v2420 = vld [vmem:[%s284 + $0x2e8] sm:$0xff]
        %v2421 = vld [vmem:[%s284 + $0x2f0] sm:$0xff]
        %v2422 = vld [vmem:[%s284 + $0x2f8] sm:$0xff]
        %v2423 = vld [vmem:[%s284 + $0x300] sm:$0xff]
        %v2424 = vld [vmem:[%s284 + $0x308] sm:$0xff]
        %v2425 = vld [vmem:[%s284 + $0x310] sm:$0xff]
        %v2426 = vld [vmem:[%s284 + $0x318] sm:$0xff]
        %v2427 = vld [vmem:[%s284 + $0x320] sm:$0xff]
        %v2428 = vld [vmem:[%s284 + $0x328] sm:$0xff]
        %v2429 = vld [vmem:[%s284 + $0x330] sm:$0xff]
        %v2430 = vld [vmem:[%s284 + $0x338] sm:$0xff]
        %v2431 = vld [vmem:[%s284 + $0x340] sm:$0xff]
        %v2432 = vld [vmem:[%s284 + $0x348] sm:$0xff]
        %v2433 = vld [vmem:[%s284 + $0x350] sm:$0xff]
        %v2434 = vld [vmem:[%s284 + $0x358] sm:$0xff]
        %v2435 = vld [vmem:[%s284 + $0x360] sm:$0xff]
        %v2436 = vld [vmem:[%s284 + $0x368] sm:$0xff]
        %v2437 = vld [vmem:[%s284 + $0x370] sm:$0xff]
        %v2438 = vld [vmem:[%s284 + $0x378] sm:$0xff]
        %v2439 = vld [vmem:[%s284 + $0x380] sm:$0xff]
        %v2440 = vld [vmem:[%s284 + $0x388] sm:$0xff]
        %v2441 = vld [vmem:[%s284 + $0x390] sm:$0xff]
        %v2442 = vld [vmem:[%s284 + $0x398] sm:$0xff]
        %v2443 = vld [vmem:[%s284 + $0x3a0] sm:$0xff]
        %v2444 = vld [vmem:[%s284 + $0x3a8] sm:$0xff]
        %v2445 = vld [vmem:[%s284 + $0x3b0] sm:$0xff]
        %v2446 = vld [vmem:[%s284 + $0x3b8] sm:$0xff]
        %v2447 = vld [vmem:[%s284 + $0x3c0] sm:$0xff]
        %v2448 = vld [vmem:[%s284 + $0x3c8] sm:$0xff]
        %v2449 = vld [vmem:[%s284 + $0x3d0] sm:$0xff]
        %v2450 = vld [vmem:[%s284 + $0x3d8] sm:$0xff]
        %v2451 = vld [vmem:[%s284 + $0x3e0] sm:$0xff]
        %v2452 = vld [vmem:[%s284 + $0x3e8] sm:$0xff]
        %v2453 = vld [vmem:[%s284 + $0x3f0] sm:$0xff]
        %v2454 = vld [vmem:[%s284 + $0x3f8] sm:$0xff]
        %v2455 = vld [vmem:[%s284 + $0x400] sm:$0xff]
        %v2456 = vld [vmem:[%s284 + $0x408] sm:$0xff]
        %v2457 = vld [vmem:[%s284 + $0x410] sm:$0xff]
        %v2458 = vld [vmem:[%s284 + $0x418] sm:$0xff]
        %v2459 = vld [vmem:[%s284 + $0x420] sm:$0xff]
        %v2460 = vld [vmem:[%s284 + $0x428] sm:$0xff]
        %v2461 = vld [vmem:[%s284 + $0x430] sm:$0xff]
        %v2462 = vld [vmem:[%s284 + $0x438] sm:$0xff]
        %v2463 = vld [vmem:[%s284 + $0x440] sm:$0xff]
        %v2464 = vld [vmem:[%s284 + $0x448] sm:$0xff]
        %v2465 = vld [vmem:[%s284 + $0x450] sm:$0xff]
        %v2466 = vld [vmem:[%s284 + $0x458] sm:$0xff]
        %v2467 = vld [vmem:[%s284 + $0x460] sm:$0xff]
        %v2468 = vld [vmem:[%s284 + $0x468] sm:$0xff]
        %v2469 = vld [vmem:[%s284 + $0x470] sm:$0xff]
        %v2470 = vld [vmem:[%s284 + $0x478] sm:$0xff]
        %v2471 = vld [vmem:[%s284 + $0x480] sm:$0xff]
        %v2472 = vld [vmem:[%s284 + $0x488] sm:$0xff]
        %v2473 = vld [vmem:[%s284 + $0x490] sm:$0xff]
        %v2474 = vld [vmem:[%s284 + $0x498] sm:$0xff]
        %v2475 = vld [vmem:[%s284 + $0x4a0] sm:$0xff]
        %v2476 = vld [vmem:[%s284 + $0x4a8] sm:$0xff]
        %v2477 = vld [vmem:[%s284 + $0x4b0] sm:$0xff]
        %v2478 = vld [vmem:[%s284 + $0x4b8] sm:$0xff]
        %v2479 = vld [vmem:[%s284 + $0x4c0] sm:$0xff]
        %v2480 = vld [vmem:[%s284 + $0x4c8] sm:$0xff]
        %v2481 = vld [vmem:[%s284 + $0x4d0] sm:$0xff]
        %v2482 = vld [vmem:[%s284 + $0x4d8] sm:$0xff]
        %v2483 = vld [vmem:[%s284 + $0x4e0] sm:$0xff]
        %v2484 = vld [vmem:[%s284 + $0x4e8] sm:$0xff]
        %v2485 = vld [vmem:[%s284 + $0x4f0] sm:$0xff]
        %v2486 = vld [vmem:[%s284 + $0x4f8] sm:$0xff]
        %v2487 = vld [vmem:[%s284 + $0x500] sm:$0xff]
        %v2488 = vld [vmem:[%s284 + $0x508] sm:$0xff]
        %v2489 = vld [vmem:[%s284 + $0x510] sm:$0xff]
        %v2490 = vld [vmem:[%s284 + $0x518] sm:$0xff]
        %v2491 = vld [vmem:[%s284 + $0x520] sm:$0xff]
        %v2492 = vld [vmem:[%s284 + $0x528] sm:$0xff]
        %v2493 = vld [vmem:[%s284 + $0x530] sm:$0xff]
        %v2494 = vld [vmem:[%s284 + $0x538] sm:$0xff]
        %v2495 = vld [vmem:[%s284 + $0x540] sm:$0xff]
        %v2496 = vld [vmem:[%s284 + $0x548] sm:$0xff]
        %v2497 = vld [vmem:[%s284 + $0x550] sm:$0xff]
        %v2498 = vld [vmem:[%s284 + $0x558] sm:$0xff]
        %v2499 = vld [vmem:[%s284 + $0x560] sm:$0xff]
        %v2500 = vld [vmem:[%s284 + $0x568] sm:$0xff]
        %v2501 = vld [vmem:[%s284 + $0x570] sm:$0xff]
        %v2502 = vld [vmem:[%s284 + $0x578] sm:$0xff]
        %v2503 = vld [vmem:[%s284 + $0x580] sm:$0xff]
        %v2504 = vld [vmem:[%s284 + $0x588] sm:$0xff]
        %v2505 = vld [vmem:[%s284 + $0x590] sm:$0xff]
        %v2506 = vld [vmem:[%s284 + $0x598] sm:$0xff]
        %v2507 = vld [vmem:[%s284 + $0x5a0] sm:$0xff]
        %v2508 = vld [vmem:[%s284 + $0x5a8] sm:$0xff]
        %v2509 = vld [vmem:[%s284 + $0x5b0] sm:$0xff]
        %v2510 = vld [vmem:[%s284 + $0x5b8] sm:$0xff]
        %v2511 = vld [vmem:[%s284 + $0x5c0] sm:$0xff]
        %v2512 = vld [vmem:[%s284 + $0x5c8] sm:$0xff]
        %v2513 = vld [vmem:[%s284 + $0x5d0] sm:$0xff]
        %v2514 = vld [vmem:[%s284 + $0x5d8] sm:$0xff]
        %v2515 = vld [vmem:[%s284 + $0x5e0] sm:$0xff]
        %v2516 = vld [vmem:[%s284 + $0x5e8] sm:$0xff]
        %v2517 = vld [vmem:[%s284 + $0x5f0] sm:$0xff]
        %v2518 = vld [vmem:[%s284 + $0x5f8] sm:$0xff]
        %v2519 = vld [vmem:[%s284 + $0x600] sm:$0xff]
        %v2520 = vld [vmem:[%s284 + $0x608] sm:$0xff]
        %v2521 = vld [vmem:[%s284 + $0x610] sm:$0xff]
        %v2522 = vld [vmem:[%s284 + $0x618] sm:$0xff]
        %v2523 = vld [vmem:[%s284 + $0x620] sm:$0xff]
        %v2524 = vld [vmem:[%s284 + $0x628] sm:$0xff]
        %v2525 = vld [vmem:[%s284 + $0x630] sm:$0xff]
        %v2526 = vld [vmem:[%s284 + $0x638] sm:$0xff]
        %v2527 = vld [vmem:[%s284 + $0x640] sm:$0xff]
        %v2528 = vld [vmem:[%s284 + $0x648] sm:$0xff]
        %v2529 = vld [vmem:[%s284 + $0x650] sm:$0xff]
        %v2530 = vld [vmem:[%s284 + $0x658] sm:$0xff]
        %v2531 = vld [vmem:[%s284 + $0x660] sm:$0xff]
        %v2532 = vld [vmem:[%s284 + $0x668] sm:$0xff]
        %v2533 = vld [vmem:[%s284 + $0x670] sm:$0xff]
        %v2534 = vld [vmem:[%s284 + $0x678] sm:$0xff]
        %v2535 = vld [vmem:[%s284 + $0x680] sm:$0xff]
        %v2536 = vld [vmem:[%s284 + $0x688] sm:$0xff]
        %v2537 = vld [vmem:[%s284 + $0x690] sm:$0xff]
        %v2538 = vld [vmem:[%s284 + $0x698] sm:$0xff]
        %v2539 = vld [vmem:[%s284 + $0x6a0] sm:$0xff]
        %v2540 = vld [vmem:[%s284 + $0x6a8] sm:$0xff]
        %v2541 = vld [vmem:[%s284 + $0x6b0] sm:$0xff]
        %v2542 = vld [vmem:[%s284 + $0x6b8] sm:$0xff]
        %v2543 = vld [vmem:[%s284 + $0x6c0] sm:$0xff]
        %v2544 = vld [vmem:[%s284 + $0x6c8] sm:$0xff]
        %v2545 = vld [vmem:[%s284 + $0x6d0] sm:$0xff]
        %v2546 = vld [vmem:[%s284 + $0x6d8] sm:$0xff]
        %v2547 = vld [vmem:[%s284 + $0x6e0] sm:$0xff]
        %v2548 = vld [vmem:[%s284 + $0x6e8] sm:$0xff]
        %v2549 = vld [vmem:[%s284 + $0x6f0] sm:$0xff]
        %v2550 = vld [vmem:[%s284 + $0x6f8] sm:$0xff]
        %v2551 = vld [vmem:[%s284 + $0x700] sm:$0xff]
        %v2552 = vld [vmem:[%s284 + $0x708] sm:$0xff]
        %v2553 = vld [vmem:[%s284 + $0x710] sm:$0xff]
        %v2554 = vld [vmem:[%s284 + $0x718] sm:$0xff]
        %v2555 = vld [vmem:[%s284 + $0x720] sm:$0xff]
        %v2556 = vld [vmem:[%s284 + $0x728] sm:$0xff]
        %v2557 = vld [vmem:[%s284 + $0x730] sm:$0xff]
        %v2558 = vld [vmem:[%s284 + $0x738] sm:$0xff]
        %v2559 = vld [vmem:[%s284 + $0x740] sm:$0xff]
        %v2560 = vld [vmem:[%s284 + $0x748] sm:$0xff]
        %v2561 = vld [vmem:[%s284 + $0x750] sm:$0xff]
        %v2562 = vld [vmem:[%s284 + $0x758] sm:$0xff]
        %v2563 = vld [vmem:[%s284 + $0x760] sm:$0xff]
        %v2564 = vld [vmem:[%s284 + $0x768] sm:$0xff]
        %v2565 = vld [vmem:[%s284 + $0x770] sm:$0xff]
        %v2566 = vld [vmem:[%s284 + $0x778] sm:$0xff]
        %v2567 = vld [vmem:[%s284 + $0x780] sm:$0xff]
        %v2568 = vld [vmem:[%s284 + $0x788] sm:$0xff]
        %v2569 = vld [vmem:[%s284 + $0x790] sm:$0xff]
        %v2570 = vld [vmem:[%s284 + $0x798] sm:$0xff]
        %v2571 = vld [vmem:[%s284 + $0x7a0] sm:$0xff]
        %v2572 = vld [vmem:[%s284 + $0x7a8] sm:$0xff]
        %v2573 = vld [vmem:[%s284 + $0x7b0] sm:$0xff]
        %v2574 = vld [vmem:[%s284 + $0x7b8] sm:$0xff]
        %v2575 = vld [vmem:[%s284 + $0x7c0] sm:$0xff]
        %v2576 = vld [vmem:[%s284 + $0x7c8] sm:$0xff]
        %v2577 = vld [vmem:[%s284 + $0x7d0] sm:$0xff]
        %v2578 = vld [vmem:[%s284 + $0x7d8] sm:$0xff]
        %v2579 = vld [vmem:[%s284 + $0x7e0] sm:$0xff]
        %v2580 = vld [vmem:[%s284 + $0x7e8] sm:$0xff]
        %v2581 = vld [vmem:[%s284 + $0x7f0] sm:$0xff]
        %v2582 = vld [vmem:[%s284 + $0x7f8] sm:$0xff]
        %v2583 = vld [vmem:[%s284 + $0x800] sm:$0xff]
        %v2584 = vld [vmem:[%s284 + $0x808] sm:$0xff]
        %v2585 = vld [vmem:[%s284 + $0x810] sm:$0xff]
        %v2586 = vld [vmem:[%s284 + $0x818] sm:$0xff]
        %v2587 = vld [vmem:[%s284 + $0x820] sm:$0xff]
        %v2588 = vld [vmem:[%s284 + $0x828] sm:$0xff]
        %v2589 = vld [vmem:[%s284 + $0x830] sm:$0xff]
        %v2590 = vld [vmem:[%s284 + $0x838] sm:$0xff]
        %v2591 = vld [vmem:[%s284 + $0x840] sm:$0xff]
        %v2592 = vld [vmem:[%s284 + $0x848] sm:$0xff]
        %v2593 = vld [vmem:[%s284 + $0x850] sm:$0xff]
        %v2594 = vld [vmem:[%s284 + $0x858] sm:$0xff]
        %v2595 = vld [vmem:[%s284 + $0x860] sm:$0xff]
        %v2596 = vld [vmem:[%s284 + $0x868] sm:$0xff]
        %v2597 = vld [vmem:[%s284 + $0x870] sm:$0xff]
        %v2598 = vld [vmem:[%s284 + $0x878] sm:$0xff]
        %v2599 = vld [vmem:[%s284 + $0x880] sm:$0xff]
        %v2600 = vld [vmem:[%s284 + $0x888] sm:$0xff]
        %v2601 = vld [vmem:[%s284 + $0x890] sm:$0xff]
        %v2602 = vld [vmem:[%s284 + $0x898] sm:$0xff]
        %v2603 = vld [vmem:[%s284 + $0x8a0] sm:$0xff]
        %v2604 = vld [vmem:[%s284 + $0x8a8] sm:$0xff]
        %v2605 = vld [vmem:[%s284 + $0x8b0] sm:$0xff]
        %v2606 = vld [vmem:[%s284 + $0x8b8] sm:$0xff]
        %v2607 = vld [vmem:[%s284 + $0x8c0] sm:$0xff]
        %v2608 = vld [vmem:[%s284 + $0x8c8] sm:$0xff]
        %v2609 = vld [vmem:[%s284 + $0x8d0] sm:$0xff]
        %v2610 = vld [vmem:[%s284 + $0x8d8] sm:$0xff]
        %v2611 = vld [vmem:[%s284 + $0x8e0] sm:$0xff]
        %v2612 = vld [vmem:[%s284 + $0x8e8] sm:$0xff]
        %v2613 = vld [vmem:[%s284 + $0x8f0] sm:$0xff]
        %v2614 = vld [vmem:[%s284 + $0x8f8] sm:$0xff]
        %v2615 = vld [vmem:[%s284 + $0x900] sm:$0xff]
        %v2616 = vld [vmem:[%s284 + $0x908] sm:$0xff]
        %v2617 = vld [vmem:[%s284 + $0x910] sm:$0xff]
        %v2618 = vld [vmem:[%s284 + $0x918] sm:$0xff]
        %v2619 = vld [vmem:[%s284 + $0x920] sm:$0xff]
        %v2620 = vld [vmem:[%s284 + $0x928] sm:$0xff]
        %v2621 = vld [vmem:[%s284 + $0x930] sm:$0xff]
        %v2622 = vld [vmem:[%s284 + $0x938] sm:$0xff]
        %v2623 = vld [vmem:[%s284 + $0x940] sm:$0xff]
        %v2624 = vld [vmem:[%s284 + $0x948] sm:$0xff]
        %v2625 = vld [vmem:[%s284 + $0x950] sm:$0xff]
        %v2626 = vld [vmem:[%s284 + $0x958] sm:$0xff]
        %v2627 = vld [vmem:[%s284 + $0x960] sm:$0xff]
        %v2628 = vld [vmem:[%s284 + $0x968] sm:$0xff]
        %v2629 = vld [vmem:[%s284 + $0x970] sm:$0xff]
        %v2630 = vld [vmem:[%s284 + $0x978] sm:$0xff]
        %v2631 = vld [vmem:[%s284 + $0x980] sm:$0xff]
        %v2632 = vld [vmem:[%s284 + $0x988] sm:$0xff]
        %v2633 = vld [vmem:[%s284 + $0x990] sm:$0xff]
        %v2634 = vld [vmem:[%s284 + $0x998] sm:$0xff]
        %v2635 = vld [vmem:[%s284 + $0x9a0] sm:$0xff]
        %v2636 = vld [vmem:[%s284 + $0x9a8] sm:$0xff]
        %v2637 = vld [vmem:[%s284 + $0x9b0] sm:$0xff]
        %v2638 = vld [vmem:[%s284 + $0x9b8] sm:$0xff]
        %v2639 = vld [vmem:[%s284 + $0x9c0] sm:$0xff]
        %v2640 = vld [vmem:[%s284 + $0x9c8] sm:$0xff]
        %v2641 = vld [vmem:[%s284 + $0x9d0] sm:$0xff]
        %v2642 = vld [vmem:[%s284 + $0x9d8] sm:$0xff]
        %v2643 = vld [vmem:[%s284 + $0x9e0] sm:$0xff]
        %v2644 = vld [vmem:[%s284 + $0x9e8] sm:$0xff]
        %v2645 = vld [vmem:[%s284 + $0x9f0] sm:$0xff]
        %v2646 = vld [vmem:[%s284 + $0x9f8] sm:$0xff]
        %v2647 = vld [vmem:[%s284 + $0xa00] sm:$0xff]
        %v2648 = vld [vmem:[%s284 + $0xa08] sm:$0xff]
        %v2649 = vld [vmem:[%s284 + $0xa10] sm:$0xff]
        %v2650 = vld [vmem:[%s284 + $0xa18] sm:$0xff]
        %v2651 = vld [vmem:[%s284 + $0xa20] sm:$0xff]
        %v2652 = vld [vmem:[%s284 + $0xa28] sm:$0xff]
        %v2653 = vld [vmem:[%s284 + $0xa30] sm:$0xff]
        %v2654 = vld [vmem:[%s284 + $0xa38] sm:$0xff]
        %v2655 = vld [vmem:[%s284 + $0xa40] sm:$0xff]
        %v2656 = vld [vmem:[%s284 + $0xa48] sm:$0xff]
        %v2657 = vld [vmem:[%s284 + $0xa50] sm:$0xff]
        %v2658 = vld [vmem:[%s284 + $0xa58] sm:$0xff]
        %v2659 = vld [vmem:[%s284 + $0xa60] sm:$0xff]
        %v2660 = vld [vmem:[%s284 + $0xa68] sm:$0xff]
        %v2661 = vld [vmem:[%s284 + $0xa70] sm:$0xff]
        %v2662 = vld [vmem:[%s284 + $0xa78] sm:$0xff]
        %v2663 = vld [vmem:[%s284 + $0xa80] sm:$0xff]
        %v2664 = vld [vmem:[%s284 + $0xa88] sm:$0xff]
        %v2665 = vld [vmem:[%s284 + $0xa90] sm:$0xff]
        %v2666 = vld [vmem:[%s284 + $0xa98] sm:$0xff]
        %v2667 = vld [vmem:[%s284 + $0xaa0] sm:$0xff]
        %v2668 = vld [vmem:[%s284 + $0xaa8] sm:$0xff]
        %v2669 = vld [vmem:[%s284 + $0xab0] sm:$0xff]
        %v2670 = vld [vmem:[%s284 + $0xab8] sm:$0xff]
        %v2671 = vld [vmem:[%s284 + $0xac0] sm:$0xff]
        %v2672 = vld [vmem:[%s284 + $0xac8] sm:$0xff]
        %v2673 = vld [vmem:[%s284 + $0xad0] sm:$0xff]
        %v2674 = vld [vmem:[%s284 + $0xad8] sm:$0xff]
        %v2675 = vld [vmem:[%s284 + $0xae0] sm:$0xff]
        %v2676 = vld [vmem:[%s284 + $0xae8] sm:$0xff]
        %v2677 = vld [vmem:[%s284 + $0xaf0] sm:$0xff]
        %v2678 = vld [vmem:[%s284 + $0xaf8] sm:$0xff]
        %v2679 = vld [vmem:[%s284 + $0xb00] sm:$0xff]
        %v2680 = vld [vmem:[%s284 + $0xb08] sm:$0xff]
        %v2681 = vld [vmem:[%s284 + $0xb10] sm:$0xff]
        %v2682 = vld [vmem:[%s284 + $0xb18] sm:$0xff]
        %v2683 = vld [vmem:[%s284 + $0xb20] sm:$0xff]
        %v2684 = vld [vmem:[%s284 + $0xb28] sm:$0xff]
        %v2685 = vld [vmem:[%s284 + $0xb30] sm:$0xff]
        %v2686 = vld [vmem:[%s284 + $0xb38] sm:$0xff]
        %v2687 = vld [vmem:[%s284 + $0xb40] sm:$0xff]
        %v2688 = vld [vmem:[%s284 + $0xb48] sm:$0xff]
        %v2689 = vld [vmem:[%s284 + $0xb50] sm:$0xff]
        %v2690 = vld [vmem:[%s284 + $0xb58] sm:$0xff]
        %v2691 = vld [vmem:[%s284 + $0xb60] sm:$0xff]
        %v2692 = vld [vmem:[%s284 + $0xb68] sm:$0xff]
        %v2693 = vld [vmem:[%s284 + $0xb70] sm:$0xff]
        %v2694 = vld [vmem:[%s284 + $0xb78] sm:$0xff]
        %v2695 = vld [vmem:[%s284 + $0xb80] sm:$0xff]
        %v2696 = vld [vmem:[%s284 + $0xb88] sm:$0xff]
        %v2697 = vld [vmem:[%s284 + $0xb90] sm:$0xff]
        %v2698 = vld [vmem:[%s284 + $0xb98] sm:$0xff]
        %v2699 = vld [vmem:[%s284 + $0xba0] sm:$0xff]
        %v2700 = vld [vmem:[%s284 + $0xba8] sm:$0xff]
        %v2701 = vld [vmem:[%s284 + $0xbb0] sm:$0xff]
        %v2702 = vld [vmem:[%s284 + $0xbb8] sm:$0xff]
        %v2703 = vld [vmem:[%s284 + $0xbc0] sm:$0xff]
        %v2704 = vld [vmem:[%s284 + $0xbc8] sm:$0xff]
        %v2705 = vld [vmem:[%s284 + $0xbd0] sm:$0xff]
        %v2706 = vld [vmem:[%s284 + $0xbd8] sm:$0xff]
        %v2707 = vld [vmem:[%s284 + $0xbe0] sm:$0xff]
        %v2708 = vld [vmem:[%s284 + $0xbe8] sm:$0xff]
        %v2709 = vld [vmem:[%s284 + $0xbf0] sm:$0xff]
        %v2710 = vld [vmem:[%s284 + $0xbf8] sm:$0xff]
        %v2711 = vld [vmem:[%s284 + $0xc00] sm:$0xff]
        %v2712 = vld [vmem:[%s284 + $0xc08] sm:$0xff]
        %v2713 = vld [vmem:[%s284 + $0xc10] sm:$0xff]
        %v2714 = vld [vmem:[%s284 + $0xc18] sm:$0xff]
        %v2715 = vld [vmem:[%s284 + $0xc20] sm:$0xff]
        %v2716 = vld [vmem:[%s284 + $0xc28] sm:$0xff]
        %v2717 = vld [vmem:[%s284 + $0xc30] sm:$0xff]
        %v2718 = vld [vmem:[%s284 + $0xc38] sm:$0xff]
        %v2719 = vld [vmem:[%s284 + $0xc40] sm:$0xff]
        %v2720 = vld [vmem:[%s284 + $0xc48] sm:$0xff]
        %v2721 = vld [vmem:[%s284 + $0xc50] sm:$0xff]
        %v2722 = vld [vmem:[%s284 + $0xc58] sm:$0xff]
        %v2723 = vld [vmem:[%s284 + $0xc60] sm:$0xff]
        %v2724 = vld [vmem:[%s284 + $0xc68] sm:$0xff]
        %v2725 = vld [vmem:[%s284 + $0xc70] sm:$0xff]
        %v2726 = vld [vmem:[%s284 + $0xc78] sm:$0xff]
        %v2727 = vld [vmem:[%s284 + $0xc80] sm:$0xff]
        %v2728 = vld [vmem:[%s284 + $0xc88] sm:$0xff]
        %v2729 = vld [vmem:[%s284 + $0xc90] sm:$0xff]
        %v2730 = vld [vmem:[%s284 + $0xc98] sm:$0xff]
        %v2731 = vld [vmem:[%s284 + $0xca0] sm:$0xff]
        %v2732 = vld [vmem:[%s284 + $0xca8] sm:$0xff]
        %v2733 = vld [vmem:[%s284 + $0xcb0] sm:$0xff]
        %v2734 = vld [vmem:[%s284 + $0xcb8] sm:$0xff]
        %v2735 = vld [vmem:[%s284 + $0xcc0] sm:$0xff]
        %v2736 = vld [vmem:[%s284 + $0xcc8] sm:$0xff]
        %v2737 = vld [vmem:[%s284 + $0xcd0] sm:$0xff]
        %v2738 = vld [vmem:[%s284 + $0xcd8] sm:$0xff]
        %v2739 = vld [vmem:[%s284 + $0xce0] sm:$0xff]
        %v2740 = vld [vmem:[%s284 + $0xce8] sm:$0xff]
        %v2741 = vld [vmem:[%s284 + $0xcf0] sm:$0xff]
        %v2742 = vld [vmem:[%s284 + $0xcf8] sm:$0xff]
        %v2743 = vld [vmem:[%s284 + $0xd00] sm:$0xff]
        %v2744 = vld [vmem:[%s284 + $0xd08] sm:$0xff]
        %v2745 = vld [vmem:[%s284 + $0xd10] sm:$0xff]
        %v2746 = vld [vmem:[%s284 + $0xd18] sm:$0xff]
        %v2747 = vld [vmem:[%s284 + $0xd20] sm:$0xff]
        %v2748 = vld [vmem:[%s284 + $0xd28] sm:$0xff]
        %v2749 = vld [vmem:[%s284 + $0xd30] sm:$0xff]
        %v2750 = vld [vmem:[%s284 + $0xd38] sm:$0xff]
        %v2751 = vld [vmem:[%s284 + $0xd40] sm:$0xff]
        %v2752 = vld [vmem:[%s284 + $0xd48] sm:$0xff]
        %v2753 = vld [vmem:[%s284 + $0xd50] sm:$0xff]
        %v2754 = vld [vmem:[%s284 + $0xd58] sm:$0xff]
        %v2755 = vld [vmem:[%s284 + $0xd60] sm:$0xff]
        %v2756 = vld [vmem:[%s284 + $0xd68] sm:$0xff]
        %v2757 = vld [vmem:[%s284 + $0xd70] sm:$0xff]
        %v2758 = vld [vmem:[%s284 + $0xd78] sm:$0xff]
        %v2759 = vld [vmem:[%s284 + $0xd80] sm:$0xff]
        %v2760 = vld [vmem:[%s284 + $0xd88] sm:$0xff]
        %v2761 = vld [vmem:[%s284 + $0xd90] sm:$0xff]
        %v2762 = vld [vmem:[%s284 + $0xd98] sm:$0xff]
        %v2763 = vld [vmem:[%s284 + $0xda0] sm:$0xff]
        %v2764 = vld [vmem:[%s284 + $0xda8] sm:$0xff]
        %v2765 = vld [vmem:[%s284 + $0xdb0] sm:$0xff]
        %v2766 = vld [vmem:[%s284 + $0xdb8] sm:$0xff]
        %v2767 = vld [vmem:[%s284 + $0xdc0] sm:$0xff]
        %v2768 = vld [vmem:[%s284 + $0xdc8] sm:$0xff]
        %v2769 = vld [vmem:[%s284 + $0xdd0] sm:$0xff]
        %v2770 = vld [vmem:[%s284 + $0xdd8] sm:$0xff]
        %v2771 = vld [vmem:[%s284 + $0xde0] sm:$0xff]
        %v2772 = vld [vmem:[%s284 + $0xde8] sm:$0xff]
        %v2773 = vld [vmem:[%s284 + $0xdf0] sm:$0xff]
        %v2774 = vld [vmem:[%s284 + $0xdf8] sm:$0xff]
        %v2775 = vld [vmem:[%s284 + $0xe00] sm:$0xff]
        %v2776 = vld [vmem:[%s284 + $0xe08] sm:$0xff]
        %v2777 = vld [vmem:[%s284 + $0xe10] sm:$0xff]
        %v2778 = vld [vmem:[%s284 + $0xe18] sm:$0xff]
        %v2779 = vld [vmem:[%s284 + $0xe20] sm:$0xff]
        %v2780 = vld [vmem:[%s284 + $0xe28] sm:$0xff]
        %v2781 = vld [vmem:[%s284 + $0xe30] sm:$0xff]
        %v2782 = vld [vmem:[%s284 + $0xe38] sm:$0xff]
        %v2783 = vld [vmem:[%s284 + $0xe40] sm:$0xff]
        %v2784 = vld [vmem:[%s284 + $0xe48] sm:$0xff]
        %v2785 = vld [vmem:[%s284 + $0xe50] sm:$0xff]
        %v2786 = vld [vmem:[%s284 + $0xe58] sm:$0xff]
        %v2787 = vld [vmem:[%s284 + $0xe60] sm:$0xff]
        %v2788 = vld [vmem:[%s284 + $0xe68] sm:$0xff]
        %v2789 = vld [vmem:[%s284 + $0xe70] sm:$0xff]
        %v2790 = vld [vmem:[%s284 + $0xe78] sm:$0xff]
        %v2791 = vld [vmem:[%s284 + $0xe80] sm:$0xff]
        %v2792 = vld [vmem:[%s284 + $0xe88] sm:$0xff]
        %v2793 = vld [vmem:[%s284 + $0xe90] sm:$0xff]
        %v2794 = vld [vmem:[%s284 + $0xe98] sm:$0xff]
        %v2795 = vld [vmem:[%s284 + $0xea0] sm:$0xff]
        %v2796 = vld [vmem:[%s284 + $0xea8] sm:$0xff]
        %v2797 = vld [vmem:[%s284 + $0xeb0] sm:$0xff]
        %v2798 = vld [vmem:[%s284 + $0xeb8] sm:$0xff]
        %v2799 = vld [vmem:[%s284 + $0xec0] sm:$0xff]
        %v2800 = vld [vmem:[%s284 + $0xec8] sm:$0xff]
        %v2801 = vld [vmem:[%s284 + $0xed0] sm:$0xff]
        %v2802 = vld [vmem:[%s284 + $0xed8] sm:$0xff]
        %v2803 = vld [vmem:[%s284 + $0xee0] sm:$0xff]
        %v2804 = vld [vmem:[%s284 + $0xee8] sm:$0xff]
        %v2805 = vld [vmem:[%s284 + $0xef0] sm:$0xff]
        %v2806 = vld [vmem:[%s284 + $0xef8] sm:$0xff]
        %v2807 = vld [vmem:[%s284 + $0xf00] sm:$0xff]
        %v2808 = vld [vmem:[%s284 + $0xf08] sm:$0xff]
        %v2809 = vld [vmem:[%s284 + $0xf10] sm:$0xff]
        %v2810 = vld [vmem:[%s284 + $0xf18] sm:$0xff]
        %v2811 = vld [vmem:[%s284 + $0xf20] sm:$0xff]
        %v2812 = vld [vmem:[%s284 + $0xf28] sm:$0xff]
        %v2813 = vld [vmem:[%s284 + $0xf30] sm:$0xff]
        %v2814 = vld [vmem:[%s284 + $0xf38] sm:$0xff]
        %v2815 = vld [vmem:[%s284 + $0xf40] sm:$0xff]
        %v2816 = vld [vmem:[%s284 + $0xf48] sm:$0xff]
        %v2817 = vld [vmem:[%s284 + $0xf50] sm:$0xff]
        %v2818 = vld [vmem:[%s284 + $0xf58] sm:$0xff]
        %v2819 = vld [vmem:[%s284 + $0xf60] sm:$0xff]
        %v2820 = vld [vmem:[%s284 + $0xf68] sm:$0xff]
        %v2821 = vld [vmem:[%s284 + $0xf70] sm:$0xff]
        %v2822 = vld [vmem:[%s284 + $0xf78] sm:$0xff]
        %v2823 = vld [vmem:[%s284 + $0xf80] sm:$0xff]
        %v2824 = vld [vmem:[%s284 + $0xf88] sm:$0xff]
        %v2825 = vld [vmem:[%s284 + $0xf90] sm:$0xff]
        %v2826 = vld [vmem:[%s284 + $0xf98] sm:$0xff]
        %v2827 = vld [vmem:[%s284 + $0xfa0] sm:$0xff]
        %v2828 = vld [vmem:[%s284 + $0xfa8] sm:$0xff]
        %v2829 = vld [vmem:[%s284 + $0xfb0] sm:$0xff]
        %v2830 = vld [vmem:[%s284 + $0xfb8] sm:$0xff]
        %v2831 = vld [vmem:[%s284 + $0xfc0] sm:$0xff]
        %v2832 = vld [vmem:[%s284 + $0xfc8] sm:$0xff]
        %v2833 = vld [vmem:[%s284 + $0xfd0] sm:$0xff]
        %v2834 = vld [vmem:[%s284 + $0xfd8] sm:$0xff]
        %v2835 = vld [vmem:[%s284 + $0xfe0] sm:$0xff]
        %v2836 = vld [vmem:[%s284 + $0xfe8] sm:$0xff]
        %v2837 = vld [vmem:[%s284 + $0xff0] sm:$0xff]
        %v2838 = vld [vmem:[%s284 + $0xff8] sm:$0xff]
        %v2839 = vld [vmem:[%s284 + $0x1000] sm:$0xff]
        %v2840 = vld [vmem:[%s284 + $0x1008] sm:$0xff]
        %v2841 = vld [vmem:[%s284 + $0x1010] sm:$0xff]
        %v2842 = vld [vmem:[%s284 + $0x1018] sm:$0xff]
        %v2843 = vld [vmem:[%s284 + $0x1020] sm:$0xff]
        %v2844 = vld [vmem:[%s284 + $0x1028] sm:$0xff]
        %v2845 = vld [vmem:[%s284 + $0x1030] sm:$0xff]
        %v2846 = vld [vmem:[%s284 + $0x1038] sm:$0xff]
        %v2847 = vld [vmem:[%s284 + $0x1040] sm:$0xff]
        %v2848 = vld [vmem:[%s284 + $0x1048] sm:$0xff]
        %v2849 = vld [vmem:[%s284 + $0x1050] sm:$0xff]
        %v2850 = vld [vmem:[%s284 + $0x1058] sm:$0xff]
        %v2851 = vld [vmem:[%s284 + $0x1060] sm:$0xff]
        %v2852 = vld [vmem:[%s284 + $0x1068] sm:$0xff]
        %v2853 = vld [vmem:[%s284 + $0x1070] sm:$0xff]
        %v2854 = vld [vmem:[%s284 + $0x1078] sm:$0xff]
        %v2855 = vld [vmem:[%s284 + $0x1080] sm:$0xff]
        %v2856 = vld [vmem:[%s284 + $0x1088] sm:$0xff]
        %v2857 = vld [vmem:[%s284 + $0x1090] sm:$0xff]
        %v2858 = vld [vmem:[%s284 + $0x1098] sm:$0xff]
        %v2859 = vld [vmem:[%s284 + $0x10a0] sm:$0xff]
        %v2860 = vld [vmem:[%s284 + $0x10a8] sm:$0xff]
        %v2861 = vld [vmem:[%s284 + $0x10b0] sm:$0xff]
        %v2862 = vld [vmem:[%s284 + $0x10b8] sm:$0xff]
        %v2863 = vld [vmem:[%s284 + $0x10c0] sm:$0xff]
        %v2864 = vld [vmem:[%s284 + $0x10c8] sm:$0xff]
        %v2865 = vld [vmem:[%s284 + $0x10d0] sm:$0xff]
        %v2866 = vld [vmem:[%s284 + $0x10d8] sm:$0xff]
        %v2867 = vld [vmem:[%s284 + $0x10e0] sm:$0xff]
        %v2868 = vld [vmem:[%s284 + $0x10e8] sm:$0xff]
        %v2869 = vld [vmem:[%s284 + $0x10f0] sm:$0xff]
        %v2870 = vld [vmem:[%s284 + $0x10f8] sm:$0xff]
        %v2871 = vld [vmem:[%s284 + $0x1100] sm:$0xff]
        %v2872 = vld [vmem:[%s284 + $0x1108] sm:$0xff]
        %v2873 = vld [vmem:[%s284 + $0x1110] sm:$0xff]
        %v2874 = vld [vmem:[%s284 + $0x1118] sm:$0xff]
        %v2875 = vld [vmem:[%s284 + $0x1120] sm:$0xff]
        %v2876 = vld [vmem:[%s284 + $0x1128] sm:$0xff]
        %v2877 = vld [vmem:[%s284 + $0x1130] sm:$0xff]
        %v2878 = vld [vmem:[%s284 + $0x1138] sm:$0xff]
        %v2879 = vld [vmem:[%s284 + $0x1140] sm:$0xff]
        %v2880 = vld [vmem:[%s284 + $0x1148] sm:$0xff]
        %v2881 = vld [vmem:[%s284 + $0x1150] sm:$0xff]
        %v2882 = vld [vmem:[%s284 + $0x1158] sm:$0xff]
        %v2883 = vld [vmem:[%s284 + $0x1160] sm:$0xff]
        %v2884 = vld [vmem:[%s284 + $0x1168] sm:$0xff]
        %v2885 = vld [vmem:[%s284 + $0x1170] sm:$0xff]
        %v2886 = vld [vmem:[%s284 + $0x1178] sm:$0xff]
        %v2887 = vld [vmem:[%s284 + $0x1180] sm:$0xff]
        %v2888 = vld [vmem:[%s284 + $0x1188] sm:$0xff]
        %v2889 = vld [vmem:[%s284 + $0x1190] sm:$0xff]
        %v2890 = vld [vmem:[%s284 + $0x1198] sm:$0xff]
        %v2891 = vld [vmem:[%s284 + $0x11a0] sm:$0xff]
        %v2892 = vld [vmem:[%s284 + $0x11a8] sm:$0xff]
        %v2893 = vld [vmem:[%s284 + $0x11b0] sm:$0xff]
        %v2894 = vld [vmem:[%s284 + $0x11b8] sm:$0xff]
        %v2895 = vld [vmem:[%s284 + $0x11c0] sm:$0xff]
        %v2896 = vld [vmem:[%s284 + $0x11c8] sm:$0xff]
        %v2897 = vld [vmem:[%s284 + $0x11d0] sm:$0xff]
        %v2898 = vld [vmem:[%s284 + $0x11d8] sm:$0xff]
        %v2899 = vld [vmem:[%s284 + $0x11e0] sm:$0xff]
        %v2900 = vld [vmem:[%s284 + $0x11e8] sm:$0xff]
        %v2901 = vld [vmem:[%s284 + $0x11f0] sm:$0xff]
        %v2902 = vld [vmem:[%s284 + $0x11f8] sm:$0xff]
        %v2903 = vld [vmem:[%s284 + $0x1200] sm:$0xff]
        %v2904 = vld [vmem:[%s284 + $0x1208] sm:$0xff]
        %v2905 = vld [vmem:[%s284 + $0x1210] sm:$0xff]
        %v2906 = vld [vmem:[%s284 + $0x1218] sm:$0xff]
        %v2907 = vld [vmem:[%s284 + $0x1220] sm:$0xff]
        %v2908 = vld [vmem:[%s284 + $0x1228] sm:$0xff]
        %v2909 = vld [vmem:[%s284 + $0x1230] sm:$0xff]
        %v2910 = vld [vmem:[%s284 + $0x1238] sm:$0xff]
        %v2911 = vld [vmem:[%s284 + $0x1240] sm:$0xff]
        %v2912 = vld [vmem:[%s284 + $0x1248] sm:$0xff]
        %v2913 = vld [vmem:[%s284 + $0x1250] sm:$0xff]
        %v2914 = vld [vmem:[%s284 + $0x1258] sm:$0xff]
        %v2915 = vld [vmem:[%s284 + $0x1260] sm:$0xff]
        %v2916 = vld [vmem:[%s284 + $0x1268] sm:$0xff]
        %v2917 = vld [vmem:[%s284 + $0x1270] sm:$0xff]
        %v2918 = vld [vmem:[%s284 + $0x1278] sm:$0xff]
        %v2919 = vld [vmem:[%s284 + $0x1280] sm:$0xff]
        %v2920 = vld [vmem:[%s284 + $0x1288] sm:$0xff]
        %v2921 = vld [vmem:[%s284 + $0x1290] sm:$0xff]
        %v2922 = vld [vmem:[%s284 + $0x1298] sm:$0xff]
        %v2923 = vld [vmem:[%s284 + $0x12a0] sm:$0xff]
        %v2924 = vld [vmem:[%s284 + $0x12a8] sm:$0xff]
        %v2925 = vld [vmem:[%s284 + $0x12b0] sm:$0xff]
        %v2926 = vld [vmem:[%s284 + $0x12b8] sm:$0xff]
        %v2927 = vld [vmem:[%s284 + $0x12c0] sm:$0xff]
        %v2928 = vld [vmem:[%s284 + $0x12c8] sm:$0xff]
        %v2929 = vld [vmem:[%s284 + $0x12d0] sm:$0xff]
        %v2930 = vld [vmem:[%s284 + $0x12d8] sm:$0xff]
        %v2931 = vld [vmem:[%s284 + $0x12e0] sm:$0xff]
        %v2932 = vld [vmem:[%s284 + $0x12e8] sm:$0xff]
        %v2933 = vld [vmem:[%s284 + $0x12f0] sm:$0xff]
        %v2934 = vld [vmem:[%s284 + $0x12f8] sm:$0xff]
        %v2935 = vld [vmem:[%s284 + $0x1300] sm:$0xff]
        %v2936 = vld [vmem:[%s284 + $0x1308] sm:$0xff]
        %v2937 = vld [vmem:[%s284 + $0x1310] sm:$0xff]
        %v2938 = vld [vmem:[%s284 + $0x1318] sm:$0xff]
        %v2939 = vld [vmem:[%s284 + $0x1320] sm:$0xff]
        %v2940 = vld [vmem:[%s284 + $0x1328] sm:$0xff]
        %v2941 = vld [vmem:[%s284 + $0x1330] sm:$0xff]
        %v2942 = vld [vmem:[%s284 + $0x1338] sm:$0xff]
        %v2943 = vld [vmem:[%s284 + $0x1340] sm:$0xff]
        %v2944 = vld [vmem:[%s284 + $0x1348] sm:$0xff]
        %v2945 = vld [vmem:[%s284 + $0x1350] sm:$0xff]
        %v2946 = vld [vmem:[%s284 + $0x1358] sm:$0xff]
        %v2947 = vld [vmem:[%s284 + $0x1360] sm:$0xff]
        %v2948 = vld [vmem:[%s284 + $0x1368] sm:$0xff]
        %v2949 = vld [vmem:[%s284 + $0x1370] sm:$0xff]
        %v2950 = vld [vmem:[%s284 + $0x1378] sm:$0xff]
        %v2951 = vld [vmem:[%s284 + $0x1380] sm:$0xff]
        %v2952 = vld [vmem:[%s284 + $0x1388] sm:$0xff]
        %v2953 = vld [vmem:[%s284 + $0x1390] sm:$0xff]
        %v2954 = vld [vmem:[%s284 + $0x1398] sm:$0xff]
        %v2955 = vld [vmem:[%s284 + $0x13a0] sm:$0xff]
        %v2956 = vld [vmem:[%s284 + $0x13a8] sm:$0xff]
        %v2957 = vld [vmem:[%s284 + $0x13b0] sm:$0xff]
        %v2958 = vld [vmem:[%s284 + $0x13b8] sm:$0xff]
        %v2959 = vld [vmem:[%s284 + $0x13c0] sm:$0xff]
        %v2960 = vld [vmem:[%s284 + $0x13c8] sm:$0xff]
        %v2961 = vld [vmem:[%s284 + $0x13d0] sm:$0xff]
        %v2962 = vld [vmem:[%s284 + $0x13d8] sm:$0xff]
        %v2963 = vld [vmem:[%s284 + $0x13e0] sm:$0xff]
        %v2964 = vld [vmem:[%s284 + $0x13e8] sm:$0xff]
        %v2965 = vld [vmem:[%s284 + $0x13f0] sm:$0xff]
        %v2966 = vld [vmem:[%s284 + $0x13f8] sm:$0xff]
        %v2967 = vld [vmem:[%s284 + $0x1400] sm:$0xff]
        %v2968 = vld [vmem:[%s284 + $0x1408] sm:$0xff]
        %v2969 = vld [vmem:[%s284 + $0x1410] sm:$0xff]
        %v2970 = vld [vmem:[%s284 + $0x1418] sm:$0xff]
        %v2971 = vld [vmem:[%s284 + $0x1420] sm:$0xff]
        %v2972 = vld [vmem:[%s284 + $0x1428] sm:$0xff]
        %v2973 = vld [vmem:[%s284 + $0x1430] sm:$0xff]
        %v2974 = vld [vmem:[%s284 + $0x1438] sm:$0xff]
        %v2975 = vld [vmem:[%s284 + $0x1440] sm:$0xff]
        %v2976 = vld [vmem:[%s284 + $0x1448] sm:$0xff]
        %v2977 = vld [vmem:[%s284 + $0x1450] sm:$0xff]
        %v2978 = vld [vmem:[%s284 + $0x1458] sm:$0xff]
        %v2979 = vld [vmem:[%s284 + $0x1460] sm:$0xff]
        %v2980 = vld [vmem:[%s284 + $0x1468] sm:$0xff]
        %v2981 = vld [vmem:[%s284 + $0x1470] sm:$0xff]
        %v2982 = vld [vmem:[%s284 + $0x1478] sm:$0xff]
        %v2983 = vld [vmem:[%s284 + $0x1480] sm:$0xff]
        %v2984 = vld [vmem:[%s284 + $0x1488] sm:$0xff]
        %v2985 = vld [vmem:[%s284 + $0x1490] sm:$0xff]
        %v2986 = vld [vmem:[%s284 + $0x1498] sm:$0xff]
        %v2987 = vld [vmem:[%s284 + $0x14a0] sm:$0xff]
        %v2988 = vld [vmem:[%s284 + $0x14a8] sm:$0xff]
        %v2989 = vld [vmem:[%s284 + $0x14b0] sm:$0xff]
        %v2990 = vld [vmem:[%s284 + $0x14b8] sm:$0xff]
        %v2991 = vld [vmem:[%s284 + $0x14c0] sm:$0xff]
        %v2992 = vld [vmem:[%s284 + $0x14c8] sm:$0xff]
        %v2993 = vld [vmem:[%s284 + $0x14d0] sm:$0xff]
        %v2994 = vld [vmem:[%s284 + $0x14d8] sm:$0xff]
        %v2995 = vld [vmem:[%s284 + $0x14e0] sm:$0xff]
        %v2996 = vld [vmem:[%s284 + $0x14e8] sm:$0xff]
        %v2997 = vld [vmem:[%s284 + $0x14f0] sm:$0xff]
        %v2998 = vld [vmem:[%s284 + $0x14f8] sm:$0xff]
        %v2999 = vld [vmem:[%s284 + $0x1500] sm:$0xff]
        %v3000 = vld [vmem:[%s284 + $0x1508] sm:$0xff]
        %v3001 = vld [vmem:[%s284 + $0x1510] sm:$0xff]
        %v3002 = vld [vmem:[%s284 + $0x1518] sm:$0xff]
        %v3003 = vld [vmem:[%s284 + $0x1520] sm:$0xff]
        %v3004 = vld [vmem:[%s284 + $0x1528] sm:$0xff]
        %v3005 = vld [vmem:[%s284 + $0x1530] sm:$0xff]
        %v3006 = vld [vmem:[%s284 + $0x1538] sm:$0xff]
        %v3007 = vld [vmem:[%s284 + $0x1540] sm:$0xff]
        %v3008 = vld [vmem:[%s284 + $0x1548] sm:$0xff]
        %v3009 = vld [vmem:[%s284 + $0x1550] sm:$0xff]
        %v3010 = vld [vmem:[%s284 + $0x1558] sm:$0xff]
        %v3011 = vld [vmem:[%s284 + $0x1560] sm:$0xff]
        %v3012 = vld [vmem:[%s284 + $0x1568] sm:$0xff]
        %v3013 = vld [vmem:[%s284 + $0x1570] sm:$0xff]
        %v3014 = vld [vmem:[%s284 + $0x1578] sm:$0xff]
        %v3015 = vld [vmem:[%s284 + $0x1580] sm:$0xff]
        %v3016 = vld [vmem:[%s284 + $0x1588] sm:$0xff]
        %v3017 = vld [vmem:[%s284 + $0x1590] sm:$0xff]
        %v3018 = vld [vmem:[%s284 + $0x1598] sm:$0xff]
        %v3019 = vld [vmem:[%s284 + $0x15a0] sm:$0xff]
        %v3020 = vld [vmem:[%s284 + $0x15a8] sm:$0xff]
        %v3021 = vld [vmem:[%s284 + $0x15b0] sm:$0xff]
        %v3022 = vld [vmem:[%s284 + $0x15b8] sm:$0xff]
        %v3023 = vld [vmem:[%s284 + $0x15c0] sm:$0xff]
        %v3024 = vld [vmem:[%s284 + $0x15c8] sm:$0xff]
        %v3025 = vld [vmem:[%s284 + $0x15d0] sm:$0xff]
        %v3026 = vld [vmem:[%s284 + $0x15d8] sm:$0xff]
        %v3027 = vld [vmem:[%s284 + $0x15e0] sm:$0xff]
        %v3028 = vld [vmem:[%s284 + $0x15e8] sm:$0xff]
        %v3029 = vld [vmem:[%s284 + $0x15f0] sm:$0xff]
        %v3030 = vld [vmem:[%s284 + $0x15f8] sm:$0xff]
        %v3031 = vld [vmem:[%s284 + $0x1600] sm:$0xff]
        %v3032 = vld [vmem:[%s284 + $0x1608] sm:$0xff]
        %v3033 = vld [vmem:[%s284 + $0x1610] sm:$0xff]
        %v3034 = vld [vmem:[%s284 + $0x1618] sm:$0xff]
        %v3035 = vld [vmem:[%s284 + $0x1620] sm:$0xff]
        %v3036 = vld [vmem:[%s284 + $0x1628] sm:$0xff]
        %v3037 = vld [vmem:[%s284 + $0x1630] sm:$0xff]
        %v3038 = vld [vmem:[%s284 + $0x1638] sm:$0xff]
        %v3039 = vld [vmem:[%s284 + $0x1640] sm:$0xff]
        %v3040 = vld [vmem:[%s284 + $0x1648] sm:$0xff]
        %v3041 = vld [vmem:[%s284 + $0x1650] sm:$0xff]
        %v3042 = vld [vmem:[%s284 + $0x1658] sm:$0xff]
        %v3043 = vld [vmem:[%s284 + $0x1660] sm:$0xff]
        %v3044 = vld [vmem:[%s284 + $0x1668] sm:$0xff]
        %v3045 = vld [vmem:[%s284 + $0x1670] sm:$0xff]
        %v3046 = vld [vmem:[%s284 + $0x1678] sm:$0xff]
        %v3047 = vld [vmem:[%s284 + $0x1680] sm:$0xff]
        %v3048 = vld [vmem:[%s284 + $0x1688] sm:$0xff]
        %v3049 = vld [vmem:[%s284 + $0x1690] sm:$0xff]
        %v3050 = vld [vmem:[%s284 + $0x1698] sm:$0xff]
        %v3051 = vld [vmem:[%s284 + $0x16a0] sm:$0xff]
        %v3052 = vld [vmem:[%s284 + $0x16a8] sm:$0xff]
        %v3053 = vld [vmem:[%s284 + $0x16b0] sm:$0xff]
        %v3054 = vld [vmem:[%s284 + $0x16b8] sm:$0xff]
        %v3055 = vld [vmem:[%s284 + $0x16c0] sm:$0xff]
        %v3056 = vld [vmem:[%s284 + $0x16c8] sm:$0xff]
        %v3057 = vld [vmem:[%s284 + $0x16d0] sm:$0xff]
        %v3058 = vld [vmem:[%s284 + $0x16d8] sm:$0xff]
        %v3059 = vld [vmem:[%s284 + $0x16e0] sm:$0xff]
        %v3060 = vld [vmem:[%s284 + $0x16e8] sm:$0xff]
        %v3061 = vld [vmem:[%s284 + $0x16f0] sm:$0xff]
        %v3062 = vld [vmem:[%s284 + $0x16f8] sm:$0xff]
        %v3063 = vld [vmem:[%s284 + $0x1700] sm:$0xff]
        %v3064 = vld [vmem:[%s284 + $0x1708] sm:$0xff]
        %v3065 = vld [vmem:[%s284 + $0x1710] sm:$0xff]
        %v3066 = vld [vmem:[%s284 + $0x1718] sm:$0xff]
        %v3067 = vld [vmem:[%s284 + $0x1720] sm:$0xff]
        %v3068 = vld [vmem:[%s284 + $0x1728] sm:$0xff]
        %v3069 = vld [vmem:[%s284 + $0x1730] sm:$0xff]
        %v3070 = vld [vmem:[%s284 + $0x1738] sm:$0xff]
        %v3071 = vld [vmem:[%s284 + $0x1740] sm:$0xff]
        %v3072 = vld [vmem:[%s284 + $0x1748] sm:$0xff]
        %v3073 = vld [vmem:[%s284 + $0x1750] sm:$0xff]
        %v3074 = vld [vmem:[%s284 + $0x1758] sm:$0xff]
        %v3075 = vld [vmem:[%s284 + $0x1760] sm:$0xff]
        %v3076 = vld [vmem:[%s284 + $0x1768] sm:$0xff]
        %v3077 = vld [vmem:[%s284 + $0x1770] sm:$0xff]
        %v3078 = vld [vmem:[%s284 + $0x1778] sm:$0xff]
        %v3079 = vld [vmem:[%s284 + $0x1780] sm:$0xff]
        %v3080 = vld [vmem:[%s284 + $0x1788] sm:$0xff]
        %v3081 = vld [vmem:[%s284 + $0x1790] sm:$0xff]
        %v3082 = vld [vmem:[%s284 + $0x1798] sm:$0xff]
        %v3083 = vld [vmem:[%s284 + $0x17a0] sm:$0xff]
        %v3084 = vld [vmem:[%s284 + $0x17a8] sm:$0xff]
        %v3085 = vld [vmem:[%s284 + $0x17b0] sm:$0xff]
        %v3086 = vld [vmem:[%s284 + $0x17b8] sm:$0xff]
        %v3087 = vld [vmem:[%s284 + $0x17c0] sm:$0xff]
        %v3088 = vld [vmem:[%s284 + $0x17c8] sm:$0xff]
        %v3089 = vld [vmem:[%s284 + $0x17d0] sm:$0xff]
        %v3090 = vld [vmem:[%s284 + $0x17d8] sm:$0xff]
        %v3091 = vld [vmem:[%s284 + $0x17e0] sm:$0xff]
        %v3092 = vld [vmem:[%s284 + $0x17e8] sm:$0xff]
        %v3093 = vld [vmem:[%s284 + $0x17f0] sm:$0xff]
        %v3094 = vld [vmem:[%s284 + $0x17f8] sm:$0xff]
        %v3095 = vld [vmem:[%s284 + $0x1800] sm:$0xff]
        %v3096 = vld [vmem:[%s284 + $0x1808] sm:$0xff]
        %v3097 = vld [vmem:[%s284 + $0x1810] sm:$0xff]
        %v3098 = vld [vmem:[%s284 + $0x1818] sm:$0xff]
        %v3099 = vld [vmem:[%s284 + $0x1820] sm:$0xff]
        %v3100 = vld [vmem:[%s284 + $0x1828] sm:$0xff]
        %v3101 = vld [vmem:[%s284 + $0x1830] sm:$0xff]
        %v3102 = vld [vmem:[%s284 + $0x1838] sm:$0xff]
        %v3103 = vld [vmem:[%s284 + $0x1840] sm:$0xff]
        %v3104 = vld [vmem:[%s284 + $0x1848] sm:$0xff]
        %v3105 = vld [vmem:[%s284 + $0x1850] sm:$0xff]
        %v3106 = vld [vmem:[%s284 + $0x1858] sm:$0xff]
        %v3107 = vld [vmem:[%s284 + $0x1860] sm:$0xff]
        %v3108 = vld [vmem:[%s284 + $0x1868] sm:$0xff]
        %v3109 = vld [vmem:[%s284 + $0x1870] sm:$0xff]
        %v3110 = vld [vmem:[%s284 + $0x1878] sm:$0xff]
        %v3111 = vld [vmem:[%s284 + $0x1880] sm:$0xff]
        %v3112 = vld [vmem:[%s284 + $0x1888] sm:$0xff]
        %v3113 = vld [vmem:[%s284 + $0x1890] sm:$0xff]
        %v3114 = vld [vmem:[%s284 + $0x1898] sm:$0xff]
        %v3115 = vld [vmem:[%s284 + $0x18a0] sm:$0xff]
        %v3116 = vld [vmem:[%s284 + $0x18a8] sm:$0xff]
        %v3117 = vld [vmem:[%s284 + $0x18b0] sm:$0xff]
        %v3118 = vld [vmem:[%s284 + $0x18b8] sm:$0xff]
        %v3119 = vld [vmem:[%s284 + $0x18c0] sm:$0xff]
        %v3120 = vld [vmem:[%s284 + $0x18c8] sm:$0xff]
        %v3121 = vld [vmem:[%s284 + $0x18d0] sm:$0xff]
        %v3122 = vld [vmem:[%s284 + $0x18d8] sm:$0xff]
        %v3123 = vld [vmem:[%s284 + $0x18e0] sm:$0xff]
        %v3124 = vld [vmem:[%s284 + $0x18e8] sm:$0xff]
        %v3125 = vld [vmem:[%s284 + $0x18f0] sm:$0xff]
        %v3126 = vld [vmem:[%s284 + $0x18f8] sm:$0xff]
        %v3127 = vld [vmem:[%s284 + $0x1900] sm:$0xff]
        %v3128 = vld [vmem:[%s284 + $0x1908] sm:$0xff]
        %v3129 = vld [vmem:[%s284 + $0x1910] sm:$0xff]
        %v3130 = vld [vmem:[%s284 + $0x1918] sm:$0xff]
        %v3131 = vld [vmem:[%s284 + $0x1920] sm:$0xff]
        %v3132 = vld [vmem:[%s284 + $0x1928] sm:$0xff]
        %v3133 = vld [vmem:[%s284 + $0x1930] sm:$0xff]
        %v3134 = vld [vmem:[%s284 + $0x1938] sm:$0xff]
        %v3135 = vld [vmem:[%s284 + $0x1940] sm:$0xff]
        %v3136 = vld [vmem:[%s284 + $0x1948] sm:$0xff]
        %v3137 = vld [vmem:[%s284 + $0x1950] sm:$0xff]
        %v3138 = vld [vmem:[%s284 + $0x1958] sm:$0xff]
        %v3139 = vld [vmem:[%s284 + $0x1960] sm:$0xff]
        %v3140 = vld [vmem:[%s284 + $0x1968] sm:$0xff]
        %v3141 = vld [vmem:[%s284 + $0x1970] sm:$0xff]
        %v3142 = vld [vmem:[%s284 + $0x1978] sm:$0xff]
        %v3143 = vld [vmem:[%s284 + $0x1980] sm:$0xff]
        %v3144 = vld [vmem:[%s284 + $0x1988] sm:$0xff]
        %v3145 = vld [vmem:[%s284 + $0x1990] sm:$0xff]
        %v3146 = vld [vmem:[%s284 + $0x1998] sm:$0xff]
        %v3147 = vld [vmem:[%s284 + $0x19a0] sm:$0xff]
        %v3148 = vld [vmem:[%s284 + $0x19a8] sm:$0xff]
        %v3149 = vld [vmem:[%s284 + $0x19b0] sm:$0xff]
        %v3150 = vld [vmem:[%s284 + $0x19b8] sm:$0xff]
        %v3151 = vld [vmem:[%s284 + $0x19c0] sm:$0xff]
        %v3152 = vld [vmem:[%s284 + $0x19c8] sm:$0xff]
        %v3153 = vld [vmem:[%s284 + $0x19d0] sm:$0xff]
        %v3154 = vld [vmem:[%s284 + $0x19d8] sm:$0xff]
        %v3155 = vld [vmem:[%s284 + $0x19e0] sm:$0xff]
        %v3156 = vld [vmem:[%s284 + $0x19e8] sm:$0xff]
        %v3157 = vld [vmem:[%s284 + $0x19f0] sm:$0xff]
        %v3158 = vld [vmem:[%s284 + $0x19f8] sm:$0xff]
        %v3159 = vld [vmem:[%s284 + $0x1a00] sm:$0xff]
        %v3160 = vld [vmem:[%s284 + $0x1a08] sm:$0xff]
        %v3161 = vld [vmem:[%s284 + $0x1a10] sm:$0xff]
        %v3162 = vld [vmem:[%s284 + $0x1a18] sm:$0xff]
        %v3163 = vld [vmem:[%s284 + $0x1a20] sm:$0xff]
        %v3164 = vld [vmem:[%s284 + $0x1a28] sm:$0xff]
        %v3165 = vld [vmem:[%s284 + $0x1a30] sm:$0xff]
        %v3166 = vld [vmem:[%s284 + $0x1a38] sm:$0xff]
        %v3167 = vld [vmem:[%s284 + $0x1a40] sm:$0xff]
        %v3168 = vld [vmem:[%s284 + $0x1a48] sm:$0xff]
        %v3169 = vld [vmem:[%s284 + $0x1a50] sm:$0xff]
        %v3170 = vld [vmem:[%s284 + $0x1a58] sm:$0xff]
        %v3171 = vld [vmem:[%s284 + $0x1a60] sm:$0xff]
        %v3172 = vld [vmem:[%s284 + $0x1a68] sm:$0xff]
        %v3173 = vld [vmem:[%s284 + $0x1a70] sm:$0xff]
        %v3174 = vld [vmem:[%s284 + $0x1a78] sm:$0xff]
        %v3175 = vld [vmem:[%s284 + $0x1a80] sm:$0xff]
        %v3176 = vld [vmem:[%s284 + $0x1a88] sm:$0xff]
        %v3177 = vld [vmem:[%s284 + $0x1a90] sm:$0xff]
        %v3178 = vld [vmem:[%s284 + $0x1a98] sm:$0xff]
        %v3179 = vld [vmem:[%s284 + $0x1aa0] sm:$0xff]
        %v3180 = vld [vmem:[%s284 + $0x1aa8] sm:$0xff]
        %v3181 = vld [vmem:[%s284 + $0x1ab0] sm:$0xff]
        %v3182 = vld [vmem:[%s284 + $0x1ab8] sm:$0xff]
        %v3183 = vld [vmem:[%s284 + $0x1ac0] sm:$0xff]
        %v3184 = vld [vmem:[%s284 + $0x1ac8] sm:$0xff]
        %v3185 = vld [vmem:[%s284 + $0x1ad0] sm:$0xff]
        %v3186 = vld [vmem:[%s284 + $0x1ad8] sm:$0xff]
        %v3187 = vld [vmem:[%s284 + $0x1ae0] sm:$0xff]
        %v3188 = vld [vmem:[%s284 + $0x1ae8] sm:$0xff]
        %v3189 = vld [vmem:[%s284 + $0x1af0] sm:$0xff]
        %v3190 = vld [vmem:[%s284 + $0x1af8] sm:$0xff]
        %v3191 = vld [vmem:[%s284 + $0x1b00] sm:$0xff]
        %v3192 = vld [vmem:[%s284 + $0x1b08] sm:$0xff]
        %v3193 = vld [vmem:[%s284 + $0x1b10] sm:$0xff]
        %v3194 = vld [vmem:[%s284 + $0x1b18] sm:$0xff]
        %v3195 = vld [vmem:[%s284 + $0x1b20] sm:$0xff]
        %v3196 = vld [vmem:[%s284 + $0x1b28] sm:$0xff]
        %v3197 = vld [vmem:[%s284 + $0x1b30] sm:$0xff]
        %v3198 = vld [vmem:[%s284 + $0x1b38] sm:$0xff]
        %v3199 = vld [vmem:[%s284 + $0x1b40] sm:$0xff]
        %v3200 = vld [vmem:[%s284 + $0x1b48] sm:$0xff]
        %v3201 = vld [vmem:[%s284 + $0x1b50] sm:$0xff]
        %v3202 = vld [vmem:[%s284 + $0x1b58] sm:$0xff]
        %v3203 = vld [vmem:[%s284 + $0x1b60] sm:$0xff]
        %v3204 = vld [vmem:[%s284 + $0x1b68] sm:$0xff]
        %v3205 = vld [vmem:[%s284 + $0x1b70] sm:$0xff]
        %v3206 = vld [vmem:[%s284 + $0x1b78] sm:$0xff]
        %v3207 = vld [vmem:[%s284 + $0x1b80] sm:$0xff]
        %v3208 = vld [vmem:[%s284 + $0x1b88] sm:$0xff]
        %v3209 = vld [vmem:[%s284 + $0x1b90] sm:$0xff]
        %v3210 = vld [vmem:[%s284 + $0x1b98] sm:$0xff]
        %v3211 = vld [vmem:[%s284 + $0x1ba0] sm:$0xff]
        %v3212 = vld [vmem:[%s284 + $0x1ba8] sm:$0xff]
        %v3213 = vld [vmem:[%s284 + $0x1bb0] sm:$0xff]
        %v3214 = vld [vmem:[%s284 + $0x1bb8] sm:$0xff]
        %v3215 = vld [vmem:[%s284 + $0x1bc0] sm:$0xff]
        %v3216 = vld [vmem:[%s284 + $0x1bc8] sm:$0xff]
        %v3217 = vld [vmem:[%s284 + $0x1bd0] sm:$0xff]
        %v3218 = vld [vmem:[%s284 + $0x1bd8] sm:$0xff]
        %v3219 = vld [vmem:[%s284 + $0x1be0] sm:$0xff]
        %v3220 = vld [vmem:[%s284 + $0x1be8] sm:$0xff]
        %v3221 = vld [vmem:[%s284 + $0x1bf0] sm:$0xff]
        %v3222 = vld [vmem:[%s284 + $0x1bf8] sm:$0xff]
        %v3223 = vld [vmem:[%s284 + $0x1c00] sm:$0xff]
        %v3224 = vld [vmem:[%s284 + $0x1c08] sm:$0xff]
        %v3225 = vld [vmem:[%s284 + $0x1c10] sm:$0xff]
        %v3226 = vld [vmem:[%s284 + $0x1c18] sm:$0xff]
        %v3227 = vld [vmem:[%s284 + $0x1c20] sm:$0xff]
        %v3228 = vld [vmem:[%s284 + $0x1c28] sm:$0xff]
        %v3229 = vld [vmem:[%s284 + $0x1c30] sm:$0xff]
        %v3230 = vld [vmem:[%s284 + $0x1c38] sm:$0xff]
        %v3231 = vld [vmem:[%s284 + $0x1c40] sm:$0xff]
        %v3232 = vld [vmem:[%s284 + $0x1c48] sm:$0xff]
        %v3233 = vld [vmem:[%s284 + $0x1c50] sm:$0xff]
        %v3234 = vld [vmem:[%s284 + $0x1c58] sm:$0xff]
        %v3235 = vld [vmem:[%s284 + $0x1c60] sm:$0xff]
        %v3236 = vld [vmem:[%s284 + $0x1c68] sm:$0xff]
        %v3237 = vld [vmem:[%s284 + $0x1c70] sm:$0xff]
        %v3238 = vld [vmem:[%s284 + $0x1c78] sm:$0xff]
        %v3239 = vld [vmem:[%s284 + $0x1c80] sm:$0xff]
        %v3240 = vld [vmem:[%s284 + $0x1c88] sm:$0xff]
        %v3241 = vld [vmem:[%s284 + $0x1c90] sm:$0xff]
        %v3242 = vld [vmem:[%s284 + $0x1c98] sm:$0xff]
        %v3243 = vld [vmem:[%s284 + $0x1ca0] sm:$0xff]
        %v3244 = vld [vmem:[%s284 + $0x1ca8] sm:$0xff]
        %v3245 = vld [vmem:[%s284 + $0x1cb0] sm:$0xff]
        %v3246 = vld [vmem:[%s284 + $0x1cb8] sm:$0xff]
        %v3247 = vld [vmem:[%s284 + $0x1cc0] sm:$0xff]
        %v3248 = vld [vmem:[%s284 + $0x1cc8] sm:$0xff]
        %v3249 = vld [vmem:[%s284 + $0x1cd0] sm:$0xff]
        %v3250 = vld [vmem:[%s284 + $0x1cd8] sm:$0xff]
        %v3251 = vld [vmem:[%s284 + $0x1ce0] sm:$0xff]
        %v3252 = vld [vmem:[%s284 + $0x1ce8] sm:$0xff]
        %v3253 = vld [vmem:[%s284 + $0x1cf0] sm:$0xff]
        %v3254 = vld [vmem:[%s284 + $0x1cf8] sm:$0xff]
        %v3255 = vld [vmem:[%s284 + $0x1d00] sm:$0xff]
        %v3256 = vld [vmem:[%s284 + $0x1d08] sm:$0xff]
        %v3257 = vld [vmem:[%s284 + $0x1d10] sm:$0xff]
        %v3258 = vld [vmem:[%s284 + $0x1d18] sm:$0xff]
        %v3259 = vld [vmem:[%s284 + $0x1d20] sm:$0xff]
        %v3260 = vld [vmem:[%s284 + $0x1d28] sm:$0xff]
        %v3261 = vld [vmem:[%s284 + $0x1d30] sm:$0xff]
        %v3262 = vld [vmem:[%s284 + $0x1d38] sm:$0xff]
        %v3263 = vld [vmem:[%s284 + $0x1d40] sm:$0xff]
        %v3264 = vld [vmem:[%s284 + $0x1d48] sm:$0xff]
        %v3265 = vld [vmem:[%s284 + $0x1d50] sm:$0xff]
        %v3266 = vld [vmem:[%s284 + $0x1d58] sm:$0xff]
        %v3267 = vld [vmem:[%s284 + $0x1d60] sm:$0xff]
        %v3268 = vld [vmem:[%s284 + $0x1d68] sm:$0xff]
        %v3269 = vld [vmem:[%s284 + $0x1d70] sm:$0xff]
        %v3270 = vld [vmem:[%s284 + $0x1d78] sm:$0xff]
        %v3271 = vld [vmem:[%s284 + $0x1d80] sm:$0xff]
        %v3272 = vld [vmem:[%s284 + $0x1d88] sm:$0xff]
        %v3273 = vld [vmem:[%s284 + $0x1d90] sm:$0xff]
        %v3274 = vld [vmem:[%s284 + $0x1d98] sm:$0xff]
        %v3275 = vld [vmem:[%s284 + $0x1da0] sm:$0xff]
        %v3276 = vld [vmem:[%s284 + $0x1da8] sm:$0xff]
        %v3277 = vld [vmem:[%s284 + $0x1db0] sm:$0xff]
        %v3278 = vld [vmem:[%s284 + $0x1db8] sm:$0xff]
        %v3279 = vld [vmem:[%s284 + $0x1dc0] sm:$0xff]
        %v3280 = vld [vmem:[%s284 + $0x1dc8] sm:$0xff]
        %v3281 = vld [vmem:[%s284 + $0x1dd0] sm:$0xff]
        %v3282 = vld [vmem:[%s284 + $0x1dd8] sm:$0xff]
        %v3283 = vld [vmem:[%s284 + $0x1de0] sm:$0xff]
        %v3284 = vld [vmem:[%s284 + $0x1de8] sm:$0xff]
        %v3285 = vld [vmem:[%s284 + $0x1df0] sm:$0xff]
        %v3286 = vld [vmem:[%s284 + $0x1df8] sm:$0xff]
        %v3287 = vld [vmem:[%s284 + $0x1e00] sm:$0xff]
        %v3288 = vld [vmem:[%s284 + $0x1e08] sm:$0xff]
        %v3289 = vld [vmem:[%s284 + $0x1e10] sm:$0xff]
        %v3290 = vld [vmem:[%s284 + $0x1e18] sm:$0xff]
        %v3291 = vld [vmem:[%s284 + $0x1e20] sm:$0xff]
        %v3292 = vld [vmem:[%s284 + $0x1e28] sm:$0xff]
        %v3293 = vld [vmem:[%s284 + $0x1e30] sm:$0xff]
        %v3294 = vld [vmem:[%s284 + $0x1e38] sm:$0xff]
        %v3295 = vld [vmem:[%s284 + $0x1e40] sm:$0xff]
        %v3296 = vld [vmem:[%s284 + $0x1e48] sm:$0xff]
        %v3297 = vld [vmem:[%s284 + $0x1e50] sm:$0xff]
        %v3298 = vld [vmem:[%s284 + $0x1e58] sm:$0xff]
        %v3299 = vld [vmem:[%s284 + $0x1e60] sm:$0xff]
        %v3300 = vld [vmem:[%s284 + $0x1e68] sm:$0xff]
        %v3301 = vld [vmem:[%s284 + $0x1e70] sm:$0xff]
        %v3302 = vld [vmem:[%s284 + $0x1e78] sm:$0xff]
        %v3303 = vld [vmem:[%s284 + $0x1e80] sm:$0xff]
        %v3304 = vld [vmem:[%s284 + $0x1e88] sm:$0xff]
        %v3305 = vld [vmem:[%s284 + $0x1e90] sm:$0xff]
        %v3306 = vld [vmem:[%s284 + $0x1e98] sm:$0xff]
        %v3307 = vld [vmem:[%s284 + $0x1ea0] sm:$0xff]
        %v3308 = vld [vmem:[%s284 + $0x1ea8] sm:$0xff]
        %v3309 = vld [vmem:[%s284 + $0x1eb0] sm:$0xff]
        %v3310 = vld [vmem:[%s284 + $0x1eb8] sm:$0xff]
        %v3311 = vld [vmem:[%s284 + $0x1ec0] sm:$0xff]
        %v3312 = vld [vmem:[%s284 + $0x1ec8] sm:$0xff]
        %v3313 = vld [vmem:[%s284 + $0x1ed0] sm:$0xff]
        %v3314 = vld [vmem:[%s284 + $0x1ed8] sm:$0xff]
        %v3315 = vld [vmem:[%s284 + $0x1ee0] sm:$0xff]
        %v3316 = vld [vmem:[%s284 + $0x1ee8] sm:$0xff]
        %v3317 = vld [vmem:[%s284 + $0x1ef0] sm:$0xff]
        %v3318 = vld [vmem:[%s284 + $0x1ef8] sm:$0xff]
        %v3319 = vld [vmem:[%s284 + $0x1f00] sm:$0xff]
        %v3320 = vld [vmem:[%s284 + $0x1f08] sm:$0xff]
        %v3321 = vld [vmem:[%s284 + $0x1f10] sm:$0xff]
        %v3322 = vld [vmem:[%s284 + $0x1f18] sm:$0xff]
        %v3323 = vld [vmem:[%s284 + $0x1f20] sm:$0xff]
        %v3324 = vld [vmem:[%s284 + $0x1f28] sm:$0xff]
        %v3325 = vld [vmem:[%s284 + $0x1f30] sm:$0xff]
        %v3326 = vld [vmem:[%s284 + $0x1f38] sm:$0xff]
        %v3327 = vld [vmem:[%s284 + $0x1f40] sm:$0xff]
        %v3328 = vld [vmem:[%s284 + $0x1f48] sm:$0xff]
        %v3329 = vld [vmem:[%s284 + $0x1f50] sm:$0xff]
        %v3330 = vld [vmem:[%s284 + $0x1f58] sm:$0xff]
        %v3331 = vld [vmem:[%s284 + $0x1f60] sm:$0xff]
        %v3332 = vld [vmem:[%s284 + $0x1f68] sm:$0xff]
        %v3333 = vld [vmem:[%s284 + $0x1f70] sm:$0xff]
        %v3334 = vld [vmem:[%s284 + $0x1f78] sm:$0xff]
        %v3335 = vld [vmem:[%s284 + $0x1f80] sm:$0xff]
        %v3336 = vld [vmem:[%s284 + $0x1f88] sm:$0xff]
        %v3337 = vld [vmem:[%s284 + $0x1f90] sm:$0xff]
        %v3338 = vld [vmem:[%s284 + $0x1f98] sm:$0xff]
        %v3339 = vld [vmem:[%s284 + $0x1fa0] sm:$0xff]
        %v3340 = vld [vmem:[%s284 + $0x1fa8] sm:$0xff]
        %v3341 = vld [vmem:[%s284 + $0x1fb0] sm:$0xff]
        %v3342 = vld [vmem:[%s284 + $0x1fb8] sm:$0xff]
        %v3343 = vld [vmem:[%s284 + $0x1fc0] sm:$0xff]
        %v3344 = vld [vmem:[%s284 + $0x1fc8] sm:$0xff]
        %v3345 = vld [vmem:[%s284 + $0x1fd0] sm:$0xff]
        %v3346 = vld [vmem:[%s284 + $0x1fd8] sm:$0xff]
        %v3347 = vld [vmem:[%s284 + $0x1fe0] sm:$0xff]
        %v3348 = vld [vmem:[%s284 + $0x1fe8] sm:$0xff]
        %v3349 = vld [vmem:[%s284 + $0x1ff0] sm:$0xff]
        %v3350 = vld [vmem:[%s284 + $0x1ff8] sm:$0xff]
        %v4375 = vunpack.c.l.b16 %v2327
        %v4376 = vunpack.c.h.b16 %v2327
        %v4377 = vunpack.c.l.b16 %v2328
        %v4378 = vunpack.c.h.b16 %v2328
        %v4379 = vunpack.c.l.b16 %v2329
        %v4380 = vunpack.c.h.b16 %v2329
        %v4381 = vunpack.c.l.b16 %v2330
        %v4382 = vunpack.c.h.b16 %v2330
        %v4383 = vunpack.c.l.b16 %v2331
        %v4384 = vunpack.c.h.b16 %v2331
        %v4385 = vunpack.c.l.b16 %v2332
        %v4386 = vunpack.c.h.b16 %v2332
        %v4387 = vunpack.c.l.b16 %v2333
        %v4388 = vunpack.c.h.b16 %v2333
        %v4389 = vunpack.c.l.b16 %v2334
        %v4390 = vunpack.c.h.b16 %v2334
        %v4391 = vunpack.c.l.b16 %v2335
        %v4392 = vunpack.c.h.b16 %v2335
        %v4393 = vunpack.c.l.b16 %v2336
        %v4394 = vunpack.c.h.b16 %v2336
        %v4395 = vunpack.c.l.b16 %v2337
        %v4396 = vunpack.c.h.b16 %v2337
        %v4397 = vunpack.c.l.b16 %v2338
        %v4398 = vunpack.c.h.b16 %v2338
        %v4399 = vunpack.c.l.b16 %v2339
        %v4400 = vunpack.c.h.b16 %v2339
        %v4401 = vunpack.c.l.b16 %v2340
        %v4402 = vunpack.c.h.b16 %v2340
        %v4403 = vunpack.c.l.b16 %v2341
        %v4404 = vunpack.c.h.b16 %v2341
        %v4405 = vunpack.c.l.b16 %v2342
        %v4406 = vunpack.c.h.b16 %v2342
        %v4407 = vunpack.c.l.b16 %v2343
        %v4408 = vunpack.c.h.b16 %v2343
        %v4409 = vunpack.c.l.b16 %v2344
        %v4410 = vunpack.c.h.b16 %v2344
        %v4411 = vunpack.c.l.b16 %v2345
        %v4412 = vunpack.c.h.b16 %v2345
        %v4413 = vunpack.c.l.b16 %v2346
        %v4414 = vunpack.c.h.b16 %v2346
        %v4415 = vunpack.c.l.b16 %v2347
        %v4416 = vunpack.c.h.b16 %v2347
        %v4417 = vunpack.c.l.b16 %v2348
        %v4418 = vunpack.c.h.b16 %v2348
        %v4419 = vunpack.c.l.b16 %v2349
        %v4420 = vunpack.c.h.b16 %v2349
        %v4421 = vunpack.c.l.b16 %v2350
        %v4422 = vunpack.c.h.b16 %v2350
        %v4423 = vunpack.c.l.b16 %v2351
        %v4424 = vunpack.c.h.b16 %v2351
        %v4425 = vunpack.c.l.b16 %v2352
        %v4426 = vunpack.c.h.b16 %v2352
        %v4427 = vunpack.c.l.b16 %v2353
        %v4428 = vunpack.c.h.b16 %v2353
        %v4429 = vunpack.c.l.b16 %v2354
        %v4430 = vunpack.c.h.b16 %v2354
        %v4431 = vunpack.c.l.b16 %v2355
        %v4432 = vunpack.c.h.b16 %v2355
        %v4433 = vunpack.c.l.b16 %v2356
        %v4434 = vunpack.c.h.b16 %v2356
        %v4435 = vunpack.c.l.b16 %v2357
        %v4436 = vunpack.c.h.b16 %v2357
        %v4437 = vunpack.c.l.b16 %v2358
        %v4438 = vunpack.c.h.b16 %v2358
        %v4439 = vunpack.c.l.b16 %v2359
        %v4440 = vunpack.c.h.b16 %v2359
        %v4441 = vunpack.c.l.b16 %v2360
        %v4442 = vunpack.c.h.b16 %v2360
        %v4443 = vunpack.c.l.b16 %v2361
        %v4444 = vunpack.c.h.b16 %v2361
        %v4445 = vunpack.c.l.b16 %v2362
        %v4446 = vunpack.c.h.b16 %v2362
        %v4447 = vunpack.c.l.b16 %v2363
        %v4448 = vunpack.c.h.b16 %v2363
        %v4449 = vunpack.c.l.b16 %v2364
        %v4450 = vunpack.c.h.b16 %v2364
        %v4451 = vunpack.c.l.b16 %v2365
        %v4452 = vunpack.c.h.b16 %v2365
        %v4453 = vunpack.c.l.b16 %v2366
        %v4454 = vunpack.c.h.b16 %v2366
        %v4455 = vunpack.c.l.b16 %v2367
        %v4456 = vunpack.c.h.b16 %v2367
        %v4457 = vunpack.c.l.b16 %v2368
        %v4458 = vunpack.c.h.b16 %v2368
        %v4459 = vunpack.c.l.b16 %v2369
        %v4460 = vunpack.c.h.b16 %v2369
        %v4461 = vunpack.c.l.b16 %v2370
        %v4462 = vunpack.c.h.b16 %v2370
        %v4463 = vunpack.c.l.b16 %v2371
        %v4464 = vunpack.c.h.b16 %v2371
        %v4465 = vunpack.c.l.b16 %v2372
        %v4466 = vunpack.c.h.b16 %v2372
        %v4467 = vunpack.c.l.b16 %v2373
        %v4468 = vunpack.c.h.b16 %v2373
        %v4469 = vunpack.c.l.b16 %v2374
        %v4470 = vunpack.c.h.b16 %v2374
        %v4471 = vunpack.c.l.b16 %v2375
        %v4472 = vunpack.c.h.b16 %v2375
        %v4473 = vunpack.c.l.b16 %v2376
        %v4474 = vunpack.c.h.b16 %v2376
        %v4475 = vunpack.c.l.b16 %v2377
        %v4476 = vunpack.c.h.b16 %v2377
        %v4477 = vunpack.c.l.b16 %v2378
        %v4478 = vunpack.c.h.b16 %v2378
        %v4479 = vunpack.c.l.b16 %v2379
        %v4480 = vunpack.c.h.b16 %v2379
        %v4481 = vunpack.c.l.b16 %v2380
        %v4482 = vunpack.c.h.b16 %v2380
        %v4483 = vunpack.c.l.b16 %v2381
        %v4484 = vunpack.c.h.b16 %v2381
        %v4485 = vunpack.c.l.b16 %v2382
        %v4486 = vunpack.c.h.b16 %v2382
        %v4487 = vunpack.c.l.b16 %v2383
        %v4488 = vunpack.c.h.b16 %v2383
        %v4489 = vunpack.c.l.b16 %v2384
        %v4490 = vunpack.c.h.b16 %v2384
        %v4491 = vunpack.c.l.b16 %v2385
        %v4492 = vunpack.c.h.b16 %v2385
        %v4493 = vunpack.c.l.b16 %v2386
        %v4494 = vunpack.c.h.b16 %v2386
        %v4495 = vunpack.c.l.b16 %v2387
        %v4496 = vunpack.c.h.b16 %v2387
        %v4497 = vunpack.c.l.b16 %v2388
        %v4498 = vunpack.c.h.b16 %v2388
        %v4499 = vunpack.c.l.b16 %v2389
        %v4500 = vunpack.c.h.b16 %v2389
        %v4501 = vunpack.c.l.b16 %v2390
        %v4502 = vunpack.c.h.b16 %v2390
        %v4503 = vunpack.c.l.b16 %v2391
        %v4504 = vunpack.c.h.b16 %v2391
        %v4505 = vunpack.c.l.b16 %v2392
        %v4506 = vunpack.c.h.b16 %v2392
        %v4507 = vunpack.c.l.b16 %v2393
        %v4508 = vunpack.c.h.b16 %v2393
        %v4509 = vunpack.c.l.b16 %v2394
        %v4510 = vunpack.c.h.b16 %v2394
        %v4511 = vunpack.c.l.b16 %v2395
        %v4512 = vunpack.c.h.b16 %v2395
        %v4513 = vunpack.c.l.b16 %v2396
        %v4514 = vunpack.c.h.b16 %v2396
        %v4515 = vunpack.c.l.b16 %v2397
        %v4516 = vunpack.c.h.b16 %v2397
        %v4517 = vunpack.c.l.b16 %v2398
        %v4518 = vunpack.c.h.b16 %v2398
        %v4519 = vunpack.c.l.b16 %v2399
        %v4520 = vunpack.c.h.b16 %v2399
        %v4521 = vunpack.c.l.b16 %v2400
        %v4522 = vunpack.c.h.b16 %v2400
        %v4523 = vunpack.c.l.b16 %v2401
        %v4524 = vunpack.c.h.b16 %v2401
        %v4525 = vunpack.c.l.b16 %v2402
        %v4526 = vunpack.c.h.b16 %v2402
        %v4527 = vunpack.c.l.b16 %v2403
        %v4528 = vunpack.c.h.b16 %v2403
        %v4529 = vunpack.c.l.b16 %v2404
        %v4530 = vunpack.c.h.b16 %v2404
        %v4531 = vunpack.c.l.b16 %v2405
        %v4532 = vunpack.c.h.b16 %v2405
        %v4533 = vunpack.c.l.b16 %v2406
        %v4534 = vunpack.c.h.b16 %v2406
        %v4535 = vunpack.c.l.b16 %v2407
        %v4536 = vunpack.c.h.b16 %v2407
        %v4537 = vunpack.c.l.b16 %v2408
        %v4538 = vunpack.c.h.b16 %v2408
        %v4539 = vunpack.c.l.b16 %v2409
        %v4540 = vunpack.c.h.b16 %v2409
        %v4541 = vunpack.c.l.b16 %v2410
        %v4542 = vunpack.c.h.b16 %v2410
        %v4543 = vunpack.c.l.b16 %v2411
        %v4544 = vunpack.c.h.b16 %v2411
        %v4545 = vunpack.c.l.b16 %v2412
        %v4546 = vunpack.c.h.b16 %v2412
        %v4547 = vunpack.c.l.b16 %v2413
        %v4548 = vunpack.c.h.b16 %v2413
        %v4549 = vunpack.c.l.b16 %v2414
        %v4550 = vunpack.c.h.b16 %v2414
        %v4551 = vunpack.c.l.b16 %v2415
        %v4552 = vunpack.c.h.b16 %v2415
        %v4553 = vunpack.c.l.b16 %v2416
        %v4554 = vunpack.c.h.b16 %v2416
        %v4555 = vunpack.c.l.b16 %v2417
        %v4556 = vunpack.c.h.b16 %v2417
        %v4557 = vunpack.c.l.b16 %v2418
        %v4558 = vunpack.c.h.b16 %v2418
        %v4559 = vunpack.c.l.b16 %v2419
        %v4560 = vunpack.c.h.b16 %v2419
        %v4561 = vunpack.c.l.b16 %v2420
        %v4562 = vunpack.c.h.b16 %v2420
        %v4563 = vunpack.c.l.b16 %v2421
        %v4564 = vunpack.c.h.b16 %v2421
        %v4565 = vunpack.c.l.b16 %v2422
        %v4566 = vunpack.c.h.b16 %v2422
        %v4567 = vunpack.c.l.b16 %v2423
        %v4568 = vunpack.c.h.b16 %v2423
        %v4569 = vunpack.c.l.b16 %v2424
        %v4570 = vunpack.c.h.b16 %v2424
        %v4571 = vunpack.c.l.b16 %v2425
        %v4572 = vunpack.c.h.b16 %v2425
        %v4573 = vunpack.c.l.b16 %v2426
        %v4574 = vunpack.c.h.b16 %v2426
        %v4575 = vunpack.c.l.b16 %v2427
        %v4576 = vunpack.c.h.b16 %v2427
        %v4577 = vunpack.c.l.b16 %v2428
        %v4578 = vunpack.c.h.b16 %v2428
        %v4579 = vunpack.c.l.b16 %v2429
        %v4580 = vunpack.c.h.b16 %v2429
        %v4581 = vunpack.c.l.b16 %v2430
        %v4582 = vunpack.c.h.b16 %v2430
        %v4583 = vunpack.c.l.b16 %v2431
        %v4584 = vunpack.c.h.b16 %v2431
        %v4585 = vunpack.c.l.b16 %v2432
        %v4586 = vunpack.c.h.b16 %v2432
        %v4587 = vunpack.c.l.b16 %v2433
        %v4588 = vunpack.c.h.b16 %v2433
        %v4589 = vunpack.c.l.b16 %v2434
        %v4590 = vunpack.c.h.b16 %v2434
        %v4591 = vunpack.c.l.b16 %v2435
        %v4592 = vunpack.c.h.b16 %v2435
        %v4593 = vunpack.c.l.b16 %v2436
        %v4594 = vunpack.c.h.b16 %v2436
        %v4595 = vunpack.c.l.b16 %v2437
        %v4596 = vunpack.c.h.b16 %v2437
        %v4597 = vunpack.c.l.b16 %v2438
        %v4598 = vunpack.c.h.b16 %v2438
        %v4599 = vunpack.c.l.b16 %v2439
        %v4600 = vunpack.c.h.b16 %v2439
        %v4601 = vunpack.c.l.b16 %v2440
        %v4602 = vunpack.c.h.b16 %v2440
        %v4603 = vunpack.c.l.b16 %v2441
        %v4604 = vunpack.c.h.b16 %v2441
        %v4605 = vunpack.c.l.b16 %v2442
        %v4606 = vunpack.c.h.b16 %v2442
        %v4607 = vunpack.c.l.b16 %v2443
        %v4608 = vunpack.c.h.b16 %v2443
        %v4609 = vunpack.c.l.b16 %v2444
        %v4610 = vunpack.c.h.b16 %v2444
        %v4611 = vunpack.c.l.b16 %v2445
        %v4612 = vunpack.c.h.b16 %v2445
        %v4613 = vunpack.c.l.b16 %v2446
        %v4614 = vunpack.c.h.b16 %v2446
        %v4615 = vunpack.c.l.b16 %v2447
        %v4616 = vunpack.c.h.b16 %v2447
        %v4617 = vunpack.c.l.b16 %v2448
        %v4618 = vunpack.c.h.b16 %v2448
        %v4619 = vunpack.c.l.b16 %v2449
        %v4620 = vunpack.c.h.b16 %v2449
        %v4621 = vunpack.c.l.b16 %v2450
        %v4622 = vunpack.c.h.b16 %v2450
        %v4623 = vunpack.c.l.b16 %v2451
        %v4624 = vunpack.c.h.b16 %v2451
        %v4625 = vunpack.c.l.b16 %v2452
        %v4626 = vunpack.c.h.b16 %v2452
        %v4627 = vunpack.c.l.b16 %v2453
        %v4628 = vunpack.c.h.b16 %v2453
        %v4629 = vunpack.c.l.b16 %v2454
        %v4630 = vunpack.c.h.b16 %v2454
        %v4631 = vunpack.c.l.b16 %v2455
        %v4632 = vunpack.c.h.b16 %v2455
        %v4633 = vunpack.c.l.b16 %v2456
        %v4634 = vunpack.c.h.b16 %v2456
        %v4635 = vunpack.c.l.b16 %v2457
        %v4636 = vunpack.c.h.b16 %v2457
        %v4637 = vunpack.c.l.b16 %v2458
        %v4638 = vunpack.c.h.b16 %v2458
        %v4639 = vunpack.c.l.b16 %v2459
        %v4640 = vunpack.c.h.b16 %v2459
        %v4641 = vunpack.c.l.b16 %v2460
        %v4642 = vunpack.c.h.b16 %v2460
        %v4643 = vunpack.c.l.b16 %v2461
        %v4644 = vunpack.c.h.b16 %v2461
        %v4645 = vunpack.c.l.b16 %v2462
        %v4646 = vunpack.c.h.b16 %v2462
        %v4647 = vunpack.c.l.b16 %v2463
        %v4648 = vunpack.c.h.b16 %v2463
        %v4649 = vunpack.c.l.b16 %v2464
        %v4650 = vunpack.c.h.b16 %v2464
        %v4651 = vunpack.c.l.b16 %v2465
        %v4652 = vunpack.c.h.b16 %v2465
        %v4653 = vunpack.c.l.b16 %v2466
        %v4654 = vunpack.c.h.b16 %v2466
        %v4655 = vunpack.c.l.b16 %v2467
        %v4656 = vunpack.c.h.b16 %v2467
        %v4657 = vunpack.c.l.b16 %v2468
        %v4658 = vunpack.c.h.b16 %v2468
        %v4659 = vunpack.c.l.b16 %v2469
        %v4660 = vunpack.c.h.b16 %v2469
        %v4661 = vunpack.c.l.b16 %v2470
        %v4662 = vunpack.c.h.b16 %v2470
        %v4663 = vunpack.c.l.b16 %v2471
        %v4664 = vunpack.c.h.b16 %v2471
        %v4665 = vunpack.c.l.b16 %v2472
        %v4666 = vunpack.c.h.b16 %v2472
        %v4667 = vunpack.c.l.b16 %v2473
        %v4668 = vunpack.c.h.b16 %v2473
        %v4669 = vunpack.c.l.b16 %v2474
        %v4670 = vunpack.c.h.b16 %v2474
        %v4671 = vunpack.c.l.b16 %v2475
        %v4672 = vunpack.c.h.b16 %v2475
        %v4673 = vunpack.c.l.b16 %v2476
        %v4674 = vunpack.c.h.b16 %v2476
        %v4675 = vunpack.c.l.b16 %v2477
        %v4676 = vunpack.c.h.b16 %v2477
        %v4677 = vunpack.c.l.b16 %v2478
        %v4678 = vunpack.c.h.b16 %v2478
        %v4679 = vunpack.c.l.b16 %v2479
        %v4680 = vunpack.c.h.b16 %v2479
        %v4681 = vunpack.c.l.b16 %v2480
        %v4682 = vunpack.c.h.b16 %v2480
        %v4683 = vunpack.c.l.b16 %v2481
        %v4684 = vunpack.c.h.b16 %v2481
        %v4685 = vunpack.c.l.b16 %v2482
        %v4686 = vunpack.c.h.b16 %v2482
        %v4687 = vunpack.c.l.b16 %v2483
        %v4688 = vunpack.c.h.b16 %v2483
        %v4689 = vunpack.c.l.b16 %v2484
        %v4690 = vunpack.c.h.b16 %v2484
        %v4691 = vunpack.c.l.b16 %v2485
        %v4692 = vunpack.c.h.b16 %v2485
        %v4693 = vunpack.c.l.b16 %v2486
        %v4694 = vunpack.c.h.b16 %v2486
        %v4695 = vunpack.c.l.b16 %v2487
        %v4696 = vunpack.c.h.b16 %v2487
        %v4697 = vunpack.c.l.b16 %v2488
        %v4698 = vunpack.c.h.b16 %v2488
        %v4699 = vunpack.c.l.b16 %v2489
        %v4700 = vunpack.c.h.b16 %v2489
        %v4701 = vunpack.c.l.b16 %v2490
        %v4702 = vunpack.c.h.b16 %v2490
        %v4703 = vunpack.c.l.b16 %v2491
        %v4704 = vunpack.c.h.b16 %v2491
        %v4705 = vunpack.c.l.b16 %v2492
        %v4706 = vunpack.c.h.b16 %v2492
        %v4707 = vunpack.c.l.b16 %v2493
        %v4708 = vunpack.c.h.b16 %v2493
        %v4709 = vunpack.c.l.b16 %v2494
        %v4710 = vunpack.c.h.b16 %v2494
        %v4711 = vunpack.c.l.b16 %v2495
        %v4712 = vunpack.c.h.b16 %v2495
        %v4713 = vunpack.c.l.b16 %v2496
        %v4714 = vunpack.c.h.b16 %v2496
        %v4715 = vunpack.c.l.b16 %v2497
        %v4716 = vunpack.c.h.b16 %v2497
        %v4717 = vunpack.c.l.b16 %v2498
        %v4718 = vunpack.c.h.b16 %v2498
        %v4719 = vunpack.c.l.b16 %v2499
        %v4720 = vunpack.c.h.b16 %v2499
        %v4721 = vunpack.c.l.b16 %v2500
        %v4722 = vunpack.c.h.b16 %v2500
        %v4723 = vunpack.c.l.b16 %v2501
        %v4724 = vunpack.c.h.b16 %v2501
        %v4725 = vunpack.c.l.b16 %v2502
        %v4726 = vunpack.c.h.b16 %v2502
        %v4727 = vunpack.c.l.b16 %v2503
        %v4728 = vunpack.c.h.b16 %v2503
        %v4729 = vunpack.c.l.b16 %v2504
        %v4730 = vunpack.c.h.b16 %v2504
        %v4731 = vunpack.c.l.b16 %v2505
        %v4732 = vunpack.c.h.b16 %v2505
        %v4733 = vunpack.c.l.b16 %v2506
        %v4734 = vunpack.c.h.b16 %v2506
        %v4735 = vunpack.c.l.b16 %v2507
        %v4736 = vunpack.c.h.b16 %v2507
        %v4737 = vunpack.c.l.b16 %v2508
        %v4738 = vunpack.c.h.b16 %v2508
        %v4739 = vunpack.c.l.b16 %v2509
        %v4740 = vunpack.c.h.b16 %v2509
        %v4741 = vunpack.c.l.b16 %v2510
        %v4742 = vunpack.c.h.b16 %v2510
        %v4743 = vunpack.c.l.b16 %v2511
        %v4744 = vunpack.c.h.b16 %v2511
        %v4745 = vunpack.c.l.b16 %v2512
        %v4746 = vunpack.c.h.b16 %v2512
        %v4747 = vunpack.c.l.b16 %v2513
        %v4748 = vunpack.c.h.b16 %v2513
        %v4749 = vunpack.c.l.b16 %v2514
        %v4750 = vunpack.c.h.b16 %v2514
        %v4751 = vunpack.c.l.b16 %v2515
        %v4752 = vunpack.c.h.b16 %v2515
        %v4753 = vunpack.c.l.b16 %v2516
        %v4754 = vunpack.c.h.b16 %v2516
        %v4755 = vunpack.c.l.b16 %v2517
        %v4756 = vunpack.c.h.b16 %v2517
        %v4757 = vunpack.c.l.b16 %v2518
        %v4758 = vunpack.c.h.b16 %v2518
        %v4759 = vunpack.c.l.b16 %v2519
        %v4760 = vunpack.c.h.b16 %v2519
        %v4761 = vunpack.c.l.b16 %v2520
        %v4762 = vunpack.c.h.b16 %v2520
        %v4763 = vunpack.c.l.b16 %v2521
        %v4764 = vunpack.c.h.b16 %v2521
        %v4765 = vunpack.c.l.b16 %v2522
        %v4766 = vunpack.c.h.b16 %v2522
        %v4767 = vunpack.c.l.b16 %v2523
        %v4768 = vunpack.c.h.b16 %v2523
        %v4769 = vunpack.c.l.b16 %v2524
        %v4770 = vunpack.c.h.b16 %v2524
        %v4771 = vunpack.c.l.b16 %v2525
        %v4772 = vunpack.c.h.b16 %v2525
        %v4773 = vunpack.c.l.b16 %v2526
        %v4774 = vunpack.c.h.b16 %v2526
        %v4775 = vunpack.c.l.b16 %v2527
        %v4776 = vunpack.c.h.b16 %v2527
        %v4777 = vunpack.c.l.b16 %v2528
        %v4778 = vunpack.c.h.b16 %v2528
        %v4779 = vunpack.c.l.b16 %v2529
        %v4780 = vunpack.c.h.b16 %v2529
        %v4781 = vunpack.c.l.b16 %v2530
        %v4782 = vunpack.c.h.b16 %v2530
        %v4783 = vunpack.c.l.b16 %v2531
        %v4784 = vunpack.c.h.b16 %v2531
        %v4785 = vunpack.c.l.b16 %v2532
        %v4786 = vunpack.c.h.b16 %v2532
        %v4787 = vunpack.c.l.b16 %v2533
        %v4788 = vunpack.c.h.b16 %v2533
        %v4789 = vunpack.c.l.b16 %v2534
        %v4790 = vunpack.c.h.b16 %v2534
        %v4791 = vunpack.c.l.b16 %v2535
        %v4792 = vunpack.c.h.b16 %v2535
        %v4793 = vunpack.c.l.b16 %v2536
        %v4794 = vunpack.c.h.b16 %v2536
        %v4795 = vunpack.c.l.b16 %v2537
        %v4796 = vunpack.c.h.b16 %v2537
        %v4797 = vunpack.c.l.b16 %v2538
        %v4798 = vunpack.c.h.b16 %v2538
        %v4799 = vunpack.c.l.b16 %v2539
        %v4800 = vunpack.c.h.b16 %v2539
        %v4801 = vunpack.c.l.b16 %v2540
        %v4802 = vunpack.c.h.b16 %v2540
        %v4803 = vunpack.c.l.b16 %v2541
        %v4804 = vunpack.c.h.b16 %v2541
        %v4805 = vunpack.c.l.b16 %v2542
        %v4806 = vunpack.c.h.b16 %v2542
        %v4807 = vunpack.c.l.b16 %v2543
        %v4808 = vunpack.c.h.b16 %v2543
        %v4809 = vunpack.c.l.b16 %v2544
        %v4810 = vunpack.c.h.b16 %v2544
        %v4811 = vunpack.c.l.b16 %v2545
        %v4812 = vunpack.c.h.b16 %v2545
        %v4813 = vunpack.c.l.b16 %v2546
        %v4814 = vunpack.c.h.b16 %v2546
        %v4815 = vunpack.c.l.b16 %v2547
        %v4816 = vunpack.c.h.b16 %v2547
        %v4817 = vunpack.c.l.b16 %v2548
        %v4818 = vunpack.c.h.b16 %v2548
        %v4819 = vunpack.c.l.b16 %v2549
        %v4820 = vunpack.c.h.b16 %v2549
        %v4821 = vunpack.c.l.b16 %v2550
        %v4822 = vunpack.c.h.b16 %v2550
        %v4823 = vunpack.c.l.b16 %v2551
        %v4824 = vunpack.c.h.b16 %v2551
        %v4825 = vunpack.c.l.b16 %v2552
        %v4826 = vunpack.c.h.b16 %v2552
        %v4827 = vunpack.c.l.b16 %v2553
        %v4828 = vunpack.c.h.b16 %v2553
        %v4829 = vunpack.c.l.b16 %v2554
        %v4830 = vunpack.c.h.b16 %v2554
        %v4831 = vunpack.c.l.b16 %v2555
        %v4832 = vunpack.c.h.b16 %v2555
        %v4833 = vunpack.c.l.b16 %v2556
        %v4834 = vunpack.c.h.b16 %v2556
        %v4835 = vunpack.c.l.b16 %v2557
        %v4836 = vunpack.c.h.b16 %v2557
        %v4837 = vunpack.c.l.b16 %v2558
        %v4838 = vunpack.c.h.b16 %v2558
        %v4839 = vunpack.c.l.b16 %v2559
        %v4840 = vunpack.c.h.b16 %v2559
        %v4841 = vunpack.c.l.b16 %v2560
        %v4842 = vunpack.c.h.b16 %v2560
        %v4843 = vunpack.c.l.b16 %v2561
        %v4844 = vunpack.c.h.b16 %v2561
        %v4845 = vunpack.c.l.b16 %v2562
        %v4846 = vunpack.c.h.b16 %v2562
        %v4847 = vunpack.c.l.b16 %v2563
        %v4848 = vunpack.c.h.b16 %v2563
        %v4849 = vunpack.c.l.b16 %v2564
        %v4850 = vunpack.c.h.b16 %v2564
        %v4851 = vunpack.c.l.b16 %v2565
        %v4852 = vunpack.c.h.b16 %v2565
        %v4853 = vunpack.c.l.b16 %v2566
        %v4854 = vunpack.c.h.b16 %v2566
        %v4855 = vunpack.c.l.b16 %v2567
        %v4856 = vunpack.c.h.b16 %v2567
        %v4857 = vunpack.c.l.b16 %v2568
        %v4858 = vunpack.c.h.b16 %v2568
        %v4859 = vunpack.c.l.b16 %v2569
        %v4860 = vunpack.c.h.b16 %v2569
        %v4861 = vunpack.c.l.b16 %v2570
        %v4862 = vunpack.c.h.b16 %v2570
        %v4863 = vunpack.c.l.b16 %v2571
        %v4864 = vunpack.c.h.b16 %v2571
        %v4865 = vunpack.c.l.b16 %v2572
        %v4866 = vunpack.c.h.b16 %v2572
        %v4867 = vunpack.c.l.b16 %v2573
        %v4868 = vunpack.c.h.b16 %v2573
        %v4869 = vunpack.c.l.b16 %v2574
        %v4870 = vunpack.c.h.b16 %v2574
        %v4871 = vunpack.c.l.b16 %v2575
        %v4872 = vunpack.c.h.b16 %v2575
        %v4873 = vunpack.c.l.b16 %v2576
        %v4874 = vunpack.c.h.b16 %v2576
        %v4875 = vunpack.c.l.b16 %v2577
        %v4876 = vunpack.c.h.b16 %v2577
        %v4877 = vunpack.c.l.b16 %v2578
        %v4878 = vunpack.c.h.b16 %v2578
        %v4879 = vunpack.c.l.b16 %v2579
        %v4880 = vunpack.c.h.b16 %v2579
        %v4881 = vunpack.c.l.b16 %v2580
        %v4882 = vunpack.c.h.b16 %v2580
        %v4883 = vunpack.c.l.b16 %v2581
        %v4884 = vunpack.c.h.b16 %v2581
        %v4885 = vunpack.c.l.b16 %v2582
        %v4886 = vunpack.c.h.b16 %v2582
        %v4887 = vunpack.c.l.b16 %v2583
        %v4888 = vunpack.c.h.b16 %v2583
        %v4889 = vunpack.c.l.b16 %v2584
        %v4890 = vunpack.c.h.b16 %v2584
        %v4891 = vunpack.c.l.b16 %v2585
        %v4892 = vunpack.c.h.b16 %v2585
        %v4893 = vunpack.c.l.b16 %v2586
        %v4894 = vunpack.c.h.b16 %v2586
        %v4895 = vunpack.c.l.b16 %v2587
        %v4896 = vunpack.c.h.b16 %v2587
        %v4897 = vunpack.c.l.b16 %v2588
        %v4898 = vunpack.c.h.b16 %v2588
        %v4899 = vunpack.c.l.b16 %v2589
        %v4900 = vunpack.c.h.b16 %v2589
        %v4901 = vunpack.c.l.b16 %v2590
        %v4902 = vunpack.c.h.b16 %v2590
        %v4903 = vunpack.c.l.b16 %v2591
        %v4904 = vunpack.c.h.b16 %v2591
        %v4905 = vunpack.c.l.b16 %v2592
        %v4906 = vunpack.c.h.b16 %v2592
        %v4907 = vunpack.c.l.b16 %v2593
        %v4908 = vunpack.c.h.b16 %v2593
        %v4909 = vunpack.c.l.b16 %v2594
        %v4910 = vunpack.c.h.b16 %v2594
        %v4911 = vunpack.c.l.b16 %v2595
        %v4912 = vunpack.c.h.b16 %v2595
        %v4913 = vunpack.c.l.b16 %v2596
        %v4914 = vunpack.c.h.b16 %v2596
        %v4915 = vunpack.c.l.b16 %v2597
        %v4916 = vunpack.c.h.b16 %v2597
        %v4917 = vunpack.c.l.b16 %v2598
        %v4918 = vunpack.c.h.b16 %v2598
        %v4919 = vunpack.c.l.b16 %v2599
        %v4920 = vunpack.c.h.b16 %v2599
        %v4921 = vunpack.c.l.b16 %v2600
        %v4922 = vunpack.c.h.b16 %v2600
        %v4923 = vunpack.c.l.b16 %v2601
        %v4924 = vunpack.c.h.b16 %v2601
        %v4925 = vunpack.c.l.b16 %v2602
        %v4926 = vunpack.c.h.b16 %v2602
        %v4927 = vunpack.c.l.b16 %v2603
        %v4928 = vunpack.c.h.b16 %v2603
        %v4929 = vunpack.c.l.b16 %v2604
        %v4930 = vunpack.c.h.b16 %v2604
        %v4931 = vunpack.c.l.b16 %v2605
        %v4932 = vunpack.c.h.b16 %v2605
        %v4933 = vunpack.c.l.b16 %v2606
        %v4934 = vunpack.c.h.b16 %v2606
        %v4935 = vunpack.c.l.b16 %v2607
        %v4936 = vunpack.c.h.b16 %v2607
        %v4937 = vunpack.c.l.b16 %v2608
        %v4938 = vunpack.c.h.b16 %v2608
        %v4939 = vunpack.c.l.b16 %v2609
        %v4940 = vunpack.c.h.b16 %v2609
        %v4941 = vunpack.c.l.b16 %v2610
        %v4942 = vunpack.c.h.b16 %v2610
        %v4943 = vunpack.c.l.b16 %v2611
        %v4944 = vunpack.c.h.b16 %v2611
        %v4945 = vunpack.c.l.b16 %v2612
        %v4946 = vunpack.c.h.b16 %v2612
        %v4947 = vunpack.c.l.b16 %v2613
        %v4948 = vunpack.c.h.b16 %v2613
        %v4949 = vunpack.c.l.b16 %v2614
        %v4950 = vunpack.c.h.b16 %v2614
        %v4951 = vunpack.c.l.b16 %v2615
        %v4952 = vunpack.c.h.b16 %v2615
        %v4953 = vunpack.c.l.b16 %v2616
        %v4954 = vunpack.c.h.b16 %v2616
        %v4955 = vunpack.c.l.b16 %v2617
        %v4956 = vunpack.c.h.b16 %v2617
        %v4957 = vunpack.c.l.b16 %v2618
        %v4958 = vunpack.c.h.b16 %v2618
        %v4959 = vunpack.c.l.b16 %v2619
        %v4960 = vunpack.c.h.b16 %v2619
        %v4961 = vunpack.c.l.b16 %v2620
        %v4962 = vunpack.c.h.b16 %v2620
        %v4963 = vunpack.c.l.b16 %v2621
        %v4964 = vunpack.c.h.b16 %v2621
        %v4965 = vunpack.c.l.b16 %v2622
        %v4966 = vunpack.c.h.b16 %v2622
        %v4967 = vunpack.c.l.b16 %v2623
        %v4968 = vunpack.c.h.b16 %v2623
        %v4969 = vunpack.c.l.b16 %v2624
        %v4970 = vunpack.c.h.b16 %v2624
        %v4971 = vunpack.c.l.b16 %v2625
        %v4972 = vunpack.c.h.b16 %v2625
        %v4973 = vunpack.c.l.b16 %v2626
        %v4974 = vunpack.c.h.b16 %v2626
        %v4975 = vunpack.c.l.b16 %v2627
        %v4976 = vunpack.c.h.b16 %v2627
        %v4977 = vunpack.c.l.b16 %v2628
        %v4978 = vunpack.c.h.b16 %v2628
        %v4979 = vunpack.c.l.b16 %v2629
        %v4980 = vunpack.c.h.b16 %v2629
        %v4981 = vunpack.c.l.b16 %v2630
        %v4982 = vunpack.c.h.b16 %v2630
        %v4983 = vunpack.c.l.b16 %v2631
        %v4984 = vunpack.c.h.b16 %v2631
        %v4985 = vunpack.c.l.b16 %v2632
        %v4986 = vunpack.c.h.b16 %v2632
        %v4987 = vunpack.c.l.b16 %v2633
        %v4988 = vunpack.c.h.b16 %v2633
        %v4989 = vunpack.c.l.b16 %v2634
        %v4990 = vunpack.c.h.b16 %v2634
        %v4991 = vunpack.c.l.b16 %v2635
        %v4992 = vunpack.c.h.b16 %v2635
        %v4993 = vunpack.c.l.b16 %v2636
        %v4994 = vunpack.c.h.b16 %v2636
        %v4995 = vunpack.c.l.b16 %v2637
        %v4996 = vunpack.c.h.b16 %v2637
        %v4997 = vunpack.c.l.b16 %v2638
        %v4998 = vunpack.c.h.b16 %v2638
        %v4999 = vunpack.c.l.b16 %v2639
        %v5000 = vunpack.c.h.b16 %v2639
        %v5001 = vunpack.c.l.b16 %v2640
        %v5002 = vunpack.c.h.b16 %v2640
        %v5003 = vunpack.c.l.b16 %v2641
        %v5004 = vunpack.c.h.b16 %v2641
        %v5005 = vunpack.c.l.b16 %v2642
        %v5006 = vunpack.c.h.b16 %v2642
        %v5007 = vunpack.c.l.b16 %v2643
        %v5008 = vunpack.c.h.b16 %v2643
        %v5009 = vunpack.c.l.b16 %v2644
        %v5010 = vunpack.c.h.b16 %v2644
        %v5011 = vunpack.c.l.b16 %v2645
        %v5012 = vunpack.c.h.b16 %v2645
        %v5013 = vunpack.c.l.b16 %v2646
        %v5014 = vunpack.c.h.b16 %v2646
        %v5015 = vunpack.c.l.b16 %v2647
        %v5016 = vunpack.c.h.b16 %v2647
        %v5017 = vunpack.c.l.b16 %v2648
        %v5018 = vunpack.c.h.b16 %v2648
        %v5019 = vunpack.c.l.b16 %v2649
        %v5020 = vunpack.c.h.b16 %v2649
        %v5021 = vunpack.c.l.b16 %v2650
        %v5022 = vunpack.c.h.b16 %v2650
        %v5023 = vunpack.c.l.b16 %v2651
        %v5024 = vunpack.c.h.b16 %v2651
        %v5025 = vunpack.c.l.b16 %v2652
        %v5026 = vunpack.c.h.b16 %v2652
        %v5027 = vunpack.c.l.b16 %v2653
        %v5028 = vunpack.c.h.b16 %v2653
        %v5029 = vunpack.c.l.b16 %v2654
        %v5030 = vunpack.c.h.b16 %v2654
        %v5031 = vunpack.c.l.b16 %v2655
        %v5032 = vunpack.c.h.b16 %v2655
        %v5033 = vunpack.c.l.b16 %v2656
        %v5034 = vunpack.c.h.b16 %v2656
        %v5035 = vunpack.c.l.b16 %v2657
        %v5036 = vunpack.c.h.b16 %v2657
        %v5037 = vunpack.c.l.b16 %v2658
        %v5038 = vunpack.c.h.b16 %v2658
        %v5039 = vunpack.c.l.b16 %v2659
        %v5040 = vunpack.c.h.b16 %v2659
        %v5041 = vunpack.c.l.b16 %v2660
        %v5042 = vunpack.c.h.b16 %v2660
        %v5043 = vunpack.c.l.b16 %v2661
        %v5044 = vunpack.c.h.b16 %v2661
        %v5045 = vunpack.c.l.b16 %v2662
        %v5046 = vunpack.c.h.b16 %v2662
        %v5047 = vunpack.c.l.b16 %v2663
        %v5048 = vunpack.c.h.b16 %v2663
        %v5049 = vunpack.c.l.b16 %v2664
        %v5050 = vunpack.c.h.b16 %v2664
        %v5051 = vunpack.c.l.b16 %v2665
        %v5052 = vunpack.c.h.b16 %v2665
        %v5053 = vunpack.c.l.b16 %v2666
        %v5054 = vunpack.c.h.b16 %v2666
        %v5055 = vunpack.c.l.b16 %v2667
        %v5056 = vunpack.c.h.b16 %v2667
        %v5057 = vunpack.c.l.b16 %v2668
        %v5058 = vunpack.c.h.b16 %v2668
        %v5059 = vunpack.c.l.b16 %v2669
        %v5060 = vunpack.c.h.b16 %v2669
        %v5061 = vunpack.c.l.b16 %v2670
        %v5062 = vunpack.c.h.b16 %v2670
        %v5063 = vunpack.c.l.b16 %v2671
        %v5064 = vunpack.c.h.b16 %v2671
        %v5065 = vunpack.c.l.b16 %v2672
        %v5066 = vunpack.c.h.b16 %v2672
        %v5067 = vunpack.c.l.b16 %v2673
        %v5068 = vunpack.c.h.b16 %v2673
        %v5069 = vunpack.c.l.b16 %v2674
        %v5070 = vunpack.c.h.b16 %v2674
        %v5071 = vunpack.c.l.b16 %v2675
        %v5072 = vunpack.c.h.b16 %v2675
        %v5073 = vunpack.c.l.b16 %v2676
        %v5074 = vunpack.c.h.b16 %v2676
        %v5075 = vunpack.c.l.b16 %v2677
        %v5076 = vunpack.c.h.b16 %v2677
        %v5077 = vunpack.c.l.b16 %v2678
        %v5078 = vunpack.c.h.b16 %v2678
        %v5079 = vunpack.c.l.b16 %v2679
        %v5080 = vunpack.c.h.b16 %v2679
        %v5081 = vunpack.c.l.b16 %v2680
        %v5082 = vunpack.c.h.b16 %v2680
        %v5083 = vunpack.c.l.b16 %v2681
        %v5084 = vunpack.c.h.b16 %v2681
        %v5085 = vunpack.c.l.b16 %v2682
        %v5086 = vunpack.c.h.b16 %v2682
        %v5087 = vunpack.c.l.b16 %v2683
        %v5088 = vunpack.c.h.b16 %v2683
        %v5089 = vunpack.c.l.b16 %v2684
        %v5090 = vunpack.c.h.b16 %v2684
        %v5091 = vunpack.c.l.b16 %v2685
        %v5092 = vunpack.c.h.b16 %v2685
        %v5093 = vunpack.c.l.b16 %v2686
        %v5094 = vunpack.c.h.b16 %v2686
        %v5095 = vunpack.c.l.b16 %v2687
        %v5096 = vunpack.c.h.b16 %v2687
        %v5097 = vunpack.c.l.b16 %v2688
        %v5098 = vunpack.c.h.b16 %v2688
        %v5099 = vunpack.c.l.b16 %v2689
        %v5100 = vunpack.c.h.b16 %v2689
        %v5101 = vunpack.c.l.b16 %v2690
        %v5102 = vunpack.c.h.b16 %v2690
        %v5103 = vunpack.c.l.b16 %v2691
        %v5104 = vunpack.c.h.b16 %v2691
        %v5105 = vunpack.c.l.b16 %v2692
        %v5106 = vunpack.c.h.b16 %v2692
        %v5107 = vunpack.c.l.b16 %v2693
        %v5108 = vunpack.c.h.b16 %v2693
        %v5109 = vunpack.c.l.b16 %v2694
        %v5110 = vunpack.c.h.b16 %v2694
        %v5111 = vunpack.c.l.b16 %v2695
        %v5112 = vunpack.c.h.b16 %v2695
        %v5113 = vunpack.c.l.b16 %v2696
        %v5114 = vunpack.c.h.b16 %v2696
        %v5115 = vunpack.c.l.b16 %v2697
        %v5116 = vunpack.c.h.b16 %v2697
        %v5117 = vunpack.c.l.b16 %v2698
        %v5118 = vunpack.c.h.b16 %v2698
        %v5119 = vunpack.c.l.b16 %v2699
        %v5120 = vunpack.c.h.b16 %v2699
        %v5121 = vunpack.c.l.b16 %v2700
        %v5122 = vunpack.c.h.b16 %v2700
        %v5123 = vunpack.c.l.b16 %v2701
        %v5124 = vunpack.c.h.b16 %v2701
        %v5125 = vunpack.c.l.b16 %v2702
        %v5126 = vunpack.c.h.b16 %v2702
        %v5127 = vunpack.c.l.b16 %v2703
        %v5128 = vunpack.c.h.b16 %v2703
        %v5129 = vunpack.c.l.b16 %v2704
        %v5130 = vunpack.c.h.b16 %v2704
        %v5131 = vunpack.c.l.b16 %v2705
        %v5132 = vunpack.c.h.b16 %v2705
        %v5133 = vunpack.c.l.b16 %v2706
        %v5134 = vunpack.c.h.b16 %v2706
        %v5135 = vunpack.c.l.b16 %v2707
        %v5136 = vunpack.c.h.b16 %v2707
        %v5137 = vunpack.c.l.b16 %v2708
        %v5138 = vunpack.c.h.b16 %v2708
        %v5139 = vunpack.c.l.b16 %v2709
        %v5140 = vunpack.c.h.b16 %v2709
        %v5141 = vunpack.c.l.b16 %v2710
        %v5142 = vunpack.c.h.b16 %v2710
        %v5143 = vunpack.c.l.b16 %v2711
        %v5144 = vunpack.c.h.b16 %v2711
        %v5145 = vunpack.c.l.b16 %v2712
        %v5146 = vunpack.c.h.b16 %v2712
        %v5147 = vunpack.c.l.b16 %v2713
        %v5148 = vunpack.c.h.b16 %v2713
        %v5149 = vunpack.c.l.b16 %v2714
        %v5150 = vunpack.c.h.b16 %v2714
        %v5151 = vunpack.c.l.b16 %v2715
        %v5152 = vunpack.c.h.b16 %v2715
        %v5153 = vunpack.c.l.b16 %v2716
        %v5154 = vunpack.c.h.b16 %v2716
        %v5155 = vunpack.c.l.b16 %v2717
        %v5156 = vunpack.c.h.b16 %v2717
        %v5157 = vunpack.c.l.b16 %v2718
        %v5158 = vunpack.c.h.b16 %v2718
        %v5159 = vunpack.c.l.b16 %v2719
        %v5160 = vunpack.c.h.b16 %v2719
        %v5161 = vunpack.c.l.b16 %v2720
        %v5162 = vunpack.c.h.b16 %v2720
        %v5163 = vunpack.c.l.b16 %v2721
        %v5164 = vunpack.c.h.b16 %v2721
        %v5165 = vunpack.c.l.b16 %v2722
        %v5166 = vunpack.c.h.b16 %v2722
        %v5167 = vunpack.c.l.b16 %v2723
        %v5168 = vunpack.c.h.b16 %v2723
        %v5169 = vunpack.c.l.b16 %v2724
        %v5170 = vunpack.c.h.b16 %v2724
        %v5171 = vunpack.c.l.b16 %v2725
        %v5172 = vunpack.c.h.b16 %v2725
        %v5173 = vunpack.c.l.b16 %v2726
        %v5174 = vunpack.c.h.b16 %v2726
        %v5175 = vunpack.c.l.b16 %v2727
        %v5176 = vunpack.c.h.b16 %v2727
        %v5177 = vunpack.c.l.b16 %v2728
        %v5178 = vunpack.c.h.b16 %v2728
        %v5179 = vunpack.c.l.b16 %v2729
        %v5180 = vunpack.c.h.b16 %v2729
        %v5181 = vunpack.c.l.b16 %v2730
        %v5182 = vunpack.c.h.b16 %v2730
        %v5183 = vunpack.c.l.b16 %v2731
        %v5184 = vunpack.c.h.b16 %v2731
        %v5185 = vunpack.c.l.b16 %v2732
        %v5186 = vunpack.c.h.b16 %v2732
        %v5187 = vunpack.c.l.b16 %v2733
        %v5188 = vunpack.c.h.b16 %v2733
        %v5189 = vunpack.c.l.b16 %v2734
        %v5190 = vunpack.c.h.b16 %v2734
        %v5191 = vunpack.c.l.b16 %v2735
        %v5192 = vunpack.c.h.b16 %v2735
        %v5193 = vunpack.c.l.b16 %v2736
        %v5194 = vunpack.c.h.b16 %v2736
        %v5195 = vunpack.c.l.b16 %v2737
        %v5196 = vunpack.c.h.b16 %v2737
        %v5197 = vunpack.c.l.b16 %v2738
        %v5198 = vunpack.c.h.b16 %v2738
        %v5199 = vunpack.c.l.b16 %v2739
        %v5200 = vunpack.c.h.b16 %v2739
        %v5201 = vunpack.c.l.b16 %v2740
        %v5202 = vunpack.c.h.b16 %v2740
        %v5203 = vunpack.c.l.b16 %v2741
        %v5204 = vunpack.c.h.b16 %v2741
        %v5205 = vunpack.c.l.b16 %v2742
        %v5206 = vunpack.c.h.b16 %v2742
        %v5207 = vunpack.c.l.b16 %v2743
        %v5208 = vunpack.c.h.b16 %v2743
        %v5209 = vunpack.c.l.b16 %v2744
        %v5210 = vunpack.c.h.b16 %v2744
        %v5211 = vunpack.c.l.b16 %v2745
        %v5212 = vunpack.c.h.b16 %v2745
        %v5213 = vunpack.c.l.b16 %v2746
        %v5214 = vunpack.c.h.b16 %v2746
        %v5215 = vunpack.c.l.b16 %v2747
        %v5216 = vunpack.c.h.b16 %v2747
        %v5217 = vunpack.c.l.b16 %v2748
        %v5218 = vunpack.c.h.b16 %v2748
        %v5219 = vunpack.c.l.b16 %v2749
        %v5220 = vunpack.c.h.b16 %v2749
        %v5221 = vunpack.c.l.b16 %v2750
        %v5222 = vunpack.c.h.b16 %v2750
        %v5223 = vunpack.c.l.b16 %v2751
        %v5224 = vunpack.c.h.b16 %v2751
        %v5225 = vunpack.c.l.b16 %v2752
        %v5226 = vunpack.c.h.b16 %v2752
        %v5227 = vunpack.c.l.b16 %v2753
        %v5228 = vunpack.c.h.b16 %v2753
        %v5229 = vunpack.c.l.b16 %v2754
        %v5230 = vunpack.c.h.b16 %v2754
        %v5231 = vunpack.c.l.b16 %v2755
        %v5232 = vunpack.c.h.b16 %v2755
        %v5233 = vunpack.c.l.b16 %v2756
        %v5234 = vunpack.c.h.b16 %v2756
        %v5235 = vunpack.c.l.b16 %v2757
        %v5236 = vunpack.c.h.b16 %v2757
        %v5237 = vunpack.c.l.b16 %v2758
        %v5238 = vunpack.c.h.b16 %v2758
        %v5239 = vunpack.c.l.b16 %v2759
        %v5240 = vunpack.c.h.b16 %v2759
        %v5241 = vunpack.c.l.b16 %v2760
        %v5242 = vunpack.c.h.b16 %v2760
        %v5243 = vunpack.c.l.b16 %v2761
        %v5244 = vunpack.c.h.b16 %v2761
        %v5245 = vunpack.c.l.b16 %v2762
        %v5246 = vunpack.c.h.b16 %v2762
        %v5247 = vunpack.c.l.b16 %v2763
        %v5248 = vunpack.c.h.b16 %v2763
        %v5249 = vunpack.c.l.b16 %v2764
        %v5250 = vunpack.c.h.b16 %v2764
        %v5251 = vunpack.c.l.b16 %v2765
        %v5252 = vunpack.c.h.b16 %v2765
        %v5253 = vunpack.c.l.b16 %v2766
        %v5254 = vunpack.c.h.b16 %v2766
        %v5255 = vunpack.c.l.b16 %v2767
        %v5256 = vunpack.c.h.b16 %v2767
        %v5257 = vunpack.c.l.b16 %v2768
        %v5258 = vunpack.c.h.b16 %v2768
        %v5259 = vunpack.c.l.b16 %v2769
        %v5260 = vunpack.c.h.b16 %v2769
        %v5261 = vunpack.c.l.b16 %v2770
        %v5262 = vunpack.c.h.b16 %v2770
        %v5263 = vunpack.c.l.b16 %v2771
        %v5264 = vunpack.c.h.b16 %v2771
        %v5265 = vunpack.c.l.b16 %v2772
        %v5266 = vunpack.c.h.b16 %v2772
        %v5267 = vunpack.c.l.b16 %v2773
        %v5268 = vunpack.c.h.b16 %v2773
        %v5269 = vunpack.c.l.b16 %v2774
        %v5270 = vunpack.c.h.b16 %v2774
        %v5271 = vunpack.c.l.b16 %v2775
        %v5272 = vunpack.c.h.b16 %v2775
        %v5273 = vunpack.c.l.b16 %v2776
        %v5274 = vunpack.c.h.b16 %v2776
        %v5275 = vunpack.c.l.b16 %v2777
        %v5276 = vunpack.c.h.b16 %v2777
        %v5277 = vunpack.c.l.b16 %v2778
        %v5278 = vunpack.c.h.b16 %v2778
        %v5279 = vunpack.c.l.b16 %v2779
        %v5280 = vunpack.c.h.b16 %v2779
        %v5281 = vunpack.c.l.b16 %v2780
        %v5282 = vunpack.c.h.b16 %v2780
        %v5283 = vunpack.c.l.b16 %v2781
        %v5284 = vunpack.c.h.b16 %v2781
        %v5285 = vunpack.c.l.b16 %v2782
        %v5286 = vunpack.c.h.b16 %v2782
        %v5287 = vunpack.c.l.b16 %v2783
        %v5288 = vunpack.c.h.b16 %v2783
        %v5289 = vunpack.c.l.b16 %v2784
        %v5290 = vunpack.c.h.b16 %v2784
        %v5291 = vunpack.c.l.b16 %v2785
        %v5292 = vunpack.c.h.b16 %v2785
        %v5293 = vunpack.c.l.b16 %v2786
        %v5294 = vunpack.c.h.b16 %v2786
        %v5295 = vunpack.c.l.b16 %v2787
        %v5296 = vunpack.c.h.b16 %v2787
        %v5297 = vunpack.c.l.b16 %v2788
        %v5298 = vunpack.c.h.b16 %v2788
        %v5299 = vunpack.c.l.b16 %v2789
        %v5300 = vunpack.c.h.b16 %v2789
        %v5301 = vunpack.c.l.b16 %v2790
        %v5302 = vunpack.c.h.b16 %v2790
        %v5303 = vunpack.c.l.b16 %v2791
        %v5304 = vunpack.c.h.b16 %v2791
        %v5305 = vunpack.c.l.b16 %v2792
        %v5306 = vunpack.c.h.b16 %v2792
        %v5307 = vunpack.c.l.b16 %v2793
        %v5308 = vunpack.c.h.b16 %v2793
        %v5309 = vunpack.c.l.b16 %v2794
        %v5310 = vunpack.c.h.b16 %v2794
        %v5311 = vunpack.c.l.b16 %v2795
        %v5312 = vunpack.c.h.b16 %v2795
        %v5313 = vunpack.c.l.b16 %v2796
        %v5314 = vunpack.c.h.b16 %v2796
        %v5315 = vunpack.c.l.b16 %v2797
        %v5316 = vunpack.c.h.b16 %v2797
        %v5317 = vunpack.c.l.b16 %v2798
        %v5318 = vunpack.c.h.b16 %v2798
        %v5319 = vunpack.c.l.b16 %v2799
        %v5320 = vunpack.c.h.b16 %v2799
        %v5321 = vunpack.c.l.b16 %v2800
        %v5322 = vunpack.c.h.b16 %v2800
        %v5323 = vunpack.c.l.b16 %v2801
        %v5324 = vunpack.c.h.b16 %v2801
        %v5325 = vunpack.c.l.b16 %v2802
        %v5326 = vunpack.c.h.b16 %v2802
        %v5327 = vunpack.c.l.b16 %v2803
        %v5328 = vunpack.c.h.b16 %v2803
        %v5329 = vunpack.c.l.b16 %v2804
        %v5330 = vunpack.c.h.b16 %v2804
        %v5331 = vunpack.c.l.b16 %v2805
        %v5332 = vunpack.c.h.b16 %v2805
        %v5333 = vunpack.c.l.b16 %v2806
        %v5334 = vunpack.c.h.b16 %v2806
        %v5335 = vunpack.c.l.b16 %v2807
        %v5336 = vunpack.c.h.b16 %v2807
        %v5337 = vunpack.c.l.b16 %v2808
        %v5338 = vunpack.c.h.b16 %v2808
        %v5339 = vunpack.c.l.b16 %v2809
        %v5340 = vunpack.c.h.b16 %v2809
        %v5341 = vunpack.c.l.b16 %v2810
        %v5342 = vunpack.c.h.b16 %v2810
        %v5343 = vunpack.c.l.b16 %v2811
        %v5344 = vunpack.c.h.b16 %v2811
        %v5345 = vunpack.c.l.b16 %v2812
        %v5346 = vunpack.c.h.b16 %v2812
        %v5347 = vunpack.c.l.b16 %v2813
        %v5348 = vunpack.c.h.b16 %v2813
        %v5349 = vunpack.c.l.b16 %v2814
        %v5350 = vunpack.c.h.b16 %v2814
        %v5351 = vunpack.c.l.b16 %v2815
        %v5352 = vunpack.c.h.b16 %v2815
        %v5353 = vunpack.c.l.b16 %v2816
        %v5354 = vunpack.c.h.b16 %v2816
        %v5355 = vunpack.c.l.b16 %v2817
        %v5356 = vunpack.c.h.b16 %v2817
        %v5357 = vunpack.c.l.b16 %v2818
        %v5358 = vunpack.c.h.b16 %v2818
        %v5359 = vunpack.c.l.b16 %v2819
        %v5360 = vunpack.c.h.b16 %v2819
        %v5361 = vunpack.c.l.b16 %v2820
        %v5362 = vunpack.c.h.b16 %v2820
        %v5363 = vunpack.c.l.b16 %v2821
        %v5364 = vunpack.c.h.b16 %v2821
        %v5365 = vunpack.c.l.b16 %v2822
        %v5366 = vunpack.c.h.b16 %v2822
        %v5367 = vunpack.c.l.b16 %v2823
        %v5368 = vunpack.c.h.b16 %v2823
        %v5369 = vunpack.c.l.b16 %v2824
        %v5370 = vunpack.c.h.b16 %v2824
        %v5371 = vunpack.c.l.b16 %v2825
        %v5372 = vunpack.c.h.b16 %v2825
        %v5373 = vunpack.c.l.b16 %v2826
        %v5374 = vunpack.c.h.b16 %v2826
        %v5375 = vunpack.c.l.b16 %v2827
        %v5376 = vunpack.c.h.b16 %v2827
        %v5377 = vunpack.c.l.b16 %v2828
        %v5378 = vunpack.c.h.b16 %v2828
        %v5379 = vunpack.c.l.b16 %v2829
        %v5380 = vunpack.c.h.b16 %v2829
        %v5381 = vunpack.c.l.b16 %v2830
        %v5382 = vunpack.c.h.b16 %v2830
        %v5383 = vunpack.c.l.b16 %v2831
        %v5384 = vunpack.c.h.b16 %v2831
        %v5385 = vunpack.c.l.b16 %v2832
        %v5386 = vunpack.c.h.b16 %v2832
        %v5387 = vunpack.c.l.b16 %v2833
        %v5388 = vunpack.c.h.b16 %v2833
        %v5389 = vunpack.c.l.b16 %v2834
        %v5390 = vunpack.c.h.b16 %v2834
        %v5391 = vunpack.c.l.b16 %v2835
        %v5392 = vunpack.c.h.b16 %v2835
        %v5393 = vunpack.c.l.b16 %v2836
        %v5394 = vunpack.c.h.b16 %v2836
        %v5395 = vunpack.c.l.b16 %v2837
        %v5396 = vunpack.c.h.b16 %v2837
        %v5397 = vunpack.c.l.b16 %v2838
        %v5398 = vunpack.c.h.b16 %v2838
        %v5399 = vunpack.c.l.b16 %v2839
        %v5400 = vunpack.c.h.b16 %v2839
        %v5401 = vunpack.c.l.b16 %v2840
        %v5402 = vunpack.c.h.b16 %v2840
        %v5403 = vunpack.c.l.b16 %v2841
        %v5404 = vunpack.c.h.b16 %v2841
        %v5405 = vunpack.c.l.b16 %v2842
        %v5406 = vunpack.c.h.b16 %v2842
        %v5407 = vunpack.c.l.b16 %v2843
        %v5408 = vunpack.c.h.b16 %v2843
        %v5409 = vunpack.c.l.b16 %v2844
        %v5410 = vunpack.c.h.b16 %v2844
        %v5411 = vunpack.c.l.b16 %v2845
        %v5412 = vunpack.c.h.b16 %v2845
        %v5413 = vunpack.c.l.b16 %v2846
        %v5414 = vunpack.c.h.b16 %v2846
        %v5415 = vunpack.c.l.b16 %v2847
        %v5416 = vunpack.c.h.b16 %v2847
        %v5417 = vunpack.c.l.b16 %v2848
        %v5418 = vunpack.c.h.b16 %v2848
        %v5419 = vunpack.c.l.b16 %v2849
        %v5420 = vunpack.c.h.b16 %v2849
        %v5421 = vunpack.c.l.b16 %v2850
        %v5422 = vunpack.c.h.b16 %v2850
        %v5423 = vunpack.c.l.b16 %v2851
        %v5424 = vunpack.c.h.b16 %v2851
        %v5425 = vunpack.c.l.b16 %v2852
        %v5426 = vunpack.c.h.b16 %v2852
        %v5427 = vunpack.c.l.b16 %v2853
        %v5428 = vunpack.c.h.b16 %v2853
        %v5429 = vunpack.c.l.b16 %v2854
        %v5430 = vunpack.c.h.b16 %v2854
        %v5431 = vunpack.c.l.b16 %v2855
        %v5432 = vunpack.c.h.b16 %v2855
        %v5433 = vunpack.c.l.b16 %v2856
        %v5434 = vunpack.c.h.b16 %v2856
        %v5435 = vunpack.c.l.b16 %v2857
        %v5436 = vunpack.c.h.b16 %v2857
        %v5437 = vunpack.c.l.b16 %v2858
        %v5438 = vunpack.c.h.b16 %v2858
        %v5439 = vunpack.c.l.b16 %v2859
        %v5440 = vunpack.c.h.b16 %v2859
        %v5441 = vunpack.c.l.b16 %v2860
        %v5442 = vunpack.c.h.b16 %v2860
        %v5443 = vunpack.c.l.b16 %v2861
        %v5444 = vunpack.c.h.b16 %v2861
        %v5445 = vunpack.c.l.b16 %v2862
        %v5446 = vunpack.c.h.b16 %v2862
        %v5447 = vunpack.c.l.b16 %v2863
        %v5448 = vunpack.c.h.b16 %v2863
        %v5449 = vunpack.c.l.b16 %v2864
        %v5450 = vunpack.c.h.b16 %v2864
        %v5451 = vunpack.c.l.b16 %v2865
        %v5452 = vunpack.c.h.b16 %v2865
        %v5453 = vunpack.c.l.b16 %v2866
        %v5454 = vunpack.c.h.b16 %v2866
        %v5455 = vunpack.c.l.b16 %v2867
        %v5456 = vunpack.c.h.b16 %v2867
        %v5457 = vunpack.c.l.b16 %v2868
        %v5458 = vunpack.c.h.b16 %v2868
        %v5459 = vunpack.c.l.b16 %v2869
        %v5460 = vunpack.c.h.b16 %v2869
        %v5461 = vunpack.c.l.b16 %v2870
        %v5462 = vunpack.c.h.b16 %v2870
        %v5463 = vunpack.c.l.b16 %v2871
        %v5464 = vunpack.c.h.b16 %v2871
        %v5465 = vunpack.c.l.b16 %v2872
        %v5466 = vunpack.c.h.b16 %v2872
        %v5467 = vunpack.c.l.b16 %v2873
        %v5468 = vunpack.c.h.b16 %v2873
        %v5469 = vunpack.c.l.b16 %v2874
        %v5470 = vunpack.c.h.b16 %v2874
        %v5471 = vunpack.c.l.b16 %v2875
        %v5472 = vunpack.c.h.b16 %v2875
        %v5473 = vunpack.c.l.b16 %v2876
        %v5474 = vunpack.c.h.b16 %v2876
        %v5475 = vunpack.c.l.b16 %v2877
        %v5476 = vunpack.c.h.b16 %v2877
        %v5477 = vunpack.c.l.b16 %v2878
        %v5478 = vunpack.c.h.b16 %v2878
        %v5479 = vunpack.c.l.b16 %v2879
        %v5480 = vunpack.c.h.b16 %v2879
        %v5481 = vunpack.c.l.b16 %v2880
        %v5482 = vunpack.c.h.b16 %v2880
        %v5483 = vunpack.c.l.b16 %v2881
        %v5484 = vunpack.c.h.b16 %v2881
        %v5485 = vunpack.c.l.b16 %v2882
        %v5486 = vunpack.c.h.b16 %v2882
        %v5487 = vunpack.c.l.b16 %v2883
        %v5488 = vunpack.c.h.b16 %v2883
        %v5489 = vunpack.c.l.b16 %v2884
        %v5490 = vunpack.c.h.b16 %v2884
        %v5491 = vunpack.c.l.b16 %v2885
        %v5492 = vunpack.c.h.b16 %v2885
        %v5493 = vunpack.c.l.b16 %v2886
        %v5494 = vunpack.c.h.b16 %v2886
        %v5495 = vunpack.c.l.b16 %v2887
        %v5496 = vunpack.c.h.b16 %v2887
        %v5497 = vunpack.c.l.b16 %v2888
        %v5498 = vunpack.c.h.b16 %v2888
        %v5499 = vunpack.c.l.b16 %v2889
        %v5500 = vunpack.c.h.b16 %v2889
        %v5501 = vunpack.c.l.b16 %v2890
        %v5502 = vunpack.c.h.b16 %v2890
        %v5503 = vunpack.c.l.b16 %v2891
        %v5504 = vunpack.c.h.b16 %v2891
        %v5505 = vunpack.c.l.b16 %v2892
        %v5506 = vunpack.c.h.b16 %v2892
        %v5507 = vunpack.c.l.b16 %v2893
        %v5508 = vunpack.c.h.b16 %v2893
        %v5509 = vunpack.c.l.b16 %v2894
        %v5510 = vunpack.c.h.b16 %v2894
        %v5511 = vunpack.c.l.b16 %v2895
        %v5512 = vunpack.c.h.b16 %v2895
        %v5513 = vunpack.c.l.b16 %v2896
        %v5514 = vunpack.c.h.b16 %v2896
        %v5515 = vunpack.c.l.b16 %v2897
        %v5516 = vunpack.c.h.b16 %v2897
        %v5517 = vunpack.c.l.b16 %v2898
        %v5518 = vunpack.c.h.b16 %v2898
        %v5519 = vunpack.c.l.b16 %v2899
        %v5520 = vunpack.c.h.b16 %v2899
        %v5521 = vunpack.c.l.b16 %v2900
        %v5522 = vunpack.c.h.b16 %v2900
        %v5523 = vunpack.c.l.b16 %v2901
        %v5524 = vunpack.c.h.b16 %v2901
        %v5525 = vunpack.c.l.b16 %v2902
        %v5526 = vunpack.c.h.b16 %v2902
        %v5527 = vunpack.c.l.b16 %v2903
        %v5528 = vunpack.c.h.b16 %v2903
        %v5529 = vunpack.c.l.b16 %v2904
        %v5530 = vunpack.c.h.b16 %v2904
        %v5531 = vunpack.c.l.b16 %v2905
        %v5532 = vunpack.c.h.b16 %v2905
        %v5533 = vunpack.c.l.b16 %v2906
        %v5534 = vunpack.c.h.b16 %v2906
        %v5535 = vunpack.c.l.b16 %v2907
        %v5536 = vunpack.c.h.b16 %v2907
        %v5537 = vunpack.c.l.b16 %v2908
        %v5538 = vunpack.c.h.b16 %v2908
        %v5539 = vunpack.c.l.b16 %v2909
        %v5540 = vunpack.c.h.b16 %v2909
        %v5541 = vunpack.c.l.b16 %v2910
        %v5542 = vunpack.c.h.b16 %v2910
        %v5543 = vunpack.c.l.b16 %v2911
        %v5544 = vunpack.c.h.b16 %v2911
        %v5545 = vunpack.c.l.b16 %v2912
        %v5546 = vunpack.c.h.b16 %v2912
        %v5547 = vunpack.c.l.b16 %v2913
        %v5548 = vunpack.c.h.b16 %v2913
        %v5549 = vunpack.c.l.b16 %v2914
        %v5550 = vunpack.c.h.b16 %v2914
        %v5551 = vunpack.c.l.b16 %v2915
        %v5552 = vunpack.c.h.b16 %v2915
        %v5553 = vunpack.c.l.b16 %v2916
        %v5554 = vunpack.c.h.b16 %v2916
        %v5555 = vunpack.c.l.b16 %v2917
        %v5556 = vunpack.c.h.b16 %v2917
        %v5557 = vunpack.c.l.b16 %v2918
        %v5558 = vunpack.c.h.b16 %v2918
        %v5559 = vunpack.c.l.b16 %v2919
        %v5560 = vunpack.c.h.b16 %v2919
        %v5561 = vunpack.c.l.b16 %v2920
        %v5562 = vunpack.c.h.b16 %v2920
        %v5563 = vunpack.c.l.b16 %v2921
        %v5564 = vunpack.c.h.b16 %v2921
        %v5565 = vunpack.c.l.b16 %v2922
        %v5566 = vunpack.c.h.b16 %v2922
        %v5567 = vunpack.c.l.b16 %v2923
        %v5568 = vunpack.c.h.b16 %v2923
        %v5569 = vunpack.c.l.b16 %v2924
        %v5570 = vunpack.c.h.b16 %v2924
        %v5571 = vunpack.c.l.b16 %v2925
        %v5572 = vunpack.c.h.b16 %v2925
        %v5573 = vunpack.c.l.b16 %v2926
        %v5574 = vunpack.c.h.b16 %v2926
        %v5575 = vunpack.c.l.b16 %v2927
        %v5576 = vunpack.c.h.b16 %v2927
        %v5577 = vunpack.c.l.b16 %v2928
        %v5578 = vunpack.c.h.b16 %v2928
        %v5579 = vunpack.c.l.b16 %v2929
        %v5580 = vunpack.c.h.b16 %v2929
        %v5581 = vunpack.c.l.b16 %v2930
        %v5582 = vunpack.c.h.b16 %v2930
        %v5583 = vunpack.c.l.b16 %v2931
        %v5584 = vunpack.c.h.b16 %v2931
        %v5585 = vunpack.c.l.b16 %v2932
        %v5586 = vunpack.c.h.b16 %v2932
        %v5587 = vunpack.c.l.b16 %v2933
        %v5588 = vunpack.c.h.b16 %v2933
        %v5589 = vunpack.c.l.b16 %v2934
        %v5590 = vunpack.c.h.b16 %v2934
        %v5591 = vunpack.c.l.b16 %v2935
        %v5592 = vunpack.c.h.b16 %v2935
        %v5593 = vunpack.c.l.b16 %v2936
        %v5594 = vunpack.c.h.b16 %v2936
        %v5595 = vunpack.c.l.b16 %v2937
        %v5596 = vunpack.c.h.b16 %v2937
        %v5597 = vunpack.c.l.b16 %v2938
        %v5598 = vunpack.c.h.b16 %v2938
        %v5599 = vunpack.c.l.b16 %v2939
        %v5600 = vunpack.c.h.b16 %v2939
        %v5601 = vunpack.c.l.b16 %v2940
        %v5602 = vunpack.c.h.b16 %v2940
        %v5603 = vunpack.c.l.b16 %v2941
        %v5604 = vunpack.c.h.b16 %v2941
        %v5605 = vunpack.c.l.b16 %v2942
        %v5606 = vunpack.c.h.b16 %v2942
        %v5607 = vunpack.c.l.b16 %v2943
        %v5608 = vunpack.c.h.b16 %v2943
        %v5609 = vunpack.c.l.b16 %v2944
        %v5610 = vunpack.c.h.b16 %v2944
        %v5611 = vunpack.c.l.b16 %v2945
        %v5612 = vunpack.c.h.b16 %v2945
        %v5613 = vunpack.c.l.b16 %v2946
        %v5614 = vunpack.c.h.b16 %v2946
        %v5615 = vunpack.c.l.b16 %v2947
        %v5616 = vunpack.c.h.b16 %v2947
        %v5617 = vunpack.c.l.b16 %v2948
        %v5618 = vunpack.c.h.b16 %v2948
        %v5619 = vunpack.c.l.b16 %v2949
        %v5620 = vunpack.c.h.b16 %v2949
        %v5621 = vunpack.c.l.b16 %v2950
        %v5622 = vunpack.c.h.b16 %v2950
        %v5623 = vunpack.c.l.b16 %v2951
        %v5624 = vunpack.c.h.b16 %v2951
        %v5625 = vunpack.c.l.b16 %v2952
        %v5626 = vunpack.c.h.b16 %v2952
        %v5627 = vunpack.c.l.b16 %v2953
        %v5628 = vunpack.c.h.b16 %v2953
        %v5629 = vunpack.c.l.b16 %v2954
        %v5630 = vunpack.c.h.b16 %v2954
        %v5631 = vunpack.c.l.b16 %v2955
        %v5632 = vunpack.c.h.b16 %v2955
        %v5633 = vunpack.c.l.b16 %v2956
        %v5634 = vunpack.c.h.b16 %v2956
        %v5635 = vunpack.c.l.b16 %v2957
        %v5636 = vunpack.c.h.b16 %v2957
        %v5637 = vunpack.c.l.b16 %v2958
        %v5638 = vunpack.c.h.b16 %v2958
        %v5639 = vunpack.c.l.b16 %v2959
        %v5640 = vunpack.c.h.b16 %v2959
        %v5641 = vunpack.c.l.b16 %v2960
        %v5642 = vunpack.c.h.b16 %v2960
        %v5643 = vunpack.c.l.b16 %v2961
        %v5644 = vunpack.c.h.b16 %v2961
        %v5645 = vunpack.c.l.b16 %v2962
        %v5646 = vunpack.c.h.b16 %v2962
        %v5647 = vunpack.c.l.b16 %v2963
        %v5648 = vunpack.c.h.b16 %v2963
        %v5649 = vunpack.c.l.b16 %v2964
        %v5650 = vunpack.c.h.b16 %v2964
        %v5651 = vunpack.c.l.b16 %v2965
        %v5652 = vunpack.c.h.b16 %v2965
        %v5653 = vunpack.c.l.b16 %v2966
        %v5654 = vunpack.c.h.b16 %v2966
        %v5655 = vunpack.c.l.b16 %v2967
        %v5656 = vunpack.c.h.b16 %v2967
        %v5657 = vunpack.c.l.b16 %v2968
        %v5658 = vunpack.c.h.b16 %v2968
        %v5659 = vunpack.c.l.b16 %v2969
        %v5660 = vunpack.c.h.b16 %v2969
        %v5661 = vunpack.c.l.b16 %v2970
        %v5662 = vunpack.c.h.b16 %v2970
        %v5663 = vunpack.c.l.b16 %v2971
        %v5664 = vunpack.c.h.b16 %v2971
        %v5665 = vunpack.c.l.b16 %v2972
        %v5666 = vunpack.c.h.b16 %v2972
        %v5667 = vunpack.c.l.b16 %v2973
        %v5668 = vunpack.c.h.b16 %v2973
        %v5669 = vunpack.c.l.b16 %v2974
        %v5670 = vunpack.c.h.b16 %v2974
        %v5671 = vunpack.c.l.b16 %v2975
        %v5672 = vunpack.c.h.b16 %v2975
        %v5673 = vunpack.c.l.b16 %v2976
        %v5674 = vunpack.c.h.b16 %v2976
        %v5675 = vunpack.c.l.b16 %v2977
        %v5676 = vunpack.c.h.b16 %v2977
        %v5677 = vunpack.c.l.b16 %v2978
        %v5678 = vunpack.c.h.b16 %v2978
        %v5679 = vunpack.c.l.b16 %v2979
        %v5680 = vunpack.c.h.b16 %v2979
        %v5681 = vunpack.c.l.b16 %v2980
        %v5682 = vunpack.c.h.b16 %v2980
        %v5683 = vunpack.c.l.b16 %v2981
        %v5684 = vunpack.c.h.b16 %v2981
        %v5685 = vunpack.c.l.b16 %v2982
        %v5686 = vunpack.c.h.b16 %v2982
        %v5687 = vunpack.c.l.b16 %v2983
        %v5688 = vunpack.c.h.b16 %v2983
        %v5689 = vunpack.c.l.b16 %v2984
        %v5690 = vunpack.c.h.b16 %v2984
        %v5691 = vunpack.c.l.b16 %v2985
        %v5692 = vunpack.c.h.b16 %v2985
        %v5693 = vunpack.c.l.b16 %v2986
        %v5694 = vunpack.c.h.b16 %v2986
        %v5695 = vunpack.c.l.b16 %v2987
        %v5696 = vunpack.c.h.b16 %v2987
        %v5697 = vunpack.c.l.b16 %v2988
        %v5698 = vunpack.c.h.b16 %v2988
        %v5699 = vunpack.c.l.b16 %v2989
        %v5700 = vunpack.c.h.b16 %v2989
        %v5701 = vunpack.c.l.b16 %v2990
        %v5702 = vunpack.c.h.b16 %v2990
        %v5703 = vunpack.c.l.b16 %v2991
        %v5704 = vunpack.c.h.b16 %v2991
        %v5705 = vunpack.c.l.b16 %v2992
        %v5706 = vunpack.c.h.b16 %v2992
        %v5707 = vunpack.c.l.b16 %v2993
        %v5708 = vunpack.c.h.b16 %v2993
        %v5709 = vunpack.c.l.b16 %v2994
        %v5710 = vunpack.c.h.b16 %v2994
        %v5711 = vunpack.c.l.b16 %v2995
        %v5712 = vunpack.c.h.b16 %v2995
        %v5713 = vunpack.c.l.b16 %v2996
        %v5714 = vunpack.c.h.b16 %v2996
        %v5715 = vunpack.c.l.b16 %v2997
        %v5716 = vunpack.c.h.b16 %v2997
        %v5717 = vunpack.c.l.b16 %v2998
        %v5718 = vunpack.c.h.b16 %v2998
        %v5719 = vunpack.c.l.b16 %v2999
        %v5720 = vunpack.c.h.b16 %v2999
        %v5721 = vunpack.c.l.b16 %v3000
        %v5722 = vunpack.c.h.b16 %v3000
        %v5723 = vunpack.c.l.b16 %v3001
        %v5724 = vunpack.c.h.b16 %v3001
        %v5725 = vunpack.c.l.b16 %v3002
        %v5726 = vunpack.c.h.b16 %v3002
        %v5727 = vunpack.c.l.b16 %v3003
        %v5728 = vunpack.c.h.b16 %v3003
        %v5729 = vunpack.c.l.b16 %v3004
        %v5730 = vunpack.c.h.b16 %v3004
        %v5731 = vunpack.c.l.b16 %v3005
        %v5732 = vunpack.c.h.b16 %v3005
        %v5733 = vunpack.c.l.b16 %v3006
        %v5734 = vunpack.c.h.b16 %v3006
        %v5735 = vunpack.c.l.b16 %v3007
        %v5736 = vunpack.c.h.b16 %v3007
        %v5737 = vunpack.c.l.b16 %v3008
        %v5738 = vunpack.c.h.b16 %v3008
        %v5739 = vunpack.c.l.b16 %v3009
        %v5740 = vunpack.c.h.b16 %v3009
        %v5741 = vunpack.c.l.b16 %v3010
        %v5742 = vunpack.c.h.b16 %v3010
        %v5743 = vunpack.c.l.b16 %v3011
        %v5744 = vunpack.c.h.b16 %v3011
        %v5745 = vunpack.c.l.b16 %v3012
        %v5746 = vunpack.c.h.b16 %v3012
        %v5747 = vunpack.c.l.b16 %v3013
        %v5748 = vunpack.c.h.b16 %v3013
        %v5749 = vunpack.c.l.b16 %v3014
        %v5750 = vunpack.c.h.b16 %v3014
        %v5751 = vunpack.c.l.b16 %v3015
        %v5752 = vunpack.c.h.b16 %v3015
        %v5753 = vunpack.c.l.b16 %v3016
        %v5754 = vunpack.c.h.b16 %v3016
        %v5755 = vunpack.c.l.b16 %v3017
        %v5756 = vunpack.c.h.b16 %v3017
        %v5757 = vunpack.c.l.b16 %v3018
        %v5758 = vunpack.c.h.b16 %v3018
        %v5759 = vunpack.c.l.b16 %v3019
        %v5760 = vunpack.c.h.b16 %v3019
        %v5761 = vunpack.c.l.b16 %v3020
        %v5762 = vunpack.c.h.b16 %v3020
        %v5763 = vunpack.c.l.b16 %v3021
        %v5764 = vunpack.c.h.b16 %v3021
        %v5765 = vunpack.c.l.b16 %v3022
        %v5766 = vunpack.c.h.b16 %v3022
        %v5767 = vunpack.c.l.b16 %v3023
        %v5768 = vunpack.c.h.b16 %v3023
        %v5769 = vunpack.c.l.b16 %v3024
        %v5770 = vunpack.c.h.b16 %v3024
        %v5771 = vunpack.c.l.b16 %v3025
        %v5772 = vunpack.c.h.b16 %v3025
        %v5773 = vunpack.c.l.b16 %v3026
        %v5774 = vunpack.c.h.b16 %v3026
        %v5775 = vunpack.c.l.b16 %v3027
        %v5776 = vunpack.c.h.b16 %v3027
        %v5777 = vunpack.c.l.b16 %v3028
        %v5778 = vunpack.c.h.b16 %v3028
        %v5779 = vunpack.c.l.b16 %v3029
        %v5780 = vunpack.c.h.b16 %v3029
        %v5781 = vunpack.c.l.b16 %v3030
        %v5782 = vunpack.c.h.b16 %v3030
        %v5783 = vunpack.c.l.b16 %v3031
        %v5784 = vunpack.c.h.b16 %v3031
        %v5785 = vunpack.c.l.b16 %v3032
        %v5786 = vunpack.c.h.b16 %v3032
        %v5787 = vunpack.c.l.b16 %v3033
        %v5788 = vunpack.c.h.b16 %v3033
        %v5789 = vunpack.c.l.b16 %v3034
        %v5790 = vunpack.c.h.b16 %v3034
        %v5791 = vunpack.c.l.b16 %v3035
        %v5792 = vunpack.c.h.b16 %v3035
        %v5793 = vunpack.c.l.b16 %v3036
        %v5794 = vunpack.c.h.b16 %v3036
        %v5795 = vunpack.c.l.b16 %v3037
        %v5796 = vunpack.c.h.b16 %v3037
        %v5797 = vunpack.c.l.b16 %v3038
        %v5798 = vunpack.c.h.b16 %v3038
        %v5799 = vunpack.c.l.b16 %v3039
        %v5800 = vunpack.c.h.b16 %v3039
        %v5801 = vunpack.c.l.b16 %v3040
        %v5802 = vunpack.c.h.b16 %v3040
        %v5803 = vunpack.c.l.b16 %v3041
        %v5804 = vunpack.c.h.b16 %v3041
        %v5805 = vunpack.c.l.b16 %v3042
        %v5806 = vunpack.c.h.b16 %v3042
        %v5807 = vunpack.c.l.b16 %v3043
        %v5808 = vunpack.c.h.b16 %v3043
        %v5809 = vunpack.c.l.b16 %v3044
        %v5810 = vunpack.c.h.b16 %v3044
        %v5811 = vunpack.c.l.b16 %v3045
        %v5812 = vunpack.c.h.b16 %v3045
        %v5813 = vunpack.c.l.b16 %v3046
        %v5814 = vunpack.c.h.b16 %v3046
        %v5815 = vunpack.c.l.b16 %v3047
        %v5816 = vunpack.c.h.b16 %v3047
        %v5817 = vunpack.c.l.b16 %v3048
        %v5818 = vunpack.c.h.b16 %v3048
        %v5819 = vunpack.c.l.b16 %v3049
        %v5820 = vunpack.c.h.b16 %v3049
        %v5821 = vunpack.c.l.b16 %v3050
        %v5822 = vunpack.c.h.b16 %v3050
        %v5823 = vunpack.c.l.b16 %v3051
        %v5824 = vunpack.c.h.b16 %v3051
        %v5825 = vunpack.c.l.b16 %v3052
        %v5826 = vunpack.c.h.b16 %v3052
        %v5827 = vunpack.c.l.b16 %v3053
        %v5828 = vunpack.c.h.b16 %v3053
        %v5829 = vunpack.c.l.b16 %v3054
        %v5830 = vunpack.c.h.b16 %v3054
        %v5831 = vunpack.c.l.b16 %v3055
        %v5832 = vunpack.c.h.b16 %v3055
        %v5833 = vunpack.c.l.b16 %v3056
        %v5834 = vunpack.c.h.b16 %v3056
        %v5835 = vunpack.c.l.b16 %v3057
        %v5836 = vunpack.c.h.b16 %v3057
        %v5837 = vunpack.c.l.b16 %v3058
        %v5838 = vunpack.c.h.b16 %v3058
        %v5839 = vunpack.c.l.b16 %v3059
        %v5840 = vunpack.c.h.b16 %v3059
        %v5841 = vunpack.c.l.b16 %v3060
        %v5842 = vunpack.c.h.b16 %v3060
        %v5843 = vunpack.c.l.b16 %v3061
        %v5844 = vunpack.c.h.b16 %v3061
        %v5845 = vunpack.c.l.b16 %v3062
        %v5846 = vunpack.c.h.b16 %v3062
        %v5847 = vunpack.c.l.b16 %v3063
        %v5848 = vunpack.c.h.b16 %v3063
        %v5849 = vunpack.c.l.b16 %v3064
        %v5850 = vunpack.c.h.b16 %v3064
        %v5851 = vunpack.c.l.b16 %v3065
        %v5852 = vunpack.c.h.b16 %v3065
        %v5853 = vunpack.c.l.b16 %v3066
        %v5854 = vunpack.c.h.b16 %v3066
        %v5855 = vunpack.c.l.b16 %v3067
        %v5856 = vunpack.c.h.b16 %v3067
        %v5857 = vunpack.c.l.b16 %v3068
        %v5858 = vunpack.c.h.b16 %v3068
        %v5859 = vunpack.c.l.b16 %v3069
        %v5860 = vunpack.c.h.b16 %v3069
        %v5861 = vunpack.c.l.b16 %v3070
        %v5862 = vunpack.c.h.b16 %v3070
        %v5863 = vunpack.c.l.b16 %v3071
        %v5864 = vunpack.c.h.b16 %v3071
        %v5865 = vunpack.c.l.b16 %v3072
        %v5866 = vunpack.c.h.b16 %v3072
        %v5867 = vunpack.c.l.b16 %v3073
        %v5868 = vunpack.c.h.b16 %v3073
        %v5869 = vunpack.c.l.b16 %v3074
        %v5870 = vunpack.c.h.b16 %v3074
        %v5871 = vunpack.c.l.b16 %v3075
        %v5872 = vunpack.c.h.b16 %v3075
        %v5873 = vunpack.c.l.b16 %v3076
        %v5874 = vunpack.c.h.b16 %v3076
        %v5875 = vunpack.c.l.b16 %v3077
        %v5876 = vunpack.c.h.b16 %v3077
        %v5877 = vunpack.c.l.b16 %v3078
        %v5878 = vunpack.c.h.b16 %v3078
        %v5879 = vunpack.c.l.b16 %v3079
        %v5880 = vunpack.c.h.b16 %v3079
        %v5881 = vunpack.c.l.b16 %v3080
        %v5882 = vunpack.c.h.b16 %v3080
        %v5883 = vunpack.c.l.b16 %v3081
        %v5884 = vunpack.c.h.b16 %v3081
        %v5885 = vunpack.c.l.b16 %v3082
        %v5886 = vunpack.c.h.b16 %v3082
        %v5887 = vunpack.c.l.b16 %v3083
        %v5888 = vunpack.c.h.b16 %v3083
        %v5889 = vunpack.c.l.b16 %v3084
        %v5890 = vunpack.c.h.b16 %v3084
        %v5891 = vunpack.c.l.b16 %v3085
        %v5892 = vunpack.c.h.b16 %v3085
        %v5893 = vunpack.c.l.b16 %v3086
        %v5894 = vunpack.c.h.b16 %v3086
        %v5895 = vunpack.c.l.b16 %v3087
        %v5896 = vunpack.c.h.b16 %v3087
        %v5897 = vunpack.c.l.b16 %v3088
        %v5898 = vunpack.c.h.b16 %v3088
        %v5899 = vunpack.c.l.b16 %v3089
        %v5900 = vunpack.c.h.b16 %v3089
        %v5901 = vunpack.c.l.b16 %v3090
        %v5902 = vunpack.c.h.b16 %v3090
        %v5903 = vunpack.c.l.b16 %v3091
        %v5904 = vunpack.c.h.b16 %v3091
        %v5905 = vunpack.c.l.b16 %v3092
        %v5906 = vunpack.c.h.b16 %v3092
        %v5907 = vunpack.c.l.b16 %v3093
        %v5908 = vunpack.c.h.b16 %v3093
        %v5909 = vunpack.c.l.b16 %v3094
        %v5910 = vunpack.c.h.b16 %v3094
        %v5911 = vunpack.c.l.b16 %v3095
        %v5912 = vunpack.c.h.b16 %v3095
        %v5913 = vunpack.c.l.b16 %v3096
        %v5914 = vunpack.c.h.b16 %v3096
        %v5915 = vunpack.c.l.b16 %v3097
        %v5916 = vunpack.c.h.b16 %v3097
        %v5917 = vunpack.c.l.b16 %v3098
        %v5918 = vunpack.c.h.b16 %v3098
        %v5919 = vunpack.c.l.b16 %v3099
        %v5920 = vunpack.c.h.b16 %v3099
        %v5921 = vunpack.c.l.b16 %v3100
        %v5922 = vunpack.c.h.b16 %v3100
        %v5923 = vunpack.c.l.b16 %v3101
        %v5924 = vunpack.c.h.b16 %v3101
        %v5925 = vunpack.c.l.b16 %v3102
        %v5926 = vunpack.c.h.b16 %v3102
        %v5927 = vunpack.c.l.b16 %v3103
        %v5928 = vunpack.c.h.b16 %v3103
        %v5929 = vunpack.c.l.b16 %v3104
        %v5930 = vunpack.c.h.b16 %v3104
        %v5931 = vunpack.c.l.b16 %v3105
        %v5932 = vunpack.c.h.b16 %v3105
        %v5933 = vunpack.c.l.b16 %v3106
        %v5934 = vunpack.c.h.b16 %v3106
        %v5935 = vunpack.c.l.b16 %v3107
        %v5936 = vunpack.c.h.b16 %v3107
        %v5937 = vunpack.c.l.b16 %v3108
        %v5938 = vunpack.c.h.b16 %v3108
        %v5939 = vunpack.c.l.b16 %v3109
        %v5940 = vunpack.c.h.b16 %v3109
        %v5941 = vunpack.c.l.b16 %v3110
        %v5942 = vunpack.c.h.b16 %v3110
        %v5943 = vunpack.c.l.b16 %v3111
        %v5944 = vunpack.c.h.b16 %v3111
        %v5945 = vunpack.c.l.b16 %v3112
        %v5946 = vunpack.c.h.b16 %v3112
        %v5947 = vunpack.c.l.b16 %v3113
        %v5948 = vunpack.c.h.b16 %v3113
        %v5949 = vunpack.c.l.b16 %v3114
        %v5950 = vunpack.c.h.b16 %v3114
        %v5951 = vunpack.c.l.b16 %v3115
        %v5952 = vunpack.c.h.b16 %v3115
        %v5953 = vunpack.c.l.b16 %v3116
        %v5954 = vunpack.c.h.b16 %v3116
        %v5955 = vunpack.c.l.b16 %v3117
        %v5956 = vunpack.c.h.b16 %v3117
        %v5957 = vunpack.c.l.b16 %v3118
        %v5958 = vunpack.c.h.b16 %v3118
        %v5959 = vunpack.c.l.b16 %v3119
        %v5960 = vunpack.c.h.b16 %v3119
        %v5961 = vunpack.c.l.b16 %v3120
        %v5962 = vunpack.c.h.b16 %v3120
        %v5963 = vunpack.c.l.b16 %v3121
        %v5964 = vunpack.c.h.b16 %v3121
        %v5965 = vunpack.c.l.b16 %v3122
        %v5966 = vunpack.c.h.b16 %v3122
        %v5967 = vunpack.c.l.b16 %v3123
        %v5968 = vunpack.c.h.b16 %v3123
        %v5969 = vunpack.c.l.b16 %v3124
        %v5970 = vunpack.c.h.b16 %v3124
        %v5971 = vunpack.c.l.b16 %v3125
        %v5972 = vunpack.c.h.b16 %v3125
        %v5973 = vunpack.c.l.b16 %v3126
        %v5974 = vunpack.c.h.b16 %v3126
        %v5975 = vunpack.c.l.b16 %v3127
        %v5976 = vunpack.c.h.b16 %v3127
        %v5977 = vunpack.c.l.b16 %v3128
        %v5978 = vunpack.c.h.b16 %v3128
        %v5979 = vunpack.c.l.b16 %v3129
        %v5980 = vunpack.c.h.b16 %v3129
        %v5981 = vunpack.c.l.b16 %v3130
        %v5982 = vunpack.c.h.b16 %v3130
        %v5983 = vunpack.c.l.b16 %v3131
        %v5984 = vunpack.c.h.b16 %v3131
        %v5985 = vunpack.c.l.b16 %v3132
        %v5986 = vunpack.c.h.b16 %v3132
        %v5987 = vunpack.c.l.b16 %v3133
        %v5988 = vunpack.c.h.b16 %v3133
        %v5989 = vunpack.c.l.b16 %v3134
        %v5990 = vunpack.c.h.b16 %v3134
        %v5991 = vunpack.c.l.b16 %v3135
        %v5992 = vunpack.c.h.b16 %v3135
        %v5993 = vunpack.c.l.b16 %v3136
        %v5994 = vunpack.c.h.b16 %v3136
        %v5995 = vunpack.c.l.b16 %v3137
        %v5996 = vunpack.c.h.b16 %v3137
        %v5997 = vunpack.c.l.b16 %v3138
        %v5998 = vunpack.c.h.b16 %v3138
        %v5999 = vunpack.c.l.b16 %v3139
        %v6000 = vunpack.c.h.b16 %v3139
        %v6001 = vunpack.c.l.b16 %v3140
        %v6002 = vunpack.c.h.b16 %v3140
        %v6003 = vunpack.c.l.b16 %v3141
        %v6004 = vunpack.c.h.b16 %v3141
        %v6005 = vunpack.c.l.b16 %v3142
        %v6006 = vunpack.c.h.b16 %v3142
        %v6007 = vunpack.c.l.b16 %v3143
        %v6008 = vunpack.c.h.b16 %v3143
        %v6009 = vunpack.c.l.b16 %v3144
        %v6010 = vunpack.c.h.b16 %v3144
        %v6011 = vunpack.c.l.b16 %v3145
        %v6012 = vunpack.c.h.b16 %v3145
        %v6013 = vunpack.c.l.b16 %v3146
        %v6014 = vunpack.c.h.b16 %v3146
        %v6015 = vunpack.c.l.b16 %v3147
        %v6016 = vunpack.c.h.b16 %v3147
        %v6017 = vunpack.c.l.b16 %v3148
        %v6018 = vunpack.c.h.b16 %v3148
        %v6019 = vunpack.c.l.b16 %v3149
        %v6020 = vunpack.c.h.b16 %v3149
        %v6021 = vunpack.c.l.b16 %v3150
        %v6022 = vunpack.c.h.b16 %v3150
        %v6023 = vunpack.c.l.b16 %v3151
        %v6024 = vunpack.c.h.b16 %v3151
        %v6025 = vunpack.c.l.b16 %v3152
        %v6026 = vunpack.c.h.b16 %v3152
        %v6027 = vunpack.c.l.b16 %v3153
        %v6028 = vunpack.c.h.b16 %v3153
        %v6029 = vunpack.c.l.b16 %v3154
        %v6030 = vunpack.c.h.b16 %v3154
        %v6031 = vunpack.c.l.b16 %v3155
        %v6032 = vunpack.c.h.b16 %v3155
        %v6033 = vunpack.c.l.b16 %v3156
        %v6034 = vunpack.c.h.b16 %v3156
        %v6035 = vunpack.c.l.b16 %v3157
        %v6036 = vunpack.c.h.b16 %v3157
        %v6037 = vunpack.c.l.b16 %v3158
        %v6038 = vunpack.c.h.b16 %v3158
        %v6039 = vunpack.c.l.b16 %v3159
        %v6040 = vunpack.c.h.b16 %v3159
        %v6041 = vunpack.c.l.b16 %v3160
        %v6042 = vunpack.c.h.b16 %v3160
        %v6043 = vunpack.c.l.b16 %v3161
        %v6044 = vunpack.c.h.b16 %v3161
        %v6045 = vunpack.c.l.b16 %v3162
        %v6046 = vunpack.c.h.b16 %v3162
        %v6047 = vunpack.c.l.b16 %v3163
        %v6048 = vunpack.c.h.b16 %v3163
        %v6049 = vunpack.c.l.b16 %v3164
        %v6050 = vunpack.c.h.b16 %v3164
        %v6051 = vunpack.c.l.b16 %v3165
        %v6052 = vunpack.c.h.b16 %v3165
        %v6053 = vunpack.c.l.b16 %v3166
        %v6054 = vunpack.c.h.b16 %v3166
        %v6055 = vunpack.c.l.b16 %v3167
        %v6056 = vunpack.c.h.b16 %v3167
        %v6057 = vunpack.c.l.b16 %v3168
        %v6058 = vunpack.c.h.b16 %v3168
        %v6059 = vunpack.c.l.b16 %v3169
        %v6060 = vunpack.c.h.b16 %v3169
        %v6061 = vunpack.c.l.b16 %v3170
        %v6062 = vunpack.c.h.b16 %v3170
        %v6063 = vunpack.c.l.b16 %v3171
        %v6064 = vunpack.c.h.b16 %v3171
        %v6065 = vunpack.c.l.b16 %v3172
        %v6066 = vunpack.c.h.b16 %v3172
        %v6067 = vunpack.c.l.b16 %v3173
        %v6068 = vunpack.c.h.b16 %v3173
        %v6069 = vunpack.c.l.b16 %v3174
        %v6070 = vunpack.c.h.b16 %v3174
        %v6071 = vunpack.c.l.b16 %v3175
        %v6072 = vunpack.c.h.b16 %v3175
        %v6073 = vunpack.c.l.b16 %v3176
        %v6074 = vunpack.c.h.b16 %v3176
        %v6075 = vunpack.c.l.b16 %v3177
        %v6076 = vunpack.c.h.b16 %v3177
        %v6077 = vunpack.c.l.b16 %v3178
        %v6078 = vunpack.c.h.b16 %v3178
        %v6079 = vunpack.c.l.b16 %v3179
        %v6080 = vunpack.c.h.b16 %v3179
        %v6081 = vunpack.c.l.b16 %v3180
        %v6082 = vunpack.c.h.b16 %v3180
        %v6083 = vunpack.c.l.b16 %v3181
        %v6084 = vunpack.c.h.b16 %v3181
        %v6085 = vunpack.c.l.b16 %v3182
        %v6086 = vunpack.c.h.b16 %v3182
        %v6087 = vunpack.c.l.b16 %v3183
        %v6088 = vunpack.c.h.b16 %v3183
        %v6089 = vunpack.c.l.b16 %v3184
        %v6090 = vunpack.c.h.b16 %v3184
        %v6091 = vunpack.c.l.b16 %v3185
        %v6092 = vunpack.c.h.b16 %v3185
        %v6093 = vunpack.c.l.b16 %v3186
        %v6094 = vunpack.c.h.b16 %v3186
        %v6095 = vunpack.c.l.b16 %v3187
        %v6096 = vunpack.c.h.b16 %v3187
        %v6097 = vunpack.c.l.b16 %v3188
        %v6098 = vunpack.c.h.b16 %v3188
        %v6099 = vunpack.c.l.b16 %v3189
        %v6100 = vunpack.c.h.b16 %v3189
        %v6101 = vunpack.c.l.b16 %v3190
        %v6102 = vunpack.c.h.b16 %v3190
        %v6103 = vunpack.c.l.b16 %v3191
        %v6104 = vunpack.c.h.b16 %v3191
        %v6105 = vunpack.c.l.b16 %v3192
        %v6106 = vunpack.c.h.b16 %v3192
        %v6107 = vunpack.c.l.b16 %v3193
        %v6108 = vunpack.c.h.b16 %v3193
        %v6109 = vunpack.c.l.b16 %v3194
        %v6110 = vunpack.c.h.b16 %v3194
        %v6111 = vunpack.c.l.b16 %v3195
        %v6112 = vunpack.c.h.b16 %v3195
        %v6113 = vunpack.c.l.b16 %v3196
        %v6114 = vunpack.c.h.b16 %v3196
        %v6115 = vunpack.c.l.b16 %v3197
        %v6116 = vunpack.c.h.b16 %v3197
        %v6117 = vunpack.c.l.b16 %v3198
        %v6118 = vunpack.c.h.b16 %v3198
        %v6119 = vunpack.c.l.b16 %v3199
        %v6120 = vunpack.c.h.b16 %v3199
        %v6121 = vunpack.c.l.b16 %v3200
        %v6122 = vunpack.c.h.b16 %v3200
        %v6123 = vunpack.c.l.b16 %v3201
        %v6124 = vunpack.c.h.b16 %v3201
        %v6125 = vunpack.c.l.b16 %v3202
        %v6126 = vunpack.c.h.b16 %v3202
        %v6127 = vunpack.c.l.b16 %v3203
        %v6128 = vunpack.c.h.b16 %v3203
        %v6129 = vunpack.c.l.b16 %v3204
        %v6130 = vunpack.c.h.b16 %v3204
        %v6131 = vunpack.c.l.b16 %v3205
        %v6132 = vunpack.c.h.b16 %v3205
        %v6133 = vunpack.c.l.b16 %v3206
        %v6134 = vunpack.c.h.b16 %v3206
        %v6135 = vunpack.c.l.b16 %v3207
        %v6136 = vunpack.c.h.b16 %v3207
        %v6137 = vunpack.c.l.b16 %v3208
        %v6138 = vunpack.c.h.b16 %v3208
        %v6139 = vunpack.c.l.b16 %v3209
        %v6140 = vunpack.c.h.b16 %v3209
        %v6141 = vunpack.c.l.b16 %v3210
        %v6142 = vunpack.c.h.b16 %v3210
        %v6143 = vunpack.c.l.b16 %v3211
        %v6144 = vunpack.c.h.b16 %v3211
        %v6145 = vunpack.c.l.b16 %v3212
        %v6146 = vunpack.c.h.b16 %v3212
        %v6147 = vunpack.c.l.b16 %v3213
        %v6148 = vunpack.c.h.b16 %v3213
        %v6149 = vunpack.c.l.b16 %v3214
        %v6150 = vunpack.c.h.b16 %v3214
        %v6151 = vunpack.c.l.b16 %v3215
        %v6152 = vunpack.c.h.b16 %v3215
        %v6153 = vunpack.c.l.b16 %v3216
        %v6154 = vunpack.c.h.b16 %v3216
        %v6155 = vunpack.c.l.b16 %v3217
        %v6156 = vunpack.c.h.b16 %v3217
        %v6157 = vunpack.c.l.b16 %v3218
        %v6158 = vunpack.c.h.b16 %v3218
        %v6159 = vunpack.c.l.b16 %v3219
        %v6160 = vunpack.c.h.b16 %v3219
        %v6161 = vunpack.c.l.b16 %v3220
        %v6162 = vunpack.c.h.b16 %v3220
        %v6163 = vunpack.c.l.b16 %v3221
        %v6164 = vunpack.c.h.b16 %v3221
        %v6165 = vunpack.c.l.b16 %v3222
        %v6166 = vunpack.c.h.b16 %v3222
        %v6167 = vunpack.c.l.b16 %v3223
        %v6168 = vunpack.c.h.b16 %v3223
        %v6169 = vunpack.c.l.b16 %v3224
        %v6170 = vunpack.c.h.b16 %v3224
        %v6171 = vunpack.c.l.b16 %v3225
        %v6172 = vunpack.c.h.b16 %v3225
        %v6173 = vunpack.c.l.b16 %v3226
        %v6174 = vunpack.c.h.b16 %v3226
        %v6175 = vunpack.c.l.b16 %v3227
        %v6176 = vunpack.c.h.b16 %v3227
        %v6177 = vunpack.c.l.b16 %v3228
        %v6178 = vunpack.c.h.b16 %v3228
        %v6179 = vunpack.c.l.b16 %v3229
        %v6180 = vunpack.c.h.b16 %v3229
        %v6181 = vunpack.c.l.b16 %v3230
        %v6182 = vunpack.c.h.b16 %v3230
        %v6183 = vunpack.c.l.b16 %v3231
        %v6184 = vunpack.c.h.b16 %v3231
        %v6185 = vunpack.c.l.b16 %v3232
        %v6186 = vunpack.c.h.b16 %v3232
        %v6187 = vunpack.c.l.b16 %v3233
        %v6188 = vunpack.c.h.b16 %v3233
        %v6189 = vunpack.c.l.b16 %v3234
        %v6190 = vunpack.c.h.b16 %v3234
        %v6191 = vunpack.c.l.b16 %v3235
        %v6192 = vunpack.c.h.b16 %v3235
        %v6193 = vunpack.c.l.b16 %v3236
        %v6194 = vunpack.c.h.b16 %v3236
        %v6195 = vunpack.c.l.b16 %v3237
        %v6196 = vunpack.c.h.b16 %v3237
        %v6197 = vunpack.c.l.b16 %v3238
        %v6198 = vunpack.c.h.b16 %v3238
        %v6199 = vunpack.c.l.b16 %v3239
        %v6200 = vunpack.c.h.b16 %v3239
        %v6201 = vunpack.c.l.b16 %v3240
        %v6202 = vunpack.c.h.b16 %v3240
        %v6203 = vunpack.c.l.b16 %v3241
        %v6204 = vunpack.c.h.b16 %v3241
        %v6205 = vunpack.c.l.b16 %v3242
        %v6206 = vunpack.c.h.b16 %v3242
        %v6207 = vunpack.c.l.b16 %v3243
        %v6208 = vunpack.c.h.b16 %v3243
        %v6209 = vunpack.c.l.b16 %v3244
        %v6210 = vunpack.c.h.b16 %v3244
        %v6211 = vunpack.c.l.b16 %v3245
        %v6212 = vunpack.c.h.b16 %v3245
        %v6213 = vunpack.c.l.b16 %v3246
        %v6214 = vunpack.c.h.b16 %v3246
        %v6215 = vunpack.c.l.b16 %v3247
        %v6216 = vunpack.c.h.b16 %v3247
        %v6217 = vunpack.c.l.b16 %v3248
        %v6218 = vunpack.c.h.b16 %v3248
        %v6219 = vunpack.c.l.b16 %v3249
        %v6220 = vunpack.c.h.b16 %v3249
        %v6221 = vunpack.c.l.b16 %v3250
        %v6222 = vunpack.c.h.b16 %v3250
        %v6223 = vunpack.c.l.b16 %v3251
        %v6224 = vunpack.c.h.b16 %v3251
        %v6225 = vunpack.c.l.b16 %v3252
        %v6226 = vunpack.c.h.b16 %v3252
        %v6227 = vunpack.c.l.b16 %v3253
        %v6228 = vunpack.c.h.b16 %v3253
        %v6229 = vunpack.c.l.b16 %v3254
        %v6230 = vunpack.c.h.b16 %v3254
        %v6231 = vunpack.c.l.b16 %v3255
        %v6232 = vunpack.c.h.b16 %v3255
        %v6233 = vunpack.c.l.b16 %v3256
        %v6234 = vunpack.c.h.b16 %v3256
        %v6235 = vunpack.c.l.b16 %v3257
        %v6236 = vunpack.c.h.b16 %v3257
        %v6237 = vunpack.c.l.b16 %v3258
        %v6238 = vunpack.c.h.b16 %v3258
        %v6239 = vunpack.c.l.b16 %v3259
        %v6240 = vunpack.c.h.b16 %v3259
        %v6241 = vunpack.c.l.b16 %v3260
        %v6242 = vunpack.c.h.b16 %v3260
        %v6243 = vunpack.c.l.b16 %v3261
        %v6244 = vunpack.c.h.b16 %v3261
        %v6245 = vunpack.c.l.b16 %v3262
        %v6246 = vunpack.c.h.b16 %v3262
        %v6247 = vunpack.c.l.b16 %v3263
        %v6248 = vunpack.c.h.b16 %v3263
        %v6249 = vunpack.c.l.b16 %v3264
        %v6250 = vunpack.c.h.b16 %v3264
        %v6251 = vunpack.c.l.b16 %v3265
        %v6252 = vunpack.c.h.b16 %v3265
        %v6253 = vunpack.c.l.b16 %v3266
        %v6254 = vunpack.c.h.b16 %v3266
        %v6255 = vunpack.c.l.b16 %v3267
        %v6256 = vunpack.c.h.b16 %v3267
        %v6257 = vunpack.c.l.b16 %v3268
        %v6258 = vunpack.c.h.b16 %v3268
        %v6259 = vunpack.c.l.b16 %v3269
        %v6260 = vunpack.c.h.b16 %v3269
        %v6261 = vunpack.c.l.b16 %v3270
        %v6262 = vunpack.c.h.b16 %v3270
        %v6263 = vunpack.c.l.b16 %v3271
        %v6264 = vunpack.c.h.b16 %v3271
        %v6265 = vunpack.c.l.b16 %v3272
        %v6266 = vunpack.c.h.b16 %v3272
        %v6267 = vunpack.c.l.b16 %v3273
        %v6268 = vunpack.c.h.b16 %v3273
        %v6269 = vunpack.c.l.b16 %v3274
        %v6270 = vunpack.c.h.b16 %v3274
        %v6271 = vunpack.c.l.b16 %v3275
        %v6272 = vunpack.c.h.b16 %v3275
        %v6273 = vunpack.c.l.b16 %v3276
        %v6274 = vunpack.c.h.b16 %v3276
        %v6275 = vunpack.c.l.b16 %v3277
        %v6276 = vunpack.c.h.b16 %v3277
        %v6277 = vunpack.c.l.b16 %v3278
        %v6278 = vunpack.c.h.b16 %v3278
        %v6279 = vunpack.c.l.b16 %v3279
        %v6280 = vunpack.c.h.b16 %v3279
        %v6281 = vunpack.c.l.b16 %v3280
        %v6282 = vunpack.c.h.b16 %v3280
        %v6283 = vunpack.c.l.b16 %v3281
        %v6284 = vunpack.c.h.b16 %v3281
        %v6285 = vunpack.c.l.b16 %v3282
        %v6286 = vunpack.c.h.b16 %v3282
        %v6287 = vunpack.c.l.b16 %v3283
        %v6288 = vunpack.c.h.b16 %v3283
        %v6289 = vunpack.c.l.b16 %v3284
        %v6290 = vunpack.c.h.b16 %v3284
        %v6291 = vunpack.c.l.b16 %v3285
        %v6292 = vunpack.c.h.b16 %v3285
        %v6293 = vunpack.c.l.b16 %v3286
        %v6294 = vunpack.c.h.b16 %v3286
        %v6295 = vunpack.c.l.b16 %v3287
        %v6296 = vunpack.c.h.b16 %v3287
        %v6297 = vunpack.c.l.b16 %v3288
        %v6298 = vunpack.c.h.b16 %v3288
        %v6299 = vunpack.c.l.b16 %v3289
        %v6300 = vunpack.c.h.b16 %v3289
        %v6301 = vunpack.c.l.b16 %v3290
        %v6302 = vunpack.c.h.b16 %v3290
        %v6303 = vunpack.c.l.b16 %v3291
        %v6304 = vunpack.c.h.b16 %v3291
        %v6305 = vunpack.c.l.b16 %v3292
        %v6306 = vunpack.c.h.b16 %v3292
        %v6307 = vunpack.c.l.b16 %v3293
        %v6308 = vunpack.c.h.b16 %v3293
        %v6309 = vunpack.c.l.b16 %v3294
        %v6310 = vunpack.c.h.b16 %v3294
        %v6311 = vunpack.c.l.b16 %v3295
        %v6312 = vunpack.c.h.b16 %v3295
        %v6313 = vunpack.c.l.b16 %v3296
        %v6314 = vunpack.c.h.b16 %v3296
        %v6315 = vunpack.c.l.b16 %v3297
        %v6316 = vunpack.c.h.b16 %v3297
        %v6317 = vunpack.c.l.b16 %v3298
        %v6318 = vunpack.c.h.b16 %v3298
        %v6319 = vunpack.c.l.b16 %v3299
        %v6320 = vunpack.c.h.b16 %v3299
        %v6321 = vunpack.c.l.b16 %v3300
        %v6322 = vunpack.c.h.b16 %v3300
        %v6323 = vunpack.c.l.b16 %v3301
        %v6324 = vunpack.c.h.b16 %v3301
        %v6325 = vunpack.c.l.b16 %v3302
        %v6326 = vunpack.c.h.b16 %v3302
        %v6327 = vunpack.c.l.b16 %v3303
        %v6328 = vunpack.c.h.b16 %v3303
        %v6329 = vunpack.c.l.b16 %v3304
        %v6330 = vunpack.c.h.b16 %v3304
        %v6331 = vunpack.c.l.b16 %v3305
        %v6332 = vunpack.c.h.b16 %v3305
        %v6333 = vunpack.c.l.b16 %v3306
        %v6334 = vunpack.c.h.b16 %v3306
        %v6335 = vunpack.c.l.b16 %v3307
        %v6336 = vunpack.c.h.b16 %v3307
        %v6337 = vunpack.c.l.b16 %v3308
        %v6338 = vunpack.c.h.b16 %v3308
        %v6339 = vunpack.c.l.b16 %v3309
        %v6340 = vunpack.c.h.b16 %v3309
        %v6341 = vunpack.c.l.b16 %v3310
        %v6342 = vunpack.c.h.b16 %v3310
        %v6343 = vunpack.c.l.b16 %v3311
        %v6344 = vunpack.c.h.b16 %v3311
        %v6345 = vunpack.c.l.b16 %v3312
        %v6346 = vunpack.c.h.b16 %v3312
        %v6347 = vunpack.c.l.b16 %v3313
        %v6348 = vunpack.c.h.b16 %v3313
        %v6349 = vunpack.c.l.b16 %v3314
        %v6350 = vunpack.c.h.b16 %v3314
        %v6351 = vunpack.c.l.b16 %v3315
        %v6352 = vunpack.c.h.b16 %v3315
        %v6353 = vunpack.c.l.b16 %v3316
        %v6354 = vunpack.c.h.b16 %v3316
        %v6355 = vunpack.c.l.b16 %v3317
        %v6356 = vunpack.c.h.b16 %v3317
        %v6357 = vunpack.c.l.b16 %v3318
        %v6358 = vunpack.c.h.b16 %v3318
        %v6359 = vunpack.c.l.b16 %v3319
        %v6360 = vunpack.c.h.b16 %v3319
        %v6361 = vunpack.c.l.b16 %v3320
        %v6362 = vunpack.c.h.b16 %v3320
        %v6363 = vunpack.c.l.b16 %v3321
        %v6364 = vunpack.c.h.b16 %v3321
        %v6365 = vunpack.c.l.b16 %v3322
        %v6366 = vunpack.c.h.b16 %v3322
        %v6367 = vunpack.c.l.b16 %v3323
        %v6368 = vunpack.c.h.b16 %v3323
        %v6369 = vunpack.c.l.b16 %v3324
        %v6370 = vunpack.c.h.b16 %v3324
        %v6371 = vunpack.c.l.b16 %v3325
        %v6372 = vunpack.c.h.b16 %v3325
        %v6373 = vunpack.c.l.b16 %v3326
        %v6374 = vunpack.c.h.b16 %v3326
        %v6375 = vunpack.c.l.b16 %v3327
        %v6376 = vunpack.c.h.b16 %v3327
        %v6377 = vunpack.c.l.b16 %v3328
        %v6378 = vunpack.c.h.b16 %v3328
        %v6379 = vunpack.c.l.b16 %v3329
        %v6380 = vunpack.c.h.b16 %v3329
        %v6381 = vunpack.c.l.b16 %v3330
        %v6382 = vunpack.c.h.b16 %v3330
        %v6383 = vunpack.c.l.b16 %v3331
        %v6384 = vunpack.c.h.b16 %v3331
        %v6385 = vunpack.c.l.b16 %v3332
        %v6386 = vunpack.c.h.b16 %v3332
        %v6387 = vunpack.c.l.b16 %v3333
        %v6388 = vunpack.c.h.b16 %v3333
        %v6389 = vunpack.c.l.b16 %v3334
        %v6390 = vunpack.c.h.b16 %v3334
        %v6391 = vunpack.c.l.b16 %v3335
        %v6392 = vunpack.c.h.b16 %v3335
        %v6393 = vunpack.c.l.b16 %v3336
        %v6394 = vunpack.c.h.b16 %v3336
        %v6395 = vunpack.c.l.b16 %v3337
        %v6396 = vunpack.c.h.b16 %v3337
        %v6397 = vunpack.c.l.b16 %v3338
        %v6398 = vunpack.c.h.b16 %v3338
        %v6399 = vunpack.c.l.b16 %v3339
        %v6400 = vunpack.c.h.b16 %v3339
        %v6401 = vunpack.c.l.b16 %v3340
        %v6402 = vunpack.c.h.b16 %v3340
        %v6403 = vunpack.c.l.b16 %v3341
        %v6404 = vunpack.c.h.b16 %v3341
        %v6405 = vunpack.c.l.b16 %v3342
        %v6406 = vunpack.c.h.b16 %v3342
        %v6407 = vunpack.c.l.b16 %v3343
        %v6408 = vunpack.c.h.b16 %v3343
        %v6409 = vunpack.c.l.b16 %v3344
        %v6410 = vunpack.c.h.b16 %v3344
        %v6411 = vunpack.c.l.b16 %v3345
        %v6412 = vunpack.c.h.b16 %v3345
        %v6413 = vunpack.c.l.b16 %v3346
        %v6414 = vunpack.c.h.b16 %v3346
        %v6415 = vunpack.c.l.b16 %v3347
        %v6416 = vunpack.c.h.b16 %v3347
        %v6417 = vunpack.c.l.b16 %v3348
        %v6418 = vunpack.c.h.b16 %v3348
        %v6419 = vunpack.c.l.b16 %v3349
        %v6420 = vunpack.c.h.b16 %v3349
        %v6421 = vunpack.c.l.b16 %v3350
        %v6422 = vunpack.c.h.b16 %v3350
        %v6423 = vpack.c.b16 %v4407, %v4375
        %v6424 = vpack.c.b16 %v4408, %v4376
        %v6425 = vpack.c.b16 %v4409, %v4377
        %v6426 = vpack.c.b16 %v4410, %v4378
        %v6427 = vpack.c.b16 %v4411, %v4379
        %v6428 = vpack.c.b16 %v4412, %v4380
        %v6429 = vpack.c.b16 %v4413, %v4381
        %v6430 = vpack.c.b16 %v4414, %v4382
        %v6431 = vpack.c.b16 %v4415, %v4383
        %v6432 = vpack.c.b16 %v4416, %v4384
        %v6433 = vpack.c.b16 %v4417, %v4385
        %v6434 = vpack.c.b16 %v4418, %v4386
        %v6435 = vpack.c.b16 %v4419, %v4387
        %v6436 = vpack.c.b16 %v4420, %v4388
        %v6437 = vpack.c.b16 %v4421, %v4389
        %v6438 = vpack.c.b16 %v4422, %v4390
        %v6439 = vpack.c.b16 %v4423, %v4391
        %v6440 = vpack.c.b16 %v4424, %v4392
        %v6441 = vpack.c.b16 %v4425, %v4393
        %v6442 = vpack.c.b16 %v4426, %v4394
        %v6443 = vpack.c.b16 %v4427, %v4395
        %v6444 = vpack.c.b16 %v4428, %v4396
        %v6445 = vpack.c.b16 %v4429, %v4397
        %v6446 = vpack.c.b16 %v4430, %v4398
        %v6447 = vpack.c.b16 %v4431, %v4399
        %v6448 = vpack.c.b16 %v4432, %v4400
        %v6449 = vpack.c.b16 %v4433, %v4401
        %v6450 = vpack.c.b16 %v4434, %v4402
        %v6451 = vpack.c.b16 %v4435, %v4403
        %v6452 = vpack.c.b16 %v4436, %v4404
        %v6453 = vpack.c.b16 %v4437, %v4405
        %v6454 = vpack.c.b16 %v4438, %v4406
        %v6455 = vpack.c.b16 %v4471, %v4439
        %v6456 = vpack.c.b16 %v4472, %v4440
        %v6457 = vpack.c.b16 %v4473, %v4441
        %v6458 = vpack.c.b16 %v4474, %v4442
        %v6459 = vpack.c.b16 %v4475, %v4443
        %v6460 = vpack.c.b16 %v4476, %v4444
        %v6461 = vpack.c.b16 %v4477, %v4445
        %v6462 = vpack.c.b16 %v4478, %v4446
        %v6463 = vpack.c.b16 %v4479, %v4447
        %v6464 = vpack.c.b16 %v4480, %v4448
        %v6465 = vpack.c.b16 %v4481, %v4449
        %v6466 = vpack.c.b16 %v4482, %v4450
        %v6467 = vpack.c.b16 %v4483, %v4451
        %v6468 = vpack.c.b16 %v4484, %v4452
        %v6469 = vpack.c.b16 %v4485, %v4453
        %v6470 = vpack.c.b16 %v4486, %v4454
        %v6471 = vpack.c.b16 %v4487, %v4455
        %v6472 = vpack.c.b16 %v4488, %v4456
        %v6473 = vpack.c.b16 %v4489, %v4457
        %v6474 = vpack.c.b16 %v4490, %v4458
        %v6475 = vpack.c.b16 %v4491, %v4459
        %v6476 = vpack.c.b16 %v4492, %v4460
        %v6477 = vpack.c.b16 %v4493, %v4461
        %v6478 = vpack.c.b16 %v4494, %v4462
        %v6479 = vpack.c.b16 %v4495, %v4463
        %v6480 = vpack.c.b16 %v4496, %v4464
        %v6481 = vpack.c.b16 %v4497, %v4465
        %v6482 = vpack.c.b16 %v4498, %v4466
        %v6483 = vpack.c.b16 %v4499, %v4467
        %v6484 = vpack.c.b16 %v4500, %v4468
        %v6485 = vpack.c.b16 %v4501, %v4469
        %v6486 = vpack.c.b16 %v4502, %v4470
        %v6487 = vpack.c.b16 %v4535, %v4503
        %v6488 = vpack.c.b16 %v4536, %v4504
        %v6489 = vpack.c.b16 %v4537, %v4505
        %v6490 = vpack.c.b16 %v4538, %v4506
        %v6491 = vpack.c.b16 %v4539, %v4507
        %v6492 = vpack.c.b16 %v4540, %v4508
        %v6493 = vpack.c.b16 %v4541, %v4509
        %v6494 = vpack.c.b16 %v4542, %v4510
        %v6495 = vpack.c.b16 %v4543, %v4511
        %v6496 = vpack.c.b16 %v4544, %v4512
        %v6497 = vpack.c.b16 %v4545, %v4513
        %v6498 = vpack.c.b16 %v4546, %v4514
        %v6499 = vpack.c.b16 %v4547, %v4515
        %v6500 = vpack.c.b16 %v4548, %v4516
        %v6501 = vpack.c.b16 %v4549, %v4517
        %v6502 = vpack.c.b16 %v4550, %v4518
        %v6503 = vpack.c.b16 %v4551, %v4519
        %v6504 = vpack.c.b16 %v4552, %v4520
        %v6505 = vpack.c.b16 %v4553, %v4521
        %v6506 = vpack.c.b16 %v4554, %v4522
        %v6507 = vpack.c.b16 %v4555, %v4523
        %v6508 = vpack.c.b16 %v4556, %v4524
        %v6509 = vpack.c.b16 %v4557, %v4525
        %v6510 = vpack.c.b16 %v4558, %v4526
        %v6511 = vpack.c.b16 %v4559, %v4527
        %v6512 = vpack.c.b16 %v4560, %v4528
        %v6513 = vpack.c.b16 %v4561, %v4529
        %v6514 = vpack.c.b16 %v4562, %v4530
        %v6515 = vpack.c.b16 %v4563, %v4531
        %v6516 = vpack.c.b16 %v4564, %v4532
        %v6517 = vpack.c.b16 %v4565, %v4533
        %v6518 = vpack.c.b16 %v4566, %v4534
        %v6519 = vpack.c.b16 %v4599, %v4567
        %v6520 = vpack.c.b16 %v4600, %v4568
        %v6521 = vpack.c.b16 %v4601, %v4569
        %v6522 = vpack.c.b16 %v4602, %v4570
        %v6523 = vpack.c.b16 %v4603, %v4571
        %v6524 = vpack.c.b16 %v4604, %v4572
        %v6525 = vpack.c.b16 %v4605, %v4573
        %v6526 = vpack.c.b16 %v4606, %v4574
        %v6527 = vpack.c.b16 %v4607, %v4575
        %v6528 = vpack.c.b16 %v4608, %v4576
        %v6529 = vpack.c.b16 %v4609, %v4577
        %v6530 = vpack.c.b16 %v4610, %v4578
        %v6531 = vpack.c.b16 %v4611, %v4579
        %v6532 = vpack.c.b16 %v4612, %v4580
        %v6533 = vpack.c.b16 %v4613, %v4581
        %v6534 = vpack.c.b16 %v4614, %v4582
        %v6535 = vpack.c.b16 %v4615, %v4583
        %v6536 = vpack.c.b16 %v4616, %v4584
        %v6537 = vpack.c.b16 %v4617, %v4585
        %v6538 = vpack.c.b16 %v4618, %v4586
        %v6539 = vpack.c.b16 %v4619, %v4587
        %v6540 = vpack.c.b16 %v4620, %v4588
        %v6541 = vpack.c.b16 %v4621, %v4589
        %v6542 = vpack.c.b16 %v4622, %v4590
        %v6543 = vpack.c.b16 %v4623, %v4591
        %v6544 = vpack.c.b16 %v4624, %v4592
        %v6545 = vpack.c.b16 %v4625, %v4593
        %v6546 = vpack.c.b16 %v4626, %v4594
        %v6547 = vpack.c.b16 %v4627, %v4595
        %v6548 = vpack.c.b16 %v4628, %v4596
        %v6549 = vpack.c.b16 %v4629, %v4597
        %v6550 = vpack.c.b16 %v4630, %v4598
        %v6551 = vpack.c.b16 %v4663, %v4631
        %v6552 = vpack.c.b16 %v4664, %v4632
        %v6553 = vpack.c.b16 %v4665, %v4633
        %v6554 = vpack.c.b16 %v4666, %v4634
        %v6555 = vpack.c.b16 %v4667, %v4635
        %v6556 = vpack.c.b16 %v4668, %v4636
        %v6557 = vpack.c.b16 %v4669, %v4637
        %v6558 = vpack.c.b16 %v4670, %v4638
        %v6559 = vpack.c.b16 %v4671, %v4639
        %v6560 = vpack.c.b16 %v4672, %v4640
        %v6561 = vpack.c.b16 %v4673, %v4641
        %v6562 = vpack.c.b16 %v4674, %v4642
        %v6563 = vpack.c.b16 %v4675, %v4643
        %v6564 = vpack.c.b16 %v4676, %v4644
        %v6565 = vpack.c.b16 %v4677, %v4645
        %v6566 = vpack.c.b16 %v4678, %v4646
        %v6567 = vpack.c.b16 %v4679, %v4647
        %v6568 = vpack.c.b16 %v4680, %v4648
        %v6569 = vpack.c.b16 %v4681, %v4649
        %v6570 = vpack.c.b16 %v4682, %v4650
        %v6571 = vpack.c.b16 %v4683, %v4651
        %v6572 = vpack.c.b16 %v4684, %v4652
        %v6573 = vpack.c.b16 %v4685, %v4653
        %v6574 = vpack.c.b16 %v4686, %v4654
        %v6575 = vpack.c.b16 %v4687, %v4655
        %v6576 = vpack.c.b16 %v4688, %v4656
        %v6577 = vpack.c.b16 %v4689, %v4657
        %v6578 = vpack.c.b16 %v4690, %v4658
        %v6579 = vpack.c.b16 %v4691, %v4659
        %v6580 = vpack.c.b16 %v4692, %v4660
        %v6581 = vpack.c.b16 %v4693, %v4661
        %v6582 = vpack.c.b16 %v4694, %v4662
        %v6583 = vpack.c.b16 %v4727, %v4695
        %v6584 = vpack.c.b16 %v4728, %v4696
        %v6585 = vpack.c.b16 %v4729, %v4697
        %v6586 = vpack.c.b16 %v4730, %v4698
        %v6587 = vpack.c.b16 %v4731, %v4699
        %v6588 = vpack.c.b16 %v4732, %v4700
        %v6589 = vpack.c.b16 %v4733, %v4701
        %v6590 = vpack.c.b16 %v4734, %v4702
        %v6591 = vpack.c.b16 %v4735, %v4703
        %v6592 = vpack.c.b16 %v4736, %v4704
        %v6593 = vpack.c.b16 %v4737, %v4705
        %v6594 = vpack.c.b16 %v4738, %v4706
        %v6595 = vpack.c.b16 %v4739, %v4707
        %v6596 = vpack.c.b16 %v4740, %v4708
        %v6597 = vpack.c.b16 %v4741, %v4709
        %v6598 = vpack.c.b16 %v4742, %v4710
        %v6599 = vpack.c.b16 %v4743, %v4711
        %v6600 = vpack.c.b16 %v4744, %v4712
        %v6601 = vpack.c.b16 %v4745, %v4713
        %v6602 = vpack.c.b16 %v4746, %v4714
        %v6603 = vpack.c.b16 %v4747, %v4715
        %v6604 = vpack.c.b16 %v4748, %v4716
        %v6605 = vpack.c.b16 %v4749, %v4717
        %v6606 = vpack.c.b16 %v4750, %v4718
        %v6607 = vpack.c.b16 %v4751, %v4719
        %v6608 = vpack.c.b16 %v4752, %v4720
        %v6609 = vpack.c.b16 %v4753, %v4721
        %v6610 = vpack.c.b16 %v4754, %v4722
        %v6611 = vpack.c.b16 %v4755, %v4723
        %v6612 = vpack.c.b16 %v4756, %v4724
        %v6613 = vpack.c.b16 %v4757, %v4725
        %v6614 = vpack.c.b16 %v4758, %v4726
        %v6615 = vpack.c.b16 %v4791, %v4759
        %v6616 = vpack.c.b16 %v4792, %v4760
        %v6617 = vpack.c.b16 %v4793, %v4761
        %v6618 = vpack.c.b16 %v4794, %v4762
        %v6619 = vpack.c.b16 %v4795, %v4763
        %v6620 = vpack.c.b16 %v4796, %v4764
        %v6621 = vpack.c.b16 %v4797, %v4765
        %v6622 = vpack.c.b16 %v4798, %v4766
        %v6623 = vpack.c.b16 %v4799, %v4767
        %v6624 = vpack.c.b16 %v4800, %v4768
        %v6625 = vpack.c.b16 %v4801, %v4769
        %v6626 = vpack.c.b16 %v4802, %v4770
        %v6627 = vpack.c.b16 %v4803, %v4771
        %v6628 = vpack.c.b16 %v4804, %v4772
        %v6629 = vpack.c.b16 %v4805, %v4773
        %v6630 = vpack.c.b16 %v4806, %v4774
        %v6631 = vpack.c.b16 %v4807, %v4775
        %v6632 = vpack.c.b16 %v4808, %v4776
        %v6633 = vpack.c.b16 %v4809, %v4777
        %v6634 = vpack.c.b16 %v4810, %v4778
        %v6635 = vpack.c.b16 %v4811, %v4779
        %v6636 = vpack.c.b16 %v4812, %v4780
        %v6637 = vpack.c.b16 %v4813, %v4781
        %v6638 = vpack.c.b16 %v4814, %v4782
        %v6639 = vpack.c.b16 %v4815, %v4783
        %v6640 = vpack.c.b16 %v4816, %v4784
        %v6641 = vpack.c.b16 %v4817, %v4785
        %v6642 = vpack.c.b16 %v4818, %v4786
        %v6643 = vpack.c.b16 %v4819, %v4787
        %v6644 = vpack.c.b16 %v4820, %v4788
        %v6645 = vpack.c.b16 %v4821, %v4789
        %v6646 = vpack.c.b16 %v4822, %v4790
        %v6647 = vpack.c.b16 %v4855, %v4823
        %v6648 = vpack.c.b16 %v4856, %v4824
        %v6649 = vpack.c.b16 %v4857, %v4825
        %v6650 = vpack.c.b16 %v4858, %v4826
        %v6651 = vpack.c.b16 %v4859, %v4827
        %v6652 = vpack.c.b16 %v4860, %v4828
        %v6653 = vpack.c.b16 %v4861, %v4829
        %v6654 = vpack.c.b16 %v4862, %v4830
        %v6655 = vpack.c.b16 %v4863, %v4831
        %v6656 = vpack.c.b16 %v4864, %v4832
        %v6657 = vpack.c.b16 %v4865, %v4833
        %v6658 = vpack.c.b16 %v4866, %v4834
        %v6659 = vpack.c.b16 %v4867, %v4835
        %v6660 = vpack.c.b16 %v4868, %v4836
        %v6661 = vpack.c.b16 %v4869, %v4837
        %v6662 = vpack.c.b16 %v4870, %v4838
        %v6663 = vpack.c.b16 %v4871, %v4839
        %v6664 = vpack.c.b16 %v4872, %v4840
        %v6665 = vpack.c.b16 %v4873, %v4841
        %v6666 = vpack.c.b16 %v4874, %v4842
        %v6667 = vpack.c.b16 %v4875, %v4843
        %v6668 = vpack.c.b16 %v4876, %v4844
        %v6669 = vpack.c.b16 %v4877, %v4845
        %v6670 = vpack.c.b16 %v4878, %v4846
        %v6671 = vpack.c.b16 %v4879, %v4847
        %v6672 = vpack.c.b16 %v4880, %v4848
        %v6673 = vpack.c.b16 %v4881, %v4849
        %v6674 = vpack.c.b16 %v4882, %v4850
        %v6675 = vpack.c.b16 %v4883, %v4851
        %v6676 = vpack.c.b16 %v4884, %v4852
        %v6677 = vpack.c.b16 %v4885, %v4853
        %v6678 = vpack.c.b16 %v4886, %v4854
        %v6679 = vpack.c.b16 %v4919, %v4887
        %v6680 = vpack.c.b16 %v4920, %v4888
        %v6681 = vpack.c.b16 %v4921, %v4889
        %v6682 = vpack.c.b16 %v4922, %v4890
        %v6683 = vpack.c.b16 %v4923, %v4891
        %v6684 = vpack.c.b16 %v4924, %v4892
        %v6685 = vpack.c.b16 %v4925, %v4893
        %v6686 = vpack.c.b16 %v4926, %v4894
        %v6687 = vpack.c.b16 %v4927, %v4895
        %v6688 = vpack.c.b16 %v4928, %v4896
        %v6689 = vpack.c.b16 %v4929, %v4897
        %v6690 = vpack.c.b16 %v4930, %v4898
        %v6691 = vpack.c.b16 %v4931, %v4899
        %v6692 = vpack.c.b16 %v4932, %v4900
        %v6693 = vpack.c.b16 %v4933, %v4901
        %v6694 = vpack.c.b16 %v4934, %v4902
        %v6695 = vpack.c.b16 %v4935, %v4903
        %v6696 = vpack.c.b16 %v4936, %v4904
        %v6697 = vpack.c.b16 %v4937, %v4905
        %v6698 = vpack.c.b16 %v4938, %v4906
        %v6699 = vpack.c.b16 %v4939, %v4907
        %v6700 = vpack.c.b16 %v4940, %v4908
        %v6701 = vpack.c.b16 %v4941, %v4909
        %v6702 = vpack.c.b16 %v4942, %v4910
        %v6703 = vpack.c.b16 %v4943, %v4911
        %v6704 = vpack.c.b16 %v4944, %v4912
        %v6705 = vpack.c.b16 %v4945, %v4913
        %v6706 = vpack.c.b16 %v4946, %v4914
        %v6707 = vpack.c.b16 %v4947, %v4915
        %v6708 = vpack.c.b16 %v4948, %v4916
        %v6709 = vpack.c.b16 %v4949, %v4917
        %v6710 = vpack.c.b16 %v4950, %v4918
        %v6711 = vpack.c.b16 %v4983, %v4951
        %v6712 = vpack.c.b16 %v4984, %v4952
        %v6713 = vpack.c.b16 %v4985, %v4953
        %v6714 = vpack.c.b16 %v4986, %v4954
        %v6715 = vpack.c.b16 %v4987, %v4955
        %v6716 = vpack.c.b16 %v4988, %v4956
        %v6717 = vpack.c.b16 %v4989, %v4957
        %v6718 = vpack.c.b16 %v4990, %v4958
        %v6719 = vpack.c.b16 %v4991, %v4959
        %v6720 = vpack.c.b16 %v4992, %v4960
        %v6721 = vpack.c.b16 %v4993, %v4961
        %v6722 = vpack.c.b16 %v4994, %v4962
        %v6723 = vpack.c.b16 %v4995, %v4963
        %v6724 = vpack.c.b16 %v4996, %v4964
        %v6725 = vpack.c.b16 %v4997, %v4965
        %v6726 = vpack.c.b16 %v4998, %v4966
        %v6727 = vpack.c.b16 %v4999, %v4967
        %v6728 = vpack.c.b16 %v5000, %v4968
        %v6729 = vpack.c.b16 %v5001, %v4969
        %v6730 = vpack.c.b16 %v5002, %v4970
        %v6731 = vpack.c.b16 %v5003, %v4971
        %v6732 = vpack.c.b16 %v5004, %v4972
        %v6733 = vpack.c.b16 %v5005, %v4973
        %v6734 = vpack.c.b16 %v5006, %v4974
        %v6735 = vpack.c.b16 %v5007, %v4975
        %v6736 = vpack.c.b16 %v5008, %v4976
        %v6737 = vpack.c.b16 %v5009, %v4977
        %v6738 = vpack.c.b16 %v5010, %v4978
        %v6739 = vpack.c.b16 %v5011, %v4979
        %v6740 = vpack.c.b16 %v5012, %v4980
        %v6741 = vpack.c.b16 %v5013, %v4981
        %v6742 = vpack.c.b16 %v5014, %v4982
        %v6743 = vpack.c.b16 %v5047, %v5015
        %v6744 = vpack.c.b16 %v5048, %v5016
        %v6745 = vpack.c.b16 %v5049, %v5017
        %v6746 = vpack.c.b16 %v5050, %v5018
        %v6747 = vpack.c.b16 %v5051, %v5019
        %v6748 = vpack.c.b16 %v5052, %v5020
        %v6749 = vpack.c.b16 %v5053, %v5021
        %v6750 = vpack.c.b16 %v5054, %v5022
        %v6751 = vpack.c.b16 %v5055, %v5023
        %v6752 = vpack.c.b16 %v5056, %v5024
        %v6753 = vpack.c.b16 %v5057, %v5025
        %v6754 = vpack.c.b16 %v5058, %v5026
        %v6755 = vpack.c.b16 %v5059, %v5027
        %v6756 = vpack.c.b16 %v5060, %v5028
        %v6757 = vpack.c.b16 %v5061, %v5029
        %v6758 = vpack.c.b16 %v5062, %v5030
        %v6759 = vpack.c.b16 %v5063, %v5031
        %v6760 = vpack.c.b16 %v5064, %v5032
        %v6761 = vpack.c.b16 %v5065, %v5033
        %v6762 = vpack.c.b16 %v5066, %v5034
        %v6763 = vpack.c.b16 %v5067, %v5035
        %v6764 = vpack.c.b16 %v5068, %v5036
        %v6765 = vpack.c.b16 %v5069, %v5037
        %v6766 = vpack.c.b16 %v5070, %v5038
        %v6767 = vpack.c.b16 %v5071, %v5039
        %v6768 = vpack.c.b16 %v5072, %v5040
        %v6769 = vpack.c.b16 %v5073, %v5041
        %v6770 = vpack.c.b16 %v5074, %v5042
        %v6771 = vpack.c.b16 %v5075, %v5043
        %v6772 = vpack.c.b16 %v5076, %v5044
        %v6773 = vpack.c.b16 %v5077, %v5045
        %v6774 = vpack.c.b16 %v5078, %v5046
        %v6775 = vpack.c.b16 %v5111, %v5079
        %v6776 = vpack.c.b16 %v5112, %v5080
        %v6777 = vpack.c.b16 %v5113, %v5081
        %v6778 = vpack.c.b16 %v5114, %v5082
        %v6779 = vpack.c.b16 %v5115, %v5083
        %v6780 = vpack.c.b16 %v5116, %v5084
        %v6781 = vpack.c.b16 %v5117, %v5085
        %v6782 = vpack.c.b16 %v5118, %v5086
        %v6783 = vpack.c.b16 %v5119, %v5087
        %v6784 = vpack.c.b16 %v5120, %v5088
        %v6785 = vpack.c.b16 %v5121, %v5089
        %v6786 = vpack.c.b16 %v5122, %v5090
        %v6787 = vpack.c.b16 %v5123, %v5091
        %v6788 = vpack.c.b16 %v5124, %v5092
        %v6789 = vpack.c.b16 %v5125, %v5093
        %v6790 = vpack.c.b16 %v5126, %v5094
        %v6791 = vpack.c.b16 %v5127, %v5095
        %v6792 = vpack.c.b16 %v5128, %v5096
        %v6793 = vpack.c.b16 %v5129, %v5097
        %v6794 = vpack.c.b16 %v5130, %v5098
        %v6795 = vpack.c.b16 %v5131, %v5099
        %v6796 = vpack.c.b16 %v5132, %v5100
        %v6797 = vpack.c.b16 %v5133, %v5101
        %v6798 = vpack.c.b16 %v5134, %v5102
        %v6799 = vpack.c.b16 %v5135, %v5103
        %v6800 = vpack.c.b16 %v5136, %v5104
        %v6801 = vpack.c.b16 %v5137, %v5105
        %v6802 = vpack.c.b16 %v5138, %v5106
        %v6803 = vpack.c.b16 %v5139, %v5107
        %v6804 = vpack.c.b16 %v5140, %v5108
        %v6805 = vpack.c.b16 %v5141, %v5109
        %v6806 = vpack.c.b16 %v5142, %v5110
        %v6807 = vpack.c.b16 %v5175, %v5143
        %v6808 = vpack.c.b16 %v5176, %v5144
        %v6809 = vpack.c.b16 %v5177, %v5145
        %v6810 = vpack.c.b16 %v5178, %v5146
        %v6811 = vpack.c.b16 %v5179, %v5147
        %v6812 = vpack.c.b16 %v5180, %v5148
        %v6813 = vpack.c.b16 %v5181, %v5149
        %v6814 = vpack.c.b16 %v5182, %v5150
        %v6815 = vpack.c.b16 %v5183, %v5151
        %v6816 = vpack.c.b16 %v5184, %v5152
        %v6817 = vpack.c.b16 %v5185, %v5153
        %v6818 = vpack.c.b16 %v5186, %v5154
        %v6819 = vpack.c.b16 %v5187, %v5155
        %v6820 = vpack.c.b16 %v5188, %v5156
        %v6821 = vpack.c.b16 %v5189, %v5157
        %v6822 = vpack.c.b16 %v5190, %v5158
        %v6823 = vpack.c.b16 %v5191, %v5159
        %v6824 = vpack.c.b16 %v5192, %v5160
        %v6825 = vpack.c.b16 %v5193, %v5161
        %v6826 = vpack.c.b16 %v5194, %v5162
        %v6827 = vpack.c.b16 %v5195, %v5163
        %v6828 = vpack.c.b16 %v5196, %v5164
        %v6829 = vpack.c.b16 %v5197, %v5165
        %v6830 = vpack.c.b16 %v5198, %v5166
        %v6831 = vpack.c.b16 %v5199, %v5167
        %v6832 = vpack.c.b16 %v5200, %v5168
        %v6833 = vpack.c.b16 %v5201, %v5169
        %v6834 = vpack.c.b16 %v5202, %v5170
        %v6835 = vpack.c.b16 %v5203, %v5171
        %v6836 = vpack.c.b16 %v5204, %v5172
        %v6837 = vpack.c.b16 %v5205, %v5173
        %v6838 = vpack.c.b16 %v5206, %v5174
        %v6839 = vpack.c.b16 %v5239, %v5207
        %v6840 = vpack.c.b16 %v5240, %v5208
        %v6841 = vpack.c.b16 %v5241, %v5209
        %v6842 = vpack.c.b16 %v5242, %v5210
        %v6843 = vpack.c.b16 %v5243, %v5211
        %v6844 = vpack.c.b16 %v5244, %v5212
        %v6845 = vpack.c.b16 %v5245, %v5213
        %v6846 = vpack.c.b16 %v5246, %v5214
        %v6847 = vpack.c.b16 %v5247, %v5215
        %v6848 = vpack.c.b16 %v5248, %v5216
        %v6849 = vpack.c.b16 %v5249, %v5217
        %v6850 = vpack.c.b16 %v5250, %v5218
        %v6851 = vpack.c.b16 %v5251, %v5219
        %v6852 = vpack.c.b16 %v5252, %v5220
        %v6853 = vpack.c.b16 %v5253, %v5221
        %v6854 = vpack.c.b16 %v5254, %v5222
        %v6855 = vpack.c.b16 %v5255, %v5223
        %v6856 = vpack.c.b16 %v5256, %v5224
        %v6857 = vpack.c.b16 %v5257, %v5225
        %v6858 = vpack.c.b16 %v5258, %v5226
        %v6859 = vpack.c.b16 %v5259, %v5227
        %v6860 = vpack.c.b16 %v5260, %v5228
        %v6861 = vpack.c.b16 %v5261, %v5229
        %v6862 = vpack.c.b16 %v5262, %v5230
        %v6863 = vpack.c.b16 %v5263, %v5231
        %v6864 = vpack.c.b16 %v5264, %v5232
        %v6865 = vpack.c.b16 %v5265, %v5233
        %v6866 = vpack.c.b16 %v5266, %v5234
        %v6867 = vpack.c.b16 %v5267, %v5235
        %v6868 = vpack.c.b16 %v5268, %v5236
        %v6869 = vpack.c.b16 %v5269, %v5237
        %v6870 = vpack.c.b16 %v5270, %v5238
        %v6871 = vpack.c.b16 %v5303, %v5271
        %v6872 = vpack.c.b16 %v5304, %v5272
        %v6873 = vpack.c.b16 %v5305, %v5273
        %v6874 = vpack.c.b16 %v5306, %v5274
        %v6875 = vpack.c.b16 %v5307, %v5275
        %v6876 = vpack.c.b16 %v5308, %v5276
        %v6877 = vpack.c.b16 %v5309, %v5277
        %v6878 = vpack.c.b16 %v5310, %v5278
        %v6879 = vpack.c.b16 %v5311, %v5279
        %v6880 = vpack.c.b16 %v5312, %v5280
        %v6881 = vpack.c.b16 %v5313, %v5281
        %v6882 = vpack.c.b16 %v5314, %v5282
        %v6883 = vpack.c.b16 %v5315, %v5283
        %v6884 = vpack.c.b16 %v5316, %v5284
        %v6885 = vpack.c.b16 %v5317, %v5285
        %v6886 = vpack.c.b16 %v5318, %v5286
        %v6887 = vpack.c.b16 %v5319, %v5287
        %v6888 = vpack.c.b16 %v5320, %v5288
        %v6889 = vpack.c.b16 %v5321, %v5289
        %v6890 = vpack.c.b16 %v5322, %v5290
        %v6891 = vpack.c.b16 %v5323, %v5291
        %v6892 = vpack.c.b16 %v5324, %v5292
        %v6893 = vpack.c.b16 %v5325, %v5293
        %v6894 = vpack.c.b16 %v5326, %v5294
        %v6895 = vpack.c.b16 %v5327, %v5295
        %v6896 = vpack.c.b16 %v5328, %v5296
        %v6897 = vpack.c.b16 %v5329, %v5297
        %v6898 = vpack.c.b16 %v5330, %v5298
        %v6899 = vpack.c.b16 %v5331, %v5299
        %v6900 = vpack.c.b16 %v5332, %v5300
        %v6901 = vpack.c.b16 %v5333, %v5301
        %v6902 = vpack.c.b16 %v5334, %v5302
        %v6903 = vpack.c.b16 %v5367, %v5335
        %v6904 = vpack.c.b16 %v5368, %v5336
        %v6905 = vpack.c.b16 %v5369, %v5337
        %v6906 = vpack.c.b16 %v5370, %v5338
        %v6907 = vpack.c.b16 %v5371, %v5339
        %v6908 = vpack.c.b16 %v5372, %v5340
        %v6909 = vpack.c.b16 %v5373, %v5341
        %v6910 = vpack.c.b16 %v5374, %v5342
        %v6911 = vpack.c.b16 %v5375, %v5343
        %v6912 = vpack.c.b16 %v5376, %v5344
        %v6913 = vpack.c.b16 %v5377, %v5345
        %v6914 = vpack.c.b16 %v5378, %v5346
        %v6915 = vpack.c.b16 %v5379, %v5347
        %v6916 = vpack.c.b16 %v5380, %v5348
        %v6917 = vpack.c.b16 %v5381, %v5349
        %v6918 = vpack.c.b16 %v5382, %v5350
        %v6919 = vpack.c.b16 %v5383, %v5351
        %v6920 = vpack.c.b16 %v5384, %v5352
        %v6921 = vpack.c.b16 %v5385, %v5353
        %v6922 = vpack.c.b16 %v5386, %v5354
        %v6923 = vpack.c.b16 %v5387, %v5355
        %v6924 = vpack.c.b16 %v5388, %v5356
        %v6925 = vpack.c.b16 %v5389, %v5357
        %v6926 = vpack.c.b16 %v5390, %v5358
        %v6927 = vpack.c.b16 %v5391, %v5359
        %v6928 = vpack.c.b16 %v5392, %v5360
        %v6929 = vpack.c.b16 %v5393, %v5361
        %v6930 = vpack.c.b16 %v5394, %v5362
        %v6931 = vpack.c.b16 %v5395, %v5363
        %v6932 = vpack.c.b16 %v5396, %v5364
        %v6933 = vpack.c.b16 %v5397, %v5365
        %v6934 = vpack.c.b16 %v5398, %v5366
        %v6935 = vpack.c.b16 %v5431, %v5399
        %v6936 = vpack.c.b16 %v5432, %v5400
        %v6937 = vpack.c.b16 %v5433, %v5401
        %v6938 = vpack.c.b16 %v5434, %v5402
        %v6939 = vpack.c.b16 %v5435, %v5403
        %v6940 = vpack.c.b16 %v5436, %v5404
        %v6941 = vpack.c.b16 %v5437, %v5405
        %v6942 = vpack.c.b16 %v5438, %v5406
        %v6943 = vpack.c.b16 %v5439, %v5407
        %v6944 = vpack.c.b16 %v5440, %v5408
        %v6945 = vpack.c.b16 %v5441, %v5409
        %v6946 = vpack.c.b16 %v5442, %v5410
        %v6947 = vpack.c.b16 %v5443, %v5411
        %v6948 = vpack.c.b16 %v5444, %v5412
        %v6949 = vpack.c.b16 %v5445, %v5413
        %v6950 = vpack.c.b16 %v5446, %v5414
        %v6951 = vpack.c.b16 %v5447, %v5415
        %v6952 = vpack.c.b16 %v5448, %v5416
        %v6953 = vpack.c.b16 %v5449, %v5417
        %v6954 = vpack.c.b16 %v5450, %v5418
        %v6955 = vpack.c.b16 %v5451, %v5419
        %v6956 = vpack.c.b16 %v5452, %v5420
        %v6957 = vpack.c.b16 %v5453, %v5421
        %v6958 = vpack.c.b16 %v5454, %v5422
        %v6959 = vpack.c.b16 %v5455, %v5423
        %v6960 = vpack.c.b16 %v5456, %v5424
        %v6961 = vpack.c.b16 %v5457, %v5425
        %v6962 = vpack.c.b16 %v5458, %v5426
        %v6963 = vpack.c.b16 %v5459, %v5427
        %v6964 = vpack.c.b16 %v5460, %v5428
        %v6965 = vpack.c.b16 %v5461, %v5429
        %v6966 = vpack.c.b16 %v5462, %v5430
        %v6967 = vpack.c.b16 %v5495, %v5463
        %v6968 = vpack.c.b16 %v5496, %v5464
        %v6969 = vpack.c.b16 %v5497, %v5465
        %v6970 = vpack.c.b16 %v5498, %v5466
        %v6971 = vpack.c.b16 %v5499, %v5467
        %v6972 = vpack.c.b16 %v5500, %v5468
        %v6973 = vpack.c.b16 %v5501, %v5469
        %v6974 = vpack.c.b16 %v5502, %v5470
        %v6975 = vpack.c.b16 %v5503, %v5471
        %v6976 = vpack.c.b16 %v5504, %v5472
        %v6977 = vpack.c.b16 %v5505, %v5473
        %v6978 = vpack.c.b16 %v5506, %v5474
        %v6979 = vpack.c.b16 %v5507, %v5475
        %v6980 = vpack.c.b16 %v5508, %v5476
        %v6981 = vpack.c.b16 %v5509, %v5477
        %v6982 = vpack.c.b16 %v5510, %v5478
        %v6983 = vpack.c.b16 %v5511, %v5479
        %v6984 = vpack.c.b16 %v5512, %v5480
        %v6985 = vpack.c.b16 %v5513, %v5481
        %v6986 = vpack.c.b16 %v5514, %v5482
        %v6987 = vpack.c.b16 %v5515, %v5483
        %v6988 = vpack.c.b16 %v5516, %v5484
        %v6989 = vpack.c.b16 %v5517, %v5485
        %v6990 = vpack.c.b16 %v5518, %v5486
        %v6991 = vpack.c.b16 %v5519, %v5487
        %v6992 = vpack.c.b16 %v5520, %v5488
        %v6993 = vpack.c.b16 %v5521, %v5489
        %v6994 = vpack.c.b16 %v5522, %v5490
        %v6995 = vpack.c.b16 %v5523, %v5491
        %v6996 = vpack.c.b16 %v5524, %v5492
        %v6997 = vpack.c.b16 %v5525, %v5493
        %v6998 = vpack.c.b16 %v5526, %v5494
        %v6999 = vpack.c.b16 %v5559, %v5527
        %v7000 = vpack.c.b16 %v5560, %v5528
        %v7001 = vpack.c.b16 %v5561, %v5529
        %v7002 = vpack.c.b16 %v5562, %v5530
        %v7003 = vpack.c.b16 %v5563, %v5531
        %v7004 = vpack.c.b16 %v5564, %v5532
        %v7005 = vpack.c.b16 %v5565, %v5533
        %v7006 = vpack.c.b16 %v5566, %v5534
        %v7007 = vpack.c.b16 %v5567, %v5535
        %v7008 = vpack.c.b16 %v5568, %v5536
        %v7009 = vpack.c.b16 %v5569, %v5537
        %v7010 = vpack.c.b16 %v5570, %v5538
        %v7011 = vpack.c.b16 %v5571, %v5539
        %v7012 = vpack.c.b16 %v5572, %v5540
        %v7013 = vpack.c.b16 %v5573, %v5541
        %v7014 = vpack.c.b16 %v5574, %v5542
        %v7015 = vpack.c.b16 %v5575, %v5543
        %v7016 = vpack.c.b16 %v5576, %v5544
        %v7017 = vpack.c.b16 %v5577, %v5545
        %v7018 = vpack.c.b16 %v5578, %v5546
        %v7019 = vpack.c.b16 %v5579, %v5547
        %v7020 = vpack.c.b16 %v5580, %v5548
        %v7021 = vpack.c.b16 %v5581, %v5549
        %v7022 = vpack.c.b16 %v5582, %v5550
        %v7023 = vpack.c.b16 %v5583, %v5551
        %v7024 = vpack.c.b16 %v5584, %v5552
        %v7025 = vpack.c.b16 %v5585, %v5553
        %v7026 = vpack.c.b16 %v5586, %v5554
        %v7027 = vpack.c.b16 %v5587, %v5555
        %v7028 = vpack.c.b16 %v5588, %v5556
        %v7029 = vpack.c.b16 %v5589, %v5557
        %v7030 = vpack.c.b16 %v5590, %v5558
        %v7031 = vpack.c.b16 %v5623, %v5591
        %v7032 = vpack.c.b16 %v5624, %v5592
        %v7033 = vpack.c.b16 %v5625, %v5593
        %v7034 = vpack.c.b16 %v5626, %v5594
        %v7035 = vpack.c.b16 %v5627, %v5595
        %v7036 = vpack.c.b16 %v5628, %v5596
        %v7037 = vpack.c.b16 %v5629, %v5597
        %v7038 = vpack.c.b16 %v5630, %v5598
        %v7039 = vpack.c.b16 %v5631, %v5599
        %v7040 = vpack.c.b16 %v5632, %v5600
        %v7041 = vpack.c.b16 %v5633, %v5601
        %v7042 = vpack.c.b16 %v5634, %v5602
        %v7043 = vpack.c.b16 %v5635, %v5603
        %v7044 = vpack.c.b16 %v5636, %v5604
        %v7045 = vpack.c.b16 %v5637, %v5605
        %v7046 = vpack.c.b16 %v5638, %v5606
        %v7047 = vpack.c.b16 %v5639, %v5607
        %v7048 = vpack.c.b16 %v5640, %v5608
        %v7049 = vpack.c.b16 %v5641, %v5609
        %v7050 = vpack.c.b16 %v5642, %v5610
        %v7051 = vpack.c.b16 %v5643, %v5611
        %v7052 = vpack.c.b16 %v5644, %v5612
        %v7053 = vpack.c.b16 %v5645, %v5613
        %v7054 = vpack.c.b16 %v5646, %v5614
        %v7055 = vpack.c.b16 %v5647, %v5615
        %v7056 = vpack.c.b16 %v5648, %v5616
        %v7057 = vpack.c.b16 %v5649, %v5617
        %v7058 = vpack.c.b16 %v5650, %v5618
        %v7059 = vpack.c.b16 %v5651, %v5619
        %v7060 = vpack.c.b16 %v5652, %v5620
        %v7061 = vpack.c.b16 %v5653, %v5621
        %v7062 = vpack.c.b16 %v5654, %v5622
        %v7063 = vpack.c.b16 %v5687, %v5655
        %v7064 = vpack.c.b16 %v5688, %v5656
        %v7065 = vpack.c.b16 %v5689, %v5657
        %v7066 = vpack.c.b16 %v5690, %v5658
        %v7067 = vpack.c.b16 %v5691, %v5659
        %v7068 = vpack.c.b16 %v5692, %v5660
        %v7069 = vpack.c.b16 %v5693, %v5661
        %v7070 = vpack.c.b16 %v5694, %v5662
        %v7071 = vpack.c.b16 %v5695, %v5663
        %v7072 = vpack.c.b16 %v5696, %v5664
        %v7073 = vpack.c.b16 %v5697, %v5665
        %v7074 = vpack.c.b16 %v5698, %v5666
        %v7075 = vpack.c.b16 %v5699, %v5667
        %v7076 = vpack.c.b16 %v5700, %v5668
        %v7077 = vpack.c.b16 %v5701, %v5669
        %v7078 = vpack.c.b16 %v5702, %v5670
        %v7079 = vpack.c.b16 %v5703, %v5671
        %v7080 = vpack.c.b16 %v5704, %v5672
        %v7081 = vpack.c.b16 %v5705, %v5673
        %v7082 = vpack.c.b16 %v5706, %v5674
        %v7083 = vpack.c.b16 %v5707, %v5675
        %v7084 = vpack.c.b16 %v5708, %v5676
        %v7085 = vpack.c.b16 %v5709, %v5677
        %v7086 = vpack.c.b16 %v5710, %v5678
        %v7087 = vpack.c.b16 %v5711, %v5679
        %v7088 = vpack.c.b16 %v5712, %v5680
        %v7089 = vpack.c.b16 %v5713, %v5681
        %v7090 = vpack.c.b16 %v5714, %v5682
        %v7091 = vpack.c.b16 %v5715, %v5683
        %v7092 = vpack.c.b16 %v5716, %v5684
        %v7093 = vpack.c.b16 %v5717, %v5685
        %v7094 = vpack.c.b16 %v5718, %v5686
        %v7095 = vpack.c.b16 %v5751, %v5719
        %v7096 = vpack.c.b16 %v5752, %v5720
        %v7097 = vpack.c.b16 %v5753, %v5721
        %v7098 = vpack.c.b16 %v5754, %v5722
        %v7099 = vpack.c.b16 %v5755, %v5723
        %v7100 = vpack.c.b16 %v5756, %v5724
        %v7101 = vpack.c.b16 %v5757, %v5725
        %v7102 = vpack.c.b16 %v5758, %v5726
        %v7103 = vpack.c.b16 %v5759, %v5727
        %v7104 = vpack.c.b16 %v5760, %v5728
        %v7105 = vpack.c.b16 %v5761, %v5729
        %v7106 = vpack.c.b16 %v5762, %v5730
        %v7107 = vpack.c.b16 %v5763, %v5731
        %v7108 = vpack.c.b16 %v5764, %v5732
        %v7109 = vpack.c.b16 %v5765, %v5733
        %v7110 = vpack.c.b16 %v5766, %v5734
        %v7111 = vpack.c.b16 %v5767, %v5735
        %v7112 = vpack.c.b16 %v5768, %v5736
        %v7113 = vpack.c.b16 %v5769, %v5737
        %v7114 = vpack.c.b16 %v5770, %v5738
        %v7115 = vpack.c.b16 %v5771, %v5739
        %v7116 = vpack.c.b16 %v5772, %v5740
        %v7117 = vpack.c.b16 %v5773, %v5741
        %v7118 = vpack.c.b16 %v5774, %v5742
        %v7119 = vpack.c.b16 %v5775, %v5743
        %v7120 = vpack.c.b16 %v5776, %v5744
        %v7121 = vpack.c.b16 %v5777, %v5745
        %v7122 = vpack.c.b16 %v5778, %v5746
        %v7123 = vpack.c.b16 %v5779, %v5747
        %v7124 = vpack.c.b16 %v5780, %v5748
        %v7125 = vpack.c.b16 %v5781, %v5749
        %v7126 = vpack.c.b16 %v5782, %v5750
        %v7127 = vpack.c.b16 %v5815, %v5783
        %v7128 = vpack.c.b16 %v5816, %v5784
        %v7129 = vpack.c.b16 %v5817, %v5785
        %v7130 = vpack.c.b16 %v5818, %v5786
        %v7131 = vpack.c.b16 %v5819, %v5787
        %v7132 = vpack.c.b16 %v5820, %v5788
        %v7133 = vpack.c.b16 %v5821, %v5789
        %v7134 = vpack.c.b16 %v5822, %v5790
        %v7135 = vpack.c.b16 %v5823, %v5791
        %v7136 = vpack.c.b16 %v5824, %v5792
        %v7137 = vpack.c.b16 %v5825, %v5793
        %v7138 = vpack.c.b16 %v5826, %v5794
        %v7139 = vpack.c.b16 %v5827, %v5795
        %v7140 = vpack.c.b16 %v5828, %v5796
        %v7141 = vpack.c.b16 %v5829, %v5797
        %v7142 = vpack.c.b16 %v5830, %v5798
        %v7143 = vpack.c.b16 %v5831, %v5799
        %v7144 = vpack.c.b16 %v5832, %v5800
        %v7145 = vpack.c.b16 %v5833, %v5801
        %v7146 = vpack.c.b16 %v5834, %v5802
        %v7147 = vpack.c.b16 %v5835, %v5803
        %v7148 = vpack.c.b16 %v5836, %v5804
        %v7149 = vpack.c.b16 %v5837, %v5805
        %v7150 = vpack.c.b16 %v5838, %v5806
        %v7151 = vpack.c.b16 %v5839, %v5807
        %v7152 = vpack.c.b16 %v5840, %v5808
        %v7153 = vpack.c.b16 %v5841, %v5809
        %v7154 = vpack.c.b16 %v5842, %v5810
        %v7155 = vpack.c.b16 %v5843, %v5811
        %v7156 = vpack.c.b16 %v5844, %v5812
        %v7157 = vpack.c.b16 %v5845, %v5813
        %v7158 = vpack.c.b16 %v5846, %v5814
        %v7159 = vpack.c.b16 %v5879, %v5847
        %v7160 = vpack.c.b16 %v5880, %v5848
        %v7161 = vpack.c.b16 %v5881, %v5849
        %v7162 = vpack.c.b16 %v5882, %v5850
        %v7163 = vpack.c.b16 %v5883, %v5851
        %v7164 = vpack.c.b16 %v5884, %v5852
        %v7165 = vpack.c.b16 %v5885, %v5853
        %v7166 = vpack.c.b16 %v5886, %v5854
        %v7167 = vpack.c.b16 %v5887, %v5855
        %v7168 = vpack.c.b16 %v5888, %v5856
        %v7169 = vpack.c.b16 %v5889, %v5857
        %v7170 = vpack.c.b16 %v5890, %v5858
        %v7171 = vpack.c.b16 %v5891, %v5859
        %v7172 = vpack.c.b16 %v5892, %v5860
        %v7173 = vpack.c.b16 %v5893, %v5861
        %v7174 = vpack.c.b16 %v5894, %v5862
        %v7175 = vpack.c.b16 %v5895, %v5863
        %v7176 = vpack.c.b16 %v5896, %v5864
        %v7177 = vpack.c.b16 %v5897, %v5865
        %v7178 = vpack.c.b16 %v5898, %v5866
        %v7179 = vpack.c.b16 %v5899, %v5867
        %v7180 = vpack.c.b16 %v5900, %v5868
        %v7181 = vpack.c.b16 %v5901, %v5869
        %v7182 = vpack.c.b16 %v5902, %v5870
        %v7183 = vpack.c.b16 %v5903, %v5871
        %v7184 = vpack.c.b16 %v5904, %v5872
        %v7185 = vpack.c.b16 %v5905, %v5873
        %v7186 = vpack.c.b16 %v5906, %v5874
        %v7187 = vpack.c.b16 %v5907, %v5875
        %v7188 = vpack.c.b16 %v5908, %v5876
        %v7189 = vpack.c.b16 %v5909, %v5877
        %v7190 = vpack.c.b16 %v5910, %v5878
        %v7191 = vpack.c.b16 %v5943, %v5911
        %v7192 = vpack.c.b16 %v5944, %v5912
        %v7193 = vpack.c.b16 %v5945, %v5913
        %v7194 = vpack.c.b16 %v5946, %v5914
        %v7195 = vpack.c.b16 %v5947, %v5915
        %v7196 = vpack.c.b16 %v5948, %v5916
        %v7197 = vpack.c.b16 %v5949, %v5917
        %v7198 = vpack.c.b16 %v5950, %v5918
        %v7199 = vpack.c.b16 %v5951, %v5919
        %v7200 = vpack.c.b16 %v5952, %v5920
        %v7201 = vpack.c.b16 %v5953, %v5921
        %v7202 = vpack.c.b16 %v5954, %v5922
        %v7203 = vpack.c.b16 %v5955, %v5923
        %v7204 = vpack.c.b16 %v5956, %v5924
        %v7205 = vpack.c.b16 %v5957, %v5925
        %v7206 = vpack.c.b16 %v5958, %v5926
        %v7207 = vpack.c.b16 %v5959, %v5927
        %v7208 = vpack.c.b16 %v5960, %v5928
        %v7209 = vpack.c.b16 %v5961, %v5929
        %v7210 = vpack.c.b16 %v5962, %v5930
        %v7211 = vpack.c.b16 %v5963, %v5931
        %v7212 = vpack.c.b16 %v5964, %v5932
        %v7213 = vpack.c.b16 %v5965, %v5933
        %v7214 = vpack.c.b16 %v5966, %v5934
        %v7215 = vpack.c.b16 %v5967, %v5935
        %v7216 = vpack.c.b16 %v5968, %v5936
        %v7217 = vpack.c.b16 %v5969, %v5937
        %v7218 = vpack.c.b16 %v5970, %v5938
        %v7219 = vpack.c.b16 %v5971, %v5939
        %v7220 = vpack.c.b16 %v5972, %v5940
        %v7221 = vpack.c.b16 %v5973, %v5941
        %v7222 = vpack.c.b16 %v5974, %v5942
        %v7223 = vpack.c.b16 %v6007, %v5975
        %v7224 = vpack.c.b16 %v6008, %v5976
        %v7225 = vpack.c.b16 %v6009, %v5977
        %v7226 = vpack.c.b16 %v6010, %v5978
        %v7227 = vpack.c.b16 %v6011, %v5979
        %v7228 = vpack.c.b16 %v6012, %v5980
        %v7229 = vpack.c.b16 %v6013, %v5981
        %v7230 = vpack.c.b16 %v6014, %v5982
        %v7231 = vpack.c.b16 %v6015, %v5983
        %v7232 = vpack.c.b16 %v6016, %v5984
        %v7233 = vpack.c.b16 %v6017, %v5985
        %v7234 = vpack.c.b16 %v6018, %v5986
        %v7235 = vpack.c.b16 %v6019, %v5987
        %v7236 = vpack.c.b16 %v6020, %v5988
        %v7237 = vpack.c.b16 %v6021, %v5989
        %v7238 = vpack.c.b16 %v6022, %v5990
        %v7239 = vpack.c.b16 %v6023, %v5991
        %v7240 = vpack.c.b16 %v6024, %v5992
        %v7241 = vpack.c.b16 %v6025, %v5993
        %v7242 = vpack.c.b16 %v6026, %v5994
        %v7243 = vpack.c.b16 %v6027, %v5995
        %v7244 = vpack.c.b16 %v6028, %v5996
        %v7245 = vpack.c.b16 %v6029, %v5997
        %v7246 = vpack.c.b16 %v6030, %v5998
        %v7247 = vpack.c.b16 %v6031, %v5999
        %v7248 = vpack.c.b16 %v6032, %v6000
        %v7249 = vpack.c.b16 %v6033, %v6001
        %v7250 = vpack.c.b16 %v6034, %v6002
        %v7251 = vpack.c.b16 %v6035, %v6003
        %v7252 = vpack.c.b16 %v6036, %v6004
        %v7253 = vpack.c.b16 %v6037, %v6005
        %v7254 = vpack.c.b16 %v6038, %v6006
        %v7255 = vpack.c.b16 %v6071, %v6039
        %v7256 = vpack.c.b16 %v6072, %v6040
        %v7257 = vpack.c.b16 %v6073, %v6041
        %v7258 = vpack.c.b16 %v6074, %v6042
        %v7259 = vpack.c.b16 %v6075, %v6043
        %v7260 = vpack.c.b16 %v6076, %v6044
        %v7261 = vpack.c.b16 %v6077, %v6045
        %v7262 = vpack.c.b16 %v6078, %v6046
        %v7263 = vpack.c.b16 %v6079, %v6047
        %v7264 = vpack.c.b16 %v6080, %v6048
        %v7265 = vpack.c.b16 %v6081, %v6049
        %v7266 = vpack.c.b16 %v6082, %v6050
        %v7267 = vpack.c.b16 %v6083, %v6051
        %v7268 = vpack.c.b16 %v6084, %v6052
        %v7269 = vpack.c.b16 %v6085, %v6053
        %v7270 = vpack.c.b16 %v6086, %v6054
        %v7271 = vpack.c.b16 %v6087, %v6055
        %v7272 = vpack.c.b16 %v6088, %v6056
        %v7273 = vpack.c.b16 %v6089, %v6057
        %v7274 = vpack.c.b16 %v6090, %v6058
        %v7275 = vpack.c.b16 %v6091, %v6059
        %v7276 = vpack.c.b16 %v6092, %v6060
        %v7277 = vpack.c.b16 %v6093, %v6061
        %v7278 = vpack.c.b16 %v6094, %v6062
        %v7279 = vpack.c.b16 %v6095, %v6063
        %v7280 = vpack.c.b16 %v6096, %v6064
        %v7281 = vpack.c.b16 %v6097, %v6065
        %v7282 = vpack.c.b16 %v6098, %v6066
        %v7283 = vpack.c.b16 %v6099, %v6067
        %v7284 = vpack.c.b16 %v6100, %v6068
        %v7285 = vpack.c.b16 %v6101, %v6069
        %v7286 = vpack.c.b16 %v6102, %v6070
        %v7287 = vpack.c.b16 %v6135, %v6103
        %v7288 = vpack.c.b16 %v6136, %v6104
        %v7289 = vpack.c.b16 %v6137, %v6105
        %v7290 = vpack.c.b16 %v6138, %v6106
        %v7291 = vpack.c.b16 %v6139, %v6107
        %v7292 = vpack.c.b16 %v6140, %v6108
        %v7293 = vpack.c.b16 %v6141, %v6109
        %v7294 = vpack.c.b16 %v6142, %v6110
        %v7295 = vpack.c.b16 %v6143, %v6111
        %v7296 = vpack.c.b16 %v6144, %v6112
        %v7297 = vpack.c.b16 %v6145, %v6113
        %v7298 = vpack.c.b16 %v6146, %v6114
        %v7299 = vpack.c.b16 %v6147, %v6115
        %v7300 = vpack.c.b16 %v6148, %v6116
        %v7301 = vpack.c.b16 %v6149, %v6117
        %v7302 = vpack.c.b16 %v6150, %v6118
        %v7303 = vpack.c.b16 %v6151, %v6119
        %v7304 = vpack.c.b16 %v6152, %v6120
        %v7305 = vpack.c.b16 %v6153, %v6121
        %v7306 = vpack.c.b16 %v6154, %v6122
        %v7307 = vpack.c.b16 %v6155, %v6123
        %v7308 = vpack.c.b16 %v6156, %v6124
        %v7309 = vpack.c.b16 %v6157, %v6125
        %v7310 = vpack.c.b16 %v6158, %v6126
        %v7311 = vpack.c.b16 %v6159, %v6127
        %v7312 = vpack.c.b16 %v6160, %v6128
        %v7313 = vpack.c.b16 %v6161, %v6129
        %v7314 = vpack.c.b16 %v6162, %v6130
        %v7315 = vpack.c.b16 %v6163, %v6131
        %v7316 = vpack.c.b16 %v6164, %v6132
        %v7317 = vpack.c.b16 %v6165, %v6133
        %v7318 = vpack.c.b16 %v6166, %v6134
        %v7319 = vpack.c.b16 %v6199, %v6167
        %v7320 = vpack.c.b16 %v6200, %v6168
        %v7321 = vpack.c.b16 %v6201, %v6169
        %v7322 = vpack.c.b16 %v6202, %v6170
        %v7323 = vpack.c.b16 %v6203, %v6171
        %v7324 = vpack.c.b16 %v6204, %v6172
        %v7325 = vpack.c.b16 %v6205, %v6173
        %v7326 = vpack.c.b16 %v6206, %v6174
        %v7327 = vpack.c.b16 %v6207, %v6175
        %v7328 = vpack.c.b16 %v6208, %v6176
        %v7329 = vpack.c.b16 %v6209, %v6177
        %v7330 = vpack.c.b16 %v6210, %v6178
        %v7331 = vpack.c.b16 %v6211, %v6179
        %v7332 = vpack.c.b16 %v6212, %v6180
        %v7333 = vpack.c.b16 %v6213, %v6181
        %v7334 = vpack.c.b16 %v6214, %v6182
        %v7335 = vpack.c.b16 %v6215, %v6183
        %v7336 = vpack.c.b16 %v6216, %v6184
        %v7337 = vpack.c.b16 %v6217, %v6185
        %v7338 = vpack.c.b16 %v6218, %v6186
        %v7339 = vpack.c.b16 %v6219, %v6187
        %v7340 = vpack.c.b16 %v6220, %v6188
        %v7341 = vpack.c.b16 %v6221, %v6189
        %v7342 = vpack.c.b16 %v6222, %v6190
        %v7343 = vpack.c.b16 %v6223, %v6191
        %v7344 = vpack.c.b16 %v6224, %v6192
        %v7345 = vpack.c.b16 %v6225, %v6193
        %v7346 = vpack.c.b16 %v6226, %v6194
        %v7347 = vpack.c.b16 %v6227, %v6195
        %v7348 = vpack.c.b16 %v6228, %v6196
        %v7349 = vpack.c.b16 %v6229, %v6197
        %v7350 = vpack.c.b16 %v6230, %v6198
        %v7351 = vpack.c.b16 %v6263, %v6231
        %v7352 = vpack.c.b16 %v6264, %v6232
        %v7353 = vpack.c.b16 %v6265, %v6233
        %v7354 = vpack.c.b16 %v6266, %v6234
        %v7355 = vpack.c.b16 %v6267, %v6235
        %v7356 = vpack.c.b16 %v6268, %v6236
        %v7357 = vpack.c.b16 %v6269, %v6237
        %v7358 = vpack.c.b16 %v6270, %v6238
        %v7359 = vpack.c.b16 %v6271, %v6239
        %v7360 = vpack.c.b16 %v6272, %v6240
        %v7361 = vpack.c.b16 %v6273, %v6241
        %v7362 = vpack.c.b16 %v6274, %v6242
        %v7363 = vpack.c.b16 %v6275, %v6243
        %v7364 = vpack.c.b16 %v6276, %v6244
        %v7365 = vpack.c.b16 %v6277, %v6245
        %v7366 = vpack.c.b16 %v6278, %v6246
        %v7367 = vpack.c.b16 %v6279, %v6247
        %v7368 = vpack.c.b16 %v6280, %v6248
        %v7369 = vpack.c.b16 %v6281, %v6249
        %v7370 = vpack.c.b16 %v6282, %v6250
        %v7371 = vpack.c.b16 %v6283, %v6251
        %v7372 = vpack.c.b16 %v6284, %v6252
        %v7373 = vpack.c.b16 %v6285, %v6253
        %v7374 = vpack.c.b16 %v6286, %v6254
        %v7375 = vpack.c.b16 %v6287, %v6255
        %v7376 = vpack.c.b16 %v6288, %v6256
        %v7377 = vpack.c.b16 %v6289, %v6257
        %v7378 = vpack.c.b16 %v6290, %v6258
        %v7379 = vpack.c.b16 %v6291, %v6259
        %v7380 = vpack.c.b16 %v6292, %v6260
        %v7381 = vpack.c.b16 %v6293, %v6261
        %v7382 = vpack.c.b16 %v6294, %v6262
        %v7383 = vpack.c.b16 %v6327, %v6295
        %v7384 = vpack.c.b16 %v6328, %v6296
        %v7385 = vpack.c.b16 %v6329, %v6297
        %v7386 = vpack.c.b16 %v6330, %v6298
        %v7387 = vpack.c.b16 %v6331, %v6299
        %v7388 = vpack.c.b16 %v6332, %v6300
        %v7389 = vpack.c.b16 %v6333, %v6301
        %v7390 = vpack.c.b16 %v6334, %v6302
        %v7391 = vpack.c.b16 %v6335, %v6303
        %v7392 = vpack.c.b16 %v6336, %v6304
        %v7393 = vpack.c.b16 %v6337, %v6305
        %v7394 = vpack.c.b16 %v6338, %v6306
        %v7395 = vpack.c.b16 %v6339, %v6307
        %v7396 = vpack.c.b16 %v6340, %v6308
        %v7397 = vpack.c.b16 %v6341, %v6309
        %v7398 = vpack.c.b16 %v6342, %v6310
        %v7399 = vpack.c.b16 %v6343, %v6311
        %v7400 = vpack.c.b16 %v6344, %v6312
        %v7401 = vpack.c.b16 %v6345, %v6313
        %v7402 = vpack.c.b16 %v6346, %v6314
        %v7403 = vpack.c.b16 %v6347, %v6315
        %v7404 = vpack.c.b16 %v6348, %v6316
        %v7405 = vpack.c.b16 %v6349, %v6317
        %v7406 = vpack.c.b16 %v6350, %v6318
        %v7407 = vpack.c.b16 %v6351, %v6319
        %v7408 = vpack.c.b16 %v6352, %v6320
        %v7409 = vpack.c.b16 %v6353, %v6321
        %v7410 = vpack.c.b16 %v6354, %v6322
        %v7411 = vpack.c.b16 %v6355, %v6323
        %v7412 = vpack.c.b16 %v6356, %v6324
        %v7413 = vpack.c.b16 %v6357, %v6325
        %v7414 = vpack.c.b16 %v6358, %v6326
        %v7415 = vpack.c.b16 %v6391, %v6359
        %v7416 = vpack.c.b16 %v6392, %v6360
        %v7417 = vpack.c.b16 %v6393, %v6361
        %v7418 = vpack.c.b16 %v6394, %v6362
        %v7419 = vpack.c.b16 %v6395, %v6363
        %v7420 = vpack.c.b16 %v6396, %v6364
        %v7421 = vpack.c.b16 %v6397, %v6365
        %v7422 = vpack.c.b16 %v6398, %v6366
        %v7423 = vpack.c.b16 %v6399, %v6367
        %v7424 = vpack.c.b16 %v6400, %v6368
        %v7425 = vpack.c.b16 %v6401, %v6369
        %v7426 = vpack.c.b16 %v6402, %v6370
        %v7427 = vpack.c.b16 %v6403, %v6371
        %v7428 = vpack.c.b16 %v6404, %v6372
        %v7429 = vpack.c.b16 %v6405, %v6373
        %v7430 = vpack.c.b16 %v6406, %v6374
        %v7431 = vpack.c.b16 %v6407, %v6375
        %v7432 = vpack.c.b16 %v6408, %v6376
        %v7433 = vpack.c.b16 %v6409, %v6377
        %v7434 = vpack.c.b16 %v6410, %v6378
        %v7435 = vpack.c.b16 %v6411, %v6379
        %v7436 = vpack.c.b16 %v6412, %v6380
        %v7437 = vpack.c.b16 %v6413, %v6381
        %v7438 = vpack.c.b16 %v6414, %v6382
        %v7439 = vpack.c.b16 %v6415, %v6383
        %v7440 = vpack.c.b16 %v6416, %v6384
        %v7441 = vpack.c.b16 %v6417, %v6385
        %v7442 = vpack.c.b16 %v6418, %v6386
        %v7443 = vpack.c.b16 %v6419, %v6387
        %v7444 = vpack.c.b16 %v6420, %v6388
        %v7445 = vpack.c.b16 %v6421, %v6389
        %v7446 = vpack.c.b16 %v6422, %v6390
        %8471 = vmatprep.subr.bf16.mxu0 %v6424
        %8472 = vmatpush1.bf16.msra.mxu0 %v6423
        %8473 = vmatprep.subr.bf16.mxu0 %v6456
        %8474 = vmatpush1.bf16.msra.mxu0 %v6455
        %8475 = vmatprep.subr.bf16.mxu0 %v6488
        %8476 = vmatpush1.bf16.msra.mxu0 %v6487
        %8477 = vmatprep.subr.bf16.mxu0 %v6520
        %8478 = vmatpush1.bf16.msra.mxu0 %v6519
        %8479 = vmatprep.subr.bf16.mxu0 %v6552
        %8480 = vmatpush1.bf16.msra.mxu0 %v6551
        %8481 = vmatprep.subr.bf16.mxu0 %v6584
        %8482 = vmatpush1.bf16.msra.mxu0 %v6583
        %8483 = vmatprep.subr.bf16.mxu0 %v6616
        %8484 = vmatpush1.bf16.msra.mxu0 %v6615
        %8485 = vmatprep.subr.bf16.mxu0 %v6648
        %8486 = vmatpush1.bf16.msra.mxu0 %v6647
        %8487 = vmatprep.subr.bf16.mxu0 %v6680
        %8488 = vmatpush1.bf16.msra.mxu0 %v6679
        %8489 = vmatprep.subr.bf16.mxu0 %v6712
        %8490 = vmatpush1.bf16.msra.mxu0 %v6711
        %8491 = vmatprep.subr.bf16.mxu0 %v6744
        %8492 = vmatpush1.bf16.msra.mxu0 %v6743
        %8493 = vmatprep.subr.bf16.mxu0 %v6776
        %8494 = vmatpush1.bf16.msra.mxu0 %v6775
        %8495 = vmatprep.subr.bf16.mxu0 %v6808
        %8496 = vmatpush1.bf16.msra.mxu0 %v6807
        %8497 = vmatprep.subr.bf16.mxu0 %v6840
        %8498 = vmatpush1.bf16.msra.mxu0 %v6839
        %8499 = vmatprep.subr.bf16.mxu0 %v6872
        %8500 = vmatpush1.bf16.msra.mxu0 %v6871
        %8501 = vmatprep.subr.bf16.mxu0 %v6904
        %8502 = vmatpush1.bf16.msra.mxu0 %v6903
        %8503 = vmatprep.mubr.bf16.mxu0 %v2292
        %8504 = vmatmul.mubr.bf16.gmra.mrb[0].mxu0 %v2291
        %v8505 = vpop.f32.mrb[0].mxu0
        %v8506 = vadd.f32 0.0, %v8505
        %v8507 = vpop.f32.mrb[0].mxu0
        %v8508 = vadd.f32 0.0, %v8507
        %v8509 = vpop.f32.mrb[0].mxu0
        %v8510 = vpop.f32.mrb[0].mxu0
        %8511 = vdwg.mxu0
        %8512 = vmatprep.subr.bf16.mxu0 %v6936
        %8513 = vmatpush1.bf16.msra.mxu0 %v6935
        %8514 = vmatprep.subr.bf16.mxu0 %v6968
        %8515 = vmatpush1.bf16.msra.mxu0 %v6967
        %8516 = vmatprep.subr.bf16.mxu0 %v7000
        %8517 = vmatpush1.bf16.msra.mxu0 %v6999
        %8518 = vmatprep.subr.bf16.mxu0 %v7032
        %8519 = vmatpush1.bf16.msra.mxu0 %v7031
        %8520 = vmatprep.subr.bf16.mxu0 %v7064
        %8521 = vmatpush1.bf16.msra.mxu0 %v7063
        %8522 = vmatprep.subr.bf16.mxu0 %v7096
        %8523 = vmatpush1.bf16.msra.mxu0 %v7095
        %8524 = vmatprep.subr.bf16.mxu0 %v7128
        %8525 = vmatpush1.bf16.msra.mxu0 %v7127
        %8526 = vmatprep.subr.bf16.mxu0 %v7160
        %8527 = vmatpush1.bf16.msra.mxu0 %v7159
        %8528 = vmatprep.subr.bf16.mxu0 %v7192
        %8529 = vmatpush1.bf16.msra.mxu0 %v7191
        %8530 = vmatprep.subr.bf16.mxu0 %v7224
        %8531 = vmatpush1.bf16.msra.mxu0 %v7223
        %8532 = vmatprep.subr.bf16.mxu0 %v7256
        %8533 = vmatpush1.bf16.msra.mxu0 %v7255
        %8534 = vmatprep.subr.bf16.mxu0 %v7288
        %8535 = vmatpush1.bf16.msra.mxu0 %v7287
        %8536 = vmatprep.subr.bf16.mxu0 %v7320
        %8537 = vmatpush1.bf16.msra.mxu0 %v7319
        %8538 = vmatprep.subr.bf16.mxu0 %v7352
        %8539 = vmatpush1.bf16.msra.mxu0 %v7351
        %8540 = vmatprep.subr.bf16.mxu0 %v7384
        %8541 = vmatpush1.bf16.msra.mxu0 %v7383
        %8542 = vmatprep.subr.bf16.mxu0 %v7416
        %8543 = vmatpush1.bf16.msra.mxu0 %v7415
        %8544 = vmatprep.mubr.bf16.mxu0 %v2294
        %8545 = vmatmul.mubr.bf16.gmra.mrb[0].mxu0 %v2293
        %v8546 = vpop.f32.mrb[0].mxu0
        %v8547 = vadd.f32 %v8506, %v8546
        %v8548 = vpop.f32.mrb[0].mxu0
        %v8549 = vadd.f32 %v8508, %v8548
        %v8550 = vpop.f32.mrb[0].mxu0
        %v8551 = vpop.f32.mrb[0].mxu0
        %8552 = vdwg.mxu0
        %8553 = vmatprep.subr.bf16.mxu0 %v6426
        %8554 = vmatpush1.bf16.msra.mxu0 %v6425
        %8555 = vmatprep.subr.bf16.mxu0 %v6458
        %8556 = vmatpush1.bf16.msra.mxu0 %v6457
        %8557 = vmatprep.subr.bf16.mxu0 %v6490
        %8558 = vmatpush1.bf16.msra.mxu0 %v6489
        %8559 = vmatprep.subr.bf16.mxu0 %v6522
        %8560 = vmatpush1.bf16.msra.mxu0 %v6521
        %8561 = vmatprep.subr.bf16.mxu0 %v6554
        %8562 = vmatpush1.bf16.msra.mxu0 %v6553
        %8563 = vmatprep.subr.bf16.mxu0 %v6586
        %8564 = vmatpush1.bf16.msra.mxu0 %v6585
        %8565 = vmatprep.subr.bf16.mxu0 %v6618
        %8566 = vmatpush1.bf16.msra.mxu0 %v6617
        %8567 = vmatprep.subr.bf16.mxu0 %v6650
        %8568 = vmatpush1.bf16.msra.mxu0 %v6649
        %8569 = vmatprep.subr.bf16.mxu0 %v6682
        %8570 = vmatpush1.bf16.msra.mxu0 %v6681
        %8571 = vmatprep.subr.bf16.mxu0 %v6714
        %8572 = vmatpush1.bf16.msra.mxu0 %v6713
        %8573 = vmatprep.subr.bf16.mxu0 %v6746
        %8574 = vmatpush1.bf16.msra.mxu0 %v6745
        %8575 = vmatprep.subr.bf16.mxu0 %v6778
        %8576 = vmatpush1.bf16.msra.mxu0 %v6777
        %8577 = vmatprep.subr.bf16.mxu0 %v6810
        %8578 = vmatpush1.bf16.msra.mxu0 %v6809
        %8579 = vmatprep.subr.bf16.mxu0 %v6842
        %8580 = vmatpush1.bf16.msra.mxu0 %v6841
        %8581 = vmatprep.subr.bf16.mxu0 %v6874
        %8582 = vmatpush1.bf16.msra.mxu0 %v6873
        %8583 = vmatprep.subr.bf16.mxu0 %v6906
        %8584 = vmatpush1.bf16.msra.mxu0 %v6905
        %8585 = vmatprep.mubr.bf16.mxu0 %v2292
        %8586 = vmatmul.mubr.bf16.gmra.mrb[0].mxu0 %v2291
        %v8587 = vpop.f32.mrb[0].mxu0
        %v8588 = vadd.f32 0.0, %v8587
        %v8589 = vpop.f32.mrb[0].mxu0
        %v8590 = vadd.f32 0.0, %v8589
        %v8591 = vpop.f32.mrb[0].mxu0
        %v8592 = vpop.f32.mrb[0].mxu0
        %8593 = vdwg.mxu0
        %8594 = vmatprep.subr.bf16.mxu0 %v6938
        %8595 = vmatpush1.bf16.msra.mxu0 %v6937
        %8596 = vmatprep.subr.bf16.mxu0 %v6970
        %8597 = vmatpush1.bf16.msra.mxu0 %v6969
        %8598 = vmatprep.subr.bf16.mxu0 %v7002
        %8599 = vmatpush1.bf16.msra.mxu0 %v7001
        %8600 = vmatprep.subr.bf16.mxu0 %v7034
        %8601 = vmatpush1.bf16.msra.mxu0 %v7033
        %8602 = vmatprep.subr.bf16.mxu0 %v7066
        %8603 = vmatpush1.bf16.msra.mxu0 %v7065
        %8604 = vmatprep.subr.bf16.mxu0 %v7098
        %8605 = vmatpush1.bf16.msra.mxu0 %v7097
        %8606 = vmatprep.subr.bf16.mxu0 %v7130
        %8607 = vmatpush1.bf16.msra.mxu0 %v7129
        %8608 = vmatprep.subr.bf16.mxu0 %v7162
        %8609 = vmatpush1.bf16.msra.mxu0 %v7161
        %8610 = vmatprep.subr.bf16.mxu0 %v7194
        %8611 = vmatpush1.bf16.msra.mxu0 %v7193
        %8612 = vmatprep.subr.bf16.mxu0 %v7226
        %8613 = vmatpush1.bf16.msra.mxu0 %v7225
        %8614 = vmatprep.subr.bf16.mxu0 %v7258
        %8615 = vmatpush1.bf16.msra.mxu0 %v7257
        %8616 = vmatprep.subr.bf16.mxu0 %v7290
        %8617 = vmatpush1.bf16.msra.mxu0 %v7289
        %8618 = vmatprep.subr.bf16.mxu0 %v7322
        %8619 = vmatpush1.bf16.msra.mxu0 %v7321
        %8620 = vmatprep.subr.bf16.mxu0 %v7354
        %8621 = vmatpush1.bf16.msra.mxu0 %v7353
        %8622 = vmatprep.subr.bf16.mxu0 %v7386
        %8623 = vmatpush1.bf16.msra.mxu0 %v7385
        %8624 = vmatprep.subr.bf16.mxu0 %v7418
        %8625 = vmatpush1.bf16.msra.mxu0 %v7417
        %8626 = vmatprep.mubr.bf16.mxu0 %v2294
        %8627 = vmatmul.mubr.bf16.gmra.mrb[0].mxu0 %v2293
        %v8628 = vpop.f32.mrb[0].mxu0
        %v8629 = vadd.f32 %v8588, %v8628
        %v8630 = vpop.f32.mrb[0].mxu0
        %v8631 = vadd.f32 %v8590, %v8630
        %v8632 = vpop.f32.mrb[0].mxu0
        %v8633 = vpop.f32.mrb[0].mxu0
        %8634 = vdwg.mxu0
        %8635 = vmatprep.subr.bf16.mxu0 %v6428
        %8636 = vmatpush1.bf16.msra.mxu0 %v6427
        %8637 = vmatprep.subr.bf16.mxu0 %v6460
        %8638 = vmatpush1.bf16.msra.mxu0 %v6459
        %8639 = vmatprep.subr.bf16.mxu0 %v6492
        %8640 = vmatpush1.bf16.msra.mxu0 %v6491
        %8641 = vmatprep.subr.bf16.mxu0 %v6524
        %8642 = vmatpush1.bf16.msra.mxu0 %v6523
        %8643 = vmatprep.subr.bf16.mxu0 %v6556
        %8644 = vmatpush1.bf16.msra.mxu0 %v6555
        %8645 = vmatprep.subr.bf16.mxu0 %v6588
        %8646 = vmatpush1.bf16.msra.mxu0 %v6587
        %8647 = vmatprep.subr.bf16.mxu0 %v6620
        %8648 = vmatpush1.bf16.msra.mxu0 %v6619
        %8649 = vmatprep.subr.bf16.mxu0 %v6652
        %8650 = vmatpush1.bf16.msra.mxu0 %v6651
        %8651 = vmatprep.subr.bf16.mxu0 %v6684
        %8652 = vmatpush1.bf16.msra.mxu0 %v6683
        %8653 = vmatprep.subr.bf16.mxu0 %v6716
        %8654 = vmatpush1.bf16.msra.mxu0 %v6715
        %8655 = vmatprep.subr.bf16.mxu0 %v6748
        %8656 = vmatpush1.bf16.msra.mxu0 %v6747
        %8657 = vmatprep.subr.bf16.mxu0 %v6780
        %8658 = vmatpush1.bf16.msra.mxu0 %v6779
        %8659 = vmatprep.subr.bf16.mxu0 %v6812
        %8660 = vmatpush1.bf16.msra.mxu0 %v6811
        %8661 = vmatprep.subr.bf16.mxu0 %v6844
        %8662 = vmatpush1.bf16.msra.mxu0 %v6843
        %8663 = vmatprep.subr.bf16.mxu0 %v6876
        %8664 = vmatpush1.bf16.msra.mxu0 %v6875
        %8665 = vmatprep.subr.bf16.mxu0 %v6908
        %8666 = vmatpush1.bf16.msra.mxu0 %v6907
        %8667 = vmatprep.mubr.bf16.mxu0 %v2292
        %8668 = vmatmul.mubr.bf16.gmra.mrb[0].mxu0 %v2291
        %v8669 = vpop.f32.mrb[0].mxu0
        %v8670 = vadd.f32 0.0, %v8669
        %v8671 = vpop.f32.mrb[0].mxu0
        %v8672 = vadd.f32 0.0, %v8671
        %v8673 = vpop.f32.mrb[0].mxu0
        %v8674 = vpop.f32.mrb[0].mxu0
        %8675 = vdwg.mxu0
        %8676 = vmatprep.subr.bf16.mxu0 %v6940
        %8677 = vmatpush1.bf16.msra.mxu0 %v6939
        %8678 = vmatprep.subr.bf16.mxu0 %v6972
        %8679 = vmatpush1.bf16.msra.mxu0 %v6971
        %8680 = vmatprep.subr.bf16.mxu0 %v7004
        %8681 = vmatpush1.bf16.msra.mxu0 %v7003
        %8682 = vmatprep.subr.bf16.mxu0 %v7036
        %8683 = vmatpush1.bf16.msra.mxu0 %v7035
        %8684 = vmatprep.subr.bf16.mxu0 %v7068
        %8685 = vmatpush1.bf16.msra.mxu0 %v7067
        %8686 = vmatprep.subr.bf16.mxu0 %v7100
        %8687 = vmatpush1.bf16.msra.mxu0 %v7099
        %8688 = vmatprep.subr.bf16.mxu0 %v7132
        %8689 = vmatpush1.bf16.msra.mxu0 %v7131
        %8690 = vmatprep.subr.bf16.mxu0 %v7164
        %8691 = vmatpush1.bf16.msra.mxu0 %v7163
        %8692 = vmatprep.subr.bf16.mxu0 %v7196
        %8693 = vmatpush1.bf16.msra.mxu0 %v7195
        %8694 = vmatprep.subr.bf16.mxu0 %v7228
        %8695 = vmatpush1.bf16.msra.mxu0 %v7227
        %8696 = vmatprep.subr.bf16.mxu0 %v7260
        %8697 = vmatpush1.bf16.msra.mxu0 %v7259
        %8698 = vmatprep.subr.bf16.mxu0 %v7292
        %8699 = vmatpush1.bf16.msra.mxu0 %v7291
        %8700 = vmatprep.subr.bf16.mxu0 %v7324
        %8701 = vmatpush1.bf16.msra.mxu0 %v7323
        %8702 = vmatprep.subr.bf16.mxu0 %v7356
        %8703 = vmatpush1.bf16.msra.mxu0 %v7355
        %8704 = vmatprep.subr.bf16.mxu0 %v7388
        %8705 = vmatpush1.bf16.msra.mxu0 %v7387
        %8706 = vmatprep.subr.bf16.mxu0 %v7420
        %8707 = vmatpush1.bf16.msra.mxu0 %v7419
        %8708 = vmatprep.mubr.bf16.mxu0 %v2294
        %8709 = vmatmul.mubr.bf16.gmra.mrb[0].mxu0 %v2293
        %v8710 = vpop.f32.mrb[0].mxu0
        %v8711 = vadd.f32 %v8670, %v8710
        %v8712 = vpop.f32.mrb[0].mxu0
        %v8713 = vadd.f32 %v8672, %v8712
        %v8714 = vpop.f32.mrb[0].mxu0
        %v8715 = vpop.f32.mrb[0].mxu0
        %8716 = vdwg.mxu0
        %8717 = vmatprep.subr.bf16.mxu0 %v6430
        %8718 = vmatpush1.bf16.msra.mxu0 %v6429
        %8719 = vmatprep.subr.bf16.mxu0 %v6462
        %8720 = vmatpush1.bf16.msra.mxu0 %v6461
        %8721 = vmatprep.subr.bf16.mxu0 %v6494
        %8722 = vmatpush1.bf16.msra.mxu0 %v6493
        %8723 = vmatprep.subr.bf16.mxu0 %v6526
        %8724 = vmatpush1.bf16.msra.mxu0 %v6525
        %8725 = vmatprep.subr.bf16.mxu0 %v6558
        %8726 = vmatpush1.bf16.msra.mxu0 %v6557
        %8727 = vmatprep.subr.bf16.mxu0 %v6590
        %8728 = vmatpush1.bf16.msra.mxu0 %v6589
        %8729 = vmatprep.subr.bf16.mxu0 %v6622
        %8730 = vmatpush1.bf16.msra.mxu0 %v6621
        %8731 = vmatprep.subr.bf16.mxu0 %v6654
        %8732 = vmatpush1.bf16.msra.mxu0 %v6653
        %8733 = vmatprep.subr.bf16.mxu0 %v6686
        %8734 = vmatpush1.bf16.msra.mxu0 %v6685
        %8735 = vmatprep.subr.bf16.mxu0 %v6718
        %8736 = vmatpush1.bf16.msra.mxu0 %v6717
        %8737 = vmatprep.subr.bf16.mxu0 %v6750
        %8738 = vmatpush1.bf16.msra.mxu0 %v6749
        %8739 = vmatprep.subr.bf16.mxu0 %v6782
        %8740 = vmatpush1.bf16.msra.mxu0 %v6781
        %8741 = vmatprep.subr.bf16.mxu0 %v6814
        %8742 = vmatpush1.bf16.msra.mxu0 %v6813
        %8743 = vmatprep.subr.bf16.mxu0 %v6846
        %8744 = vmatpush1.bf16.msra.mxu0 %v6845
        %8745 = vmatprep.subr.bf16.mxu0 %v6878
        %8746 = vmatpush1.bf16.msra.mxu0 %v6877
        %8747 = vmatprep.subr.bf16.mxu0 %v6910
        %8748 = vmatpush1.bf16.msra.mxu0 %v6909
        %8749 = vmatprep.mubr.bf16.mxu0 %v2292
        %8750 = vmatmul.mubr.bf16.gmra.mrb[0].mxu0 %v2291
        %v8751 = vpop.f32.mrb[0].mxu0
        %v8752 = vadd.f32 0.0, %v8751
        %v8753 = vpop.f32.mrb[0].mxu0
        %v8754 = vadd.f32 0.0, %v8753
        %v8755 = vpop.f32.mrb[0].mxu0
        %v8756 = vpop.f32.mrb[0].mxu0
        %8757 = vdwg.mxu0
        %8758 = vmatprep.subr.bf16.mxu0 %v6942
        %8759 = vmatpush1.bf16.msra.mxu0 %v6941
        %8760 = vmatprep.subr.bf16.mxu0 %v6974
        %8761 = vmatpush1.bf16.msra.mxu0 %v6973
        %8762 = vmatprep.subr.bf16.mxu0 %v7006
        %8763 = vmatpush1.bf16.msra.mxu0 %v7005
        %8764 = vmatprep.subr.bf16.mxu0 %v7038
        %8765 = vmatpush1.bf16.msra.mxu0 %v7037
        %8766 = vmatprep.subr.bf16.mxu0 %v7070
        %8767 = vmatpush1.bf16.msra.mxu0 %v7069
        %8768 = vmatprep.subr.bf16.mxu0 %v7102
        %8769 = vmatpush1.bf16.msra.mxu0 %v7101
        %8770 = vmatprep.subr.bf16.mxu0 %v7134
        %8771 = vmatpush1.bf16.msra.mxu0 %v7133
        %8772 = vmatprep.subr.bf16.mxu0 %v7166
        %8773 = vmatpush1.bf16.msra.mxu0 %v7165
        %8774 = vmatprep.subr.bf16.mxu0 %v7198
        %8775 = vmatpush1.bf16.msra.mxu0 %v7197
        %8776 = vmatprep.subr.bf16.mxu0 %v7230
        %8777 = vmatpush1.bf16.msra.mxu0 %v7229
        %8778 = vmatprep.subr.bf16.mxu0 %v7262
        %8779 = vmatpush1.bf16.msra.mxu0 %v7261
        %8780 = vmatprep.subr.bf16.mxu0 %v7294
        %8781 = vmatpush1.bf16.msra.mxu0 %v7293
        %8782 = vmatprep.subr.bf16.mxu0 %v7326
        %8783 = vmatpush1.bf16.msra.mxu0 %v7325
        %8784 = vmatprep.subr.bf16.mxu0 %v7358
        %8785 = vmatpush1.bf16.msra.mxu0 %v7357
        %8786 = vmatprep.subr.bf16.mxu0 %v7390
        %8787 = vmatpush1.bf16.msra.mxu0 %v7389
        %8788 = vmatprep.subr.bf16.mxu0 %v7422
        %8789 = vmatpush1.bf16.msra.mxu0 %v7421
        %8790 = vmatprep.mubr.bf16.mxu0 %v2294
        %8791 = vmatmul.mubr.bf16.gmra.mrb[0].mxu0 %v2293
        %v8792 = vpop.f32.mrb[0].mxu0
        %v8793 = vadd.f32 %v8752, %v8792
        %v8794 = vpop.f32.mrb[0].mxu0
        %v8795 = vadd.f32 %v8754, %v8794
        %v8796 = vpop.f32.mrb[0].mxu0
        %v8797 = vpop.f32.mrb[0].mxu0
        %8798 = vdwg.mxu0
        %8799 = vmatprep.subr.bf16.mxu0 %v6432
        %8800 = vmatpush1.bf16.msra.mxu0 %v6431
        %8801 = vmatprep.subr.bf16.mxu0 %v6464
        %8802 = vmatpush1.bf16.msra.mxu0 %v6463
        %8803 = vmatprep.subr.bf16.mxu0 %v6496
        %8804 = vmatpush1.bf16.msra.mxu0 %v6495
        %8805 = vmatprep.subr.bf16.mxu0 %v6528
        %8806 = vmatpush1.bf16.msra.mxu0 %v6527
        %8807 = vmatprep.subr.bf16.mxu0 %v6560
        %8808 = vmatpush1.bf16.msra.mxu0 %v6559
        %8809 = vmatprep.subr.bf16.mxu0 %v6592
        %8810 = vmatpush1.bf16.msra.mxu0 %v6591
        %8811 = vmatprep.subr.bf16.mxu0 %v6624
        %8812 = vmatpush1.bf16.msra.mxu0 %v6623
        %8813 = vmatprep.subr.bf16.mxu0 %v6656
        %8814 = vmatpush1.bf16.msra.mxu0 %v6655
        %8815 = vmatprep.subr.bf16.mxu0 %v6688
        %8816 = vmatpush1.bf16.msra.mxu0 %v6687
        %8817 = vmatprep.subr.bf16.mxu0 %v6720
        %8818 = vmatpush1.bf16.msra.mxu0 %v6719
        %8819 = vmatprep.subr.bf16.mxu0 %v6752
        %8820 = vmatpush1.bf16.msra.mxu0 %v6751
        %8821 = vmatprep.subr.bf16.mxu0 %v6784
        %8822 = vmatpush1.bf16.msra.mxu0 %v6783
        %8823 = vmatprep.subr.bf16.mxu0 %v6816
        %8824 = vmatpush1.bf16.msra.mxu0 %v6815
        %8825 = vmatprep.subr.bf16.mxu0 %v6848
        %8826 = vmatpush1.bf16.msra.mxu0 %v6847
        %8827 = vmatprep.subr.bf16.mxu0 %v6880
        %8828 = vmatpush1.bf16.msra.mxu0 %v6879
        %8829 = vmatprep.subr.bf16.mxu0 %v6912
        %8830 = vmatpush1.bf16.msra.mxu0 %v6911
        %8831 = vmatprep.mubr.bf16.mxu0 %v2292
        %8832 = vmatmul.mubr.bf16.gmra.mrb[0].mxu0 %v2291
        %v8833 = vpop.f32.mrb[0].mxu0
        %v8834 = vadd.f32 0.0, %v8833
        %v8835 = vpop.f32.mrb[0].mxu0
        %v8836 = vadd.f32 0.0, %v8835
        %v8837 = vpop.f32.mrb[0].mxu0
        %v8838 = vpop.f32.mrb[0].mxu0
        %8839 = vdwg.mxu0
        %8840 = vmatprep.subr.bf16.mxu0 %v6944
        %8841 = vmatpush1.bf16.msra.mxu0 %v6943
        %8842 = vmatprep.subr.bf16.mxu0 %v6976
        %8843 = vmatpush1.bf16.msra.mxu0 %v6975
        %8844 = vmatprep.subr.bf16.mxu0 %v7008
        %8845 = vmatpush1.bf16.msra.mxu0 %v7007
        %8846 = vmatprep.subr.bf16.mxu0 %v7040
        %8847 = vmatpush1.bf16.msra.mxu0 %v7039
        %8848 = vmatprep.subr.bf16.mxu0 %v7072
        %8849 = vmatpush1.bf16.msra.mxu0 %v7071
        %8850 = vmatprep.subr.bf16.mxu0 %v7104
        %8851 = vmatpush1.bf16.msra.mxu0 %v7103
        %8852 = vmatprep.subr.bf16.mxu0 %v7136
        %8853 = vmatpush1.bf16.msra.mxu0 %v7135
        %8854 = vmatprep.subr.bf16.mxu0 %v7168
        %8855 = vmatpush1.bf16.msra.mxu0 %v7167
        %8856 = vmatprep.subr.bf16.mxu0 %v7200
        %8857 = vmatpush1.bf16.msra.mxu0 %v7199
        %8858 = vmatprep.subr.bf16.mxu0 %v7232
        %8859 = vmatpush1.bf16.msra.mxu0 %v7231
        %8860 = vmatprep.subr.bf16.mxu0 %v7264
        %8861 = vmatpush1.bf16.msra.mxu0 %v7263
        %8862 = vmatprep.subr.bf16.mxu0 %v7296
        %8863 = vmatpush1.bf16.msra.mxu0 %v7295
        %8864 = vmatprep.subr.bf16.mxu0 %v7328
        %8865 = vmatpush1.bf16.msra.mxu0 %v7327
        %8866 = vmatprep.subr.bf16.mxu0 %v7360
        %8867 = vmatpush1.bf16.msra.mxu0 %v7359
        %8868 = vmatprep.subr.bf16.mxu0 %v7392
        %8869 = vmatpush1.bf16.msra.mxu0 %v7391
        %8870 = vmatprep.subr.bf16.mxu0 %v7424
        %8871 = vmatpush1.bf16.msra.mxu0 %v7423
        %8872 = vmatprep.mubr.bf16.mxu0 %v2294
        %8873 = vmatmul.mubr.bf16.gmra.mrb[0].mxu0 %v2293
        %v8874 = vpop.f32.mrb[0].mxu0
        %v8875 = vadd.f32 %v8834, %v8874
        %v8876 = vpop.f32.mrb[0].mxu0
        %v8877 = vadd.f32 %v8836, %v8876
        %v8878 = vpop.f32.mrb[0].mxu0
        %v8879 = vpop.f32.mrb[0].mxu0
        %8880 = vdwg.mxu0
        %8881 = vmatprep.subr.bf16.mxu0 %v6434
        %8882 = vmatpush1.bf16.msra.mxu0 %v6433
        %8883 = vmatprep.subr.bf16.mxu0 %v6466
        %8884 = vmatpush1.bf16.msra.mxu0 %v6465
        %8885 = vmatprep.subr.bf16.mxu0 %v6498
        %8886 = vmatpush1.bf16.msra.mxu0 %v6497
        %8887 = vmatprep.subr.bf16.mxu0 %v6530
        %8888 = vmatpush1.bf16.msra.mxu0 %v6529
        %8889 = vmatprep.subr.bf16.mxu0 %v6562
        %8890 = vmatpush1.bf16.msra.mxu0 %v6561
        %8891 = vmatprep.subr.bf16.mxu0 %v6594
        %8892 = vmatpush1.bf16.msra.mxu0 %v6593
        %8893 = vmatprep.subr.bf16.mxu0 %v6626
        %8894 = vmatpush1.bf16.msra.mxu0 %v6625
        %8895 = vmatprep.subr.bf16.mxu0 %v6658
        %8896 = vmatpush1.bf16.msra.mxu0 %v6657
        %8897 = vmatprep.subr.bf16.mxu0 %v6690
        %8898 = vmatpush1.bf16.msra.mxu0 %v6689
        %8899 = vmatprep.subr.bf16.mxu0 %v6722
        %8900 = vmatpush1.bf16.msra.mxu0 %v6721
        %8901 = vmatprep.subr.bf16.mxu0 %v6754
        %8902 = vmatpush1.bf16.msra.mxu0 %v6753
        %8903 = vmatprep.subr.bf16.mxu0 %v6786
        %8904 = vmatpush1.bf16.msra.mxu0 %v6785
        %8905 = vmatprep.subr.bf16.mxu0 %v6818
        %8906 = vmatpush1.bf16.msra.mxu0 %v6817
        %8907 = vmatprep.subr.bf16.mxu0 %v6850
        %8908 = vmatpush1.bf16.msra.mxu0 %v6849
        %8909 = vmatprep.subr.bf16.mxu0 %v6882
        %8910 = vmatpush1.bf16.msra.mxu0 %v6881
        %8911 = vmatprep.subr.bf16.mxu0 %v6914
        %8912 = vmatpush1.bf16.msra.mxu0 %v6913
        %8913 = vmatprep.mubr.bf16.mxu0 %v2292
        %8914 = vmatmul.mubr.bf16.gmra.mrb[0].mxu0 %v2291
        %v8915 = vpop.f32.mrb[0].mxu0
        %v8916 = vadd.f32 0.0, %v8915
        %v8917 = vpop.f32.mrb[0].mxu0
        %v8918 = vadd.f32 0.0, %v8917
        %v8919 = vpop.f32.mrb[0].mxu0
        %v8920 = vpop.f32.mrb[0].mxu0
        %8921 = vdwg.mxu0
        %8922 = vmatprep.subr.bf16.mxu0 %v6946
        %8923 = vmatpush1.bf16.msra.mxu0 %v6945
        %8924 = vmatprep.subr.bf16.mxu0 %v6978
        %8925 = vmatpush1.bf16.msra.mxu0 %v6977
        %8926 = vmatprep.subr.bf16.mxu0 %v7010
        %8927 = vmatpush1.bf16.msra.mxu0 %v7009
        %8928 = vmatprep.subr.bf16.mxu0 %v7042
        %8929 = vmatpush1.bf16.msra.mxu0 %v7041
        %8930 = vmatprep.subr.bf16.mxu0 %v7074
        %8931 = vmatpush1.bf16.msra.mxu0 %v7073
        %8932 = vmatprep.subr.bf16.mxu0 %v7106
        %8933 = vmatpush1.bf16.msra.mxu0 %v7105
        %8934 = vmatprep.subr.bf16.mxu0 %v7138
        %8935 = vmatpush1.bf16.msra.mxu0 %v7137
        %8936 = vmatprep.subr.bf16.mxu0 %v7170
        %8937 = vmatpush1.bf16.msra.mxu0 %v7169
        %8938 = vmatprep.subr.bf16.mxu0 %v7202
        %8939 = vmatpush1.bf16.msra.mxu0 %v7201
        %8940 = vmatprep.subr.bf16.mxu0 %v7234
        %8941 = vmatpush1.bf16.msra.mxu0 %v7233
        %8942 = vmatprep.subr.bf16.mxu0 %v7266
        %8943 = vmatpush1.bf16.msra.mxu0 %v7265
        %8944 = vmatprep.subr.bf16.mxu0 %v7298
        %8945 = vmatpush1.bf16.msra.mxu0 %v7297
        %8946 = vmatprep.subr.bf16.mxu0 %v7330
        %8947 = vmatpush1.bf16.msra.mxu0 %v7329
        %8948 = vmatprep.subr.bf16.mxu0 %v7362
        %8949 = vmatpush1.bf16.msra.mxu0 %v7361
        %8950 = vmatprep.subr.bf16.mxu0 %v7394
        %8951 = vmatpush1.bf16.msra.mxu0 %v7393
        %8952 = vmatprep.subr.bf16.mxu0 %v7426
        %8953 = vmatpush1.bf16.msra.mxu0 %v7425
        %8954 = vmatprep.mubr.bf16.mxu0 %v2294
        %8955 = vmatmul.mubr.bf16.gmra.mrb[0].mxu0 %v2293
        %v8956 = vpop.f32.mrb[0].mxu0
        %v8957 = vadd.f32 %v8916, %v8956
        %v8958 = vpop.f32.mrb[0].mxu0
        %v8959 = vadd.f32 %v8918, %v8958
        %v8960 = vpop.f32.mrb[0].mxu0
        %v8961 = vpop.f32.mrb[0].mxu0
        %8962 = vdwg.mxu0
        %8963 = vmatprep.subr.bf16.mxu0 %v6436
        %8964 = vmatpush1.bf16.msra.mxu0 %v6435
        %8965 = vmatprep.subr.bf16.mxu0 %v6468
        %8966 = vmatpush1.bf16.msra.mxu0 %v6467
        %8967 = vmatprep.subr.bf16.mxu0 %v6500
        %8968 = vmatpush1.bf16.msra.mxu0 %v6499
        %8969 = vmatprep.subr.bf16.mxu0 %v6532
        %8970 = vmatpush1.bf16.msra.mxu0 %v6531
        %8971 = vmatprep.subr.bf16.mxu0 %v6564
        %8972 = vmatpush1.bf16.msra.mxu0 %v6563
        %8973 = vmatprep.subr.bf16.mxu0 %v6596
        %8974 = vmatpush1.bf16.msra.mxu0 %v6595
        %8975 = vmatprep.subr.bf16.mxu0 %v6628
        %8976 = vmatpush1.bf16.msra.mxu0 %v6627
        %8977 = vmatprep.subr.bf16.mxu0 %v6660
        %8978 = vmatpush1.bf16.msra.mxu0 %v6659
        %8979 = vmatprep.subr.bf16.mxu0 %v6692
        %8980 = vmatpush1.bf16.msra.mxu0 %v6691
        %8981 = vmatprep.subr.bf16.mxu0 %v6724
        %8982 = vmatpush1.bf16.msra.mxu0 %v6723
        %8983 = vmatprep.subr.bf16.mxu0 %v6756
        %8984 = vmatpush1.bf16.msra.mxu0 %v6755
        %8985 = vmatprep.subr.bf16.mxu0 %v6788
        %8986 = vmatpush1.bf16.msra.mxu0 %v6787
        %8987 = vmatprep.subr.bf16.mxu0 %v6820
        %8988 = vmatpush1.bf16.msra.mxu0 %v6819
        %8989 = vmatprep.subr.bf16.mxu0 %v6852
        %8990 = vmatpush1.bf16.msra.mxu0 %v6851
        %8991 = vmatprep.subr.bf16.mxu0 %v6884
        %8992 = vmatpush1.bf16.msra.mxu0 %v6883
        %8993 = vmatprep.subr.bf16.mxu0 %v6916
        %8994 = vmatpush1.bf16.msra.mxu0 %v6915
        %8995 = vmatprep.mubr.bf16.mxu0 %v2292
        %8996 = vmatmul.mubr.bf16.gmra.mrb[0].mxu0 %v2291
        %v8997 = vpop.f32.mrb[0].mxu0
        %v8998 = vadd.f32 0.0, %v8997
        %v8999 = vpop.f32.mrb[0].mxu0
        %v9000 = vadd.f32 0.0, %v8999
        %v9001 = vpop.f32.mrb[0].mxu0
        %v9002 = vpop.f32.mrb[0].mxu0
        %9003 = vdwg.mxu0
        %9004 = vmatprep.subr.bf16.mxu0 %v6948
        %9005 = vmatpush1.bf16.msra.mxu0 %v6947
        %9006 = vmatprep.subr.bf16.mxu0 %v6980
        %9007 = vmatpush1.bf16.msra.mxu0 %v6979
        %9008 = vmatprep.subr.bf16.mxu0 %v7012
        %9009 = vmatpush1.bf16.msra.mxu0 %v7011
        %9010 = vmatprep.subr.bf16.mxu0 %v7044
        %9011 = vmatpush1.bf16.msra.mxu0 %v7043
        %9012 = vmatprep.subr.bf16.mxu0 %v7076
        %9013 = vmatpush1.bf16.msra.mxu0 %v7075
        %9014 = vmatprep.subr.bf16.mxu0 %v7108
        %9015 = vmatpush1.bf16.msra.mxu0 %v7107
        %9016 = vmatprep.subr.bf16.mxu0 %v7140
        %9017 = vmatpush1.bf16.msra.mxu0 %v7139
        %9018 = vmatprep.subr.bf16.mxu0 %v7172
        %9019 = vmatpush1.bf16.msra.mxu0 %v7171
        %9020 = vmatprep.subr.bf16.mxu0 %v7204
        %9021 = vmatpush1.bf16.msra.mxu0 %v7203
        %9022 = vmatprep.subr.bf16.mxu0 %v7236
        %9023 = vmatpush1.bf16.msra.mxu0 %v7235
        %9024 = vmatprep.subr.bf16.mxu0 %v7268
        %9025 = vmatpush1.bf16.msra.mxu0 %v7267
        %9026 = vmatprep.subr.bf16.mxu0 %v7300
        %9027 = vmatpush1.bf16.msra.mxu0 %v7299
        %9028 = vmatprep.subr.bf16.mxu0 %v7332
        %9029 = vmatpush1.bf16.msra.mxu0 %v7331
        %9030 = vmatprep.subr.bf16.mxu0 %v7364
        %9031 = vmatpush1.bf16.msra.mxu0 %v7363
        %9032 = vmatprep.subr.bf16.mxu0 %v7396
        %9033 = vmatpush1.bf16.msra.mxu0 %v7395
        %9034 = vmatprep.subr.bf16.mxu0 %v7428
        %9035 = vmatpush1.bf16.msra.mxu0 %v7427
        %9036 = vmatprep.mubr.bf16.mxu0 %v2294
        %9037 = vmatmul.mubr.bf16.gmra.mrb[0].mxu0 %v2293
        %v9038 = vpop.f32.mrb[0].mxu0
        %v9039 = vadd.f32 %v8998, %v9038
        %v9040 = vpop.f32.mrb[0].mxu0
        %v9041 = vadd.f32 %v9000, %v9040
        %v9042 = vpop.f32.mrb[0].mxu0
        %v9043 = vpop.f32.mrb[0].mxu0
        %9044 = vdwg.mxu0
        %9045 = vmatprep.subr.bf16.mxu0 %v6438
        %9046 = vmatpush1.bf16.msra.mxu0 %v6437
        %9047 = vmatprep.subr.bf16.mxu0 %v6470
        %9048 = vmatpush1.bf16.msra.mxu0 %v6469
        %9049 = vmatprep.subr.bf16.mxu0 %v6502
        %9050 = vmatpush1.bf16.msra.mxu0 %v6501
        %9051 = vmatprep.subr.bf16.mxu0 %v6534
        %9052 = vmatpush1.bf16.msra.mxu0 %v6533
        %9053 = vmatprep.subr.bf16.mxu0 %v6566
        %9054 = vmatpush1.bf16.msra.mxu0 %v6565
        %9055 = vmatprep.subr.bf16.mxu0 %v6598
        %9056 = vmatpush1.bf16.msra.mxu0 %v6597
        %9057 = vmatprep.subr.bf16.mxu0 %v6630
        %9058 = vmatpush1.bf16.msra.mxu0 %v6629
        %9059 = vmatprep.subr.bf16.mxu0 %v6662
        %9060 = vmatpush1.bf16.msra.mxu0 %v6661
        %9061 = vmatprep.subr.bf16.mxu0 %v6694
        %9062 = vmatpush1.bf16.msra.mxu0 %v6693
        %9063 = vmatprep.subr.bf16.mxu0 %v6726
        %9064 = vmatpush1.bf16.msra.mxu0 %v6725
        %9065 = vmatprep.subr.bf16.mxu0 %v6758
        %9066 = vmatpush1.bf16.msra.mxu0 %v6757
        %9067 = vmatprep.subr.bf16.mxu0 %v6790
        %9068 = vmatpush1.bf16.msra.mxu0 %v6789
        %9069 = vmatprep.subr.bf16.mxu0 %v6822
        %9070 = vmatpush1.bf16.msra.mxu0 %v6821
        %9071 = vmatprep.subr.bf16.mxu0 %v6854
        %9072 = vmatpush1.bf16.msra.mxu0 %v6853
        %9073 = vmatprep.subr.bf16.mxu0 %v6886
        %9074 = vmatpush1.bf16.msra.mxu0 %v6885
        %9075 = vmatprep.subr.bf16.mxu0 %v6918
        %9076 = vmatpush1.bf16.msra.mxu0 %v6917
        %9077 = vmatprep.mubr.bf16.mxu0 %v2292
        %9078 = vmatmul.mubr.bf16.gmra.mrb[0].mxu0 %v2291
        %v9079 = vpop.f32.mrb[0].mxu0
        %v9080 = vadd.f32 0.0, %v9079
        %v9081 = vpop.f32.mrb[0].mxu0
        %v9082 = vadd.f32 0.0, %v9081
        %v9083 = vpop.f32.mrb[0].mxu0
        %v9084 = vpop.f32.mrb[0].mxu0
        %9085 = vdwg.mxu0
        %9086 = vmatprep.subr.bf16.mxu0 %v6950
        %9087 = vmatpush1.bf16.msra.mxu0 %v6949
        %9088 = vmatprep.subr.bf16.mxu0 %v6982
        %9089 = vmatpush1.bf16.msra.mxu0 %v6981
        %9090 = vmatprep.subr.bf16.mxu0 %v7014
        %9091 = vmatpush1.bf16.msra.mxu0 %v7013
        %9092 = vmatprep.subr.bf16.mxu0 %v7046
        %9093 = vmatpush1.bf16.msra.mxu0 %v7045
        %9094 = vmatprep.subr.bf16.mxu0 %v7078
        %9095 = vmatpush1.bf16.msra.mxu0 %v7077
        %9096 = vmatprep.subr.bf16.mxu0 %v7110
        %9097 = vmatpush1.bf16.msra.mxu0 %v7109
        %9098 = vmatprep.subr.bf16.mxu0 %v7142
        %9099 = vmatpush1.bf16.msra.mxu0 %v7141
        %9100 = vmatprep.subr.bf16.mxu0 %v7174
        %9101 = vmatpush1.bf16.msra.mxu0 %v7173
        %9102 = vmatprep.subr.bf16.mxu0 %v7206
        %9103 = vmatpush1.bf16.msra.mxu0 %v7205
        %9104 = vmatprep.subr.bf16.mxu0 %v7238
        %9105 = vmatpush1.bf16.msra.mxu0 %v7237
        %9106 = vmatprep.subr.bf16.mxu0 %v7270
        %9107 = vmatpush1.bf16.msra.mxu0 %v7269
        %9108 = vmatprep.subr.bf16.mxu0 %v7302
        %9109 = vmatpush1.bf16.msra.mxu0 %v7301
        %9110 = vmatprep.subr.bf16.mxu0 %v7334
        %9111 = vmatpush1.bf16.msra.mxu0 %v7333
        %9112 = vmatprep.subr.bf16.mxu0 %v7366
        %9113 = vmatpush1.bf16.msra.mxu0 %v7365
        %9114 = vmatprep.subr.bf16.mxu0 %v7398
        %9115 = vmatpush1.bf16.msra.mxu0 %v7397
        %9116 = vmatprep.subr.bf16.mxu0 %v7430
        %9117 = vmatpush1.bf16.msra.mxu0 %v7429
        %9118 = vmatprep.mubr.bf16.mxu0 %v2294
        %9119 = vmatmul.mubr.bf16.gmra.mrb[0].mxu0 %v2293
        %v9120 = vpop.f32.mrb[0].mxu0
        %v9121 = vadd.f32 %v9080, %v9120
        %v9122 = vpop.f32.mrb[0].mxu0
        %v9123 = vadd.f32 %v9082, %v9122
        %v9124 = vpop.f32.mrb[0].mxu0
        %v9125 = vpop.f32.mrb[0].mxu0
        %9126 = vdwg.mxu0
        %9127 = vmatprep.subr.bf16.mxu0 %v6440
        %9128 = vmatpush1.bf16.msra.mxu0 %v6439
        %9129 = vmatprep.subr.bf16.mxu0 %v6472
        %9130 = vmatpush1.bf16.msra.mxu0 %v6471
        %9131 = vmatprep.subr.bf16.mxu0 %v6504
        %9132 = vmatpush1.bf16.msra.mxu0 %v6503
        %9133 = vmatprep.subr.bf16.mxu0 %v6536
        %9134 = vmatpush1.bf16.msra.mxu0 %v6535
        %9135 = vmatprep.subr.bf16.mxu0 %v6568
        %9136 = vmatpush1.bf16.msra.mxu0 %v6567
        %9137 = vmatprep.subr.bf16.mxu0 %v6600
        %9138 = vmatpush1.bf16.msra.mxu0 %v6599
        %9139 = vmatprep.subr.bf16.mxu0 %v6632
        %9140 = vmatpush1.bf16.msra.mxu0 %v6631
        %9141 = vmatprep.subr.bf16.mxu0 %v6664
        %9142 = vmatpush1.bf16.msra.mxu0 %v6663
        %9143 = vmatprep.subr.bf16.mxu0 %v6696
        %9144 = vmatpush1.bf16.msra.mxu0 %v6695
        %9145 = vmatprep.subr.bf16.mxu0 %v6728
        %9146 = vmatpush1.bf16.msra.mxu0 %v6727
        %9147 = vmatprep.subr.bf16.mxu0 %v6760
        %9148 = vmatpush1.bf16.msra.mxu0 %v6759
        %9149 = vmatprep.subr.bf16.mxu0 %v6792
        %9150 = vmatpush1.bf16.msra.mxu0 %v6791
        %9151 = vmatprep.subr.bf16.mxu0 %v6824
        %9152 = vmatpush1.bf16.msra.mxu0 %v6823
        %9153 = vmatprep.subr.bf16.mxu0 %v6856
        %9154 = vmatpush1.bf16.msra.mxu0 %v6855
        %9155 = vmatprep.subr.bf16.mxu0 %v6888
        %9156 = vmatpush1.bf16.msra.mxu0 %v6887
        %9157 = vmatprep.subr.bf16.mxu0 %v6920
        %9158 = vmatpush1.bf16.msra.mxu0 %v6919
        %9159 = vmatprep.mubr.bf16.mxu0 %v2292
        %9160 = vmatmul.mubr.bf16.gmra.mrb[0].mxu0 %v2291
        %v9161 = vpop.f32.mrb[0].mxu0
        %v9162 = vadd.f32 0.0, %v9161
        %v9163 = vpop.f32.mrb[0].mxu0
        %v9164 = vadd.f32 0.0, %v9163
        %v9165 = vpop.f32.mrb[0].mxu0
        %v9166 = vpop.f32.mrb[0].mxu0
        %9167 = vdwg.mxu0
        %9168 = vmatprep.subr.bf16.mxu0 %v6952
        %9169 = vmatpush1.bf16.msra.mxu0 %v6951
        %9170 = vmatprep.subr.bf16.mxu0 %v6984
        %9171 = vmatpush1.bf16.msra.mxu0 %v6983
        %9172 = vmatprep.subr.bf16.mxu0 %v7016
        %9173 = vmatpush1.bf16.msra.mxu0 %v7015
        %9174 = vmatprep.subr.bf16.mxu0 %v7048
        %9175 = vmatpush1.bf16.msra.mxu0 %v7047
        %9176 = vmatprep.subr.bf16.mxu0 %v7080
        %9177 = vmatpush1.bf16.msra.mxu0 %v7079
        %9178 = vmatprep.subr.bf16.mxu0 %v7112
        %9179 = vmatpush1.bf16.msra.mxu0 %v7111
        %9180 = vmatprep.subr.bf16.mxu0 %v7144
        %9181 = vmatpush1.bf16.msra.mxu0 %v7143
        %9182 = vmatprep.subr.bf16.mxu0 %v7176
        %9183 = vmatpush1.bf16.msra.mxu0 %v7175
        %9184 = vmatprep.subr.bf16.mxu0 %v7208
        %9185 = vmatpush1.bf16.msra.mxu0 %v7207
        %9186 = vmatprep.subr.bf16.mxu0 %v7240
        %9187 = vmatpush1.bf16.msra.mxu0 %v7239
        %9188 = vmatprep.subr.bf16.mxu0 %v7272
        %9189 = vmatpush1.bf16.msra.mxu0 %v7271
        %9190 = vmatprep.subr.bf16.mxu0 %v7304
        %9191 = vmatpush1.bf16.msra.mxu0 %v7303
        %9192 = vmatprep.subr.bf16.mxu0 %v7336
        %9193 = vmatpush1.bf16.msra.mxu0 %v7335
        %9194 = vmatprep.subr.bf16.mxu0 %v7368
        %9195 = vmatpush1.bf16.msra.mxu0 %v7367
        %9196 = vmatprep.subr.bf16.mxu0 %v7400
        %9197 = vmatpush1.bf16.msra.mxu0 %v7399
        %9198 = vmatprep.subr.bf16.mxu0 %v7432
        %9199 = vmatpush1.bf16.msra.mxu0 %v7431
        %9200 = vmatprep.mubr.bf16.mxu0 %v2294
        %9201 = vmatmul.mubr.bf16.gmra.mrb[0].mxu0 %v2293
        %v9202 = vpop.f32.mrb[0].mxu0
        %v9203 = vadd.f32 %v9162, %v9202
        %v9204 = vpop.f32.mrb[0].mxu0
        %v9205 = vadd.f32 %v9164, %v9204
        %v9206 = vpop.f32.mrb[0].mxu0
        %v9207 = vpop.f32.mrb[0].mxu0
        %9208 = vdwg.mxu0
        %9209 = vmatprep.subr.bf16.mxu0 %v6442
        %9210 = vmatpush1.bf16.msra.mxu0 %v6441
        %9211 = vmatprep.subr.bf16.mxu0 %v6474
        %9212 = vmatpush1.bf16.msra.mxu0 %v6473
        %9213 = vmatprep.subr.bf16.mxu0 %v6506
        %9214 = vmatpush1.bf16.msra.mxu0 %v6505
        %9215 = vmatprep.subr.bf16.mxu0 %v6538
        %9216 = vmatpush1.bf16.msra.mxu0 %v6537
        %9217 = vmatprep.subr.bf16.mxu0 %v6570
        %9218 = vmatpush1.bf16.msra.mxu0 %v6569
        %9219 = vmatprep.subr.bf16.mxu0 %v6602
        %9220 = vmatpush1.bf16.msra.mxu0 %v6601
        %9221 = vmatprep.subr.bf16.mxu0 %v6634
        %9222 = vmatpush1.bf16.msra.mxu0 %v6633
        %9223 = vmatprep.subr.bf16.mxu0 %v6666
        %9224 = vmatpush1.bf16.msra.mxu0 %v6665
        %9225 = vmatprep.subr.bf16.mxu0 %v6698
        %9226 = vmatpush1.bf16.msra.mxu0 %v6697
        %9227 = vmatprep.subr.bf16.mxu0 %v6730
        %9228 = vmatpush1.bf16.msra.mxu0 %v6729
        %9229 = vmatprep.subr.bf16.mxu0 %v6762
        %9230 = vmatpush1.bf16.msra.mxu0 %v6761
        %9231 = vmatprep.subr.bf16.mxu0 %v6794
        %9232 = vmatpush1.bf16.msra.mxu0 %v6793
        %9233 = vmatprep.subr.bf16.mxu0 %v6826
        %9234 = vmatpush1.bf16.msra.mxu0 %v6825
        %9235 = vmatprep.subr.bf16.mxu0 %v6858
        %9236 = vmatpush1.bf16.msra.mxu0 %v6857
        %9237 = vmatprep.subr.bf16.mxu0 %v6890
        %9238 = vmatpush1.bf16.msra.mxu0 %v6889
        %9239 = vmatprep.subr.bf16.mxu0 %v6922
        %9240 = vmatpush1.bf16.msra.mxu0 %v6921
        %9241 = vmatprep.mubr.bf16.mxu0 %v2292
        %9242 = vmatmul.mubr.bf16.gmra.mrb[0].mxu0 %v2291
        %v9243 = vpop.f32.mrb[0].mxu0
        %v9244 = vadd.f32 0.0, %v9243
        %v9245 = vpop.f32.mrb[0].mxu0
        %v9246 = vadd.f32 0.0, %v9245
        %v9247 = vpop.f32.mrb[0].mxu0
        %v9248 = vpop.f32.mrb[0].mxu0
        %9249 = vdwg.mxu0
        %9250 = vmatprep.subr.bf16.mxu0 %v6954
        %9251 = vmatpush1.bf16.msra.mxu0 %v6953
        %9252 = vmatprep.subr.bf16.mxu0 %v6986
        %9253 = vmatpush1.bf16.msra.mxu0 %v6985
        %9254 = vmatprep.subr.bf16.mxu0 %v7018
        %9255 = vmatpush1.bf16.msra.mxu0 %v7017
        %9256 = vmatprep.subr.bf16.mxu0 %v7050
        %9257 = vmatpush1.bf16.msra.mxu0 %v7049
        %9258 = vmatprep.subr.bf16.mxu0 %v7082
        %9259 = vmatpush1.bf16.msra.mxu0 %v7081
        %9260 = vmatprep.subr.bf16.mxu0 %v7114
        %9261 = vmatpush1.bf16.msra.mxu0 %v7113
        %9262 = vmatprep.subr.bf16.mxu0 %v7146
        %9263 = vmatpush1.bf16.msra.mxu0 %v7145
        %9264 = vmatprep.subr.bf16.mxu0 %v7178
        %9265 = vmatpush1.bf16.msra.mxu0 %v7177
        %9266 = vmatprep.subr.bf16.mxu0 %v7210
        %9267 = vmatpush1.bf16.msra.mxu0 %v7209
        %9268 = vmatprep.subr.bf16.mxu0 %v7242
        %9269 = vmatpush1.bf16.msra.mxu0 %v7241
        %9270 = vmatprep.subr.bf16.mxu0 %v7274
        %9271 = vmatpush1.bf16.msra.mxu0 %v7273
        %9272 = vmatprep.subr.bf16.mxu0 %v7306
        %9273 = vmatpush1.bf16.msra.mxu0 %v7305
        %9274 = vmatprep.subr.bf16.mxu0 %v7338
        %9275 = vmatpush1.bf16.msra.mxu0 %v7337
        %9276 = vmatprep.subr.bf16.mxu0 %v7370
        %9277 = vmatpush1.bf16.msra.mxu0 %v7369
        %9278 = vmatprep.subr.bf16.mxu0 %v7402
        %9279 = vmatpush1.bf16.msra.mxu0 %v7401
        %9280 = vmatprep.subr.bf16.mxu0 %v7434
        %9281 = vmatpush1.bf16.msra.mxu0 %v7433
        %9282 = vmatprep.mubr.bf16.mxu0 %v2294
        %9283 = vmatmul.mubr.bf16.gmra.mrb[0].mxu0 %v2293
        %v9284 = vpop.f32.mrb[0].mxu0
        %v9285 = vadd.f32 %v9244, %v9284
        %v9286 = vpop.f32.mrb[0].mxu0
        %v9287 = vadd.f32 %v9246, %v9286
        %v9288 = vpop.f32.mrb[0].mxu0
        %v9289 = vpop.f32.mrb[0].mxu0
        %9290 = vdwg.mxu0
        %9291 = vmatprep.subr.bf16.mxu0 %v6444
        %9292 = vmatpush1.bf16.msra.mxu0 %v6443
        %9293 = vmatprep.subr.bf16.mxu0 %v6476
        %9294 = vmatpush1.bf16.msra.mxu0 %v6475
        %9295 = vmatprep.subr.bf16.mxu0 %v6508
        %9296 = vmatpush1.bf16.msra.mxu0 %v6507
        %9297 = vmatprep.subr.bf16.mxu0 %v6540
        %9298 = vmatpush1.bf16.msra.mxu0 %v6539
        %9299 = vmatprep.subr.bf16.mxu0 %v6572
        %9300 = vmatpush1.bf16.msra.mxu0 %v6571
        %9301 = vmatprep.subr.bf16.mxu0 %v6604
        %9302 = vmatpush1.bf16.msra.mxu0 %v6603
        %9303 = vmatprep.subr.bf16.mxu0 %v6636
        %9304 = vmatpush1.bf16.msra.mxu0 %v6635
        %9305 = vmatprep.subr.bf16.mxu0 %v6668
        %9306 = vmatpush1.bf16.msra.mxu0 %v6667
        %9307 = vmatprep.subr.bf16.mxu0 %v6700
        %9308 = vmatpush1.bf16.msra.mxu0 %v6699
        %9309 = vmatprep.subr.bf16.mxu0 %v6732
        %9310 = vmatpush1.bf16.msra.mxu0 %v6731
        %9311 = vmatprep.subr.bf16.mxu0 %v6764
        %9312 = vmatpush1.bf16.msra.mxu0 %v6763
        %9313 = vmatprep.subr.bf16.mxu0 %v6796
        %9314 = vmatpush1.bf16.msra.mxu0 %v6795
        %9315 = vmatprep.subr.bf16.mxu0 %v6828
        %9316 = vmatpush1.bf16.msra.mxu0 %v6827
        %9317 = vmatprep.subr.bf16.mxu0 %v6860
        %9318 = vmatpush1.bf16.msra.mxu0 %v6859
        %9319 = vmatprep.subr.bf16.mxu0 %v6892
        %9320 = vmatpush1.bf16.msra.mxu0 %v6891
        %9321 = vmatprep.subr.bf16.mxu0 %v6924
        %9322 = vmatpush1.bf16.msra.mxu0 %v6923
        %9323 = vmatprep.mubr.bf16.mxu0 %v2292
        %9324 = vmatmul.mubr.bf16.gmra.mrb[0].mxu0 %v2291
        %v9325 = vpop.f32.mrb[0].mxu0
        %v9326 = vadd.f32 0.0, %v9325
        %v9327 = vpop.f32.mrb[0].mxu0
        %v9328 = vadd.f32 0.0, %v9327
        %v9329 = vpop.f32.mrb[0].mxu0
        %v9330 = vpop.f32.mrb[0].mxu0
        %9331 = vdwg.mxu0
        %9332 = vmatprep.subr.bf16.mxu0 %v6956
        %9333 = vmatpush1.bf16.msra.mxu0 %v6955
        %9334 = vmatprep.subr.bf16.mxu0 %v6988
        %9335 = vmatpush1.bf16.msra.mxu0 %v6987
        %9336 = vmatprep.subr.bf16.mxu0 %v7020
        %9337 = vmatpush1.bf16.msra.mxu0 %v7019
        %9338 = vmatprep.subr.bf16.mxu0 %v7052
        %9339 = vmatpush1.bf16.msra.mxu0 %v7051
        %9340 = vmatprep.subr.bf16.mxu0 %v7084
        %9341 = vmatpush1.bf16.msra.mxu0 %v7083
        %9342 = vmatprep.subr.bf16.mxu0 %v7116
        %9343 = vmatpush1.bf16.msra.mxu0 %v7115
        %9344 = vmatprep.subr.bf16.mxu0 %v7148
        %9345 = vmatpush1.bf16.msra.mxu0 %v7147
        %9346 = vmatprep.subr.bf16.mxu0 %v7180
        %9347 = vmatpush1.bf16.msra.mxu0 %v7179
        %9348 = vmatprep.subr.bf16.mxu0 %v7212
        %9349 = vmatpush1.bf16.msra.mxu0 %v7211
        %9350 = vmatprep.subr.bf16.mxu0 %v7244
        %9351 = vmatpush1.bf16.msra.mxu0 %v7243
        %9352 = vmatprep.subr.bf16.mxu0 %v7276
        %9353 = vmatpush1.bf16.msra.mxu0 %v7275
        %9354 = vmatprep.subr.bf16.mxu0 %v7308
        %9355 = vmatpush1.bf16.msra.mxu0 %v7307
        %9356 = vmatprep.subr.bf16.mxu0 %v7340
        %9357 = vmatpush1.bf16.msra.mxu0 %v7339
        %9358 = vmatprep.subr.bf16.mxu0 %v7372
        %9359 = vmatpush1.bf16.msra.mxu0 %v7371
        %9360 = vmatprep.subr.bf16.mxu0 %v7404
        %9361 = vmatpush1.bf16.msra.mxu0 %v7403
        %9362 = vmatprep.subr.bf16.mxu0 %v7436
        %9363 = vmatpush1.bf16.msra.mxu0 %v7435
        %9364 = vmatprep.mubr.bf16.mxu0 %v2294
        %9365 = vmatmul.mubr.bf16.gmra.mrb[0].mxu0 %v2293
        %v9366 = vpop.f32.mrb[0].mxu0
        %v9367 = vadd.f32 %v9326, %v9366
        %v9368 = vpop.f32.mrb[0].mxu0
        %v9369 = vadd.f32 %v9328, %v9368
        %v9370 = vpop.f32.mrb[0].mxu0
        %v9371 = vpop.f32.mrb[0].mxu0
        %9372 = vdwg.mxu0
        %9373 = vmatprep.subr.bf16.mxu0 %v6446
        %9374 = vmatpush1.bf16.msra.mxu0 %v6445
        %9375 = vmatprep.subr.bf16.mxu0 %v6478
        %9376 = vmatpush1.bf16.msra.mxu0 %v6477
        %9377 = vmatprep.subr.bf16.mxu0 %v6510
        %9378 = vmatpush1.bf16.msra.mxu0 %v6509
        %9379 = vmatprep.subr.bf16.mxu0 %v6542
        %9380 = vmatpush1.bf16.msra.mxu0 %v6541
        %9381 = vmatprep.subr.bf16.mxu0 %v6574
        %9382 = vmatpush1.bf16.msra.mxu0 %v6573
        %9383 = vmatprep.subr.bf16.mxu0 %v6606
        %9384 = vmatpush1.bf16.msra.mxu0 %v6605
        %9385 = vmatprep.subr.bf16.mxu0 %v6638
        %9386 = vmatpush1.bf16.msra.mxu0 %v6637
        %9387 = vmatprep.subr.bf16.mxu0 %v6670
        %9388 = vmatpush1.bf16.msra.mxu0 %v6669
        %9389 = vmatprep.subr.bf16.mxu0 %v6702
        %9390 = vmatpush1.bf16.msra.mxu0 %v6701
        %9391 = vmatprep.subr.bf16.mxu0 %v6734
        %9392 = vmatpush1.bf16.msra.mxu0 %v6733
        %9393 = vmatprep.subr.bf16.mxu0 %v6766
        %9394 = vmatpush1.bf16.msra.mxu0 %v6765
        %9395 = vmatprep.subr.bf16.mxu0 %v6798
        %9396 = vmatpush1.bf16.msra.mxu0 %v6797
        %9397 = vmatprep.subr.bf16.mxu0 %v6830
        %9398 = vmatpush1.bf16.msra.mxu0 %v6829
        %9399 = vmatprep.subr.bf16.mxu0 %v6862
        %9400 = vmatpush1.bf16.msra.mxu0 %v6861
        %9401 = vmatprep.subr.bf16.mxu0 %v6894
        %9402 = vmatpush1.bf16.msra.mxu0 %v6893
        %9403 = vmatprep.subr.bf16.mxu0 %v6926
        %9404 = vmatpush1.bf16.msra.mxu0 %v6925
        %9405 = vmatprep.mubr.bf16.mxu0 %v2292
        %9406 = vmatmul.mubr.bf16.gmra.mrb[0].mxu0 %v2291
        %v9407 = vpop.f32.mrb[0].mxu0
        %v9408 = vadd.f32 0.0, %v9407
        %v9409 = vpop.f32.mrb[0].mxu0
        %v9410 = vadd.f32 0.0, %v9409
        %v9411 = vpop.f32.mrb[0].mxu0
        %v9412 = vpop.f32.mrb[0].mxu0
        %9413 = vdwg.mxu0
        %9414 = vmatprep.subr.bf16.mxu0 %v6958
        %9415 = vmatpush1.bf16.msra.mxu0 %v6957
        %9416 = vmatprep.subr.bf16.mxu0 %v6990
        %9417 = vmatpush1.bf16.msra.mxu0 %v6989
        %9418 = vmatprep.subr.bf16.mxu0 %v7022
        %9419 = vmatpush1.bf16.msra.mxu0 %v7021
        %9420 = vmatprep.subr.bf16.mxu0 %v7054
        %9421 = vmatpush1.bf16.msra.mxu0 %v7053
        %9422 = vmatprep.subr.bf16.mxu0 %v7086
        %9423 = vmatpush1.bf16.msra.mxu0 %v7085
        %9424 = vmatprep.subr.bf16.mxu0 %v7118
        %9425 = vmatpush1.bf16.msra.mxu0 %v7117
        %9426 = vmatprep.subr.bf16.mxu0 %v7150
        %9427 = vmatpush1.bf16.msra.mxu0 %v7149
        %9428 = vmatprep.subr.bf16.mxu0 %v7182
        %9429 = vmatpush1.bf16.msra.mxu0 %v7181
        %9430 = vmatprep.subr.bf16.mxu0 %v7214
        %9431 = vmatpush1.bf16.msra.mxu0 %v7213
        %9432 = vmatprep.subr.bf16.mxu0 %v7246
        %9433 = vmatpush1.bf16.msra.mxu0 %v7245
        %9434 = vmatprep.subr.bf16.mxu0 %v7278
        %9435 = vmatpush1.bf16.msra.mxu0 %v7277
        %9436 = vmatprep.subr.bf16.mxu0 %v7310
        %9437 = vmatpush1.bf16.msra.mxu0 %v7309
        %9438 = vmatprep.subr.bf16.mxu0 %v7342
        %9439 = vmatpush1.bf16.msra.mxu0 %v7341
        %9440 = vmatprep.subr.bf16.mxu0 %v7374
        %9441 = vmatpush1.bf16.msra.mxu0 %v7373
        %9442 = vmatprep.subr.bf16.mxu0 %v7406
        %9443 = vmatpush1.bf16.msra.mxu0 %v7405
        %9444 = vmatprep.subr.bf16.mxu0 %v7438
        %9445 = vmatpush1.bf16.msra.mxu0 %v7437
        %9446 = vmatprep.mubr.bf16.mxu0 %v2294
        %9447 = vmatmul.mubr.bf16.gmra.mrb[0].mxu0 %v2293
        %v9448 = vpop.f32.mrb[0].mxu0
        %v9449 = vadd.f32 %v9408, %v9448
        %v9450 = vpop.f32.mrb[0].mxu0
        %v9451 = vadd.f32 %v9410, %v9450
        %v9452 = vpop.f32.mrb[0].mxu0
        %v9453 = vpop.f32.mrb[0].mxu0
        %9454 = vdwg.mxu0
        %9455 = vmatprep.subr.bf16.mxu0 %v6448
        %9456 = vmatpush1.bf16.msra.mxu0 %v6447
        %9457 = vmatprep.subr.bf16.mxu0 %v6480
        %9458 = vmatpush1.bf16.msra.mxu0 %v6479
        %9459 = vmatprep.subr.bf16.mxu0 %v6512
        %9460 = vmatpush1.bf16.msra.mxu0 %v6511
        %9461 = vmatprep.subr.bf16.mxu0 %v6544
        %9462 = vmatpush1.bf16.msra.mxu0 %v6543
        %9463 = vmatprep.subr.bf16.mxu0 %v6576
        %9464 = vmatpush1.bf16.msra.mxu0 %v6575
        %9465 = vmatprep.subr.bf16.mxu0 %v6608
        %9466 = vmatpush1.bf16.msra.mxu0 %v6607
        %9467 = vmatprep.subr.bf16.mxu0 %v6640
        %9468 = vmatpush1.bf16.msra.mxu0 %v6639
        %9469 = vmatprep.subr.bf16.mxu0 %v6672
        %9470 = vmatpush1.bf16.msra.mxu0 %v6671
        %9471 = vmatprep.subr.bf16.mxu0 %v6704
        %9472 = vmatpush1.bf16.msra.mxu0 %v6703
        %9473 = vmatprep.subr.bf16.mxu0 %v6736
        %9474 = vmatpush1.bf16.msra.mxu0 %v6735
        %9475 = vmatprep.subr.bf16.mxu0 %v6768
        %9476 = vmatpush1.bf16.msra.mxu0 %v6767
        %9477 = vmatprep.subr.bf16.mxu0 %v6800
        %9478 = vmatpush1.bf16.msra.mxu0 %v6799
        %9479 = vmatprep.subr.bf16.mxu0 %v6832
        %9480 = vmatpush1.bf16.msra.mxu0 %v6831
        %9481 = vmatprep.subr.bf16.mxu0 %v6864
        %9482 = vmatpush1.bf16.msra.mxu0 %v6863
        %9483 = vmatprep.subr.bf16.mxu0 %v6896
        %9484 = vmatpush1.bf16.msra.mxu0 %v6895
        %9485 = vmatprep.subr.bf16.mxu0 %v6928
        %9486 = vmatpush1.bf16.msra.mxu0 %v6927
        %9487 = vmatprep.mubr.bf16.mxu0 %v2292
        %9488 = vmatmul.mubr.bf16.gmra.mrb[0].mxu0 %v2291
        %v9489 = vpop.f32.mrb[0].mxu0
        %v9490 = vadd.f32 0.0, %v9489
        %v9491 = vpop.f32.mrb[0].mxu0
        %v9492 = vadd.f32 0.0, %v9491
        %v9493 = vpop.f32.mrb[0].mxu0
        %v9494 = vpop.f32.mrb[0].mxu0
        %9495 = vdwg.mxu0
        %9496 = vmatprep.subr.bf16.mxu0 %v6960
        %9497 = vmatpush1.bf16.msra.mxu0 %v6959
        %9498 = vmatprep.subr.bf16.mxu0 %v6992
        %9499 = vmatpush1.bf16.msra.mxu0 %v6991
        %9500 = vmatprep.subr.bf16.mxu0 %v7024
        %9501 = vmatpush1.bf16.msra.mxu0 %v7023
        %9502 = vmatprep.subr.bf16.mxu0 %v7056
        %9503 = vmatpush1.bf16.msra.mxu0 %v7055
        %9504 = vmatprep.subr.bf16.mxu0 %v7088
        %9505 = vmatpush1.bf16.msra.mxu0 %v7087
        %9506 = vmatprep.subr.bf16.mxu0 %v7120
        %9507 = vmatpush1.bf16.msra.mxu0 %v7119
        %9508 = vmatprep.subr.bf16.mxu0 %v7152
        %9509 = vmatpush1.bf16.msra.mxu0 %v7151
        %9510 = vmatprep.subr.bf16.mxu0 %v7184
        %9511 = vmatpush1.bf16.msra.mxu0 %v7183
        %9512 = vmatprep.subr.bf16.mxu0 %v7216
        %9513 = vmatpush1.bf16.msra.mxu0 %v7215
        %9514 = vmatprep.subr.bf16.mxu0 %v7248
        %9515 = vmatpush1.bf16.msra.mxu0 %v7247
        %9516 = vmatprep.subr.bf16.mxu0 %v7280
        %9517 = vmatpush1.bf16.msra.mxu0 %v7279
        %9518 = vmatprep.subr.bf16.mxu0 %v7312
        %9519 = vmatpush1.bf16.msra.mxu0 %v7311
        %9520 = vmatprep.subr.bf16.mxu0 %v7344
        %9521 = vmatpush1.bf16.msra.mxu0 %v7343
        %9522 = vmatprep.subr.bf16.mxu0 %v7376
        %9523 = vmatpush1.bf16.msra.mxu0 %v7375
        %9524 = vmatprep.subr.bf16.mxu0 %v7408
        %9525 = vmatpush1.bf16.msra.mxu0 %v7407
        %9526 = vmatprep.subr.bf16.mxu0 %v7440
        %9527 = vmatpush1.bf16.msra.mxu0 %v7439
        %9528 = vmatprep.mubr.bf16.mxu0 %v2294
        %9529 = vmatmul.mubr.bf16.gmra.mrb[0].mxu0 %v2293
        %v9530 = vpop.f32.mrb[0].mxu0
        %v9531 = vadd.f32 %v9490, %v9530
        %v9532 = vpop.f32.mrb[0].mxu0
        %v9533 = vadd.f32 %v9492, %v9532
        %v9534 = vpop.f32.mrb[0].mxu0
        %v9535 = vpop.f32.mrb[0].mxu0
        %9536 = vdwg.mxu0
        %9537 = vmatprep.subr.bf16.mxu0 %v6450
        %9538 = vmatpush1.bf16.msra.mxu0 %v6449
        %9539 = vmatprep.subr.bf16.mxu0 %v6482
        %9540 = vmatpush1.bf16.msra.mxu0 %v6481
        %9541 = vmatprep.subr.bf16.mxu0 %v6514
        %9542 = vmatpush1.bf16.msra.mxu0 %v6513
        %9543 = vmatprep.subr.bf16.mxu0 %v6546
        %9544 = vmatpush1.bf16.msra.mxu0 %v6545
        %9545 = vmatprep.subr.bf16.mxu0 %v6578
        %9546 = vmatpush1.bf16.msra.mxu0 %v6577
        %9547 = vmatprep.subr.bf16.mxu0 %v6610
        %9548 = vmatpush1.bf16.msra.mxu0 %v6609
        %9549 = vmatprep.subr.bf16.mxu0 %v6642
        %9550 = vmatpush1.bf16.msra.mxu0 %v6641
        %9551 = vmatprep.subr.bf16.mxu0 %v6674
        %9552 = vmatpush1.bf16.msra.mxu0 %v6673
        %9553 = vmatprep.subr.bf16.mxu0 %v6706
        %9554 = vmatpush1.bf16.msra.mxu0 %v6705
        %9555 = vmatprep.subr.bf16.mxu0 %v6738
        %9556 = vmatpush1.bf16.msra.mxu0 %v6737
        %9557 = vmatprep.subr.bf16.mxu0 %v6770
        %9558 = vmatpush1.bf16.msra.mxu0 %v6769
        %9559 = vmatprep.subr.bf16.mxu0 %v6802
        %9560 = vmatpush1.bf16.msra.mxu0 %v6801
        %9561 = vmatprep.subr.bf16.mxu0 %v6834
        %9562 = vmatpush1.bf16.msra.mxu0 %v6833
        %9563 = vmatprep.subr.bf16.mxu0 %v6866
        %9564 = vmatpush1.bf16.msra.mxu0 %v6865
        %9565 = vmatprep.subr.bf16.mxu0 %v6898
        %9566 = vmatpush1.bf16.msra.mxu0 %v6897
        %9567 = vmatprep.subr.bf16.mxu0 %v6930
        %9568 = vmatpush1.bf16.msra.mxu0 %v6929
        %9569 = vmatprep.mubr.bf16.mxu0 %v2292
        %9570 = vmatmul.mubr.bf16.gmra.mrb[0].mxu0 %v2291
        %v9571 = vpop.f32.mrb[0].mxu0
        %v9572 = vadd.f32 0.0, %v9571
        %v9573 = vpop.f32.mrb[0].mxu0
        %v9574 = vadd.f32 0.0, %v9573
        %v9575 = vpop.f32.mrb[0].mxu0
        %v9576 = vpop.f32.mrb[0].mxu0
        %9577 = vdwg.mxu0
        %9578 = vmatprep.subr.bf16.mxu0 %v6962
        %9579 = vmatpush1.bf16.msra.mxu0 %v6961
        %9580 = vmatprep.subr.bf16.mxu0 %v6994
        %9581 = vmatpush1.bf16.msra.mxu0 %v6993
        %9582 = vmatprep.subr.bf16.mxu0 %v7026
        %9583 = vmatpush1.bf16.msra.mxu0 %v7025
        %9584 = vmatprep.subr.bf16.mxu0 %v7058
        %9585 = vmatpush1.bf16.msra.mxu0 %v7057
        %9586 = vmatprep.subr.bf16.mxu0 %v7090
        %9587 = vmatpush1.bf16.msra.mxu0 %v7089
        %9588 = vmatprep.subr.bf16.mxu0 %v7122
        %9589 = vmatpush1.bf16.msra.mxu0 %v7121
        %9590 = vmatprep.subr.bf16.mxu0 %v7154
        %9591 = vmatpush1.bf16.msra.mxu0 %v7153
        %9592 = vmatprep.subr.bf16.mxu0 %v7186
        %9593 = vmatpush1.bf16.msra.mxu0 %v7185
        %9594 = vmatprep.subr.bf16.mxu0 %v7218
        %9595 = vmatpush1.bf16.msra.mxu0 %v7217
        %9596 = vmatprep.subr.bf16.mxu0 %v7250
        %9597 = vmatpush1.bf16.msra.mxu0 %v7249
        %9598 = vmatprep.subr.bf16.mxu0 %v7282
        %9599 = vmatpush1.bf16.msra.mxu0 %v7281
        %9600 = vmatprep.subr.bf16.mxu0 %v7314
        %9601 = vmatpush1.bf16.msra.mxu0 %v7313
        %9602 = vmatprep.subr.bf16.mxu0 %v7346
        %9603 = vmatpush1.bf16.msra.mxu0 %v7345
        %9604 = vmatprep.subr.bf16.mxu0 %v7378
        %9605 = vmatpush1.bf16.msra.mxu0 %v7377
        %9606 = vmatprep.subr.bf16.mxu0 %v7410
        %9607 = vmatpush1.bf16.msra.mxu0 %v7409
        %9608 = vmatprep.subr.bf16.mxu0 %v7442
        %9609 = vmatpush1.bf16.msra.mxu0 %v7441
        %9610 = vmatprep.mubr.bf16.mxu0 %v2294
        %9611 = vmatmul.mubr.bf16.gmra.mrb[0].mxu0 %v2293
        %v9612 = vpop.f32.mrb[0].mxu0
        %v9613 = vadd.f32 %v9572, %v9612
        %v9614 = vpop.f32.mrb[0].mxu0
        %v9615 = vadd.f32 %v9574, %v9614
        %v9616 = vpop.f32.mrb[0].mxu0
        %v9617 = vpop.f32.mrb[0].mxu0
        %9618 = vdwg.mxu0
        %9619 = vmatprep.subr.bf16.mxu0 %v6452
        %9620 = vmatpush1.bf16.msra.mxu0 %v6451
        %9621 = vmatprep.subr.bf16.mxu0 %v6484
        %9622 = vmatpush1.bf16.msra.mxu0 %v6483
        %9623 = vmatprep.subr.bf16.mxu0 %v6516
        %9624 = vmatpush1.bf16.msra.mxu0 %v6515
        %9625 = vmatprep.subr.bf16.mxu0 %v6548
        %9626 = vmatpush1.bf16.msra.mxu0 %v6547
        %9627 = vmatprep.subr.bf16.mxu0 %v6580
        %9628 = vmatpush1.bf16.msra.mxu0 %v6579
        %9629 = vmatprep.subr.bf16.mxu0 %v6612
        %9630 = vmatpush1.bf16.msra.mxu0 %v6611
        %9631 = vmatprep.subr.bf16.mxu0 %v6644
        %9632 = vmatpush1.bf16.msra.mxu0 %v6643
        %9633 = vmatprep.subr.bf16.mxu0 %v6676
        %9634 = vmatpush1.bf16.msra.mxu0 %v6675
        %9635 = vmatprep.subr.bf16.mxu0 %v6708
        %9636 = vmatpush1.bf16.msra.mxu0 %v6707
        %9637 = vmatprep.subr.bf16.mxu0 %v6740
        %9638 = vmatpush1.bf16.msra.mxu0 %v6739
        %9639 = vmatprep.subr.bf16.mxu0 %v6772
        %9640 = vmatpush1.bf16.msra.mxu0 %v6771
        %9641 = vmatprep.subr.bf16.mxu0 %v6804
        %9642 = vmatpush1.bf16.msra.mxu0 %v6803
        %9643 = vmatprep.subr.bf16.mxu0 %v6836
        %9644 = vmatpush1.bf16.msra.mxu0 %v6835
        %9645 = vmatprep.subr.bf16.mxu0 %v6868
        %9646 = vmatpush1.bf16.msra.mxu0 %v6867
        %9647 = vmatprep.subr.bf16.mxu0 %v6900
        %9648 = vmatpush1.bf16.msra.mxu0 %v6899
        %9649 = vmatprep.subr.bf16.mxu0 %v6932
        %9650 = vmatpush1.bf16.msra.mxu0 %v6931
        %9651 = vmatprep.mubr.bf16.mxu0 %v2292
        %9652 = vmatmul.mubr.bf16.gmra.mrb[0].mxu0 %v2291
        %v9653 = vpop.f32.mrb[0].mxu0
        %v9654 = vadd.f32 0.0, %v9653
        %v9655 = vpop.f32.mrb[0].mxu0
        %v9656 = vadd.f32 0.0, %v9655
        %v9657 = vpop.f32.mrb[0].mxu0
        %v9658 = vpop.f32.mrb[0].mxu0
        %9659 = vdwg.mxu0
        %9660 = vmatprep.subr.bf16.mxu0 %v6964
        %9661 = vmatpush1.bf16.msra.mxu0 %v6963
        %9662 = vmatprep.subr.bf16.mxu0 %v6996
        %9663 = vmatpush1.bf16.msra.mxu0 %v6995
        %9664 = vmatprep.subr.bf16.mxu0 %v7028
        %9665 = vmatpush1.bf16.msra.mxu0 %v7027
        %9666 = vmatprep.subr.bf16.mxu0 %v7060
        %9667 = vmatpush1.bf16.msra.mxu0 %v7059
        %9668 = vmatprep.subr.bf16.mxu0 %v7092
        %9669 = vmatpush1.bf16.msra.mxu0 %v7091
        %9670 = vmatprep.subr.bf16.mxu0 %v7124
        %9671 = vmatpush1.bf16.msra.mxu0 %v7123
        %9672 = vmatprep.subr.bf16.mxu0 %v7156
        %9673 = vmatpush1.bf16.msra.mxu0 %v7155
        %9674 = vmatprep.subr.bf16.mxu0 %v7188
        %9675 = vmatpush1.bf16.msra.mxu0 %v7187
        %9676 = vmatprep.subr.bf16.mxu0 %v7220
        %9677 = vmatpush1.bf16.msra.mxu0 %v7219
        %9678 = vmatprep.subr.bf16.mxu0 %v7252
        %9679 = vmatpush1.bf16.msra.mxu0 %v7251
        %9680 = vmatprep.subr.bf16.mxu0 %v7284
        %9681 = vmatpush1.bf16.msra.mxu0 %v7283
        %9682 = vmatprep.subr.bf16.mxu0 %v7316
        %9683 = vmatpush1.bf16.msra.mxu0 %v7315
        %9684 = vmatprep.subr.bf16.mxu0 %v7348
        %9685 = vmatpush1.bf16.msra.mxu0 %v7347
        %9686 = vmatprep.subr.bf16.mxu0 %v7380
        %9687 = vmatpush1.bf16.msra.mxu0 %v7379
        %9688 = vmatprep.subr.bf16.mxu0 %v7412
        %9689 = vmatpush1.bf16.msra.mxu0 %v7411
        %9690 = vmatprep.subr.bf16.mxu0 %v7444
        %9691 = vmatpush1.bf16.msra.mxu0 %v7443
        %9692 = vmatprep.mubr.bf16.mxu0 %v2294
        %9693 = vmatmul.mubr.bf16.gmra.mrb[0].mxu0 %v2293
        %v9694 = vpop.f32.mrb[0].mxu0
        %v9695 = vadd.f32 %v9654, %v9694
        %v9696 = vpop.f32.mrb[0].mxu0
        %v9697 = vadd.f32 %v9656, %v9696
        %v9698 = vpop.f32.mrb[0].mxu0
        %v9699 = vpop.f32.mrb[0].mxu0
        %9700 = vdwg.mxu0
        %9701 = vmatprep.subr.bf16.mxu0 %v6454
        %9702 = vmatpush1.bf16.msra.mxu0 %v6453
        %9703 = vmatprep.subr.bf16.mxu0 %v6486
        %9704 = vmatpush1.bf16.msra.mxu0 %v6485
        %9705 = vmatprep.subr.bf16.mxu0 %v6518
        %9706 = vmatpush1.bf16.msra.mxu0 %v6517
        %9707 = vmatprep.subr.bf16.mxu0 %v6550
        %9708 = vmatpush1.bf16.msra.mxu0 %v6549
        %9709 = vmatprep.subr.bf16.mxu0 %v6582
        %9710 = vmatpush1.bf16.msra.mxu0 %v6581
        %9711 = vmatprep.subr.bf16.mxu0 %v6614
        %9712 = vmatpush1.bf16.msra.mxu0 %v6613
        %9713 = vmatprep.subr.bf16.mxu0 %v6646
        %9714 = vmatpush1.bf16.msra.mxu0 %v6645
        %9715 = vmatprep.subr.bf16.mxu0 %v6678
        %9716 = vmatpush1.bf16.msra.mxu0 %v6677
        %9717 = vmatprep.subr.bf16.mxu0 %v6710
        %9718 = vmatpush1.bf16.msra.mxu0 %v6709
        %9719 = vmatprep.subr.bf16.mxu0 %v6742
        %9720 = vmatpush1.bf16.msra.mxu0 %v6741
        %9721 = vmatprep.subr.bf16.mxu0 %v6774
        %9722 = vmatpush1.bf16.msra.mxu0 %v6773
        %9723 = vmatprep.subr.bf16.mxu0 %v6806
        %9724 = vmatpush1.bf16.msra.mxu0 %v6805
        %9725 = vmatprep.subr.bf16.mxu0 %v6838
        %9726 = vmatpush1.bf16.msra.mxu0 %v6837
        %9727 = vmatprep.subr.bf16.mxu0 %v6870
        %9728 = vmatpush1.bf16.msra.mxu0 %v6869
        %9729 = vmatprep.subr.bf16.mxu0 %v6902
        %9730 = vmatpush1.bf16.msra.mxu0 %v6901
        %9731 = vmatprep.subr.bf16.mxu0 %v6934
        %9732 = vmatpush1.bf16.msra.mxu0 %v6933
        %9733 = vmatprep.mubr.bf16.mxu0 %v2292
        %9734 = vmatmul.mubr.bf16.gmra.mrb[0].mxu0 %v2291
        %v9735 = vpop.f32.mrb[0].mxu0
        %v9736 = vadd.f32 0.0, %v9735
        %v9737 = vpop.f32.mrb[0].mxu0
        %v9738 = vadd.f32 0.0, %v9737
        %v9739 = vpop.f32.mrb[0].mxu0
        %v9740 = vpop.f32.mrb[0].mxu0
        %9741 = vdwg.mxu0
        %9742 = vmatprep.subr.bf16.mxu0 %v6966
        %9743 = vmatpush1.bf16.msra.mxu0 %v6965
        %9744 = vmatprep.subr.bf16.mxu0 %v6998
        %9745 = vmatpush1.bf16.msra.mxu0 %v6997
        %9746 = vmatprep.subr.bf16.mxu0 %v7030
        %9747 = vmatpush1.bf16.msra.mxu0 %v7029
        %9748 = vmatprep.subr.bf16.mxu0 %v7062
        %9749 = vmatpush1.bf16.msra.mxu0 %v7061
        %9750 = vmatprep.subr.bf16.mxu0 %v7094
        %9751 = vmatpush1.bf16.msra.mxu0 %v7093
        %9752 = vmatprep.subr.bf16.mxu0 %v7126
        %9753 = vmatpush1.bf16.msra.mxu0 %v7125
        %9754 = vmatprep.subr.bf16.mxu0 %v7158
        %9755 = vmatpush1.bf16.msra.mxu0 %v7157
        %9756 = vmatprep.subr.bf16.mxu0 %v7190
        %9757 = vmatpush1.bf16.msra.mxu0 %v7189
        %9758 = vmatprep.subr.bf16.mxu0 %v7222
        %9759 = vmatpush1.bf16.msra.mxu0 %v7221
        %9760 = vmatprep.subr.bf16.mxu0 %v7254
        %9761 = vmatpush1.bf16.msra.mxu0 %v7253
        %9762 = vmatprep.subr.bf16.mxu0 %v7286
        %9763 = vmatpush1.bf16.msra.mxu0 %v7285
        %9764 = vmatprep.subr.bf16.mxu0 %v7318
        %9765 = vmatpush1.bf16.msra.mxu0 %v7317
        %9766 = vmatprep.subr.bf16.mxu0 %v7350
        %9767 = vmatpush1.bf16.msra.mxu0 %v7349
        %9768 = vmatprep.subr.bf16.mxu0 %v7382
        %9769 = vmatpush1.bf16.msra.mxu0 %v7381
        %9770 = vmatprep.subr.bf16.mxu0 %v7414
        %9771 = vmatpush1.bf16.msra.mxu0 %v7413
        %9772 = vmatprep.subr.bf16.mxu0 %v7446
        %9773 = vmatpush1.bf16.msra.mxu0 %v7445
        %9774 = vmatprep.mubr.bf16.mxu0 %v2294
        %9775 = vmatmul.mubr.bf16.gmra.mrb[0].mxu0 %v2293
        %v9776 = vpop.f32.mrb[0].mxu0
        %v9777 = vadd.f32 %v9736, %v9776
        %v9778 = vpop.f32.mrb[0].mxu0
        %v9779 = vadd.f32 %v9738, %v9778
        %v9780 = vpop.f32.mrb[0].mxu0
        %v9781 = vpop.f32.mrb[0].mxu0
        %9782 = vdwg.mxu0
        %v9783 = vadd.f32 %v2295, %v8547
        %v9784 = vadd.f32 %v2296, %v8549
        %v9785 = vadd.f32 %v2297, %v8629
        %v9786 = vadd.f32 %v2298, %v8631
        %v9787 = vadd.f32 %v2299, %v8711
        %v9788 = vadd.f32 %v2300, %v8713
        %v9789 = vadd.f32 %v2301, %v8793
        %v9790 = vadd.f32 %v2302, %v8795
        %v9791 = vadd.f32 %v2303, %v8875
        %v9792 = vadd.f32 %v2304, %v8877
        %v9793 = vadd.f32 %v2305, %v8957
        %v9794 = vadd.f32 %v2306, %v8959
        %v9795 = vadd.f32 %v2307, %v9039
        %v9796 = vadd.f32 %v2308, %v9041
        %v9797 = vadd.f32 %v2309, %v9121
        %v9798 = vadd.f32 %v2310, %v9123
        %v9799 = vadd.f32 %v2311, %v9203
        %v9800 = vadd.f32 %v2312, %v9205
        %v9801 = vadd.f32 %v2313, %v9285
        %v9802 = vadd.f32 %v2314, %v9287
        %v9803 = vadd.f32 %v2315, %v9367
        %v9804 = vadd.f32 %v2316, %v9369
        %v9805 = vadd.f32 %v2317, %v9449
        %v9806 = vadd.f32 %v2318, %v9451
        %v9807 = vadd.f32 %v2319, %v9531
        %v9808 = vadd.f32 %v2320, %v9533
        %v9809 = vadd.f32 %v2321, %v9613
        %v9810 = vadd.f32 %v2322, %v9615
        %v9811 = vadd.f32 %v2323, %v9695
        %v9812 = vadd.f32 %v2324, %v9697
        %v9813 = vadd.f32 %v2325, %v9777
        %v9814 = vadd.f32 %v2326, %v9779
        %9815 = vst [vmem:[%s332] sm:$0xff] %v9783
        %9816 = vst [vmem:[%s332 + $0x8] sm:$0xff] %v9784
        %9817 = vst [vmem:[%s332 + $0x10] sm:$0xff] %v9785
        %9818 = vst [vmem:[%s332 + $0x18] sm:$0xff] %v9786
        %9819 = vst [vmem:[%s332 + $0x20] sm:$0xff] %v9787
        %9820 = vst [vmem:[%s332 + $0x28] sm:$0xff] %v9788
        %9821 = vst [vmem:[%s332 + $0x30] sm:$0xff] %v9789
        %9822 = vst [vmem:[%s332 + $0x38] sm:$0xff] %v9790
        %9823 = vst [vmem:[%s332 + $0x40] sm:$0xff] %v9791
        %9824 = vst [vmem:[%s332 + $0x48] sm:$0xff] %v9792
        %9825 = vst [vmem:[%s332 + $0x50] sm:$0xff] %v9793
        %9826 = vst [vmem:[%s332 + $0x58] sm:$0xff] %v9794
        %9827 = vst [vmem:[%s332 + $0x60] sm:$0xff] %v9795
        %9828 = vst [vmem:[%s332 + $0x68] sm:$0xff] %v9796
        %9829 = vst [vmem:[%s332 + $0x70] sm:$0xff] %v9797
        %9830 = vst [vmem:[%s332 + $0x78] sm:$0xff] %v9798
        %9831 = vst [vmem:[%s332 + $0x80] sm:$0xff] %v9799
        %9832 = vst [vmem:[%s332 + $0x88] sm:$0xff] %v9800
        %9833 = vst [vmem:[%s332 + $0x90] sm:$0xff] %v9801
        %9834 = vst [vmem:[%s332 + $0x98] sm:$0xff] %v9802
        %9835 = vst [vmem:[%s332 + $0xa0] sm:$0xff] %v9803
        %9836 = vst [vmem:[%s332 + $0xa8] sm:$0xff] %v9804
        %9837 = vst [vmem:[%s332 + $0xb0] sm:$0xff] %v9805
        %9838 = vst [vmem:[%s332 + $0xb8] sm:$0xff] %v9806
        %9839 = vst [vmem:[%s332 + $0xc0] sm:$0xff] %v9807
        %9840 = vst [vmem:[%s332 + $0xc8] sm:$0xff] %v9808
        %9841 = vst [vmem:[%s332 + $0xd0] sm:$0xff] %v9809
        %9842 = vst [vmem:[%s332 + $0xd8] sm:$0xff] %v9810
        %9843 = vst [vmem:[%s332 + $0xe0] sm:$0xff] %v9811
        %9844 = vst [vmem:[%s332 + $0xe8] sm:$0xff] %v9812
        %9845 = vst [vmem:[%s332 + $0xf0] sm:$0xff] %v9813
        %9846 = vst [vmem:[%s332 + $0xf8] sm:$0xff] %v9814
        %p9847 = scmp.lt.s32.totalorder %s25, 1
        %s9848 = scalar_select %p9847, %s25, 1
        %s9849 = smul.addr %s9848, 32
        %s9850 = smul.addr %s9849, 8
        %s9851 = scalar_lea.vmem %s4, %s9850
        // Predicated region
        $region53: #{forward.2} parent=35 // pred_check
          %p9852 = pneg %p162
        $region54: #{forward.2} parent=35 // pred_check_branch
          %9854 = sbr.rel (%p9852) target = $region56
        $region55: #{forward.2} parent=35 // pred_region
          _
        $region56: #{forward.2} parent=35 // pred_fallthru
          _
      $region36: #{forward.2} parent=5 // pred_fallthru
        _
      %p9855 = scmp.le.s32.totalorder 2, %s16
      // Predicated region
      $region57: #{forward.2} parent=5 // pred_check
        %p9856 = pneg %p9855
      $region58: #{forward.2} parent=5 // pred_check_branch
        %9858 = sbr.rel (%p9856) target = $region60
      $region59: #{forward.2} parent=5 // pred_region
        %s9859 = ssub.s32 %s16, 2
        // Predicated region
        $region61: #{forward.2} parent=59 // pred_check
          %p9860 = pneg %p168
        $region62: #{forward.2} parent=59 // pred_check_branch
          %9862 = sbr.rel (%p9860) target = $region64
        $region63: #{forward.2} parent=59 // pred_region
          %p9863 = scmp.lt.s32.totalorder %s27, 1
          %s9864 = scalar_select %p9863, %s27, 1
          %s9865 = smul.addr %s9864, 32
          %s9866 = smul.addr %s9865, 8
          %s9867 = scalar_lea.vmem %s4, %s9866
        $region64: #{forward.2} parent=59 // pred_fallthru
          _
      $region60: #{forward.2} parent=5 // pred_fallthru
        _
    $region6: #{forward.2} parent=1 // loop_footer
      %s20 = sadd.s32 1, %s16
    $region7: #{forward.2} parent=1 // loop_footer_branch
      %15 = sbr.rel target = $region3
    $region8: #{forward.2} parent=1 // loop_exit
      _
    %9868 = vsyncpa [#allocation3], 1
    %s9869 = scalar_lea.sflag [#allocation3], 1
    %9870 = vsyncpa %s9869, 1
    %9871 = vsyncpa [#allocation5], 1
    %s9872 = scalar_lea.sflag [#allocation5], 1
    %9873 = vsyncpa %s9872, 1

</llo_original>
